<compile_context>
chip_gen: v7x
topology: tpu7x:2x2x1
jax: 0.10.0
libtpu: 0.0.40
codegen_flags: <defaults>
</compile_context>

<pallas_src>
import functools

import jax
import jax.numpy as jnp
from jax import lax
from jax.experimental import pallas as pl
from jax.experimental.pallas import tpu as pltpu

KSIZE = 7
PAD = 3
NTAPS = KSIZE * KSIZE  # 49


def _cdiv(a, b):
    return -(-a // b)


def _reflect_pad_into(src_ref, dst_ref, H, W):
    """Reflect-pad (PAD each side of H and W) src_ref (H, W, C) into
    dst_ref (H+2*PAD, W+2*PAD, C); both are VMEM refs."""
    dst_ref[PAD:PAD + H, PAD:PAD + W, :] = src_ref[...]
    # Rows (leading axis): padded row PAD-d mirrors source row d (edge excluded).
    for d in range(1, PAD + 1):
        dst_ref[PAD - d:PAD - d + 1, PAD:PAD + W, :] = src_ref[d:d + 1, :, :]
        dst_ref[PAD + H - 1 + d:PAD + H + d, PAD:PAD + W, :] = (
            src_ref[H - 1 - d:H - d, :, :])
    # Columns (sublane axis): mirror already row-padded columns of dst.
    for d in range(1, PAD + 1):
        dst_ref[:, PAD - d:PAD - d + 1, :] = dst_ref[:, PAD + d:PAD + d + 1, :]
        dst_ref[:, PAD + W - 1 + d:PAD + W + d, :] = (
            dst_ref[:, PAD + W - 1 - d:PAD + W - d, :])


def _pixel_attention_kernel(x_ref, p_ref, w_ref, b_ref, o_ref,
                            xp_ref, pp_ref, *, H, W, CT, RS, NCHAINS):
    # x_ref, p_ref, o_ref : (H, W, CT)       channels-last blocks (CT tiles B*C)
    # w_ref               : (2*49, CT)       conv weights, tap-major, VMEM
    # b_ref               : (1, CT)          bias, VMEM
    # xp_ref, pp_ref      : (H+6, W+6, CT)   VMEM scratch (reflect-padded)
    _reflect_pad_into(x_ref, xp_ref, H, W)
    _reflect_pad_into(p_ref, pp_ref, H, W)

    bias = jnp.reshape(b_ref[0, :], (1, 1, CT))

    @pl.loop(0, H // RS)
    def _strip(s):
        r0 = pl.multiple_of(s * RS, RS)
        # Independent accumulator chains sized from the vreg budget.
        accs = [jnp.zeros((RS, W, CT), jnp.float32) for _ in range(NCHAINS)]
        for kh in range(KSIZE):
            xrows = xp_ref[pl.ds(r0 + kh, RS), :, :]    # (RS, W+6, CT)
            prows = pp_ref[pl.ds(r0 + kh, RS), :, :]
            for kw in range(KSIZE):
                tap = kh * KSIZE + kw
                wx = jnp.reshape(w_ref[tap, :], (1, 1, CT))
                wp = jnp.reshape(w_ref[NTAPS + tap, :], (1, 1, CT))
                xwin = xrows[:, kw:kw + W, :]           # sublane shift only
                pwin = prows[:, kw:kw + W, :]
                i = (2 * tap) % NCHAINS
                j = (2 * tap + 1) % NCHAINS
                accs[i] = accs[i] + wx * xwin
                accs[j] = accs[j] + wp * pwin
        if NCHAINS == 4:
            total = (accs[0] + accs[1]) + (accs[2] + accs[3])
        else:
            total = accs[0]
            for a in accs[1:]:
                total = total + a
        total = total + bias
        o_ref[pl.ds(r0, RS), :, :] = jax.nn.sigmoid(total).astype(o_ref.dtype)


def _pick_channel_tile(N, H, W):
    """Largest lane-dense (multiple-of-128) divisor of N (or N itself) whose
    per-step working set fits the VMEM budget."""
    hp, wp = H + 2 * PAD, W + 2 * PAD

    def need(ct):
        plane = H * W * ct * 4
        pad_plane = hp * wp * ct * 4
        return (3 * 2 * plane                     # two inputs + output, double-buffered
                + 2 * pad_plane                   # reflect-padded scratch planes
                + 2 * 2 * (2 * NTAPS + 1) * ct * 4)  # weights + bias

    cands = [d for d in range(128, N + 1, 128) if N % d == 0]
    cands.append(N)
    cands = sorted(set(cands))
    budget = 40 * 1024 * 1024
    fitting = [c for c in cands if need(c) <= budget]
    ct = max(fitting) if fitting else min(cands)
    return ct, need(ct)


def _plan_strip(H, W, CT):
    """Pick row-strip height and accumulator-chain count from a vreg budget."""
    lane_tiles = _cdiv(CT, 128)
    per_row_out = _cdiv(W, 8) * lane_tiles            # acc vregs per row per chain
    per_row_pad = _cdiv(W + 2 * PAD, 8) * lane_tiles  # loaded-window vregs per row
    rs = 1
    for cand in (8, 4, 2, 1):
        if H % cand:
            continue
        if cand * per_row_out <= 16 and 2 * cand * per_row_pad <= 24:
            rs = cand
            break
    chains = 1
    for cand in (4, 2, 1):
        if cand * rs * per_row_out <= 16:
            chains = cand
            break
    return rs, chains


def pixel_attention(x, pattn1, weight, bias):
    """x, pattn1: (B, C, H, W); weight: (C, 2, 7, 7); bias: (C,). NCHW in/out."""
    B, C, H, W = x.shape
    assert pattn1.shape == x.shape
    assert weight.shape == (C, 2, KSIZE, KSIZE)
    assert bias.shape == (C,)
    # Reflect padding of 3 requires at least 4 rows/cols (same as PyTorch).
    assert H >= PAD + 1 and W >= PAD + 1

    N = B * C
    ct, need = _pick_channel_tile(N, H, W)
    rs, nchains = _plan_strip(H, W, ct)
    hp, wp = H + 2 * PAD, W + 2 * PAD

    # Layout plumbing: NCHW -> (H, W, B*C) so batch*channel sits on the lane
    # axis (dense lanes even for small C, fewer grid steps).
    x_cl = jnp.transpose(x, (2, 3, 0, 1)).reshape(H, W, N).astype(jnp.float32)
    p_cl = jnp.transpose(pattn1, (2, 3, 0, 1)).reshape(H, W, N).astype(jnp.float32)
    # (C, 2, 7, 7) -> (2*49, C): w_slab[t*49 + kh*7 + kw, c] = weight[c, t, kh, kw]
    w_slab = jnp.transpose(weight.reshape(C, 2 * NTAPS), (1, 0)).astype(jnp.float32)
    # Replicate per batch so column b*C + c carries channel c's taps.
    w_slab = jnp.tile(w_slab, (1, B))                       # (2*49, B*C)
    b_row = jnp.tile(bias.reshape(1, C).astype(jnp.float32), (1, B))  # (1, B*C)

    vmem_limit = int(min(48 << 20, max(32 << 20, need + (4 << 20))))

    kernel = functools.partial(_pixel_attention_kernel,
                               H=H, W=W, CT=ct, RS=rs, NCHAINS=nchains)

    out_cl = pl.pallas_call(
        kernel,
        out_shape=jax.ShapeDtypeStruct((H, W, N), jnp.float32),
        grid_spec=pltpu.PrefetchScalarGridSpec(
            num_scalar_prefetch=0,
            grid=(N // ct,),
            in_specs=[
                pl.BlockSpec((H, W, ct), lambda cb: (0, 0, cb)),
                pl.BlockSpec((H, W, ct), lambda cb: (0, 0, cb)),
                pl.BlockSpec((2 * NTAPS, ct), lambda cb: (0, cb)),
                pl.BlockSpec((1, ct), lambda cb: (0, cb)),
            ],
            out_specs=pl.BlockSpec((H, W, ct), lambda cb: (0, 0, cb)),
            scratch_shapes=[
                pltpu.VMEM((hp, wp, ct), jnp.float32),
                pltpu.VMEM((hp, wp, ct), jnp.float32),
            ],
        ),
        compiler_params=pltpu.CompilerParams(
            dimension_semantics=("parallel",),
            vmem_limit_bytes=vmem_limit),
    )(x_cl, p_cl, w_slab, b_row)

    # TODO(synk): for very large H*W per channel tile, add an H-strip grid axis
    # with halo handling (and an inner W tile) instead of one full plane per step.
    out = out_cl.reshape(H, W, B, C)
    return jnp.transpose(out, (2, 3, 0, 1))


def _reference(x, pattn1, weight, bias):
    """Pure-JAX reference mirroring the PyTorch forward."""
    B, C, H, W = x.shape
    # cat along new dim=2 then rearrange 'b c t h w -> b (c t) h w'
    x2 = jnp.stack([x, pattn1], axis=2).reshape(B, 2 * C, H, W)
    x2 = jnp.pad(x2, ((0, 0), (0, 0), (PAD, PAD), (PAD, PAD)), mode="reflect")
    out = lax.conv_general_dilated(
        x2, weight, window_strides=(1, 1), padding="VALID",
        dimension_numbers=("NCHW", "OIHW", "NCHW"),
        feature_group_count=C)
    return jax.nn.sigmoid(out + bias[None, :, None, None])


if __name__ == "__main__":
    B, C, H, W = 2, 4, 16, 16  # dim = C = 4

    key = jax.random.PRNGKey(0)
    kx, kp, kw, kb = jax.random.split(key, 4)

    x = jax.random.normal(kx, (B, C, H, W), dtype=jnp.float32)
    pattn1 = jax.random.normal(kp, (B, C, H, W), dtype=jnp.float32)
    # Conv2d(2*dim, dim, 7, groups=dim) -> weight (dim, 2, 7, 7), bias (dim,)
    weight = 0.1 * jax.random.normal(kw, (C, 2, KSIZE, KSIZE), dtype=jnp.float32)
    bias = 0.1 * jax.random.normal(kb, (C,), dtype=jnp.float32)

    out = pixel_attention(x, pattn1, weight, bias)
    out = jax.block_until_ready(out)

    ref = _reference(x, pattn1, weight, bias)
    assert out.shape == (B, C, H, W)
    assert jnp.max(jnp.abs(out - ref)) < 2e-5, "mismatch vs reference"

    print("KERNEL_OK")
</pallas_src>

<mosaic_0001>
module attributes {stable_mosaic.version = 11 : i64} {
  func.func @_pixel_attention_kernel(%arg0: i32, %arg1: memref<16x16x8xf32, #tpu.memory_space<vmem>>, %arg2: memref<16x16x8xf32, #tpu.memory_space<vmem>>, %arg3: memref<98x8xf32, #tpu.memory_space<vmem>>, %arg4: memref<1x8xf32, #tpu.memory_space<vmem>>, %arg5: memref<16x16x8xf32, #tpu.memory_space<vmem>>, %arg6: memref<22x22x8xf32, #tpu.memory_space<vmem>>, %arg7: memref<22x22x8xf32, #tpu.memory_space<vmem>>) attributes {dimension_semantics = [#tpu.dimension_semantics<parallel>], iteration_bounds = array<i64: 1>, scalar_prefetch = 0 : i64, scratch_operands = 2 : i64, tpu.core_type = #tpu.core_type<tc>, window_params = [{transform_indices = @transform_0, window_bounds = array<i64: 16, 16, 8>}, {transform_indices = @transform_1, window_bounds = array<i64: 16, 16, 8>}, {transform_indices = @transform_2, window_bounds = array<i64: 98, 8>}, {transform_indices = @transform_3, window_bounds = array<i64: 1, 8>}, {transform_indices = @transform_4, window_bounds = array<i64: 16, 16, 8>}]} {
    %c0 = arith.constant 0 : index
    %c0_0 = arith.constant 0 : index
    %c0_1 = arith.constant 0 : index
    %0 = vector.load %arg1[%c0, %c0_0, %c0_1] : memref<16x16x8xf32, #tpu.memory_space<vmem>>, vector<16x16x8xf32>
    %c3 = arith.constant 3 : index
    %c3_2 = arith.constant 3 : index
    %c0_3 = arith.constant 0 : index
    %1 = vector.load %arg6[%c3, %c3_2, %c0_3] : memref<22x22x8xf32, #tpu.memory_space<vmem>>, vector<16x16x8xf32>
    tpu.vector_store %arg6[%c3, %c3_2, %c0_3], %0 {strides = array<i32>} : memref<22x22x8xf32, #tpu.memory_space<vmem>>, vector<16x16x8xf32>,
    %c1 = arith.constant 1 : index
    %c0_4 = arith.constant 0 : index
    %c0_5 = arith.constant 0 : index
    %2 = vector.load %arg1[%c1, %c0_4, %c0_5] : memref<16x16x8xf32, #tpu.memory_space<vmem>>, vector<1x16x8xf32>
    %c2 = arith.constant 2 : index
    %c3_6 = arith.constant 3 : index
    %c0_7 = arith.constant 0 : index
    %3 = vector.load %arg6[%c2, %c3_6, %c0_7] : memref<22x22x8xf32, #tpu.memory_space<vmem>>, vector<1x16x8xf32>
    tpu.vector_store %arg6[%c2, %c3_6, %c0_7], %2 {strides = array<i32>} : memref<22x22x8xf32, #tpu.memory_space<vmem>>, vector<1x16x8xf32>,
    %c14 = arith.constant 14 : index
    %c0_8 = arith.constant 0 : index
    %c0_9 = arith.constant 0 : index
    %4 = vector.load %arg1[%c14, %c0_8, %c0_9] : memref<16x16x8xf32, #tpu.memory_space<vmem>>, vector<1x16x8xf32>
    %c19 = arith.constant 19 : index
    %c3_10 = arith.constant 3 : index
    %c0_11 = arith.constant 0 : index
    %5 = vector.load %arg6[%c19, %c3_10, %c0_11] : memref<22x22x8xf32, #tpu.memory_space<vmem>>, vector<1x16x8xf32>
    tpu.vector_store %arg6[%c19, %c3_10, %c0_11], %4 {strides = array<i32>} : memref<22x22x8xf32, #tpu.memory_space<vmem>>, vector<1x16x8xf32>,
    %c2_12 = arith.constant 2 : index
    %c0_13 = arith.constant 0 : index
    %c0_14 = arith.constant 0 : index
    %6 = vector.load %arg1[%c2_12, %c0_13, %c0_14] : memref<16x16x8xf32, #tpu.memory_space<vmem>>, vector<1x16x8xf32>
    %c1_15 = arith.constant 1 : index
    %c3_16 = arith.constant 3 : index
    %c0_17 = arith.constant 0 : index
    %7 = vector.load %arg6[%c1_15, %c3_16, %c0_17] : memref<22x22x8xf32, #tpu.memory_space<vmem>>, vector<1x16x8xf32>
    tpu.vector_store %arg6[%c1_15, %c3_16, %c0_17], %6 {strides = array<i32>} : memref<22x22x8xf32, #tpu.memory_space<vmem>>, vector<1x16x8xf32>,
    %c13 = arith.constant 13 : index
    %c0_18 = arith.constant 0 : index
    %c0_19 = arith.constant 0 : index
    %8 = vector.load %arg1[%c13, %c0_18, %c0_19] : memref<16x16x8xf32, #tpu.memory_space<vmem>>, vector<1x16x8xf32>
    %c20 = arith.constant 20 : index
    %c3_20 = arith.constant 3 : index
    %c0_21 = arith.constant 0 : index
    %9 = vector.load %arg6[%c20, %c3_20, %c0_21] : memref<22x22x8xf32, #tpu.memory_space<vmem>>, vector<1x16x8xf32>
    tpu.vector_store %arg6[%c20, %c3_20, %c0_21], %8 {strides = array<i32>} : memref<22x22x8xf32, #tpu.memory_space<vmem>>, vector<1x16x8xf32>,
    %c3_22 = arith.constant 3 : index
    %c0_23 = arith.constant 0 : index
    %c0_24 = arith.constant 0 : index
    %10 = vector.load %arg1[%c3_22, %c0_23, %c0_24] : memref<16x16x8xf32, #tpu.memory_space<vmem>>, vector<1x16x8xf32>
    %c0_25 = arith.constant 0 : index
    %c3_26 = arith.constant 3 : index
    %c0_27 = arith.constant 0 : index
    %11 = vector.load %arg6[%c0_25, %c3_26, %c0_27] : memref<22x22x8xf32, #tpu.memory_space<vmem>>, vector<1x16x8xf32>
    tpu.vector_store %arg6[%c0_25, %c3_26, %c0_27], %10 {strides = array<i32>} : memref<22x22x8xf32, #tpu.memory_space<vmem>>, vector<1x16x8xf32>,
    %c12 = arith.constant 12 : index
    %c0_28 = arith.constant 0 : index
    %c0_29 = arith.constant 0 : index
    %12 = vector.load %arg1[%c12, %c0_28, %c0_29] : memref<16x16x8xf32, #tpu.memory_space<vmem>>, vector<1x16x8xf32>
    %c21 = arith.constant 21 : index
    %c3_30 = arith.constant 3 : index
    %c0_31 = arith.constant 0 : index
    %13 = vector.load %arg6[%c21, %c3_30, %c0_31] : memref<22x22x8xf32, #tpu.memory_space<vmem>>, vector<1x16x8xf32>
    tpu.vector_store %arg6[%c21, %c3_30, %c0_31], %12 {strides = array<i32>} : memref<22x22x8xf32, #tpu.memory_space<vmem>>, vector<1x16x8xf32>,
    %c0_32 = arith.constant 0 : index
    %c4 = arith.constant 4 : index
    %c0_33 = arith.constant 0 : index
    %14 = vector.load %arg6[%c0_32, %c4, %c0_33] : memref<22x22x8xf32, #tpu.memory_space<vmem>>, vector<22x1x8xf32>
    %c0_34 = arith.constant 0 : index
    %c2_35 = arith.constant 2 : index
    %c0_36 = arith.constant 0 : index
    %15 = vector.load %arg6[%c0_34, %c2_35, %c0_36] : memref<22x22x8xf32, #tpu.memory_space<vmem>>, vector<22x1x8xf32>
    tpu.vector_store %arg6[%c0_34, %c2_35, %c0_36], %14 {strides = array<i32>} : memref<22x22x8xf32, #tpu.memory_space<vmem>>, vector<22x1x8xf32>,
    %c0_37 = arith.constant 0 : index
    %c17 = arith.constant 17 : index
    %c0_38 = arith.constant 0 : index
    %16 = vector.load %arg6[%c0_37, %c17, %c0_38] : memref<22x22x8xf32, #tpu.memory_space<vmem>>, vector<22x1x8xf32>
    %c0_39 = arith.constant 0 : index
    %c19_40 = arith.constant 19 : index
    %c0_41 = arith.constant 0 : index
    %17 = vector.load %arg6[%c0_39, %c19_40, %c0_41] : memref<22x22x8xf32, #tpu.memory_space<vmem>>, vector<22x1x8xf32>
    tpu.vector_store %arg6[%c0_39, %c19_40, %c0_41], %16 {strides = array<i32>} : memref<22x22x8xf32, #tpu.memory_space<vmem>>, vector<22x1x8xf32>,
    %c0_42 = arith.constant 0 : index
    %c5 = arith.constant 5 : index
    %c0_43 = arith.constant 0 : index
    %18 = vector.load %arg6[%c0_42, %c5, %c0_43] : memref<22x22x8xf32, #tpu.memory_space<vmem>>, vector<22x1x8xf32>
    %c0_44 = arith.constant 0 : index
    %c1_45 = arith.constant 1 : index
    %c0_46 = arith.constant 0 : index
    %19 = vector.load %arg6[%c0_44, %c1_45, %c0_46] : memref<22x22x8xf32, #tpu.memory_space<vmem>>, vector<22x1x8xf32>
    tpu.vector_store %arg6[%c0_44, %c1_45, %c0_46], %18 {strides = array<i32>} : memref<22x22x8xf32, #tpu.memory_space<vmem>>, vector<22x1x8xf32>,
    %c0_47 = arith.constant 0 : index
    %c16 = arith.constant 16 : index
    %c0_48 = arith.constant 0 : index
    %20 = vector.load %arg6[%c0_47, %c16, %c0_48] : memref<22x22x8xf32, #tpu.memory_space<vmem>>, vector<22x1x8xf32>
    %c0_49 = arith.constant 0 : index
    %c20_50 = arith.constant 20 : index
    %c0_51 = arith.constant 0 : index
    %21 = vector.load %arg6[%c0_49, %c20_50, %c0_51] : memref<22x22x8xf32, #tpu.memory_space<vmem>>, vector<22x1x8xf32>
    tpu.vector_store %arg6[%c0_49, %c20_50, %c0_51], %20 {strides = array<i32>} : memref<22x22x8xf32, #tpu.memory_space<vmem>>, vector<22x1x8xf32>,
    %c0_52 = arith.constant 0 : index
    %c6 = arith.constant 6 : index
    %c0_53 = arith.constant 0 : index
    %22 = vector.load %arg6[%c0_52, %c6, %c0_53] : memref<22x22x8xf32, #tpu.memory_space<vmem>>, vector<22x1x8xf32>
    %c0_54 = arith.constant 0 : index
    %c0_55 = arith.constant 0 : index
    %c0_56 = arith.constant 0 : index
    %23 = vector.load %arg6[%c0_54, %c0_55, %c0_56] : memref<22x22x8xf32, #tpu.memory_space<vmem>>, vector<22x1x8xf32>
    tpu.vector_store %arg6[%c0_54, %c0_55, %c0_56], %22 {strides = array<i32>} : memref<22x22x8xf32, #tpu.memory_space<vmem>>, vector<22x1x8xf32>,
    %c0_57 = arith.constant 0 : index
    %c15 = arith.constant 15 : index
    %c0_58 = arith.constant 0 : index
    %24 = vector.load %arg6[%c0_57, %c15, %c0_58] : memref<22x22x8xf32, #tpu.memory_space<vmem>>, vector<22x1x8xf32>
    %c0_59 = arith.constant 0 : index
    %c21_60 = arith.constant 21 : index
    %c0_61 = arith.constant 0 : index
    %25 = vector.load %arg6[%c0_59, %c21_60, %c0_61] : memref<22x22x8xf32, #tpu.memory_space<vmem>>, vector<22x1x8xf32>
    tpu.vector_store %arg6[%c0_59, %c21_60, %c0_61], %24 {strides = array<i32>} : memref<22x22x8xf32, #tpu.memory_space<vmem>>, vector<22x1x8xf32>,
    %c0_62 = arith.constant 0 : index
    %c0_63 = arith.constant 0 : index
    %c0_64 = arith.constant 0 : index
    %26 = vector.load %arg2[%c0_62, %c0_63, %c0_64] : memref<16x16x8xf32, #tpu.memory_space<vmem>>, vector<16x16x8xf32>
    %c3_65 = arith.constant 3 : index
    %c3_66 = arith.constant 3 : index
    %c0_67 = arith.constant 0 : index
    %27 = vector.load %arg7[%c3_65, %c3_66, %c0_67] : memref<22x22x8xf32, #tpu.memory_space<vmem>>, vector<16x16x8xf32>
    tpu.vector_store %arg7[%c3_65, %c3_66, %c0_67], %26 {strides = array<i32>} : memref<22x22x8xf32, #tpu.memory_space<vmem>>, vector<16x16x8xf32>,
    %c1_68 = arith.constant 1 : index
    %c0_69 = arith.constant 0 : index
    %c0_70 = arith.constant 0 : index
    %28 = vector.load %arg2[%c1_68, %c0_69, %c0_70] : memref<16x16x8xf32, #tpu.memory_space<vmem>>, vector<1x16x8xf32>
    %c2_71 = arith.constant 2 : index
    %c3_72 = arith.constant 3 : index
    %c0_73 = arith.constant 0 : index
    %29 = vector.load %arg7[%c2_71, %c3_72, %c0_73] : memref<22x22x8xf32, #tpu.memory_space<vmem>>, vector<1x16x8xf32>
    tpu.vector_store %arg7[%c2_71, %c3_72, %c0_73], %28 {strides = array<i32>} : memref<22x22x8xf32, #tpu.memory_space<vmem>>, vector<1x16x8xf32>,
    %c14_74 = arith.constant 14 : index
    %c0_75 = arith.constant 0 : index
    %c0_76 = arith.constant 0 : index
    %30 = vector.load %arg2[%c14_74, %c0_75, %c0_76] : memref<16x16x8xf32, #tpu.memory_space<vmem>>, vector<1x16x8xf32>
    %c19_77 = arith.constant 19 : index
    %c3_78 = arith.constant 3 : index
    %c0_79 = arith.constant 0 : index
    %31 = vector.load %arg7[%c19_77, %c3_78, %c0_79] : memref<22x22x8xf32, #tpu.memory_space<vmem>>, vector<1x16x8xf32>
    tpu.vector_store %arg7[%c19_77, %c3_78, %c0_79], %30 {strides = array<i32>} : memref<22x22x8xf32, #tpu.memory_space<vmem>>, vector<1x16x8xf32>,
    %c2_80 = arith.constant 2 : index
    %c0_81 = arith.constant 0 : index
    %c0_82 = arith.constant 0 : index
    %32 = vector.load %arg2[%c2_80, %c0_81, %c0_82] : memref<16x16x8xf32, #tpu.memory_space<vmem>>, vector<1x16x8xf32>
    %c1_83 = arith.constant 1 : index
    %c3_84 = arith.constant 3 : index
    %c0_85 = arith.constant 0 : index
    %33 = vector.load %arg7[%c1_83, %c3_84, %c0_85] : memref<22x22x8xf32, #tpu.memory_space<vmem>>, vector<1x16x8xf32>
    tpu.vector_store %arg7[%c1_83, %c3_84, %c0_85], %32 {strides = array<i32>} : memref<22x22x8xf32, #tpu.memory_space<vmem>>, vector<1x16x8xf32>,
    %c13_86 = arith.constant 13 : index
    %c0_87 = arith.constant 0 : index
    %c0_88 = arith.constant 0 : index
    %34 = vector.load %arg2[%c13_86, %c0_87, %c0_88] : memref<16x16x8xf32, #tpu.memory_space<vmem>>, vector<1x16x8xf32>
    %c20_89 = arith.constant 20 : index
    %c3_90 = arith.constant 3 : index
    %c0_91 = arith.constant 0 : index
    %35 = vector.load %arg7[%c20_89, %c3_90, %c0_91] : memref<22x22x8xf32, #tpu.memory_space<vmem>>, vector<1x16x8xf32>
    tpu.vector_store %arg7[%c20_89, %c3_90, %c0_91], %34 {strides = array<i32>} : memref<22x22x8xf32, #tpu.memory_space<vmem>>, vector<1x16x8xf32>,
    %c3_92 = arith.constant 3 : index
    %c0_93 = arith.constant 0 : index
    %c0_94 = arith.constant 0 : index
    %36 = vector.load %arg2[%c3_92, %c0_93, %c0_94] : memref<16x16x8xf32, #tpu.memory_space<vmem>>, vector<1x16x8xf32>
    %c0_95 = arith.constant 0 : index
    %c3_96 = arith.constant 3 : index
    %c0_97 = arith.constant 0 : index
    %37 = vector.load %arg7[%c0_95, %c3_96, %c0_97] : memref<22x22x8xf32, #tpu.memory_space<vmem>>, vector<1x16x8xf32>
    tpu.vector_store %arg7[%c0_95, %c3_96, %c0_97], %36 {strides = array<i32>} : memref<22x22x8xf32, #tpu.memory_space<vmem>>, vector<1x16x8xf32>,
    %c12_98 = arith.constant 12 : index
    %c0_99 = arith.constant 0 : index
    %c0_100 = arith.constant 0 : index
    %38 = vector.load %arg2[%c12_98, %c0_99, %c0_100] : memref<16x16x8xf32, #tpu.memory_space<vmem>>, vector<1x16x8xf32>
    %c21_101 = arith.constant 21 : index
    %c3_102 = arith.constant 3 : index
    %c0_103 = arith.constant 0 : index
    %39 = vector.load %arg7[%c21_101, %c3_102, %c0_103] : memref<22x22x8xf32, #tpu.memory_space<vmem>>, vector<1x16x8xf32>
    tpu.vector_store %arg7[%c21_101, %c3_102, %c0_103], %38 {strides = array<i32>} : memref<22x22x8xf32, #tpu.memory_space<vmem>>, vector<1x16x8xf32>,
    %c0_104 = arith.constant 0 : index
    %c4_105 = arith.constant 4 : index
    %c0_106 = arith.constant 0 : index
    %40 = vector.load %arg7[%c0_104, %c4_105, %c0_106] : memref<22x22x8xf32, #tpu.memory_space<vmem>>, vector<22x1x8xf32>
    %c0_107 = arith.constant 0 : index
    %c2_108 = arith.constant 2 : index
    %c0_109 = arith.constant 0 : index
    %41 = vector.load %arg7[%c0_107, %c2_108, %c0_109] : memref<22x22x8xf32, #tpu.memory_space<vmem>>, vector<22x1x8xf32>
    tpu.vector_store %arg7[%c0_107, %c2_108, %c0_109], %40 {strides = array<i32>} : memref<22x22x8xf32, #tpu.memory_space<vmem>>, vector<22x1x8xf32>,
    %c0_110 = arith.constant 0 : index
    %c17_111 = arith.constant 17 : index
    %c0_112 = arith.constant 0 : index
    %42 = vector.load %arg7[%c0_110, %c17_111, %c0_112] : memref<22x22x8xf32, #tpu.memory_space<vmem>>, vector<22x1x8xf32>
    %c0_113 = arith.constant 0 : index
    %c19_114 = arith.constant 19 : index
    %c0_115 = arith.constant 0 : index
    %43 = vector.load %arg7[%c0_113, %c19_114, %c0_115] : memref<22x22x8xf32, #tpu.memory_space<vmem>>, vector<22x1x8xf32>
    tpu.vector_store %arg7[%c0_113, %c19_114, %c0_115], %42 {strides = array<i32>} : memref<22x22x8xf32, #tpu.memory_space<vmem>>, vector<22x1x8xf32>,
    %c0_116 = arith.constant 0 : index
    %c5_117 = arith.constant 5 : index
    %c0_118 = arith.constant 0 : index
    %44 = vector.load %arg7[%c0_116, %c5_117, %c0_118] : memref<22x22x8xf32, #tpu.memory_space<vmem>>, vector<22x1x8xf32>
    %c0_119 = arith.constant 0 : index
    %c1_120 = arith.constant 1 : index
    %c0_121 = arith.constant 0 : index
    %45 = vector.load %arg7[%c0_119, %c1_120, %c0_121] : memref<22x22x8xf32, #tpu.memory_space<vmem>>, vector<22x1x8xf32>
    tpu.vector_store %arg7[%c0_119, %c1_120, %c0_121], %44 {strides = array<i32>} : memref<22x22x8xf32, #tpu.memory_space<vmem>>, vector<22x1x8xf32>,
    %c0_122 = arith.constant 0 : index
    %c16_123 = arith.constant 16 : index
    %c0_124 = arith.constant 0 : index
    %46 = vector.load %arg7[%c0_122, %c16_123, %c0_124] : memref<22x22x8xf32, #tpu.memory_space<vmem>>, vector<22x1x8xf32>
    %c0_125 = arith.constant 0 : index
    %c20_126 = arith.constant 20 : index
    %c0_127 = arith.constant 0 : index
    %47 = vector.load %arg7[%c0_125, %c20_126, %c0_127] : memref<22x22x8xf32, #tpu.memory_space<vmem>>, vector<22x1x8xf32>
    tpu.vector_store %arg7[%c0_125, %c20_126, %c0_127], %46 {strides = array<i32>} : memref<22x22x8xf32, #tpu.memory_space<vmem>>, vector<22x1x8xf32>,
    %c0_128 = arith.constant 0 : index
    %c6_129 = arith.constant 6 : index
    %c0_130 = arith.constant 0 : index
    %48 = vector.load %arg7[%c0_128, %c6_129, %c0_130] : memref<22x22x8xf32, #tpu.memory_space<vmem>>, vector<22x1x8xf32>
    %c0_131 = arith.constant 0 : index
    %c0_132 = arith.constant 0 : index
    %c0_133 = arith.constant 0 : index
    %49 = vector.load %arg7[%c0_131, %c0_132, %c0_133] : memref<22x22x8xf32, #tpu.memory_space<vmem>>, vector<22x1x8xf32>
    tpu.vector_store %arg7[%c0_131, %c0_132, %c0_133], %48 {strides = array<i32>} : memref<22x22x8xf32, #tpu.memory_space<vmem>>, vector<22x1x8xf32>,
    %c0_134 = arith.constant 0 : index
    %c15_135 = arith.constant 15 : index
    %c0_136 = arith.constant 0 : index
    %50 = vector.load %arg7[%c0_134, %c15_135, %c0_136] : memref<22x22x8xf32, #tpu.memory_space<vmem>>, vector<22x1x8xf32>
    %c0_137 = arith.constant 0 : index
    %c21_138 = arith.constant 21 : index
    %c0_139 = arith.constant 0 : index
    %51 = vector.load %arg7[%c0_137, %c21_138, %c0_139] : memref<22x22x8xf32, #tpu.memory_space<vmem>>, vector<22x1x8xf32>
    tpu.vector_store %arg7[%c0_137, %c21_138, %c0_139], %50 {strides = array<i32>} : memref<22x22x8xf32, #tpu.memory_space<vmem>>, vector<22x1x8xf32>,
    %c0_140 = arith.constant 0 : index
    %c0_141 = arith.constant 0 : index
    %52 = vector.load %arg4[%c0_140, %c0_141] : memref<1x8xf32, #tpu.memory_space<vmem>>, vector<1x8xf32>
    %53 = vector.shape_cast %52 : vector<1x8xf32> to vector<8xf32>
    %54 = vector.shape_cast %53 : vector<8xf32> to vector<1x1x8xf32>
    %c0_i32 = arith.constant 0 : i32
    %c4_i32 = arith.constant 4 : i32
    %55 = arith.addi %c0_i32, %c4_i32 : i32
    %c1_i32 = arith.constant 1 : i32
    scf.for %arg8 = %c0_i32 to %55 step %c1_i32  : i32 {
      %c1_i32_143 = arith.constant 1 : i32
      %56 = arith.muli %arg8, %c1_i32_143 : i32
      %c0_i32_144 = arith.constant 0 : i32
      %57 = arith.addi %c0_i32_144, %56 : i32
      %c4_i32_145 = arith.constant 4 : i32
      %58 = arith.muli %57, %c4_i32_145 : i32
      %59 = tpu.assume_multiple %58, 4 : i32
      %cst = arith.constant 0.000000e+00 : f32
      %60 = vector.broadcast %cst : f32 to vector<4x16x8xf32>
      %cst_146 = arith.constant 0.000000e+00 : f32
      %61 = vector.broadcast %cst_146 : f32 to vector<4x16x8xf32>
      %c0_i32_147 = arith.constant 0 : i32
      %62 = arith.addi %59, %c0_i32_147 : i32
      %63 = arith.index_cast %62 : i32 to index
      %c0_148 = arith.constant 0 : index
      %c0_149 = arith.constant 0 : index
      %64 = vector.load %arg6[%63, %c0_148, %c0_149] : memref<22x22x8xf32, #tpu.memory_space<vmem>>, vector<4x22x8xf32>
      %c0_i32_150 = arith.constant 0 : i32
      %65 = arith.addi %59, %c0_i32_150 : i32
      %66 = arith.index_cast %65 : i32 to index
      %c0_151 = arith.constant 0 : index
      %c0_152 = arith.constant 0 : index
      %67 = vector.load %arg7[%66, %c0_151, %c0_152] : memref<22x22x8xf32, #tpu.memory_space<vmem>>, vector<4x22x8xf32>
      %c0_153 = arith.constant 0 : index
      %c0_154 = arith.constant 0 : index
      %68 = vector.load %arg3[%c0_153, %c0_154] : memref<98x8xf32, #tpu.memory_space<vmem>>, vector<1x8xf32>
      %69 = vector.shape_cast %68 : vector<1x8xf32> to vector<8xf32>
      %70 = vector.shape_cast %69 : vector<8xf32> to vector<1x1x8xf32>
      %c49 = arith.constant 49 : index
      %c0_155 = arith.constant 0 : index
      %71 = vector.load %arg3[%c49, %c0_155] : memref<98x8xf32, #tpu.memory_space<vmem>>, vector<1x8xf32>
      %72 = vector.shape_cast %71 : vector<1x8xf32> to vector<8xf32>
      %73 = vector.shape_cast %72 : vector<8xf32> to vector<1x1x8xf32>
      %74 = vector.extract_strided_slice %64 {offsets = [0, 0, 0], sizes = [4, 16, 8], strides = [1, 1, 1]} : vector<4x22x8xf32> to vector<4x16x8xf32>
      %75 = vector.extract_strided_slice %67 {offsets = [0, 0, 0], sizes = [4, 16, 8], strides = [1, 1, 1]} : vector<4x22x8xf32> to vector<4x16x8xf32>
      %76 = vector.broadcast %70 : vector<1x1x8xf32> to vector<4x16x8xf32>
      %77 = arith.mulf %76, %74 : vector<4x16x8xf32>
      %78 = arith.addf %60, %77 : vector<4x16x8xf32>
      %79 = vector.broadcast %73 : vector<1x1x8xf32> to vector<4x16x8xf32>
      %80 = arith.mulf %79, %75 : vector<4x16x8xf32>
      %81 = arith.addf %61, %80 : vector<4x16x8xf32>
      %c1_156 = arith.constant 1 : index
      %c0_157 = arith.constant 0 : index
      %82 = vector.load %arg3[%c1_156, %c0_157] : memref<98x8xf32, #tpu.memory_space<vmem>>, vector<1x8xf32>
      %83 = vector.shape_cast %82 : vector<1x8xf32> to vector<8xf32>
      %84 = vector.shape_cast %83 : vector<8xf32> to vector<1x1x8xf32>
      %c50 = arith.constant 50 : index
      %c0_158 = arith.constant 0 : index
      %85 = vector.load %arg3[%c50, %c0_158] : memref<98x8xf32, #tpu.memory_space<vmem>>, vector<1x8xf32>
      %86 = vector.shape_cast %85 : vector<1x8xf32> to vector<8xf32>
      %87 = vector.shape_cast %86 : vector<8xf32> to vector<1x1x8xf32>
      %88 = vector.extract_strided_slice %64 {offsets = [0, 1, 0], sizes = [4, 16, 8], strides = [1, 1, 1]} : vector<4x22x8xf32> to vector<4x16x8xf32>
      %89 = vector.extract_strided_slice %67 {offsets = [0, 1, 0], sizes = [4, 16, 8], strides = [1, 1, 1]} : vector<4x22x8xf32> to vector<4x16x8xf32>
      %90 = vector.broadcast %84 : vector<1x1x8xf32> to vector<4x16x8xf32>
      %91 = arith.mulf %90, %88 : vector<4x16x8xf32>
      %92 = arith.addf %78, %91 : vector<4x16x8xf32>
      %93 = vector.broadcast %87 : vector<1x1x8xf32> to vector<4x16x8xf32>
      %94 = arith.mulf %93, %89 : vector<4x16x8xf32>
      %95 = arith.addf %81, %94 : vector<4x16x8xf32>
      %c2_159 = arith.constant 2 : index
      %c0_160 = arith.constant 0 : index
      %96 = vector.load %arg3[%c2_159, %c0_160] : memref<98x8xf32, #tpu.memory_space<vmem>>, vector<1x8xf32>
      %97 = vector.shape_cast %96 : vector<1x8xf32> to vector<8xf32>
      %98 = vector.shape_cast %97 : vector<8xf32> to vector<1x1x8xf32>
      %c51 = arith.constant 51 : index
      %c0_161 = arith.constant 0 : index
      %99 = vector.load %arg3[%c51, %c0_161] : memref<98x8xf32, #tpu.memory_space<vmem>>, vector<1x8xf32>
      %100 = vector.shape_cast %99 : vector<1x8xf32> to vector<8xf32>
      %101 = vector.shape_cast %100 : vector<8xf32> to vector<1x1x8xf32>
      %102 = vector.extract_strided_slice %64 {offsets = [0, 2, 0], sizes = [4, 16, 8], strides = [1, 1, 1]} : vector<4x22x8xf32> to vector<4x16x8xf32>
      %103 = vector.extract_strided_slice %67 {offsets = [0, 2, 0], sizes = [4, 16, 8], strides = [1, 1, 1]} : vector<4x22x8xf32> to vector<4x16x8xf32>
      %104 = vector.broadcast %98 : vector<1x1x8xf32> to vector<4x16x8xf32>
      %105 = arith.mulf %104, %102 : vector<4x16x8xf32>
      %106 = arith.addf %92, %105 : vector<4x16x8xf32>
      %107 = vector.broadcast %101 : vector<1x1x8xf32> to vector<4x16x8xf32>
      %108 = arith.mulf %107, %103 : vector<4x16x8xf32>
      %109 = arith.addf %95, %108 : vector<4x16x8xf32>
      %c3_162 = arith.constant 3 : index
      %c0_163 = arith.constant 0 : index
      %110 = vector.load %arg3[%c3_162, %c0_163] : memref<98x8xf32, #tpu.memory_space<vmem>>, vector<1x8xf32>
      %111 = vector.shape_cast %110 : vector<1x8xf32> to vector<8xf32>
      %112 = vector.shape_cast %111 : vector<8xf32> to vector<1x1x8xf32>
      %c52 = arith.constant 52 : index
      %c0_164 = arith.constant 0 : index
      %113 = vector.load %arg3[%c52, %c0_164] : memref<98x8xf32, #tpu.memory_space<vmem>>, vector<1x8xf32>
      %114 = vector.shape_cast %113 : vector<1x8xf32> to vector<8xf32>
      %115 = vector.shape_cast %114 : vector<8xf32> to vector<1x1x8xf32>
      %116 = vector.extract_strided_slice %64 {offsets = [0, 3, 0], sizes = [4, 16, 8], strides = [1, 1, 1]} : vector<4x22x8xf32> to vector<4x16x8xf32>
      %117 = vector.extract_strided_slice %67 {offsets = [0, 3, 0], sizes = [4, 16, 8], strides = [1, 1, 1]} : vector<4x22x8xf32> to vector<4x16x8xf32>
      %118 = vector.broadcast %112 : vector<1x1x8xf32> to vector<4x16x8xf32>
      %119 = arith.mulf %118, %116 : vector<4x16x8xf32>
      %120 = arith.addf %106, %119 : vector<4x16x8xf32>
      %121 = vector.broadcast %115 : vector<1x1x8xf32> to vector<4x16x8xf32>
      %122 = arith.mulf %121, %117 : vector<4x16x8xf32>
      %123 = arith.addf %109, %122 : vector<4x16x8xf32>
      %c4_165 = arith.constant 4 : index
      %c0_166 = arith.constant 0 : index
      %124 = vector.load %arg3[%c4_165, %c0_166] : memref<98x8xf32, #tpu.memory_space<vmem>>, vector<1x8xf32>
      %125 = vector.shape_cast %124 : vector<1x8xf32> to vector<8xf32>
      %126 = vector.shape_cast %125 : vector<8xf32> to vector<1x1x8xf32>
      %c53 = arith.constant 53 : index
      %c0_167 = arith.constant 0 : index
      %127 = vector.load %arg3[%c53, %c0_167] : memref<98x8xf32, #tpu.memory_space<vmem>>, vector<1x8xf32>
      %128 = vector.shape_cast %127 : vector<1x8xf32> to vector<8xf32>
      %129 = vector.shape_cast %128 : vector<8xf32> to vector<1x1x8xf32>
      %130 = vector.extract_strided_slice %64 {offsets = [0, 4, 0], sizes = [4, 16, 8], strides = [1, 1, 1]} : vector<4x22x8xf32> to vector<4x16x8xf32>
      %131 = vector.extract_strided_slice %67 {offsets = [0, 4, 0], sizes = [4, 16, 8], strides = [1, 1, 1]} : vector<4x22x8xf32> to vector<4x16x8xf32>
      %132 = vector.broadcast %126 : vector<1x1x8xf32> to vector<4x16x8xf32>
      %133 = arith.mulf %132, %130 : vector<4x16x8xf32>
      %134 = arith.addf %120, %133 : vector<4x16x8xf32>
      %135 = vector.broadcast %129 : vector<1x1x8xf32> to vector<4x16x8xf32>
      %136 = arith.mulf %135, %131 : vector<4x16x8xf32>
      %137 = arith.addf %123, %136 : vector<4x16x8xf32>
      %c5_168 = arith.constant 5 : index
      %c0_169 = arith.constant 0 : index
      %138 = vector.load %arg3[%c5_168, %c0_169] : memref<98x8xf32, #tpu.memory_space<vmem>>, vector<1x8xf32>
      %139 = vector.shape_cast %138 : vector<1x8xf32> to vector<8xf32>
      %140 = vector.shape_cast %139 : vector<8xf32> to vector<1x1x8xf32>
      %c54 = arith.constant 54 : index
      %c0_170 = arith.constant 0 : index
      %141 = vector.load %arg3[%c54, %c0_170] : memref<98x8xf32, #tpu.memory_space<vmem>>, vector<1x8xf32>
      %142 = vector.shape_cast %141 : vector<1x8xf32> to vector<8xf32>
      %143 = vector.shape_cast %142 : vector<8xf32> to vector<1x1x8xf32>
      %144 = vector.extract_strided_slice %64 {offsets = [0, 5, 0], sizes = [4, 16, 8], strides = [1, 1, 1]} : vector<4x22x8xf32> to vector<4x16x8xf32>
      %145 = vector.extract_strided_slice %67 {offsets = [0, 5, 0], sizes = [4, 16, 8], strides = [1, 1, 1]} : vector<4x22x8xf32> to vector<4x16x8xf32>
      %146 = vector.broadcast %140 : vector<1x1x8xf32> to vector<4x16x8xf32>
      %147 = arith.mulf %146, %144 : vector<4x16x8xf32>
      %148 = arith.addf %134, %147 : vector<4x16x8xf32>
      %149 = vector.broadcast %143 : vector<1x1x8xf32> to vector<4x16x8xf32>
      %150 = arith.mulf %149, %145 : vector<4x16x8xf32>
      %151 = arith.addf %137, %150 : vector<4x16x8xf32>
      %c6_171 = arith.constant 6 : index
      %c0_172 = arith.constant 0 : index
      %152 = vector.load %arg3[%c6_171, %c0_172] : memref<98x8xf32, #tpu.memory_space<vmem>>, vector<1x8xf32>
      %153 = vector.shape_cast %152 : vector<1x8xf32> to vector<8xf32>
      %154 = vector.shape_cast %153 : vector<8xf32> to vector<1x1x8xf32>
      %c55 = arith.constant 55 : index
      %c0_173 = arith.constant 0 : index
      %155 = vector.load %arg3[%c55, %c0_173] : memref<98x8xf32, #tpu.memory_space<vmem>>, vector<1x8xf32>
      %156 = vector.shape_cast %155 : vector<1x8xf32> to vector<8xf32>
      %157 = vector.shape_cast %156 : vector<8xf32> to vector<1x1x8xf32>
      %158 = vector.extract_strided_slice %64 {offsets = [0, 6, 0], sizes = [4, 16, 8], strides = [1, 1, 1]} : vector<4x22x8xf32> to vector<4x16x8xf32>
      %159 = vector.extract_strided_slice %67 {offsets = [0, 6, 0], sizes = [4, 16, 8], strides = [1, 1, 1]} : vector<4x22x8xf32> to vector<4x16x8xf32>
      %160 = vector.broadcast %154 : vector<1x1x8xf32> to vector<4x16x8xf32>
      %161 = arith.mulf %160, %158 : vector<4x16x8xf32>
      %162 = arith.addf %148, %161 : vector<4x16x8xf32>
      %163 = vector.broadcast %157 : vector<1x1x8xf32> to vector<4x16x8xf32>
      %164 = arith.mulf %163, %159 : vector<4x16x8xf32>
      %165 = arith.addf %151, %164 : vector<4x16x8xf32>
      %c1_i32_174 = arith.constant 1 : i32
      %166 = arith.addi %59, %c1_i32_174 : i32
      %167 = arith.index_cast %166 : i32 to index
      %c0_175 = arith.constant 0 : index
      %c0_176 = arith.constant 0 : index
      %168 = vector.load %arg6[%167, %c0_175, %c0_176] : memref<22x22x8xf32, #tpu.memory_space<vmem>>, vector<4x22x8xf32>
      %c1_i32_177 = arith.constant 1 : i32
      %169 = arith.addi %59, %c1_i32_177 : i32
      %170 = arith.index_cast %169 : i32 to index
      %c0_178 = arith.constant 0 : index
      %c0_179 = arith.constant 0 : index
      %171 = vector.load %arg7[%170, %c0_178, %c0_179] : memref<22x22x8xf32, #tpu.memory_space<vmem>>, vector<4x22x8xf32>
      %c7 = arith.constant 7 : index
      %c0_180 = arith.constant 0 : index
      %172 = vector.load %arg3[%c7, %c0_180] : memref<98x8xf32, #tpu.memory_space<vmem>>, vector<1x8xf32>
      %173 = vector.shape_cast %172 : vector<1x8xf32> to vector<8xf32>
      %174 = vector.shape_cast %173 : vector<8xf32> to vector<1x1x8xf32>
      %c56 = arith.constant 56 : index
      %c0_181 = arith.constant 0 : index
      %175 = vector.load %arg3[%c56, %c0_181] : memref<98x8xf32, #tpu.memory_space<vmem>>, vector<1x8xf32>
      %176 = vector.shape_cast %175 : vector<1x8xf32> to vector<8xf32>
      %177 = vector.shape_cast %176 : vector<8xf32> to vector<1x1x8xf32>
      %178 = vector.extract_strided_slice %168 {offsets = [0, 0, 0], sizes = [4, 16, 8], strides = [1, 1, 1]} : vector<4x22x8xf32> to vector<4x16x8xf32>
      %179 = vector.extract_strided_slice %171 {offsets = [0, 0, 0], sizes = [4, 16, 8], strides = [1, 1, 1]} : vector<4x22x8xf32> to vector<4x16x8xf32>
      %180 = vector.broadcast %174 : vector<1x1x8xf32> to vector<4x16x8xf32>
      %181 = arith.mulf %180, %178 : vector<4x16x8xf32>
      %182 = arith.addf %162, %181 : vector<4x16x8xf32>
      %183 = vector.broadcast %177 : vector<1x1x8xf32> to vector<4x16x8xf32>
      %184 = arith.mulf %183, %179 : vector<4x16x8xf32>
      %185 = arith.addf %165, %184 : vector<4x16x8xf32>
      %c8 = arith.constant 8 : index
      %c0_182 = arith.constant 0 : index
      %186 = vector.load %arg3[%c8, %c0_182] : memref<98x8xf32, #tpu.memory_space<vmem>>, vector<1x8xf32>
      %187 = vector.shape_cast %186 : vector<1x8xf32> to vector<8xf32>
      %188 = vector.shape_cast %187 : vector<8xf32> to vector<1x1x8xf32>
      %c57 = arith.constant 57 : index
      %c0_183 = arith.constant 0 : index
      %189 = vector.load %arg3[%c57, %c0_183] : memref<98x8xf32, #tpu.memory_space<vmem>>, vector<1x8xf32>
      %190 = vector.shape_cast %189 : vector<1x8xf32> to vector<8xf32>
      %191 = vector.shape_cast %190 : vector<8xf32> to vector<1x1x8xf32>
      %192 = vector.extract_strided_slice %168 {offsets = [0, 1, 0], sizes = [4, 16, 8], strides = [1, 1, 1]} : vector<4x22x8xf32> to vector<4x16x8xf32>
      %193 = vector.extract_strided_slice %171 {offsets = [0, 1, 0], sizes = [4, 16, 8], strides = [1, 1, 1]} : vector<4x22x8xf32> to vector<4x16x8xf32>
      %194 = vector.broadcast %188 : vector<1x1x8xf32> to vector<4x16x8xf32>
      %195 = arith.mulf %194, %192 : vector<4x16x8xf32>
      %196 = arith.addf %182, %195 : vector<4x16x8xf32>
      %197 = vector.broadcast %191 : vector<1x1x8xf32> to vector<4x16x8xf32>
      %198 = arith.mulf %197, %193 : vector<4x16x8xf32>
      %199 = arith.addf %185, %198 : vector<4x16x8xf32>
      %c9 = arith.constant 9 : index
      %c0_184 = arith.constant 0 : index
      %200 = vector.load %arg3[%c9, %c0_184] : memref<98x8xf32, #tpu.memory_space<vmem>>, vector<1x8xf32>
      %201 = vector.shape_cast %200 : vector<1x8xf32> to vector<8xf32>
      %202 = vector.shape_cast %201 : vector<8xf32> to vector<1x1x8xf32>
      %c58 = arith.constant 58 : index
      %c0_185 = arith.constant 0 : index
      %203 = vector.load %arg3[%c58, %c0_185] : memref<98x8xf32, #tpu.memory_space<vmem>>, vector<1x8xf32>
      %204 = vector.shape_cast %203 : vector<1x8xf32> to vector<8xf32>
      %205 = vector.shape_cast %204 : vector<8xf32> to vector<1x1x8xf32>
      %206 = vector.extract_strided_slice %168 {offsets = [0, 2, 0], sizes = [4, 16, 8], strides = [1, 1, 1]} : vector<4x22x8xf32> to vector<4x16x8xf32>
      %207 = vector.extract_strided_slice %171 {offsets = [0, 2, 0], sizes = [4, 16, 8], strides = [1, 1, 1]} : vector<4x22x8xf32> to vector<4x16x8xf32>
      %208 = vector.broadcast %202 : vector<1x1x8xf32> to vector<4x16x8xf32>
      %209 = arith.mulf %208, %206 : vector<4x16x8xf32>
      %210 = arith.addf %196, %209 : vector<4x16x8xf32>
      %211 = vector.broadcast %205 : vector<1x1x8xf32> to vector<4x16x8xf32>
      %212 = arith.mulf %211, %207 : vector<4x16x8xf32>
      %213 = arith.addf %199, %212 : vector<4x16x8xf32>
      %c10 = arith.constant 10 : index
      %c0_186 = arith.constant 0 : index
      %214 = vector.load %arg3[%c10, %c0_186] : memref<98x8xf32, #tpu.memory_space<vmem>>, vector<1x8xf32>
      %215 = vector.shape_cast %214 : vector<1x8xf32> to vector<8xf32>
      %216 = vector.shape_cast %215 : vector<8xf32> to vector<1x1x8xf32>
      %c59 = arith.constant 59 : index
      %c0_187 = arith.constant 0 : index
      %217 = vector.load %arg3[%c59, %c0_187] : memref<98x8xf32, #tpu.memory_space<vmem>>, vector<1x8xf32>
      %218 = vector.shape_cast %217 : vector<1x8xf32> to vector<8xf32>
      %219 = vector.shape_cast %218 : vector<8xf32> to vector<1x1x8xf32>
      %220 = vector.extract_strided_slice %168 {offsets = [0, 3, 0], sizes = [4, 16, 8], strides = [1, 1, 1]} : vector<4x22x8xf32> to vector<4x16x8xf32>
      %221 = vector.extract_strided_slice %171 {offsets = [0, 3, 0], sizes = [4, 16, 8], strides = [1, 1, 1]} : vector<4x22x8xf32> to vector<4x16x8xf32>
      %222 = vector.broadcast %216 : vector<1x1x8xf32> to vector<4x16x8xf32>
      %223 = arith.mulf %222, %220 : vector<4x16x8xf32>
      %224 = arith.addf %210, %223 : vector<4x16x8xf32>
      %225 = vector.broadcast %219 : vector<1x1x8xf32> to vector<4x16x8xf32>
      %226 = arith.mulf %225, %221 : vector<4x16x8xf32>
      %227 = arith.addf %213, %226 : vector<4x16x8xf32>
      %c11 = arith.constant 11 : index
      %c0_188 = arith.constant 0 : index
      %228 = vector.load %arg3[%c11, %c0_188] : memref<98x8xf32, #tpu.memory_space<vmem>>, vector<1x8xf32>
      %229 = vector.shape_cast %228 : vector<1x8xf32> to vector<8xf32>
      %230 = vector.shape_cast %229 : vector<8xf32> to vector<1x1x8xf32>
      %c60 = arith.constant 60 : index
      %c0_189 = arith.constant 0 : index
      %231 = vector.load %arg3[%c60, %c0_189] : memref<98x8xf32, #tpu.memory_space<vmem>>, vector<1x8xf32>
      %232 = vector.shape_cast %231 : vector<1x8xf32> to vector<8xf32>
      %233 = vector.shape_cast %232 : vector<8xf32> to vector<1x1x8xf32>
      %234 = vector.extract_strided_slice %168 {offsets = [0, 4, 0], sizes = [4, 16, 8], strides = [1, 1, 1]} : vector<4x22x8xf32> to vector<4x16x8xf32>
      %235 = vector.extract_strided_slice %171 {offsets = [0, 4, 0], sizes = [4, 16, 8], strides = [1, 1, 1]} : vector<4x22x8xf32> to vector<4x16x8xf32>
      %236 = vector.broadcast %230 : vector<1x1x8xf32> to vector<4x16x8xf32>
      %237 = arith.mulf %236, %234 : vector<4x16x8xf32>
      %238 = arith.addf %224, %237 : vector<4x16x8xf32>
      %239 = vector.broadcast %233 : vector<1x1x8xf32> to vector<4x16x8xf32>
      %240 = arith.mulf %239, %235 : vector<4x16x8xf32>
      %241 = arith.addf %227, %240 : vector<4x16x8xf32>
      %c12_190 = arith.constant 12 : index
      %c0_191 = arith.constant 0 : index
      %242 = vector.load %arg3[%c12_190, %c0_191] : memref<98x8xf32, #tpu.memory_space<vmem>>, vector<1x8xf32>
      %243 = vector.shape_cast %242 : vector<1x8xf32> to vector<8xf32>
      %244 = vector.shape_cast %243 : vector<8xf32> to vector<1x1x8xf32>
      %c61 = arith.constant 61 : index
      %c0_192 = arith.constant 0 : index
      %245 = vector.load %arg3[%c61, %c0_192] : memref<98x8xf32, #tpu.memory_space<vmem>>, vector<1x8xf32>
      %246 = vector.shape_cast %245 : vector<1x8xf32> to vector<8xf32>
      %247 = vector.shape_cast %246 : vector<8xf32> to vector<1x1x8xf32>
      %248 = vector.extract_strided_slice %168 {offsets = [0, 5, 0], sizes = [4, 16, 8], strides = [1, 1, 1]} : vector<4x22x8xf32> to vector<4x16x8xf32>
      %249 = vector.extract_strided_slice %171 {offsets = [0, 5, 0], sizes = [4, 16, 8], strides = [1, 1, 1]} : vector<4x22x8xf32> to vector<4x16x8xf32>
      %250 = vector.broadcast %244 : vector<1x1x8xf32> to vector<4x16x8xf32>
      %251 = arith.mulf %250, %248 : vector<4x16x8xf32>
      %252 = arith.addf %238, %251 : vector<4x16x8xf32>
      %253 = vector.broadcast %247 : vector<1x1x8xf32> to vector<4x16x8xf32>
      %254 = arith.mulf %253, %249 : vector<4x16x8xf32>
      %255 = arith.addf %241, %254 : vector<4x16x8xf32>
      %c13_193 = arith.constant 13 : index
      %c0_194 = arith.constant 0 : index
      %256 = vector.load %arg3[%c13_193, %c0_194] : memref<98x8xf32, #tpu.memory_space<vmem>>, vector<1x8xf32>
      %257 = vector.shape_cast %256 : vector<1x8xf32> to vector<8xf32>
      %258 = vector.shape_cast %257 : vector<8xf32> to vector<1x1x8xf32>
      %c62 = arith.constant 62 : index
      %c0_195 = arith.constant 0 : index
      %259 = vector.load %arg3[%c62, %c0_195] : memref<98x8xf32, #tpu.memory_space<vmem>>, vector<1x8xf32>
      %260 = vector.shape_cast %259 : vector<1x8xf32> to vector<8xf32>
      %261 = vector.shape_cast %260 : vector<8xf32> to vector<1x1x8xf32>
      %262 = vector.extract_strided_slice %168 {offsets = [0, 6, 0], sizes = [4, 16, 8], strides = [1, 1, 1]} : vector<4x22x8xf32> to vector<4x16x8xf32>
      %263 = vector.extract_strided_slice %171 {offsets = [0, 6, 0], sizes = [4, 16, 8], strides = [1, 1, 1]} : vector<4x22x8xf32> to vector<4x16x8xf32>
      %264 = vector.broadcast %258 : vector<1x1x8xf32> to vector<4x16x8xf32>
      %265 = arith.mulf %264, %262 : vector<4x16x8xf32>
      %266 = arith.addf %252, %265 : vector<4x16x8xf32>
      %267 = vector.broadcast %261 : vector<1x1x8xf32> to vector<4x16x8xf32>
      %268 = arith.mulf %267, %263 : vector<4x16x8xf32>
      %269 = arith.addf %255, %268 : vector<4x16x8xf32>
      %c2_i32 = arith.constant 2 : i32
      %270 = arith.addi %59, %c2_i32 : i32
      %271 = arith.index_cast %270 : i32 to index
      %c0_196 = arith.constant 0 : index
      %c0_197 = arith.constant 0 : index
      %272 = vector.load %arg6[%271, %c0_196, %c0_197] : memref<22x22x8xf32, #tpu.memory_space<vmem>>, vector<4x22x8xf32>
      %c2_i32_198 = arith.constant 2 : i32
      %273 = arith.addi %59, %c2_i32_198 : i32
      %274 = arith.index_cast %273 : i32 to index
      %c0_199 = arith.constant 0 : index
      %c0_200 = arith.constant 0 : index
      %275 = vector.load %arg7[%274, %c0_199, %c0_200] : memref<22x22x8xf32, #tpu.memory_space<vmem>>, vector<4x22x8xf32>
      %c14_201 = arith.constant 14 : index
      %c0_202 = arith.constant 0 : index
      %276 = vector.load %arg3[%c14_201, %c0_202] : memref<98x8xf32, #tpu.memory_space<vmem>>, vector<1x8xf32>
      %277 = vector.shape_cast %276 : vector<1x8xf32> to vector<8xf32>
      %278 = vector.shape_cast %277 : vector<8xf32> to vector<1x1x8xf32>
      %c63 = arith.constant 63 : index
      %c0_203 = arith.constant 0 : index
      %279 = vector.load %arg3[%c63, %c0_203] : memref<98x8xf32, #tpu.memory_space<vmem>>, vector<1x8xf32>
      %280 = vector.shape_cast %279 : vector<1x8xf32> to vector<8xf32>
      %281 = vector.shape_cast %280 : vector<8xf32> to vector<1x1x8xf32>
      %282 = vector.extract_strided_slice %272 {offsets = [0, 0, 0], sizes = [4, 16, 8], strides = [1, 1, 1]} : vector<4x22x8xf32> to vector<4x16x8xf32>
      %283 = vector.extract_strided_slice %275 {offsets = [0, 0, 0], sizes = [4, 16, 8], strides = [1, 1, 1]} : vector<4x22x8xf32> to vector<4x16x8xf32>
      %284 = vector.broadcast %278 : vector<1x1x8xf32> to vector<4x16x8xf32>
      %285 = arith.mulf %284, %282 : vector<4x16x8xf32>
      %286 = arith.addf %266, %285 : vector<4x16x8xf32>
      %287 = vector.broadcast %281 : vector<1x1x8xf32> to vector<4x16x8xf32>
      %288 = arith.mulf %287, %283 : vector<4x16x8xf32>
      %289 = arith.addf %269, %288 : vector<4x16x8xf32>
      %c15_204 = arith.constant 15 : index
      %c0_205 = arith.constant 0 : index
      %290 = vector.load %arg3[%c15_204, %c0_205] : memref<98x8xf32, #tpu.memory_space<vmem>>, vector<1x8xf32>
      %291 = vector.shape_cast %290 : vector<1x8xf32> to vector<8xf32>
      %292 = vector.shape_cast %291 : vector<8xf32> to vector<1x1x8xf32>
      %c64 = arith.constant 64 : index
      %c0_206 = arith.constant 0 : index
      %293 = vector.load %arg3[%c64, %c0_206] : memref<98x8xf32, #tpu.memory_space<vmem>>, vector<1x8xf32>
      %294 = vector.shape_cast %293 : vector<1x8xf32> to vector<8xf32>
      %295 = vector.shape_cast %294 : vector<8xf32> to vector<1x1x8xf32>
      %296 = vector.extract_strided_slice %272 {offsets = [0, 1, 0], sizes = [4, 16, 8], strides = [1, 1, 1]} : vector<4x22x8xf32> to vector<4x16x8xf32>
      %297 = vector.extract_strided_slice %275 {offsets = [0, 1, 0], sizes = [4, 16, 8], strides = [1, 1, 1]} : vector<4x22x8xf32> to vector<4x16x8xf32>
      %298 = vector.broadcast %292 : vector<1x1x8xf32> to vector<4x16x8xf32>
      %299 = arith.mulf %298, %296 : vector<4x16x8xf32>
      %300 = arith.addf %286, %299 : vector<4x16x8xf32>
      %301 = vector.broadcast %295 : vector<1x1x8xf32> to vector<4x16x8xf32>
      %302 = arith.mulf %301, %297 : vector<4x16x8xf32>
      %303 = arith.addf %289, %302 : vector<4x16x8xf32>
      %c16_207 = arith.constant 16 : index
      %c0_208 = arith.constant 0 : index
      %304 = vector.load %arg3[%c16_207, %c0_208] : memref<98x8xf32, #tpu.memory_space<vmem>>, vector<1x8xf32>
      %305 = vector.shape_cast %304 : vector<1x8xf32> to vector<8xf32>
      %306 = vector.shape_cast %305 : vector<8xf32> to vector<1x1x8xf32>
      %c65 = arith.constant 65 : index
      %c0_209 = arith.constant 0 : index
      %307 = vector.load %arg3[%c65, %c0_209] : memref<98x8xf32, #tpu.memory_space<vmem>>, vector<1x8xf32>
      %308 = vector.shape_cast %307 : vector<1x8xf32> to vector<8xf32>
      %309 = vector.shape_cast %308 : vector<8xf32> to vector<1x1x8xf32>
      %310 = vector.extract_strided_slice %272 {offsets = [0, 2, 0], sizes = [4, 16, 8], strides = [1, 1, 1]} : vector<4x22x8xf32> to vector<4x16x8xf32>
      %311 = vector.extract_strided_slice %275 {offsets = [0, 2, 0], sizes = [4, 16, 8], strides = [1, 1, 1]} : vector<4x22x8xf32> to vector<4x16x8xf32>
      %312 = vector.broadcast %306 : vector<1x1x8xf32> to vector<4x16x8xf32>
      %313 = arith.mulf %312, %310 : vector<4x16x8xf32>
      %314 = arith.addf %300, %313 : vector<4x16x8xf32>
      %315 = vector.broadcast %309 : vector<1x1x8xf32> to vector<4x16x8xf32>
      %316 = arith.mulf %315, %311 : vector<4x16x8xf32>
      %317 = arith.addf %303, %316 : vector<4x16x8xf32>
      %c17_210 = arith.constant 17 : index
      %c0_211 = arith.constant 0 : index
      %318 = vector.load %arg3[%c17_210, %c0_211] : memref<98x8xf32, #tpu.memory_space<vmem>>, vector<1x8xf32>
      %319 = vector.shape_cast %318 : vector<1x8xf32> to vector<8xf32>
      %320 = vector.shape_cast %319 : vector<8xf32> to vector<1x1x8xf32>
      %c66 = arith.constant 66 : index
      %c0_212 = arith.constant 0 : index
      %321 = vector.load %arg3[%c66, %c0_212] : memref<98x8xf32, #tpu.memory_space<vmem>>, vector<1x8xf32>
      %322 = vector.shape_cast %321 : vector<1x8xf32> to vector<8xf32>
      %323 = vector.shape_cast %322 : vector<8xf32> to vector<1x1x8xf32>
      %324 = vector.extract_strided_slice %272 {offsets = [0, 3, 0], sizes = [4, 16, 8], strides = [1, 1, 1]} : vector<4x22x8xf32> to vector<4x16x8xf32>
      %325 = vector.extract_strided_slice %275 {offsets = [0, 3, 0], sizes = [4, 16, 8], strides = [1, 1, 1]} : vector<4x22x8xf32> to vector<4x16x8xf32>
      %326 = vector.broadcast %320 : vector<1x1x8xf32> to vector<4x16x8xf32>
      %327 = arith.mulf %326, %324 : vector<4x16x8xf32>
      %328 = arith.addf %314, %327 : vector<4x16x8xf32>
      %329 = vector.broadcast %323 : vector<1x1x8xf32> to vector<4x16x8xf32>
      %330 = arith.mulf %329, %325 : vector<4x16x8xf32>
      %331 = arith.addf %317, %330 : vector<4x16x8xf32>
      %c18 = arith.constant 18 : index
      %c0_213 = arith.constant 0 : index
      %332 = vector.load %arg3[%c18, %c0_213] : memref<98x8xf32, #tpu.memory_space<vmem>>, vector<1x8xf32>
      %333 = vector.shape_cast %332 : vector<1x8xf32> to vector<8xf32>
      %334 = vector.shape_cast %333 : vector<8xf32> to vector<1x1x8xf32>
      %c67 = arith.constant 67 : index
      %c0_214 = arith.constant 0 : index
      %335 = vector.load %arg3[%c67, %c0_214] : memref<98x8xf32, #tpu.memory_space<vmem>>, vector<1x8xf32>
      %336 = vector.shape_cast %335 : vector<1x8xf32> to vector<8xf32>
      %337 = vector.shape_cast %336 : vector<8xf32> to vector<1x1x8xf32>
      %338 = vector.extract_strided_slice %272 {offsets = [0, 4, 0], sizes = [4, 16, 8], strides = [1, 1, 1]} : vector<4x22x8xf32> to vector<4x16x8xf32>
      %339 = vector.extract_strided_slice %275 {offsets = [0, 4, 0], sizes = [4, 16, 8], strides = [1, 1, 1]} : vector<4x22x8xf32> to vector<4x16x8xf32>
      %340 = vector.broadcast %334 : vector<1x1x8xf32> to vector<4x16x8xf32>
      %341 = arith.mulf %340, %338 : vector<4x16x8xf32>
      %342 = arith.addf %328, %341 : vector<4x16x8xf32>
      %343 = vector.broadcast %337 : vector<1x1x8xf32> to vector<4x16x8xf32>
      %344 = arith.mulf %343, %339 : vector<4x16x8xf32>
      %345 = arith.addf %331, %344 : vector<4x16x8xf32>
      %c19_215 = arith.constant 19 : index
      %c0_216 = arith.constant 0 : index
      %346 = vector.load %arg3[%c19_215, %c0_216] : memref<98x8xf32, #tpu.memory_space<vmem>>, vector<1x8xf32>
      %347 = vector.shape_cast %346 : vector<1x8xf32> to vector<8xf32>
      %348 = vector.shape_cast %347 : vector<8xf32> to vector<1x1x8xf32>
      %c68 = arith.constant 68 : index
      %c0_217 = arith.constant 0 : index
      %349 = vector.load %arg3[%c68, %c0_217] : memref<98x8xf32, #tpu.memory_space<vmem>>, vector<1x8xf32>
      %350 = vector.shape_cast %349 : vector<1x8xf32> to vector<8xf32>
      %351 = vector.shape_cast %350 : vector<8xf32> to vector<1x1x8xf32>
      %352 = vector.extract_strided_slice %272 {offsets = [0, 5, 0], sizes = [4, 16, 8], strides = [1, 1, 1]} : vector<4x22x8xf32> to vector<4x16x8xf32>
      %353 = vector.extract_strided_slice %275 {offsets = [0, 5, 0], sizes = [4, 16, 8], strides = [1, 1, 1]} : vector<4x22x8xf32> to vector<4x16x8xf32>
      %354 = vector.broadcast %348 : vector<1x1x8xf32> to vector<4x16x8xf32>
      %355 = arith.mulf %354, %352 : vector<4x16x8xf32>
      %356 = arith.addf %342, %355 : vector<4x16x8xf32>
      %357 = vector.broadcast %351 : vector<1x1x8xf32> to vector<4x16x8xf32>
      %358 = arith.mulf %357, %353 : vector<4x16x8xf32>
      %359 = arith.addf %345, %358 : vector<4x16x8xf32>
      %c20_218 = arith.constant 20 : index
      %c0_219 = arith.constant 0 : index
      %360 = vector.load %arg3[%c20_218, %c0_219] : memref<98x8xf32, #tpu.memory_space<vmem>>, vector<1x8xf32>
      %361 = vector.shape_cast %360 : vector<1x8xf32> to vector<8xf32>
      %362 = vector.shape_cast %361 : vector<8xf32> to vector<1x1x8xf32>
      %c69 = arith.constant 69 : index
      %c0_220 = arith.constant 0 : index
      %363 = vector.load %arg3[%c69, %c0_220] : memref<98x8xf32, #tpu.memory_space<vmem>>, vector<1x8xf32>
      %364 = vector.shape_cast %363 : vector<1x8xf32> to vector<8xf32>
      %365 = vector.shape_cast %364 : vector<8xf32> to vector<1x1x8xf32>
      %366 = vector.extract_strided_slice %272 {offsets = [0, 6, 0], sizes = [4, 16, 8], strides = [1, 1, 1]} : vector<4x22x8xf32> to vector<4x16x8xf32>
      %367 = vector.extract_strided_slice %275 {offsets = [0, 6, 0], sizes = [4, 16, 8], strides = [1, 1, 1]} : vector<4x22x8xf32> to vector<4x16x8xf32>
      %368 = vector.broadcast %362 : vector<1x1x8xf32> to vector<4x16x8xf32>
      %369 = arith.mulf %368, %366 : vector<4x16x8xf32>
      %370 = arith.addf %356, %369 : vector<4x16x8xf32>
      %371 = vector.broadcast %365 : vector<1x1x8xf32> to vector<4x16x8xf32>
      %372 = arith.mulf %371, %367 : vector<4x16x8xf32>
      %373 = arith.addf %359, %372 : vector<4x16x8xf32>
      %c3_i32 = arith.constant 3 : i32
      %374 = arith.addi %59, %c3_i32 : i32
      %375 = arith.index_cast %374 : i32 to index
      %c0_221 = arith.constant 0 : index
      %c0_222 = arith.constant 0 : index
      %376 = vector.load %arg6[%375, %c0_221, %c0_222] : memref<22x22x8xf32, #tpu.memory_space<vmem>>, vector<4x22x8xf32>
      %c3_i32_223 = arith.constant 3 : i32
      %377 = arith.addi %59, %c3_i32_223 : i32
      %378 = arith.index_cast %377 : i32 to index
      %c0_224 = arith.constant 0 : index
      %c0_225 = arith.constant 0 : index
      %379 = vector.load %arg7[%378, %c0_224, %c0_225] : memref<22x22x8xf32, #tpu.memory_space<vmem>>, vector<4x22x8xf32>
      %c21_226 = arith.constant 21 : index
      %c0_227 = arith.constant 0 : index
      %380 = vector.load %arg3[%c21_226, %c0_227] : memref<98x8xf32, #tpu.memory_space<vmem>>, vector<1x8xf32>
      %381 = vector.shape_cast %380 : vector<1x8xf32> to vector<8xf32>
      %382 = vector.shape_cast %381 : vector<8xf32> to vector<1x1x8xf32>
      %c70 = arith.constant 70 : index
      %c0_228 = arith.constant 0 : index
      %383 = vector.load %arg3[%c70, %c0_228] : memref<98x8xf32, #tpu.memory_space<vmem>>, vector<1x8xf32>
      %384 = vector.shape_cast %383 : vector<1x8xf32> to vector<8xf32>
      %385 = vector.shape_cast %384 : vector<8xf32> to vector<1x1x8xf32>
      %386 = vector.extract_strided_slice %376 {offsets = [0, 0, 0], sizes = [4, 16, 8], strides = [1, 1, 1]} : vector<4x22x8xf32> to vector<4x16x8xf32>
      %387 = vector.extract_strided_slice %379 {offsets = [0, 0, 0], sizes = [4, 16, 8], strides = [1, 1, 1]} : vector<4x22x8xf32> to vector<4x16x8xf32>
      %388 = vector.broadcast %382 : vector<1x1x8xf32> to vector<4x16x8xf32>
      %389 = arith.mulf %388, %386 : vector<4x16x8xf32>
      %390 = arith.addf %370, %389 : vector<4x16x8xf32>
      %391 = vector.broadcast %385 : vector<1x1x8xf32> to vector<4x16x8xf32>
      %392 = arith.mulf %391, %387 : vector<4x16x8xf32>
      %393 = arith.addf %373, %392 : vector<4x16x8xf32>
      %c22 = arith.constant 22 : index
      %c0_229 = arith.constant 0 : index
      %394 = vector.load %arg3[%c22, %c0_229] : memref<98x8xf32, #tpu.memory_space<vmem>>, vector<1x8xf32>
      %395 = vector.shape_cast %394 : vector<1x8xf32> to vector<8xf32>
      %396 = vector.shape_cast %395 : vector<8xf32> to vector<1x1x8xf32>
      %c71 = arith.constant 71 : index
      %c0_230 = arith.constant 0 : index
      %397 = vector.load %arg3[%c71, %c0_230] : memref<98x8xf32, #tpu.memory_space<vmem>>, vector<1x8xf32>
      %398 = vector.shape_cast %397 : vector<1x8xf32> to vector<8xf32>
      %399 = vector.shape_cast %398 : vector<8xf32> to vector<1x1x8xf32>
      %400 = vector.extract_strided_slice %376 {offsets = [0, 1, 0], sizes = [4, 16, 8], strides = [1, 1, 1]} : vector<4x22x8xf32> to vector<4x16x8xf32>
      %401 = vector.extract_strided_slice %379 {offsets = [0, 1, 0], sizes = [4, 16, 8], strides = [1, 1, 1]} : vector<4x22x8xf32> to vector<4x16x8xf32>
      %402 = vector.broadcast %396 : vector<1x1x8xf32> to vector<4x16x8xf32>
      %403 = arith.mulf %402, %400 : vector<4x16x8xf32>
      %404 = arith.addf %390, %403 : vector<4x16x8xf32>
      %405 = vector.broadcast %399 : vector<1x1x8xf32> to vector<4x16x8xf32>
      %406 = arith.mulf %405, %401 : vector<4x16x8xf32>
      %407 = arith.addf %393, %406 : vector<4x16x8xf32>
      %c23 = arith.constant 23 : index
      %c0_231 = arith.constant 0 : index
      %408 = vector.load %arg3[%c23, %c0_231] : memref<98x8xf32, #tpu.memory_space<vmem>>, vector<1x8xf32>
      %409 = vector.shape_cast %408 : vector<1x8xf32> to vector<8xf32>
      %410 = vector.shape_cast %409 : vector<8xf32> to vector<1x1x8xf32>
      %c72 = arith.constant 72 : index
      %c0_232 = arith.constant 0 : index
      %411 = vector.load %arg3[%c72, %c0_232] : memref<98x8xf32, #tpu.memory_space<vmem>>, vector<1x8xf32>
      %412 = vector.shape_cast %411 : vector<1x8xf32> to vector<8xf32>
      %413 = vector.shape_cast %412 : vector<8xf32> to vector<1x1x8xf32>
      %414 = vector.extract_strided_slice %376 {offsets = [0, 2, 0], sizes = [4, 16, 8], strides = [1, 1, 1]} : vector<4x22x8xf32> to vector<4x16x8xf32>
      %415 = vector.extract_strided_slice %379 {offsets = [0, 2, 0], sizes = [4, 16, 8], strides = [1, 1, 1]} : vector<4x22x8xf32> to vector<4x16x8xf32>
      %416 = vector.broadcast %410 : vector<1x1x8xf32> to vector<4x16x8xf32>
      %417 = arith.mulf %416, %414 : vector<4x16x8xf32>
      %418 = arith.addf %404, %417 : vector<4x16x8xf32>
      %419 = vector.broadcast %413 : vector<1x1x8xf32> to vector<4x16x8xf32>
      %420 = arith.mulf %419, %415 : vector<4x16x8xf32>
      %421 = arith.addf %407, %420 : vector<4x16x8xf32>
      %c24 = arith.constant 24 : index
      %c0_233 = arith.constant 0 : index
      %422 = vector.load %arg3[%c24, %c0_233] : memref<98x8xf32, #tpu.memory_space<vmem>>, vector<1x8xf32>
      %423 = vector.shape_cast %422 : vector<1x8xf32> to vector<8xf32>
      %424 = vector.shape_cast %423 : vector<8xf32> to vector<1x1x8xf32>
      %c73 = arith.constant 73 : index
      %c0_234 = arith.constant 0 : index
      %425 = vector.load %arg3[%c73, %c0_234] : memref<98x8xf32, #tpu.memory_space<vmem>>, vector<1x8xf32>
      %426 = vector.shape_cast %425 : vector<1x8xf32> to vector<8xf32>
      %427 = vector.shape_cast %426 : vector<8xf32> to vector<1x1x8xf32>
      %428 = vector.extract_strided_slice %376 {offsets = [0, 3, 0], sizes = [4, 16, 8], strides = [1, 1, 1]} : vector<4x22x8xf32> to vector<4x16x8xf32>
      %429 = vector.extract_strided_slice %379 {offsets = [0, 3, 0], sizes = [4, 16, 8], strides = [1, 1, 1]} : vector<4x22x8xf32> to vector<4x16x8xf32>
      %430 = vector.broadcast %424 : vector<1x1x8xf32> to vector<4x16x8xf32>
      %431 = arith.mulf %430, %428 : vector<4x16x8xf32>
      %432 = arith.addf %418, %431 : vector<4x16x8xf32>
      %433 = vector.broadcast %427 : vector<1x1x8xf32> to vector<4x16x8xf32>
      %434 = arith.mulf %433, %429 : vector<4x16x8xf32>
      %435 = arith.addf %421, %434 : vector<4x16x8xf32>
      %c25 = arith.constant 25 : index
      %c0_235 = arith.constant 0 : index
      %436 = vector.load %arg3[%c25, %c0_235] : memref<98x8xf32, #tpu.memory_space<vmem>>, vector<1x8xf32>
      %437 = vector.shape_cast %436 : vector<1x8xf32> to vector<8xf32>
      %438 = vector.shape_cast %437 : vector<8xf32> to vector<1x1x8xf32>
      %c74 = arith.constant 74 : index
      %c0_236 = arith.constant 0 : index
      %439 = vector.load %arg3[%c74, %c0_236] : memref<98x8xf32, #tpu.memory_space<vmem>>, vector<1x8xf32>
      %440 = vector.shape_cast %439 : vector<1x8xf32> to vector<8xf32>
      %441 = vector.shape_cast %440 : vector<8xf32> to vector<1x1x8xf32>
      %442 = vector.extract_strided_slice %376 {offsets = [0, 4, 0], sizes = [4, 16, 8], strides = [1, 1, 1]} : vector<4x22x8xf32> to vector<4x16x8xf32>
      %443 = vector.extract_strided_slice %379 {offsets = [0, 4, 0], sizes = [4, 16, 8], strides = [1, 1, 1]} : vector<4x22x8xf32> to vector<4x16x8xf32>
      %444 = vector.broadcast %438 : vector<1x1x8xf32> to vector<4x16x8xf32>
      %445 = arith.mulf %444, %442 : vector<4x16x8xf32>
      %446 = arith.addf %432, %445 : vector<4x16x8xf32>
      %447 = vector.broadcast %441 : vector<1x1x8xf32> to vector<4x16x8xf32>
      %448 = arith.mulf %447, %443 : vector<4x16x8xf32>
      %449 = arith.addf %435, %448 : vector<4x16x8xf32>
      %c26 = arith.constant 26 : index
      %c0_237 = arith.constant 0 : index
      %450 = vector.load %arg3[%c26, %c0_237] : memref<98x8xf32, #tpu.memory_space<vmem>>, vector<1x8xf32>
      %451 = vector.shape_cast %450 : vector<1x8xf32> to vector<8xf32>
      %452 = vector.shape_cast %451 : vector<8xf32> to vector<1x1x8xf32>
      %c75 = arith.constant 75 : index
      %c0_238 = arith.constant 0 : index
      %453 = vector.load %arg3[%c75, %c0_238] : memref<98x8xf32, #tpu.memory_space<vmem>>, vector<1x8xf32>
      %454 = vector.shape_cast %453 : vector<1x8xf32> to vector<8xf32>
      %455 = vector.shape_cast %454 : vector<8xf32> to vector<1x1x8xf32>
      %456 = vector.extract_strided_slice %376 {offsets = [0, 5, 0], sizes = [4, 16, 8], strides = [1, 1, 1]} : vector<4x22x8xf32> to vector<4x16x8xf32>
      %457 = vector.extract_strided_slice %379 {offsets = [0, 5, 0], sizes = [4, 16, 8], strides = [1, 1, 1]} : vector<4x22x8xf32> to vector<4x16x8xf32>
      %458 = vector.broadcast %452 : vector<1x1x8xf32> to vector<4x16x8xf32>
      %459 = arith.mulf %458, %456 : vector<4x16x8xf32>
      %460 = arith.addf %446, %459 : vector<4x16x8xf32>
      %461 = vector.broadcast %455 : vector<1x1x8xf32> to vector<4x16x8xf32>
      %462 = arith.mulf %461, %457 : vector<4x16x8xf32>
      %463 = arith.addf %449, %462 : vector<4x16x8xf32>
      %c27 = arith.constant 27 : index
      %c0_239 = arith.constant 0 : index
      %464 = vector.load %arg3[%c27, %c0_239] : memref<98x8xf32, #tpu.memory_space<vmem>>, vector<1x8xf32>
      %465 = vector.shape_cast %464 : vector<1x8xf32> to vector<8xf32>
      %466 = vector.shape_cast %465 : vector<8xf32> to vector<1x1x8xf32>
      %c76 = arith.constant 76 : index
      %c0_240 = arith.constant 0 : index
      %467 = vector.load %arg3[%c76, %c0_240] : memref<98x8xf32, #tpu.memory_space<vmem>>, vector<1x8xf32>
      %468 = vector.shape_cast %467 : vector<1x8xf32> to vector<8xf32>
      %469 = vector.shape_cast %468 : vector<8xf32> to vector<1x1x8xf32>
      %470 = vector.extract_strided_slice %376 {offsets = [0, 6, 0], sizes = [4, 16, 8], strides = [1, 1, 1]} : vector<4x22x8xf32> to vector<4x16x8xf32>
      %471 = vector.extract_strided_slice %379 {offsets = [0, 6, 0], sizes = [4, 16, 8], strides = [1, 1, 1]} : vector<4x22x8xf32> to vector<4x16x8xf32>
      %472 = vector.broadcast %466 : vector<1x1x8xf32> to vector<4x16x8xf32>
      %473 = arith.mulf %472, %470 : vector<4x16x8xf32>
      %474 = arith.addf %460, %473 : vector<4x16x8xf32>
      %475 = vector.broadcast %469 : vector<1x1x8xf32> to vector<4x16x8xf32>
      %476 = arith.mulf %475, %471 : vector<4x16x8xf32>
      %477 = arith.addf %463, %476 : vector<4x16x8xf32>
      %c4_i32_241 = arith.constant 4 : i32
      %478 = arith.addi %59, %c4_i32_241 : i32
      %479 = arith.index_cast %478 : i32 to index
      %c0_242 = arith.constant 0 : index
      %c0_243 = arith.constant 0 : index
      %480 = vector.load %arg6[%479, %c0_242, %c0_243] : memref<22x22x8xf32, #tpu.memory_space<vmem>>, vector<4x22x8xf32>
      %c4_i32_244 = arith.constant 4 : i32
      %481 = arith.addi %59, %c4_i32_244 : i32
      %482 = arith.index_cast %481 : i32 to index
      %c0_245 = arith.constant 0 : index
      %c0_246 = arith.constant 0 : index
      %483 = vector.load %arg7[%482, %c0_245, %c0_246] : memref<22x22x8xf32, #tpu.memory_space<vmem>>, vector<4x22x8xf32>
      %c28 = arith.constant 28 : index
      %c0_247 = arith.constant 0 : index
      %484 = vector.load %arg3[%c28, %c0_247] : memref<98x8xf32, #tpu.memory_space<vmem>>, vector<1x8xf32>
      %485 = vector.shape_cast %484 : vector<1x8xf32> to vector<8xf32>
      %486 = vector.shape_cast %485 : vector<8xf32> to vector<1x1x8xf32>
      %c77 = arith.constant 77 : index
      %c0_248 = arith.constant 0 : index
      %487 = vector.load %arg3[%c77, %c0_248] : memref<98x8xf32, #tpu.memory_space<vmem>>, vector<1x8xf32>
      %488 = vector.shape_cast %487 : vector<1x8xf32> to vector<8xf32>
      %489 = vector.shape_cast %488 : vector<8xf32> to vector<1x1x8xf32>
      %490 = vector.extract_strided_slice %480 {offsets = [0, 0, 0], sizes = [4, 16, 8], strides = [1, 1, 1]} : vector<4x22x8xf32> to vector<4x16x8xf32>
      %491 = vector.extract_strided_slice %483 {offsets = [0, 0, 0], sizes = [4, 16, 8], strides = [1, 1, 1]} : vector<4x22x8xf32> to vector<4x16x8xf32>
      %492 = vector.broadcast %486 : vector<1x1x8xf32> to vector<4x16x8xf32>
      %493 = arith.mulf %492, %490 : vector<4x16x8xf32>
      %494 = arith.addf %474, %493 : vector<4x16x8xf32>
      %495 = vector.broadcast %489 : vector<1x1x8xf32> to vector<4x16x8xf32>
      %496 = arith.mulf %495, %491 : vector<4x16x8xf32>
      %497 = arith.addf %477, %496 : vector<4x16x8xf32>
      %c29 = arith.constant 29 : index
      %c0_249 = arith.constant 0 : index
      %498 = vector.load %arg3[%c29, %c0_249] : memref<98x8xf32, #tpu.memory_space<vmem>>, vector<1x8xf32>
      %499 = vector.shape_cast %498 : vector<1x8xf32> to vector<8xf32>
      %500 = vector.shape_cast %499 : vector<8xf32> to vector<1x1x8xf32>
      %c78 = arith.constant 78 : index
      %c0_250 = arith.constant 0 : index
      %501 = vector.load %arg3[%c78, %c0_250] : memref<98x8xf32, #tpu.memory_space<vmem>>, vector<1x8xf32>
      %502 = vector.shape_cast %501 : vector<1x8xf32> to vector<8xf32>
      %503 = vector.shape_cast %502 : vector<8xf32> to vector<1x1x8xf32>
      %504 = vector.extract_strided_slice %480 {offsets = [0, 1, 0], sizes = [4, 16, 8], strides = [1, 1, 1]} : vector<4x22x8xf32> to vector<4x16x8xf32>
      %505 = vector.extract_strided_slice %483 {offsets = [0, 1, 0], sizes = [4, 16, 8], strides = [1, 1, 1]} : vector<4x22x8xf32> to vector<4x16x8xf32>
      %506 = vector.broadcast %500 : vector<1x1x8xf32> to vector<4x16x8xf32>
      %507 = arith.mulf %506, %504 : vector<4x16x8xf32>
      %508 = arith.addf %494, %507 : vector<4x16x8xf32>
      %509 = vector.broadcast %503 : vector<1x1x8xf32> to vector<4x16x8xf32>
      %510 = arith.mulf %509, %505 : vector<4x16x8xf32>
      %511 = arith.addf %497, %510 : vector<4x16x8xf32>
      %c30 = arith.constant 30 : index
      %c0_251 = arith.constant 0 : index
      %512 = vector.load %arg3[%c30, %c0_251] : memref<98x8xf32, #tpu.memory_space<vmem>>, vector<1x8xf32>
      %513 = vector.shape_cast %512 : vector<1x8xf32> to vector<8xf32>
      %514 = vector.shape_cast %513 : vector<8xf32> to vector<1x1x8xf32>
      %c79 = arith.constant 79 : index
      %c0_252 = arith.constant 0 : index
      %515 = vector.load %arg3[%c79, %c0_252] : memref<98x8xf32, #tpu.memory_space<vmem>>, vector<1x8xf32>
      %516 = vector.shape_cast %515 : vector<1x8xf32> to vector<8xf32>
      %517 = vector.shape_cast %516 : vector<8xf32> to vector<1x1x8xf32>
      %518 = vector.extract_strided_slice %480 {offsets = [0, 2, 0], sizes = [4, 16, 8], strides = [1, 1, 1]} : vector<4x22x8xf32> to vector<4x16x8xf32>
      %519 = vector.extract_strided_slice %483 {offsets = [0, 2, 0], sizes = [4, 16, 8], strides = [1, 1, 1]} : vector<4x22x8xf32> to vector<4x16x8xf32>
      %520 = vector.broadcast %514 : vector<1x1x8xf32> to vector<4x16x8xf32>
      %521 = arith.mulf %520, %518 : vector<4x16x8xf32>
      %522 = arith.addf %508, %521 : vector<4x16x8xf32>
      %523 = vector.broadcast %517 : vector<1x1x8xf32> to vector<4x16x8xf32>
      %524 = arith.mulf %523, %519 : vector<4x16x8xf32>
      %525 = arith.addf %511, %524 : vector<4x16x8xf32>
      %c31 = arith.constant 31 : index
      %c0_253 = arith.constant 0 : index
      %526 = vector.load %arg3[%c31, %c0_253] : memref<98x8xf32, #tpu.memory_space<vmem>>, vector<1x8xf32>
      %527 = vector.shape_cast %526 : vector<1x8xf32> to vector<8xf32>
      %528 = vector.shape_cast %527 : vector<8xf32> to vector<1x1x8xf32>
      %c80 = arith.constant 80 : index
      %c0_254 = arith.constant 0 : index
      %529 = vector.load %arg3[%c80, %c0_254] : memref<98x8xf32, #tpu.memory_space<vmem>>, vector<1x8xf32>
      %530 = vector.shape_cast %529 : vector<1x8xf32> to vector<8xf32>
      %531 = vector.shape_cast %530 : vector<8xf32> to vector<1x1x8xf32>
      %532 = vector.extract_strided_slice %480 {offsets = [0, 3, 0], sizes = [4, 16, 8], strides = [1, 1, 1]} : vector<4x22x8xf32> to vector<4x16x8xf32>
      %533 = vector.extract_strided_slice %483 {offsets = [0, 3, 0], sizes = [4, 16, 8], strides = [1, 1, 1]} : vector<4x22x8xf32> to vector<4x16x8xf32>
      %534 = vector.broadcast %528 : vector<1x1x8xf32> to vector<4x16x8xf32>
      %535 = arith.mulf %534, %532 : vector<4x16x8xf32>
      %536 = arith.addf %522, %535 : vector<4x16x8xf32>
      %537 = vector.broadcast %531 : vector<1x1x8xf32> to vector<4x16x8xf32>
      %538 = arith.mulf %537, %533 : vector<4x16x8xf32>
      %539 = arith.addf %525, %538 : vector<4x16x8xf32>
      %c32 = arith.constant 32 : index
      %c0_255 = arith.constant 0 : index
      %540 = vector.load %arg3[%c32, %c0_255] : memref<98x8xf32, #tpu.memory_space<vmem>>, vector<1x8xf32>
      %541 = vector.shape_cast %540 : vector<1x8xf32> to vector<8xf32>
      %542 = vector.shape_cast %541 : vector<8xf32> to vector<1x1x8xf32>
      %c81 = arith.constant 81 : index
      %c0_256 = arith.constant 0 : index
      %543 = vector.load %arg3[%c81, %c0_256] : memref<98x8xf32, #tpu.memory_space<vmem>>, vector<1x8xf32>
      %544 = vector.shape_cast %543 : vector<1x8xf32> to vector<8xf32>
      %545 = vector.shape_cast %544 : vector<8xf32> to vector<1x1x8xf32>
      %546 = vector.extract_strided_slice %480 {offsets = [0, 4, 0], sizes = [4, 16, 8], strides = [1, 1, 1]} : vector<4x22x8xf32> to vector<4x16x8xf32>
      %547 = vector.extract_strided_slice %483 {offsets = [0, 4, 0], sizes = [4, 16, 8], strides = [1, 1, 1]} : vector<4x22x8xf32> to vector<4x16x8xf32>
      %548 = vector.broadcast %542 : vector<1x1x8xf32> to vector<4x16x8xf32>
      %549 = arith.mulf %548, %546 : vector<4x16x8xf32>
      %550 = arith.addf %536, %549 : vector<4x16x8xf32>
      %551 = vector.broadcast %545 : vector<1x1x8xf32> to vector<4x16x8xf32>
      %552 = arith.mulf %551, %547 : vector<4x16x8xf32>
      %553 = arith.addf %539, %552 : vector<4x16x8xf32>
      %c33 = arith.constant 33 : index
      %c0_257 = arith.constant 0 : index
      %554 = vector.load %arg3[%c33, %c0_257] : memref<98x8xf32, #tpu.memory_space<vmem>>, vector<1x8xf32>
      %555 = vector.shape_cast %554 : vector<1x8xf32> to vector<8xf32>
      %556 = vector.shape_cast %555 : vector<8xf32> to vector<1x1x8xf32>
      %c82 = arith.constant 82 : index
      %c0_258 = arith.constant 0 : index
      %557 = vector.load %arg3[%c82, %c0_258] : memref<98x8xf32, #tpu.memory_space<vmem>>, vector<1x8xf32>
      %558 = vector.shape_cast %557 : vector<1x8xf32> to vector<8xf32>
      %559 = vector.shape_cast %558 : vector<8xf32> to vector<1x1x8xf32>
      %560 = vector.extract_strided_slice %480 {offsets = [0, 5, 0], sizes = [4, 16, 8], strides = [1, 1, 1]} : vector<4x22x8xf32> to vector<4x16x8xf32>
      %561 = vector.extract_strided_slice %483 {offsets = [0, 5, 0], sizes = [4, 16, 8], strides = [1, 1, 1]} : vector<4x22x8xf32> to vector<4x16x8xf32>
      %562 = vector.broadcast %556 : vector<1x1x8xf32> to vector<4x16x8xf32>
      %563 = arith.mulf %562, %560 : vector<4x16x8xf32>
      %564 = arith.addf %550, %563 : vector<4x16x8xf32>
      %565 = vector.broadcast %559 : vector<1x1x8xf32> to vector<4x16x8xf32>
      %566 = arith.mulf %565, %561 : vector<4x16x8xf32>
      %567 = arith.addf %553, %566 : vector<4x16x8xf32>
      %c34 = arith.constant 34 : index
      %c0_259 = arith.constant 0 : index
      %568 = vector.load %arg3[%c34, %c0_259] : memref<98x8xf32, #tpu.memory_space<vmem>>, vector<1x8xf32>
      %569 = vector.shape_cast %568 : vector<1x8xf32> to vector<8xf32>
      %570 = vector.shape_cast %569 : vector<8xf32> to vector<1x1x8xf32>
      %c83 = arith.constant 83 : index
      %c0_260 = arith.constant 0 : index
      %571 = vector.load %arg3[%c83, %c0_260] : memref<98x8xf32, #tpu.memory_space<vmem>>, vector<1x8xf32>
      %572 = vector.shape_cast %571 : vector<1x8xf32> to vector<8xf32>
      %573 = vector.shape_cast %572 : vector<8xf32> to vector<1x1x8xf32>
      %574 = vector.extract_strided_slice %480 {offsets = [0, 6, 0], sizes = [4, 16, 8], strides = [1, 1, 1]} : vector<4x22x8xf32> to vector<4x16x8xf32>
      %575 = vector.extract_strided_slice %483 {offsets = [0, 6, 0], sizes = [4, 16, 8], strides = [1, 1, 1]} : vector<4x22x8xf32> to vector<4x16x8xf32>
      %576 = vector.broadcast %570 : vector<1x1x8xf32> to vector<4x16x8xf32>
      %577 = arith.mulf %576, %574 : vector<4x16x8xf32>
      %578 = arith.addf %564, %577 : vector<4x16x8xf32>
      %579 = vector.broadcast %573 : vector<1x1x8xf32> to vector<4x16x8xf32>
      %580 = arith.mulf %579, %575 : vector<4x16x8xf32>
      %581 = arith.addf %567, %580 : vector<4x16x8xf32>
      %c5_i32 = arith.constant 5 : i32
      %582 = arith.addi %59, %c5_i32 : i32
      %583 = arith.index_cast %582 : i32 to index
      %c0_261 = arith.constant 0 : index
      %c0_262 = arith.constant 0 : index
      %584 = vector.load %arg6[%583, %c0_261, %c0_262] : memref<22x22x8xf32, #tpu.memory_space<vmem>>, vector<4x22x8xf32>
      %c5_i32_263 = arith.constant 5 : i32
      %585 = arith.addi %59, %c5_i32_263 : i32
      %586 = arith.index_cast %585 : i32 to index
      %c0_264 = arith.constant 0 : index
      %c0_265 = arith.constant 0 : index
      %587 = vector.load %arg7[%586, %c0_264, %c0_265] : memref<22x22x8xf32, #tpu.memory_space<vmem>>, vector<4x22x8xf32>
      %c35 = arith.constant 35 : index
      %c0_266 = arith.constant 0 : index
      %588 = vector.load %arg3[%c35, %c0_266] : memref<98x8xf32, #tpu.memory_space<vmem>>, vector<1x8xf32>
      %589 = vector.shape_cast %588 : vector<1x8xf32> to vector<8xf32>
      %590 = vector.shape_cast %589 : vector<8xf32> to vector<1x1x8xf32>
      %c84 = arith.constant 84 : index
      %c0_267 = arith.constant 0 : index
      %591 = vector.load %arg3[%c84, %c0_267] : memref<98x8xf32, #tpu.memory_space<vmem>>, vector<1x8xf32>
      %592 = vector.shape_cast %591 : vector<1x8xf32> to vector<8xf32>
      %593 = vector.shape_cast %592 : vector<8xf32> to vector<1x1x8xf32>
      %594 = vector.extract_strided_slice %584 {offsets = [0, 0, 0], sizes = [4, 16, 8], strides = [1, 1, 1]} : vector<4x22x8xf32> to vector<4x16x8xf32>
      %595 = vector.extract_strided_slice %587 {offsets = [0, 0, 0], sizes = [4, 16, 8], strides = [1, 1, 1]} : vector<4x22x8xf32> to vector<4x16x8xf32>
      %596 = vector.broadcast %590 : vector<1x1x8xf32> to vector<4x16x8xf32>
      %597 = arith.mulf %596, %594 : vector<4x16x8xf32>
      %598 = arith.addf %578, %597 : vector<4x16x8xf32>
      %599 = vector.broadcast %593 : vector<1x1x8xf32> to vector<4x16x8xf32>
      %600 = arith.mulf %599, %595 : vector<4x16x8xf32>
      %601 = arith.addf %581, %600 : vector<4x16x8xf32>
      %c36 = arith.constant 36 : index
      %c0_268 = arith.constant 0 : index
      %602 = vector.load %arg3[%c36, %c0_268] : memref<98x8xf32, #tpu.memory_space<vmem>>, vector<1x8xf32>
      %603 = vector.shape_cast %602 : vector<1x8xf32> to vector<8xf32>
      %604 = vector.shape_cast %603 : vector<8xf32> to vector<1x1x8xf32>
      %c85 = arith.constant 85 : index
      %c0_269 = arith.constant 0 : index
      %605 = vector.load %arg3[%c85, %c0_269] : memref<98x8xf32, #tpu.memory_space<vmem>>, vector<1x8xf32>
      %606 = vector.shape_cast %605 : vector<1x8xf32> to vector<8xf32>
      %607 = vector.shape_cast %606 : vector<8xf32> to vector<1x1x8xf32>
      %608 = vector.extract_strided_slice %584 {offsets = [0, 1, 0], sizes = [4, 16, 8], strides = [1, 1, 1]} : vector<4x22x8xf32> to vector<4x16x8xf32>
      %609 = vector.extract_strided_slice %587 {offsets = [0, 1, 0], sizes = [4, 16, 8], strides = [1, 1, 1]} : vector<4x22x8xf32> to vector<4x16x8xf32>
      %610 = vector.broadcast %604 : vector<1x1x8xf32> to vector<4x16x8xf32>
      %611 = arith.mulf %610, %608 : vector<4x16x8xf32>
      %612 = arith.addf %598, %611 : vector<4x16x8xf32>
      %613 = vector.broadcast %607 : vector<1x1x8xf32> to vector<4x16x8xf32>
      %614 = arith.mulf %613, %609 : vector<4x16x8xf32>
      %615 = arith.addf %601, %614 : vector<4x16x8xf32>
      %c37 = arith.constant 37 : index
      %c0_270 = arith.constant 0 : index
      %616 = vector.load %arg3[%c37, %c0_270] : memref<98x8xf32, #tpu.memory_space<vmem>>, vector<1x8xf32>
      %617 = vector.shape_cast %616 : vector<1x8xf32> to vector<8xf32>
      %618 = vector.shape_cast %617 : vector<8xf32> to vector<1x1x8xf32>
      %c86 = arith.constant 86 : index
      %c0_271 = arith.constant 0 : index
      %619 = vector.load %arg3[%c86, %c0_271] : memref<98x8xf32, #tpu.memory_space<vmem>>, vector<1x8xf32>
      %620 = vector.shape_cast %619 : vector<1x8xf32> to vector<8xf32>
      %621 = vector.shape_cast %620 : vector<8xf32> to vector<1x1x8xf32>
      %622 = vector.extract_strided_slice %584 {offsets = [0, 2, 0], sizes = [4, 16, 8], strides = [1, 1, 1]} : vector<4x22x8xf32> to vector<4x16x8xf32>
      %623 = vector.extract_strided_slice %587 {offsets = [0, 2, 0], sizes = [4, 16, 8], strides = [1, 1, 1]} : vector<4x22x8xf32> to vector<4x16x8xf32>
      %624 = vector.broadcast %618 : vector<1x1x8xf32> to vector<4x16x8xf32>
      %625 = arith.mulf %624, %622 : vector<4x16x8xf32>
      %626 = arith.addf %612, %625 : vector<4x16x8xf32>
      %627 = vector.broadcast %621 : vector<1x1x8xf32> to vector<4x16x8xf32>
      %628 = arith.mulf %627, %623 : vector<4x16x8xf32>
      %629 = arith.addf %615, %628 : vector<4x16x8xf32>
      %c38 = arith.constant 38 : index
      %c0_272 = arith.constant 0 : index
      %630 = vector.load %arg3[%c38, %c0_272] : memref<98x8xf32, #tpu.memory_space<vmem>>, vector<1x8xf32>
      %631 = vector.shape_cast %630 : vector<1x8xf32> to vector<8xf32>
      %632 = vector.shape_cast %631 : vector<8xf32> to vector<1x1x8xf32>
      %c87 = arith.constant 87 : index
      %c0_273 = arith.constant 0 : index
      %633 = vector.load %arg3[%c87, %c0_273] : memref<98x8xf32, #tpu.memory_space<vmem>>, vector<1x8xf32>
      %634 = vector.shape_cast %633 : vector<1x8xf32> to vector<8xf32>
      %635 = vector.shape_cast %634 : vector<8xf32> to vector<1x1x8xf32>
      %636 = vector.extract_strided_slice %584 {offsets = [0, 3, 0], sizes = [4, 16, 8], strides = [1, 1, 1]} : vector<4x22x8xf32> to vector<4x16x8xf32>
      %637 = vector.extract_strided_slice %587 {offsets = [0, 3, 0], sizes = [4, 16, 8], strides = [1, 1, 1]} : vector<4x22x8xf32> to vector<4x16x8xf32>
      %638 = vector.broadcast %632 : vector<1x1x8xf32> to vector<4x16x8xf32>
      %639 = arith.mulf %638, %636 : vector<4x16x8xf32>
      %640 = arith.addf %626, %639 : vector<4x16x8xf32>
      %641 = vector.broadcast %635 : vector<1x1x8xf32> to vector<4x16x8xf32>
      %642 = arith.mulf %641, %637 : vector<4x16x8xf32>
      %643 = arith.addf %629, %642 : vector<4x16x8xf32>
      %c39 = arith.constant 39 : index
      %c0_274 = arith.constant 0 : index
      %644 = vector.load %arg3[%c39, %c0_274] : memref<98x8xf32, #tpu.memory_space<vmem>>, vector<1x8xf32>
      %645 = vector.shape_cast %644 : vector<1x8xf32> to vector<8xf32>
      %646 = vector.shape_cast %645 : vector<8xf32> to vector<1x1x8xf32>
      %c88 = arith.constant 88 : index
      %c0_275 = arith.constant 0 : index
      %647 = vector.load %arg3[%c88, %c0_275] : memref<98x8xf32, #tpu.memory_space<vmem>>, vector<1x8xf32>
      %648 = vector.shape_cast %647 : vector<1x8xf32> to vector<8xf32>
      %649 = vector.shape_cast %648 : vector<8xf32> to vector<1x1x8xf32>
      %650 = vector.extract_strided_slice %584 {offsets = [0, 4, 0], sizes = [4, 16, 8], strides = [1, 1, 1]} : vector<4x22x8xf32> to vector<4x16x8xf32>
      %651 = vector.extract_strided_slice %587 {offsets = [0, 4, 0], sizes = [4, 16, 8], strides = [1, 1, 1]} : vector<4x22x8xf32> to vector<4x16x8xf32>
      %652 = vector.broadcast %646 : vector<1x1x8xf32> to vector<4x16x8xf32>
      %653 = arith.mulf %652, %650 : vector<4x16x8xf32>
      %654 = arith.addf %640, %653 : vector<4x16x8xf32>
      %655 = vector.broadcast %649 : vector<1x1x8xf32> to vector<4x16x8xf32>
      %656 = arith.mulf %655, %651 : vector<4x16x8xf32>
      %657 = arith.addf %643, %656 : vector<4x16x8xf32>
      %c40 = arith.constant 40 : index
      %c0_276 = arith.constant 0 : index
      %658 = vector.load %arg3[%c40, %c0_276] : memref<98x8xf32, #tpu.memory_space<vmem>>, vector<1x8xf32>
      %659 = vector.shape_cast %658 : vector<1x8xf32> to vector<8xf32>
      %660 = vector.shape_cast %659 : vector<8xf32> to vector<1x1x8xf32>
      %c89 = arith.constant 89 : index
      %c0_277 = arith.constant 0 : index
      %661 = vector.load %arg3[%c89, %c0_277] : memref<98x8xf32, #tpu.memory_space<vmem>>, vector<1x8xf32>
      %662 = vector.shape_cast %661 : vector<1x8xf32> to vector<8xf32>
      %663 = vector.shape_cast %662 : vector<8xf32> to vector<1x1x8xf32>
      %664 = vector.extract_strided_slice %584 {offsets = [0, 5, 0], sizes = [4, 16, 8], strides = [1, 1, 1]} : vector<4x22x8xf32> to vector<4x16x8xf32>
      %665 = vector.extract_strided_slice %587 {offsets = [0, 5, 0], sizes = [4, 16, 8], strides = [1, 1, 1]} : vector<4x22x8xf32> to vector<4x16x8xf32>
      %666 = vector.broadcast %660 : vector<1x1x8xf32> to vector<4x16x8xf32>
      %667 = arith.mulf %666, %664 : vector<4x16x8xf32>
      %668 = arith.addf %654, %667 : vector<4x16x8xf32>
      %669 = vector.broadcast %663 : vector<1x1x8xf32> to vector<4x16x8xf32>
      %670 = arith.mulf %669, %665 : vector<4x16x8xf32>
      %671 = arith.addf %657, %670 : vector<4x16x8xf32>
      %c41 = arith.constant 41 : index
      %c0_278 = arith.constant 0 : index
      %672 = vector.load %arg3[%c41, %c0_278] : memref<98x8xf32, #tpu.memory_space<vmem>>, vector<1x8xf32>
      %673 = vector.shape_cast %672 : vector<1x8xf32> to vector<8xf32>
      %674 = vector.shape_cast %673 : vector<8xf32> to vector<1x1x8xf32>
      %c90 = arith.constant 90 : index
      %c0_279 = arith.constant 0 : index
      %675 = vector.load %arg3[%c90, %c0_279] : memref<98x8xf32, #tpu.memory_space<vmem>>, vector<1x8xf32>
      %676 = vector.shape_cast %675 : vector<1x8xf32> to vector<8xf32>
      %677 = vector.shape_cast %676 : vector<8xf32> to vector<1x1x8xf32>
      %678 = vector.extract_strided_slice %584 {offsets = [0, 6, 0], sizes = [4, 16, 8], strides = [1, 1, 1]} : vector<4x22x8xf32> to vector<4x16x8xf32>
      %679 = vector.extract_strided_slice %587 {offsets = [0, 6, 0], sizes = [4, 16, 8], strides = [1, 1, 1]} : vector<4x22x8xf32> to vector<4x16x8xf32>
      %680 = vector.broadcast %674 : vector<1x1x8xf32> to vector<4x16x8xf32>
      %681 = arith.mulf %680, %678 : vector<4x16x8xf32>
      %682 = arith.addf %668, %681 : vector<4x16x8xf32>
      %683 = vector.broadcast %677 : vector<1x1x8xf32> to vector<4x16x8xf32>
      %684 = arith.mulf %683, %679 : vector<4x16x8xf32>
      %685 = arith.addf %671, %684 : vector<4x16x8xf32>
      %c6_i32 = arith.constant 6 : i32
      %686 = arith.addi %59, %c6_i32 : i32
      %687 = arith.index_cast %686 : i32 to index
      %c0_280 = arith.constant 0 : index
      %c0_281 = arith.constant 0 : index
      %688 = vector.load %arg6[%687, %c0_280, %c0_281] : memref<22x22x8xf32, #tpu.memory_space<vmem>>, vector<4x22x8xf32>
      %c6_i32_282 = arith.constant 6 : i32
      %689 = arith.addi %59, %c6_i32_282 : i32
      %690 = arith.index_cast %689 : i32 to index
      %c0_283 = arith.constant 0 : index
      %c0_284 = arith.constant 0 : index
      %691 = vector.load %arg7[%690, %c0_283, %c0_284] : memref<22x22x8xf32, #tpu.memory_space<vmem>>, vector<4x22x8xf32>
      %c42 = arith.constant 42 : index
      %c0_285 = arith.constant 0 : index
      %692 = vector.load %arg3[%c42, %c0_285] : memref<98x8xf32, #tpu.memory_space<vmem>>, vector<1x8xf32>
      %693 = vector.shape_cast %692 : vector<1x8xf32> to vector<8xf32>
      %694 = vector.shape_cast %693 : vector<8xf32> to vector<1x1x8xf32>
      %c91 = arith.constant 91 : index
      %c0_286 = arith.constant 0 : index
      %695 = vector.load %arg3[%c91, %c0_286] : memref<98x8xf32, #tpu.memory_space<vmem>>, vector<1x8xf32>
      %696 = vector.shape_cast %695 : vector<1x8xf32> to vector<8xf32>
      %697 = vector.shape_cast %696 : vector<8xf32> to vector<1x1x8xf32>
      %698 = vector.extract_strided_slice %688 {offsets = [0, 0, 0], sizes = [4, 16, 8], strides = [1, 1, 1]} : vector<4x22x8xf32> to vector<4x16x8xf32>
      %699 = vector.extract_strided_slice %691 {offsets = [0, 0, 0], sizes = [4, 16, 8], strides = [1, 1, 1]} : vector<4x22x8xf32> to vector<4x16x8xf32>
      %700 = vector.broadcast %694 : vector<1x1x8xf32> to vector<4x16x8xf32>
      %701 = arith.mulf %700, %698 : vector<4x16x8xf32>
      %702 = arith.addf %682, %701 : vector<4x16x8xf32>
      %703 = vector.broadcast %697 : vector<1x1x8xf32> to vector<4x16x8xf32>
      %704 = arith.mulf %703, %699 : vector<4x16x8xf32>
      %705 = arith.addf %685, %704 : vector<4x16x8xf32>
      %c43 = arith.constant 43 : index
      %c0_287 = arith.constant 0 : index
      %706 = vector.load %arg3[%c43, %c0_287] : memref<98x8xf32, #tpu.memory_space<vmem>>, vector<1x8xf32>
      %707 = vector.shape_cast %706 : vector<1x8xf32> to vector<8xf32>
      %708 = vector.shape_cast %707 : vector<8xf32> to vector<1x1x8xf32>
      %c92 = arith.constant 92 : index
      %c0_288 = arith.constant 0 : index
      %709 = vector.load %arg3[%c92, %c0_288] : memref<98x8xf32, #tpu.memory_space<vmem>>, vector<1x8xf32>
      %710 = vector.shape_cast %709 : vector<1x8xf32> to vector<8xf32>
      %711 = vector.shape_cast %710 : vector<8xf32> to vector<1x1x8xf32>
      %712 = vector.extract_strided_slice %688 {offsets = [0, 1, 0], sizes = [4, 16, 8], strides = [1, 1, 1]} : vector<4x22x8xf32> to vector<4x16x8xf32>
      %713 = vector.extract_strided_slice %691 {offsets = [0, 1, 0], sizes = [4, 16, 8], strides = [1, 1, 1]} : vector<4x22x8xf32> to vector<4x16x8xf32>
      %714 = vector.broadcast %708 : vector<1x1x8xf32> to vector<4x16x8xf32>
      %715 = arith.mulf %714, %712 : vector<4x16x8xf32>
      %716 = arith.addf %702, %715 : vector<4x16x8xf32>
      %717 = vector.broadcast %711 : vector<1x1x8xf32> to vector<4x16x8xf32>
      %718 = arith.mulf %717, %713 : vector<4x16x8xf32>
      %719 = arith.addf %705, %718 : vector<4x16x8xf32>
      %c44 = arith.constant 44 : index
      %c0_289 = arith.constant 0 : index
      %720 = vector.load %arg3[%c44, %c0_289] : memref<98x8xf32, #tpu.memory_space<vmem>>, vector<1x8xf32>
      %721 = vector.shape_cast %720 : vector<1x8xf32> to vector<8xf32>
      %722 = vector.shape_cast %721 : vector<8xf32> to vector<1x1x8xf32>
      %c93 = arith.constant 93 : index
      %c0_290 = arith.constant 0 : index
      %723 = vector.load %arg3[%c93, %c0_290] : memref<98x8xf32, #tpu.memory_space<vmem>>, vector<1x8xf32>
      %724 = vector.shape_cast %723 : vector<1x8xf32> to vector<8xf32>
      %725 = vector.shape_cast %724 : vector<8xf32> to vector<1x1x8xf32>
      %726 = vector.extract_strided_slice %688 {offsets = [0, 2, 0], sizes = [4, 16, 8], strides = [1, 1, 1]} : vector<4x22x8xf32> to vector<4x16x8xf32>
      %727 = vector.extract_strided_slice %691 {offsets = [0, 2, 0], sizes = [4, 16, 8], strides = [1, 1, 1]} : vector<4x22x8xf32> to vector<4x16x8xf32>
      %728 = vector.broadcast %722 : vector<1x1x8xf32> to vector<4x16x8xf32>
      %729 = arith.mulf %728, %726 : vector<4x16x8xf32>
      %730 = arith.addf %716, %729 : vector<4x16x8xf32>
      %731 = vector.broadcast %725 : vector<1x1x8xf32> to vector<4x16x8xf32>
      %732 = arith.mulf %731, %727 : vector<4x16x8xf32>
      %733 = arith.addf %719, %732 : vector<4x16x8xf32>
      %c45 = arith.constant 45 : index
      %c0_291 = arith.constant 0 : index
      %734 = vector.load %arg3[%c45, %c0_291] : memref<98x8xf32, #tpu.memory_space<vmem>>, vector<1x8xf32>
      %735 = vector.shape_cast %734 : vector<1x8xf32> to vector<8xf32>
      %736 = vector.shape_cast %735 : vector<8xf32> to vector<1x1x8xf32>
      %c94 = arith.constant 94 : index
      %c0_292 = arith.constant 0 : index
      %737 = vector.load %arg3[%c94, %c0_292] : memref<98x8xf32, #tpu.memory_space<vmem>>, vector<1x8xf32>
      %738 = vector.shape_cast %737 : vector<1x8xf32> to vector<8xf32>
      %739 = vector.shape_cast %738 : vector<8xf32> to vector<1x1x8xf32>
      %740 = vector.extract_strided_slice %688 {offsets = [0, 3, 0], sizes = [4, 16, 8], strides = [1, 1, 1]} : vector<4x22x8xf32> to vector<4x16x8xf32>
      %741 = vector.extract_strided_slice %691 {offsets = [0, 3, 0], sizes = [4, 16, 8], strides = [1, 1, 1]} : vector<4x22x8xf32> to vector<4x16x8xf32>
      %742 = vector.broadcast %736 : vector<1x1x8xf32> to vector<4x16x8xf32>
      %743 = arith.mulf %742, %740 : vector<4x16x8xf32>
      %744 = arith.addf %730, %743 : vector<4x16x8xf32>
      %745 = vector.broadcast %739 : vector<1x1x8xf32> to vector<4x16x8xf32>
      %746 = arith.mulf %745, %741 : vector<4x16x8xf32>
      %747 = arith.addf %733, %746 : vector<4x16x8xf32>
      %c46 = arith.constant 46 : index
      %c0_293 = arith.constant 0 : index
      %748 = vector.load %arg3[%c46, %c0_293] : memref<98x8xf32, #tpu.memory_space<vmem>>, vector<1x8xf32>
      %749 = vector.shape_cast %748 : vector<1x8xf32> to vector<8xf32>
      %750 = vector.shape_cast %749 : vector<8xf32> to vector<1x1x8xf32>
      %c95 = arith.constant 95 : index
      %c0_294 = arith.constant 0 : index
      %751 = vector.load %arg3[%c95, %c0_294] : memref<98x8xf32, #tpu.memory_space<vmem>>, vector<1x8xf32>
      %752 = vector.shape_cast %751 : vector<1x8xf32> to vector<8xf32>
      %753 = vector.shape_cast %752 : vector<8xf32> to vector<1x1x8xf32>
      %754 = vector.extract_strided_slice %688 {offsets = [0, 4, 0], sizes = [4, 16, 8], strides = [1, 1, 1]} : vector<4x22x8xf32> to vector<4x16x8xf32>
      %755 = vector.extract_strided_slice %691 {offsets = [0, 4, 0], sizes = [4, 16, 8], strides = [1, 1, 1]} : vector<4x22x8xf32> to vector<4x16x8xf32>
      %756 = vector.broadcast %750 : vector<1x1x8xf32> to vector<4x16x8xf32>
      %757 = arith.mulf %756, %754 : vector<4x16x8xf32>
      %758 = arith.addf %744, %757 : vector<4x16x8xf32>
      %759 = vector.broadcast %753 : vector<1x1x8xf32> to vector<4x16x8xf32>
      %760 = arith.mulf %759, %755 : vector<4x16x8xf32>
      %761 = arith.addf %747, %760 : vector<4x16x8xf32>
      %c47 = arith.constant 47 : index
      %c0_295 = arith.constant 0 : index
      %762 = vector.load %arg3[%c47, %c0_295] : memref<98x8xf32, #tpu.memory_space<vmem>>, vector<1x8xf32>
      %763 = vector.shape_cast %762 : vector<1x8xf32> to vector<8xf32>
      %764 = vector.shape_cast %763 : vector<8xf32> to vector<1x1x8xf32>
      %c96 = arith.constant 96 : index
      %c0_296 = arith.constant 0 : index
      %765 = vector.load %arg3[%c96, %c0_296] : memref<98x8xf32, #tpu.memory_space<vmem>>, vector<1x8xf32>
      %766 = vector.shape_cast %765 : vector<1x8xf32> to vector<8xf32>
      %767 = vector.shape_cast %766 : vector<8xf32> to vector<1x1x8xf32>
      %768 = vector.extract_strided_slice %688 {offsets = [0, 5, 0], sizes = [4, 16, 8], strides = [1, 1, 1]} : vector<4x22x8xf32> to vector<4x16x8xf32>
      %769 = vector.extract_strided_slice %691 {offsets = [0, 5, 0], sizes = [4, 16, 8], strides = [1, 1, 1]} : vector<4x22x8xf32> to vector<4x16x8xf32>
      %770 = vector.broadcast %764 : vector<1x1x8xf32> to vector<4x16x8xf32>
      %771 = arith.mulf %770, %768 : vector<4x16x8xf32>
      %772 = arith.addf %758, %771 : vector<4x16x8xf32>
      %773 = vector.broadcast %767 : vector<1x1x8xf32> to vector<4x16x8xf32>
      %774 = arith.mulf %773, %769 : vector<4x16x8xf32>
      %775 = arith.addf %761, %774 : vector<4x16x8xf32>
      %c48 = arith.constant 48 : index
      %c0_297 = arith.constant 0 : index
      %776 = vector.load %arg3[%c48, %c0_297] : memref<98x8xf32, #tpu.memory_space<vmem>>, vector<1x8xf32>
      %777 = vector.shape_cast %776 : vector<1x8xf32> to vector<8xf32>
      %778 = vector.shape_cast %777 : vector<8xf32> to vector<1x1x8xf32>
      %c97 = arith.constant 97 : index
      %c0_298 = arith.constant 0 : index
      %779 = vector.load %arg3[%c97, %c0_298] : memref<98x8xf32, #tpu.memory_space<vmem>>, vector<1x8xf32>
      %780 = vector.shape_cast %779 : vector<1x8xf32> to vector<8xf32>
      %781 = vector.shape_cast %780 : vector<8xf32> to vector<1x1x8xf32>
      %782 = vector.extract_strided_slice %688 {offsets = [0, 6, 0], sizes = [4, 16, 8], strides = [1, 1, 1]} : vector<4x22x8xf32> to vector<4x16x8xf32>
      %783 = vector.extract_strided_slice %691 {offsets = [0, 6, 0], sizes = [4, 16, 8], strides = [1, 1, 1]} : vector<4x22x8xf32> to vector<4x16x8xf32>
      %784 = vector.broadcast %778 : vector<1x1x8xf32> to vector<4x16x8xf32>
      %785 = arith.mulf %784, %782 : vector<4x16x8xf32>
      %786 = arith.addf %772, %785 : vector<4x16x8xf32>
      %787 = vector.broadcast %781 : vector<1x1x8xf32> to vector<4x16x8xf32>
      %788 = arith.mulf %787, %783 : vector<4x16x8xf32>
      %789 = arith.addf %775, %788 : vector<4x16x8xf32>
      %790 = arith.addf %786, %789 : vector<4x16x8xf32>
      %791 = vector.broadcast %54 : vector<1x1x8xf32> to vector<4x16x8xf32>
      %792 = arith.addf %790, %791 : vector<4x16x8xf32>
      %793 = arith.negf %792 : vector<4x16x8xf32>
      %794 = math.exp %793 : vector<4x16x8xf32>
      %cst_299 = arith.constant 1.000000e+00 : f32
      %795 = vector.broadcast %cst_299 : f32 to vector<4x16x8xf32>
      %796 = arith.addf %795, %794 : vector<4x16x8xf32>
      %797 = arith.divf %795, %796 : vector<4x16x8xf32>
      %798 = arith.index_cast %59 : i32 to index
      %c0_300 = arith.constant 0 : index
      %c0_301 = arith.constant 0 : index
      %799 = vector.load %arg5[%798, %c0_300, %c0_301] : memref<16x16x8xf32, #tpu.memory_space<vmem>>, vector<4x16x8xf32>
      tpu.vector_store %arg5[%798, %c0_300, %c0_301], %797 {strides = array<i32>} : memref<16x16x8xf32, #tpu.memory_space<vmem>>, vector<4x16x8xf32>,
    }
    %c4_i32_142 = arith.constant 4 : i32
    return
  }
  func.func @transform_0(%arg0: i32) -> (i32, i32, i32) {
    %c0_i32 = arith.constant 0 : i32
    %c0_i32_0 = arith.constant 0 : i32
    %c0_i32_1 = arith.constant 0 : i32
    return %c0_i32, %c0_i32_0, %arg0 : i32, i32, i32
  }
  func.func @transform_1(%arg0: i32) -> (i32, i32, i32) {
    %c0_i32 = arith.constant 0 : i32
    %c0_i32_0 = arith.constant 0 : i32
    %c0_i32_1 = arith.constant 0 : i32
    return %c0_i32, %c0_i32_0, %arg0 : i32, i32, i32
  }
  func.func @transform_2(%arg0: i32) -> (i32, i32) {
    %c0_i32 = arith.constant 0 : i32
    %c0_i32_0 = arith.constant 0 : i32
    return %c0_i32, %arg0 : i32, i32
  }
  func.func @transform_3(%arg0: i32) -> (i32, i32) {
    %c0_i32 = arith.constant 0 : i32
    %c0_i32_0 = arith.constant 0 : i32
    return %c0_i32, %arg0 : i32, i32
  }
  func.func @transform_4(%arg0: i32) -> (i32, i32, i32) {
    %c0_i32 = arith.constant 0 : i32
    %c0_i32_0 = arith.constant 0 : i32
    %c0_i32_1 = arith.constant 0 : i32
    return %c0_i32, %c0_i32_0, %arg0 : i32, i32, i32
  }
}

</mosaic_0001>

<llo_original>
// kernel: tpu_custom_call.1
$region0: #{tpu_custom_call.1}
  #allocation0 [shape = 'u32[]', space=smem, size = 0x4, offset = 0x4, fixed_abs, tag = 'smem constant byte address 0x4 - core index']
  #allocation1 [shape = 'u32[144,128]{1,0:T(1,128)}', space=vmem, size = 0x12000, scoped, tag = 'internal scratch']
  #allocation2 [shape = 'f32[22,22,8]{2,1,0:T(8,128)}', space=vmem, size = 0x42000, scoped, tag = 'scratch operand']
  #allocation3 [shape = 'f32[22,22,8]{2,1,0:T(8,128)}', space=vmem, size = 0x42000, scoped, tag = 'scratch operand']
  %s0 = inlined_call_operand.vmem [shape: f32[16,16,8], index: 0, kind: input, shape index: {}]
  %s1 = inlined_call_operand.vmem [shape: f32[16,16,8], index: 1, kind: input, shape index: {}]
  %s2 = inlined_call_operand.vmem [shape: f32[98,8], index: 2, kind: input, shape index: {}]
  %s3 = inlined_call_operand.vmem [shape: f32[1,8], index: 3, kind: input, shape index: {}]
  %s4 = inlined_call_operand.vmem [shape: f32[16,16,8], index: 4, kind: output, shape index: {}]
  %s5 = sld [smem:[#allocation0]]
  $region33: #{tpu_custom_call.1} parent=0
    _
  %s7 = ssub.s32 1, %s5
  %s8 = scalar_select 0, %s7, %s5
  // Predicated region
  $region2: #{tpu_custom_call.1} parent=0 // pred_check
    _
  $region3: #{tpu_custom_call.1} parent=0 // pred_check_branch
    %10 = sbr.rel (0) target = $region5
  $region4: #{tpu_custom_call.1} parent=0 // pred_region
    _
  $region5: #{tpu_custom_call.1} parent=0 // pred_fallthru
    _
  // Predicated region
  $region6: #{tpu_custom_call.1} parent=0 // pred_check
    _
  $region7: #{tpu_custom_call.1} parent=0 // pred_check_branch
    %12 = sbr.rel (0) target = $region9
  $region8: #{tpu_custom_call.1} parent=0 // pred_region
    _
  $region9: #{tpu_custom_call.1} parent=0 // pred_fallthru
    _
  // Predicated region
  $region10: #{tpu_custom_call.1} parent=0 // pred_check
    _
  $region11: #{tpu_custom_call.1} parent=0 // pred_check_branch
    %14 = sbr.rel (0) target = $region13
  $region12: #{tpu_custom_call.1} parent=0 // pred_region
    _
  $region13: #{tpu_custom_call.1} parent=0 // pred_fallthru
    _
  // Predicated region
  $region14: #{tpu_custom_call.1} parent=0 // pred_check
    _
  $region15: #{tpu_custom_call.1} parent=0 // pred_check_branch
    %16 = sbr.rel (0) target = $region17
  $region16: #{tpu_custom_call.1} parent=0 // pred_region
    _
  $region17: #{tpu_custom_call.1} parent=0 // pred_fallthru
    _
  %v17 = vld [vmem:[%s0] sm:$0xff]
  %v18 = vld [vmem:[%s0 + $0x8] sm:$0xff]
  %v19 = vld [vmem:[%s0 + $0x10] sm:$0xff]
  %v20 = vld [vmem:[%s0 + $0x18] sm:$0xff]
  %v21 = vld [vmem:[%s0 + $0x20] sm:$0xff]
  %v22 = vld [vmem:[%s0 + $0x28] sm:$0xff]
  %v23 = vld [vmem:[%s0 + $0x30] sm:$0xff]
  %v24 = vld [vmem:[%s0 + $0x38] sm:$0xff]
  %v25 = vld [vmem:[%s0 + $0x40] sm:$0xff]
  %v26 = vld [vmem:[%s0 + $0x48] sm:$0xff]
  %v27 = vld [vmem:[%s0 + $0x50] sm:$0xff]
  %v28 = vld [vmem:[%s0 + $0x58] sm:$0xff]
  %v29 = vld [vmem:[%s0 + $0x60] sm:$0xff]
  %v30 = vld [vmem:[%s0 + $0x68] sm:$0xff]
  %v31 = vld [vmem:[%s0 + $0x70] sm:$0xff]
  %v32 = vld [vmem:[%s0 + $0x78] sm:$0xff]
  %v33 = vld [vmem:[%s0 + $0x80] sm:$0xff]
  %v34 = vld [vmem:[%s0 + $0x88] sm:$0xff]
  %v35 = vld [vmem:[%s0 + $0x90] sm:$0xff]
  %v36 = vld [vmem:[%s0 + $0x98] sm:$0xff]
  %v37 = vld [vmem:[%s0 + $0xa0] sm:$0xff]
  %v38 = vld [vmem:[%s0 + $0xa8] sm:$0xff]
  %v39 = vld [vmem:[%s0 + $0xb0] sm:$0xff]
  %v40 = vld [vmem:[%s0 + $0xb8] sm:$0xff]
  %v41 = vld [vmem:[%s0 + $0xc0] sm:$0xff]
  %v42 = vld [vmem:[%s0 + $0xc8] sm:$0xff]
  %v43 = vld [vmem:[%s0 + $0xd0] sm:$0xff]
  %v44 = vld [vmem:[%s0 + $0xd8] sm:$0xff]
  %v45 = vld [vmem:[%s0 + $0xe0] sm:$0xff]
  %v46 = vld [vmem:[%s0 + $0xe8] sm:$0xff]
  %v47 = vld [vmem:[%s0 + $0xf0] sm:$0xff]
  %v48 = vld [vmem:[%s0 + $0xf8] sm:$0xff]
  %s49 = scalar_lea.vmem [#allocation2], 72
  %vm50 = vcmask 64512
  %51 = vst.msk [vmem:[%s49 + $0x3] sm:$0xff] %vm50, %v17
  %52 = vst.msk [vmem:[%s49 + $0xb] sm:$0xff] %vm50, %v18
  %53 = vst.msk [vmem:[%s49 + $0x1b] sm:$0xff] %vm50, %v19
  %54 = vst.msk [vmem:[%s49 + $0x23] sm:$0xff] %vm50, %v20
  %55 = vst.msk [vmem:[%s49 + $0x33] sm:$0xff] %vm50, %v21
  %56 = vst.msk [vmem:[%s49 + $0x3b] sm:$0xff] %vm50, %v22
  %57 = vst.msk [vmem:[%s49 + $0x4b] sm:$0xff] %vm50, %v23
  %58 = vst.msk [vmem:[%s49 + $0x53] sm:$0xff] %vm50, %v24
  %59 = vst.msk [vmem:[%s49 + $0x63] sm:$0xff] %vm50, %v25
  %60 = vst.msk [vmem:[%s49 + $0x6b] sm:$0xff] %vm50, %v26
  %61 = vst.msk [vmem:[%s49 + $0x7b] sm:$0xff] %vm50, %v27
  %62 = vst.msk [vmem:[%s49 + $0x83] sm:$0xff] %vm50, %v28
  %63 = vst.msk [vmem:[%s49 + $0x93] sm:$0xff] %vm50, %v29
  %64 = vst.msk [vmem:[%s49 + $0x9b] sm:$0xff] %vm50, %v30
  %65 = vst.msk [vmem:[%s49 + $0xab] sm:$0xff] %vm50, %v31
  %66 = vst.msk [vmem:[%s49 + $0xb3] sm:$0xff] %vm50, %v32
  %67 = vst.msk [vmem:[%s49 + $0xc3] sm:$0xff] %vm50, %v33
  %68 = vst.msk [vmem:[%s49 + $0xcb] sm:$0xff] %vm50, %v34
  %69 = vst.msk [vmem:[%s49 + $0xdb] sm:$0xff] %vm50, %v35
  %70 = vst.msk [vmem:[%s49 + $0xe3] sm:$0xff] %vm50, %v36
  %71 = vst.msk [vmem:[%s49 + $0xf3] sm:$0xff] %vm50, %v37
  %72 = vst.msk [vmem:[%s49 + $0xfb] sm:$0xff] %vm50, %v38
  %73 = vst.msk [vmem:[%s49 + $0x10b] sm:$0xff] %vm50, %v39
  %74 = vst.msk [vmem:[%s49 + $0x113] sm:$0xff] %vm50, %v40
  %75 = vst.msk [vmem:[%s49 + $0x123] sm:$0xff] %vm50, %v41
  %76 = vst.msk [vmem:[%s49 + $0x12b] sm:$0xff] %vm50, %v42
  %77 = vst.msk [vmem:[%s49 + $0x13b] sm:$0xff] %vm50, %v43
  %78 = vst.msk [vmem:[%s49 + $0x143] sm:$0xff] %vm50, %v44
  %79 = vst.msk [vmem:[%s49 + $0x153] sm:$0xff] %vm50, %v45
  %80 = vst.msk [vmem:[%s49 + $0x15b] sm:$0xff] %vm50, %v46
  %81 = vst.msk [vmem:[%s49 + $0x16b] sm:$0xff] %vm50, %v47
  %82 = vst.msk [vmem:[%s49 + $0x173] sm:$0xff] %vm50, %v48
  %s83 = scalar_lea.vmem %s0, 16
  %v84 = vld [vmem:[%s83] sm:$0xff]
  %v85 = vld [vmem:[%s83 + $0x8] sm:$0xff]
  %s86 = scalar_lea.vmem [#allocation2], 48
  %87 = vst.msk [vmem:[%s86 + $0x3] sm:$0xff] %vm50, %v84
  %88 = vst.msk [vmem:[%s86 + $0xb] sm:$0xff] %vm50, %v85
  %s89 = scalar_lea.vmem %s0, 224
  %v90 = vld [vmem:[%s89] sm:$0xff]
  %v91 = vld [vmem:[%s89 + $0x8] sm:$0xff]
  %s92 = scalar_lea.vmem [#allocation2], 456
  %93 = vst.msk [vmem:[%s92 + $0x3] sm:$0xff] %vm50, %v90
  %94 = vst.msk [vmem:[%s92 + $0xb] sm:$0xff] %vm50, %v91
  %s95 = scalar_lea.vmem %s0, 32
  %v96 = vld [vmem:[%s95] sm:$0xff]
  %v97 = vld [vmem:[%s95 + $0x8] sm:$0xff]
  %s98 = scalar_lea.vmem [#allocation2], 24
  %99 = vst.msk [vmem:[%s98 + $0x3] sm:$0xff] %vm50, %v96
  %100 = vst.msk [vmem:[%s98 + $0xb] sm:$0xff] %vm50, %v97
  %s101 = scalar_lea.vmem %s0, 208
  %v102 = vld [vmem:[%s101] sm:$0xff]
  %v103 = vld [vmem:[%s101 + $0x8] sm:$0xff]
  %s104 = scalar_lea.vmem [#allocation2], 480
  %105 = vst.msk [vmem:[%s104 + $0x3] sm:$0xff] %vm50, %v102
  %106 = vst.msk [vmem:[%s104 + $0xb] sm:$0xff] %vm50, %v103
  %s107 = scalar_lea.vmem %s0, 48
  %v108 = vld [vmem:[%s107] sm:$0xff]
  %v109 = vld [vmem:[%s107 + $0x8] sm:$0xff]
  %110 = vst.msk [vmem:[#allocation2 + $0x3] sm:$0xff] %vm50, %v108
  %111 = vst.msk [vmem:[#allocation2 + $0xb] sm:$0xff] %vm50, %v109
  %s112 = scalar_lea.vmem %s0, 192
  %v113 = vld [vmem:[%s112] sm:$0xff]
  %v114 = vld [vmem:[%s112 + $0x8] sm:$0xff]
  %s115 = scalar_lea.vmem [#allocation2], 504
  %116 = vst.msk [vmem:[%s115 + $0x3] sm:$0xff] %vm50, %v113
  %117 = vst.msk [vmem:[%s115 + $0xb] sm:$0xff] %vm50, %v114
  %v118 = vld [vmem:[#allocation2 + $0x4] sm:$0x1]
  %v119 = vld [vmem:[#allocation2 + $0x1c] sm:$0x1]
  %v120 = vld [vmem:[#allocation2 + $0x34] sm:$0x1]
  %v121 = vld [vmem:[#allocation2 + $0x4c] sm:$0x1]
  %v122 = vld [vmem:[#allocation2 + $0x64] sm:$0x1]
  %v123 = vld [vmem:[#allocation2 + $0x7c] sm:$0x1]
  %v124 = vld [vmem:[#allocation2 + $0x94] sm:$0x1]
  %v125 = vld [vmem:[#allocation2 + $0xac] sm:$0x1]
  %v126 = vld [vmem:[#allocation2 + $0xc4] sm:$0x1]
  %v127 = vld [vmem:[#allocation2 + $0xdc] sm:$0x1]
  %v128 = vld [vmem:[#allocation2 + $0xf4] sm:$0x1]
  %v129 = vld [vmem:[#allocation2 + $0x10c] sm:$0x1]
  %v130 = vld [vmem:[#allocation2 + $0x124] sm:$0x1]
  %v131 = vld [vmem:[#allocation2 + $0x13c] sm:$0x1]
  %v132 = vld [vmem:[#allocation2 + $0x154] sm:$0x1]
  %v133 = vld [vmem:[#allocation2 + $0x16c] sm:$0x1]
  %v134 = vld [vmem:[#allocation2 + $0x184] sm:$0x1]
  %v135 = vld [vmem:[#allocation2 + $0x19c] sm:$0x1]
  %v136 = vld [vmem:[#allocation2 + $0x1b4] sm:$0x1]
  %v137 = vld [vmem:[#allocation2 + $0x1cc] sm:$0x1]
  %v138 = vld [vmem:[#allocation2 + $0x1e4] sm:$0x1]
  %v139 = vld [vmem:[#allocation2 + $0x1fc] sm:$0x1]
  %vm140 = vcmask 57344
  %141 = vst.msk [vmem:[#allocation2 + $0x2] sm:$0x1] %vm140, %v118
  %142 = vst.msk [vmem:[#allocation2 + $0x1a] sm:$0x1] %vm140, %v119
  %143 = vst.msk [vmem:[#allocation2 + $0x32] sm:$0x1] %vm140, %v120
  %144 = vst.msk [vmem:[#allocation2 + $0x4a] sm:$0x1] %vm140, %v121
  %145 = vst.msk [vmem:[#allocation2 + $0x62] sm:$0x1] %vm140, %v122
  %146 = vst.msk [vmem:[#allocation2 + $0x7a] sm:$0x1] %vm140, %v123
  %147 = vst.msk [vmem:[#allocation2 + $0x92] sm:$0x1] %vm140, %v124
  %148 = vst.msk [vmem:[#allocation2 + $0xaa] sm:$0x1] %vm140, %v125
  %149 = vst.msk [vmem:[#allocation2 + $0xc2] sm:$0x1] %vm140, %v126
  %150 = vst.msk [vmem:[#allocation2 + $0xda] sm:$0x1] %vm140, %v127
  %151 = vst.msk [vmem:[#allocation2 + $0xf2] sm:$0x1] %vm140, %v128
  %152 = vst.msk [vmem:[#allocation2 + $0x10a] sm:$0x1] %vm140, %v129
  %153 = vst.msk [vmem:[#allocation2 + $0x122] sm:$0x1] %vm140, %v130
  %154 = vst.msk [vmem:[#allocation2 + $0x13a] sm:$0x1] %vm140, %v131
  %155 = vst.msk [vmem:[#allocation2 + $0x152] sm:$0x1] %vm140, %v132
  %156 = vst.msk [vmem:[#allocation2 + $0x16a] sm:$0x1] %vm140, %v133
  %157 = vst.msk [vmem:[#allocation2 + $0x182] sm:$0x1] %vm140, %v134
  %158 = vst.msk [vmem:[#allocation2 + $0x19a] sm:$0x1] %vm140, %v135
  %159 = vst.msk [vmem:[#allocation2 + $0x1b2] sm:$0x1] %vm140, %v136
  %160 = vst.msk [vmem:[#allocation2 + $0x1ca] sm:$0x1] %vm140, %v137
  %161 = vst.msk [vmem:[#allocation2 + $0x1e2] sm:$0x1] %vm140, %v138
  %162 = vst.msk [vmem:[#allocation2 + $0x1fa] sm:$0x1] %vm140, %v139
  %v163 = vld [vmem:[#allocation2 + $0x11] sm:$0x1]
  %v164 = vld [vmem:[#allocation2 + $0x29] sm:$0x1]
  %v165 = vld [vmem:[#allocation2 + $0x41] sm:$0x1]
  %v166 = vld [vmem:[#allocation2 + $0x59] sm:$0x1]
  %v167 = vld [vmem:[#allocation2 + $0x71] sm:$0x1]
  %v168 = vld [vmem:[#allocation2 + $0x89] sm:$0x1]
  %v169 = vld [vmem:[#allocation2 + $0xa1] sm:$0x1]
  %v170 = vld [vmem:[#allocation2 + $0xb9] sm:$0x1]
  %v171 = vld [vmem:[#allocation2 + $0xd1] sm:$0x1]
  %v172 = vld [vmem:[#allocation2 + $0xe9] sm:$0x1]
  %v173 = vld [vmem:[#allocation2 + $0x101] sm:$0x1]
  %v174 = vld [vmem:[#allocation2 + $0x119] sm:$0x1]
  %v175 = vld [vmem:[#allocation2 + $0x131] sm:$0x1]
  %v176 = vld [vmem:[#allocation2 + $0x149] sm:$0x1]
  %v177 = vld [vmem:[#allocation2 + $0x161] sm:$0x1]
  %v178 = vld [vmem:[#allocation2 + $0x179] sm:$0x1]
  %v179 = vld [vmem:[#allocation2 + $0x191] sm:$0x1]
  %v180 = vld [vmem:[#allocation2 + $0x1a9] sm:$0x1]
  %v181 = vld [vmem:[#allocation2 + $0x1c1] sm:$0x1]
  %v182 = vld [vmem:[#allocation2 + $0x1d9] sm:$0x1]
  %v183 = vld [vmem:[#allocation2 + $0x1f1] sm:$0x1]
  %v184 = vld [vmem:[#allocation2 + $0x209] sm:$0x1]
  %185 = vst.msk [vmem:[#allocation2 + $0x13] sm:$0x1] %vm140, %v163
  %186 = vst.msk [vmem:[#allocation2 + $0x2b] sm:$0x1] %vm140, %v164
  %187 = vst.msk [vmem:[#allocation2 + $0x43] sm:$0x1] %vm140, %v165
  %188 = vst.msk [vmem:[#allocation2 + $0x5b] sm:$0x1] %vm140, %v166
  %189 = vst.msk [vmem:[#allocation2 + $0x73] sm:$0x1] %vm140, %v167
  %190 = vst.msk [vmem:[#allocation2 + $0x8b] sm:$0x1] %vm140, %v168
  %191 = vst.msk [vmem:[#allocation2 + $0xa3] sm:$0x1] %vm140, %v169
  %192 = vst.msk [vmem:[#allocation2 + $0xbb] sm:$0x1] %vm140, %v170
  %193 = vst.msk [vmem:[#allocation2 + $0xd3] sm:$0x1] %vm140, %v171
  %194 = vst.msk [vmem:[#allocation2 + $0xeb] sm:$0x1] %vm140, %v172
  %195 = vst.msk [vmem:[#allocation2 + $0x103] sm:$0x1] %vm140, %v173
  %196 = vst.msk [vmem:[#allocation2 + $0x11b] sm:$0x1] %vm140, %v174
  %197 = vst.msk [vmem:[#allocation2 + $0x133] sm:$0x1] %vm140, %v175
  %198 = vst.msk [vmem:[#allocation2 + $0x14b] sm:$0x1] %vm140, %v176
  %199 = vst.msk [vmem:[#allocation2 + $0x163] sm:$0x1] %vm140, %v177
  %200 = vst.msk [vmem:[#allocation2 + $0x17b] sm:$0x1] %vm140, %v178
  %201 = vst.msk [vmem:[#allocation2 + $0x193] sm:$0x1] %vm140, %v179
  %202 = vst.msk [vmem:[#allocation2 + $0x1ab] sm:$0x1] %vm140, %v180
  %203 = vst.msk [vmem:[#allocation2 + $0x1c3] sm:$0x1] %vm140, %v181
  %204 = vst.msk [vmem:[#allocation2 + $0x1db] sm:$0x1] %vm140, %v182
  %205 = vst.msk [vmem:[#allocation2 + $0x1f3] sm:$0x1] %vm140, %v183
  %206 = vst.msk [vmem:[#allocation2 + $0x20b] sm:$0x1] %vm140, %v184
  %v207 = vld [vmem:[#allocation2 + $0x5] sm:$0x1]
  %v208 = vld [vmem:[#allocation2 + $0x1d] sm:$0x1]
  %v209 = vld [vmem:[#allocation2 + $0x35] sm:$0x1]
  %v210 = vld [vmem:[#allocation2 + $0x4d] sm:$0x1]
  %v211 = vld [vmem:[#allocation2 + $0x65] sm:$0x1]
  %v212 = vld [vmem:[#allocation2 + $0x7d] sm:$0x1]
  %v213 = vld [vmem:[#allocation2 + $0x95] sm:$0x1]
  %v214 = vld [vmem:[#allocation2 + $0xad] sm:$0x1]
  %v215 = vld [vmem:[#allocation2 + $0xc5] sm:$0x1]
  %v216 = vld [vmem:[#allocation2 + $0xdd] sm:$0x1]
  %v217 = vld [vmem:[#allocation2 + $0xf5] sm:$0x1]
  %v218 = vld [vmem:[#allocation2 + $0x10d] sm:$0x1]
  %v219 = vld [vmem:[#allocation2 + $0x125] sm:$0x1]
  %v220 = vld [vmem:[#allocation2 + $0x13d] sm:$0x1]
  %v221 = vld [vmem:[#allocation2 + $0x155] sm:$0x1]
  %v222 = vld [vmem:[#allocation2 + $0x16d] sm:$0x1]
  %v223 = vld [vmem:[#allocation2 + $0x185] sm:$0x1]
  %v224 = vld [vmem:[#allocation2 + $0x19d] sm:$0x1]
  %v225 = vld [vmem:[#allocation2 + $0x1b5] sm:$0x1]
  %v226 = vld [vmem:[#allocation2 + $0x1cd] sm:$0x1]
  %v227 = vld [vmem:[#allocation2 + $0x1e5] sm:$0x1]
  %v228 = vld [vmem:[#allocation2 + $0x1fd] sm:$0x1]
  %229 = vst.msk [vmem:[#allocation2 + $0x1] sm:$0x1] %vm140, %v207
  %230 = vst.msk [vmem:[#allocation2 + $0x19] sm:$0x1] %vm140, %v208
  %231 = vst.msk [vmem:[#allocation2 + $0x31] sm:$0x1] %vm140, %v209
  %232 = vst.msk [vmem:[#allocation2 + $0x49] sm:$0x1] %vm140, %v210
  %233 = vst.msk [vmem:[#allocation2 + $0x61] sm:$0x1] %vm140, %v211
  %234 = vst.msk [vmem:[#allocation2 + $0x79] sm:$0x1] %vm140, %v212
  %235 = vst.msk [vmem:[#allocation2 + $0x91] sm:$0x1] %vm140, %v213
  %236 = vst.msk [vmem:[#allocation2 + $0xa9] sm:$0x1] %vm140, %v214
  %237 = vst.msk [vmem:[#allocation2 + $0xc1] sm:$0x1] %vm140, %v215
  %238 = vst.msk [vmem:[#allocation2 + $0xd9] sm:$0x1] %vm140, %v216
  %239 = vst.msk [vmem:[#allocation2 + $0xf1] sm:$0x1] %vm140, %v217
  %240 = vst.msk [vmem:[#allocation2 + $0x109] sm:$0x1] %vm140, %v218
  %241 = vst.msk [vmem:[#allocation2 + $0x121] sm:$0x1] %vm140, %v219
  %242 = vst.msk [vmem:[#allocation2 + $0x139] sm:$0x1] %vm140, %v220
  %243 = vst.msk [vmem:[#allocation2 + $0x151] sm:$0x1] %vm140, %v221
  %244 = vst.msk [vmem:[#allocation2 + $0x169] sm:$0x1] %vm140, %v222
  %245 = vst.msk [vmem:[#allocation2 + $0x181] sm:$0x1] %vm140, %v223
  %246 = vst.msk [vmem:[#allocation2 + $0x199] sm:$0x1] %vm140, %v224
  %247 = vst.msk [vmem:[#allocation2 + $0x1b1] sm:$0x1] %vm140, %v225
  %248 = vst.msk [vmem:[#allocation2 + $0x1c9] sm:$0x1] %vm140, %v226
  %249 = vst.msk [vmem:[#allocation2 + $0x1e1] sm:$0x1] %vm140, %v227
  %250 = vst.msk [vmem:[#allocation2 + $0x1f9] sm:$0x1] %vm140, %v228
  %v251 = vld [vmem:[#allocation2 + $0x10] sm:$0x1]
  %v252 = vld [vmem:[#allocation2 + $0x28] sm:$0x1]
  %v253 = vld [vmem:[#allocation2 + $0x40] sm:$0x1]
  %v254 = vld [vmem:[#allocation2 + $0x58] sm:$0x1]
  %v255 = vld [vmem:[#allocation2 + $0x70] sm:$0x1]
  %v256 = vld [vmem:[#allocation2 + $0x88] sm:$0x1]
  %v257 = vld [vmem:[#allocation2 + $0xa0] sm:$0x1]
  %v258 = vld [vmem:[#allocation2 + $0xb8] sm:$0x1]
  %v259 = vld [vmem:[#allocation2 + $0xd0] sm:$0x1]
  %v260 = vld [vmem:[#allocation2 + $0xe8] sm:$0x1]
  %v261 = vld [vmem:[#allocation2 + $0x100] sm:$0x1]
  %v262 = vld [vmem:[#allocation2 + $0x118] sm:$0x1]
  %v263 = vld [vmem:[#allocation2 + $0x130] sm:$0x1]
  %v264 = vld [vmem:[#allocation2 + $0x148] sm:$0x1]
  %v265 = vld [vmem:[#allocation2 + $0x160] sm:$0x1]
  %v266 = vld [vmem:[#allocation2 + $0x178] sm:$0x1]
  %v267 = vld [vmem:[#allocation2 + $0x190] sm:$0x1]
  %v268 = vld [vmem:[#allocation2 + $0x1a8] sm:$0x1]
  %v269 = vld [vmem:[#allocation2 + $0x1c0] sm:$0x1]
  %v270 = vld [vmem:[#allocation2 + $0x1d8] sm:$0x1]
  %v271 = vld [vmem:[#allocation2 + $0x1f0] sm:$0x1]
  %v272 = vld [vmem:[#allocation2 + $0x208] sm:$0x1]
  %273 = vst.msk [vmem:[#allocation2 + $0x14] sm:$0x1] %vm140, %v251
  %274 = vst.msk [vmem:[#allocation2 + $0x2c] sm:$0x1] %vm140, %v252
  %275 = vst.msk [vmem:[#allocation2 + $0x44] sm:$0x1] %vm140, %v253
  %276 = vst.msk [vmem:[#allocation2 + $0x5c] sm:$0x1] %vm140, %v254
  %277 = vst.msk [vmem:[#allocation2 + $0x74] sm:$0x1] %vm140, %v255
  %278 = vst.msk [vmem:[#allocation2 + $0x8c] sm:$0x1] %vm140, %v256
  %279 = vst.msk [vmem:[#allocation2 + $0xa4] sm:$0x1] %vm140, %v257
  %280 = vst.msk [vmem:[#allocation2 + $0xbc] sm:$0x1] %vm140, %v258
  %281 = vst.msk [vmem:[#allocation2 + $0xd4] sm:$0x1] %vm140, %v259
  %282 = vst.msk [vmem:[#allocation2 + $0xec] sm:$0x1] %vm140, %v260
  %283 = vst.msk [vmem:[#allocation2 + $0x104] sm:$0x1] %vm140, %v261
  %284 = vst.msk [vmem:[#allocation2 + $0x11c] sm:$0x1] %vm140, %v262
  %285 = vst.msk [vmem:[#allocation2 + $0x134] sm:$0x1] %vm140, %v263
  %286 = vst.msk [vmem:[#allocation2 + $0x14c] sm:$0x1] %vm140, %v264
  %287 = vst.msk [vmem:[#allocation2 + $0x164] sm:$0x1] %vm140, %v265
  %288 = vst.msk [vmem:[#allocation2 + $0x17c] sm:$0x1] %vm140, %v266
  %289 = vst.msk [vmem:[#allocation2 + $0x194] sm:$0x1] %vm140, %v267
  %290 = vst.msk [vmem:[#allocation2 + $0x1ac] sm:$0x1] %vm140, %v268
  %291 = vst.msk [vmem:[#allocation2 + $0x1c4] sm:$0x1] %vm140, %v269
  %292 = vst.msk [vmem:[#allocation2 + $0x1dc] sm:$0x1] %vm140, %v270
  %293 = vst.msk [vmem:[#allocation2 + $0x1f4] sm:$0x1] %vm140, %v271
  %294 = vst.msk [vmem:[#allocation2 + $0x20c] sm:$0x1] %vm140, %v272
  %v295 = vld [vmem:[#allocation2 + $0x6] sm:$0x1]
  %v296 = vld [vmem:[#allocation2 + $0x1e] sm:$0x1]
  %v297 = vld [vmem:[#allocation2 + $0x36] sm:$0x1]
  %v298 = vld [vmem:[#allocation2 + $0x4e] sm:$0x1]
  %v299 = vld [vmem:[#allocation2 + $0x66] sm:$0x1]
  %v300 = vld [vmem:[#allocation2 + $0x7e] sm:$0x1]
  %v301 = vld [vmem:[#allocation2 + $0x96] sm:$0x1]
  %v302 = vld [vmem:[#allocation2 + $0xae] sm:$0x1]
  %v303 = vld [vmem:[#allocation2 + $0xc6] sm:$0x1]
  %v304 = vld [vmem:[#allocation2 + $0xde] sm:$0x1]
  %v305 = vld [vmem:[#allocation2 + $0xf6] sm:$0x1]
  %v306 = vld [vmem:[#allocation2 + $0x10e] sm:$0x1]
  %v307 = vld [vmem:[#allocation2 + $0x126] sm:$0x1]
  %v308 = vld [vmem:[#allocation2 + $0x13e] sm:$0x1]
  %v309 = vld [vmem:[#allocation2 + $0x156] sm:$0x1]
  %v310 = vld [vmem:[#allocation2 + $0x16e] sm:$0x1]
  %v311 = vld [vmem:[#allocation2 + $0x186] sm:$0x1]
  %v312 = vld [vmem:[#allocation2 + $0x19e] sm:$0x1]
  %v313 = vld [vmem:[#allocation2 + $0x1b6] sm:$0x1]
  %v314 = vld [vmem:[#allocation2 + $0x1ce] sm:$0x1]
  %v315 = vld [vmem:[#allocation2 + $0x1e6] sm:$0x1]
  %v316 = vld [vmem:[#allocation2 + $0x1fe] sm:$0x1]
  %317 = vst.msk [vmem:[#allocation2] sm:$0x1] %vm140, %v295
  %318 = vst.msk [vmem:[#allocation2 + $0x18] sm:$0x1] %vm140, %v296
  %319 = vst.msk [vmem:[#allocation2 + $0x30] sm:$0x1] %vm140, %v297
  %320 = vst.msk [vmem:[#allocation2 + $0x48] sm:$0x1] %vm140, %v298
  %321 = vst.msk [vmem:[#allocation2 + $0x60] sm:$0x1] %vm140, %v299
  %322 = vst.msk [vmem:[#allocation2 + $0x78] sm:$0x1] %vm140, %v300
  %323 = vst.msk [vmem:[#allocation2 + $0x90] sm:$0x1] %vm140, %v301
  %324 = vst.msk [vmem:[#allocation2 + $0xa8] sm:$0x1] %vm140, %v302
  %325 = vst.msk [vmem:[#allocation2 + $0xc0] sm:$0x1] %vm140, %v303
  %326 = vst.msk [vmem:[#allocation2 + $0xd8] sm:$0x1] %vm140, %v304
  %327 = vst.msk [vmem:[#allocation2 + $0xf0] sm:$0x1] %vm140, %v305
  %328 = vst.msk [vmem:[#allocation2 + $0x108] sm:$0x1] %vm140, %v306
  %329 = vst.msk [vmem:[#allocation2 + $0x120] sm:$0x1] %vm140, %v307
  %330 = vst.msk [vmem:[#allocation2 + $0x138] sm:$0x1] %vm140, %v308
  %331 = vst.msk [vmem:[#allocation2 + $0x150] sm:$0x1] %vm140, %v309
  %332 = vst.msk [vmem:[#allocation2 + $0x168] sm:$0x1] %vm140, %v310
  %333 = vst.msk [vmem:[#allocation2 + $0x180] sm:$0x1] %vm140, %v311
  %334 = vst.msk [vmem:[#allocation2 + $0x198] sm:$0x1] %vm140, %v312
  %335 = vst.msk [vmem:[#allocation2 + $0x1b0] sm:$0x1] %vm140, %v313
  %336 = vst.msk [vmem:[#allocation2 + $0x1c8] sm:$0x1] %vm140, %v314
  %337 = vst.msk [vmem:[#allocation2 + $0x1e0] sm:$0x1] %vm140, %v315
  %338 = vst.msk [vmem:[#allocation2 + $0x1f8] sm:$0x1] %vm140, %v316
  %v339 = vld [vmem:[#allocation2 + $0xf] sm:$0x1]
  %v340 = vld [vmem:[#allocation2 + $0x27] sm:$0x1]
  %v341 = vld [vmem:[#allocation2 + $0x3f] sm:$0x1]
  %v342 = vld [vmem:[#allocation2 + $0x57] sm:$0x1]
  %v343 = vld [vmem:[#allocation2 + $0x6f] sm:$0x1]
  %v344 = vld [vmem:[#allocation2 + $0x87] sm:$0x1]
  %v345 = vld [vmem:[#allocation2 + $0x9f] sm:$0x1]
  %v346 = vld [vmem:[#allocation2 + $0xb7] sm:$0x1]
  %v347 = vld [vmem:[#allocation2 + $0xcf] sm:$0x1]
  %v348 = vld [vmem:[#allocation2 + $0xe7] sm:$0x1]
  %v349 = vld [vmem:[#allocation2 + $0xff] sm:$0x1]
  %v350 = vld [vmem:[#allocation2 + $0x117] sm:$0x1]
  %v351 = vld [vmem:[#allocation2 + $0x12f] sm:$0x1]
  %v352 = vld [vmem:[#allocation2 + $0x147] sm:$0x1]
  %v353 = vld [vmem:[#allocation2 + $0x15f] sm:$0x1]
  %v354 = vld [vmem:[#allocation2 + $0x177] sm:$0x1]
  %v355 = vld [vmem:[#allocation2 + $0x18f] sm:$0x1]
  %v356 = vld [vmem:[#allocation2 + $0x1a7] sm:$0x1]
  %v357 = vld [vmem:[#allocation2 + $0x1bf] sm:$0x1]
  %v358 = vld [vmem:[#allocation2 + $0x1d7] sm:$0x1]
  %v359 = vld [vmem:[#allocation2 + $0x1ef] sm:$0x1]
  %v360 = vld [vmem:[#allocation2 + $0x207] sm:$0x1]
  %361 = vst.msk [vmem:[#allocation2 + $0x15] sm:$0x1] %vm140, %v339
  %362 = vst.msk [vmem:[#allocation2 + $0x2d] sm:$0x1] %vm140, %v340
  %363 = vst.msk [vmem:[#allocation2 + $0x45] sm:$0x1] %vm140, %v341
  %364 = vst.msk [vmem:[#allocation2 + $0x5d] sm:$0x1] %vm140, %v342
  %365 = vst.msk [vmem:[#allocation2 + $0x75] sm:$0x1] %vm140, %v343
  %366 = vst.msk [vmem:[#allocation2 + $0x8d] sm:$0x1] %vm140, %v344
  %367 = vst.msk [vmem:[#allocation2 + $0xa5] sm:$0x1] %vm140, %v345
  %368 = vst.msk [vmem:[#allocation2 + $0xbd] sm:$0x1] %vm140, %v346
  %369 = vst.msk [vmem:[#allocation2 + $0xd5] sm:$0x1] %vm140, %v347
  %370 = vst.msk [vmem:[#allocation2 + $0xed] sm:$0x1] %vm140, %v348
  %371 = vst.msk [vmem:[#allocation2 + $0x105] sm:$0x1] %vm140, %v349
  %372 = vst.msk [vmem:[#allocation2 + $0x11d] sm:$0x1] %vm140, %v350
  %373 = vst.msk [vmem:[#allocation2 + $0x135] sm:$0x1] %vm140, %v351
  %374 = vst.msk [vmem:[#allocation2 + $0x14d] sm:$0x1] %vm140, %v352
  %375 = vst.msk [vmem:[#allocation2 + $0x165] sm:$0x1] %vm140, %v353
  %376 = vst.msk [vmem:[#allocation2 + $0x17d] sm:$0x1] %vm140, %v354
  %377 = vst.msk [vmem:[#allocation2 + $0x195] sm:$0x1] %vm140, %v355
  %378 = vst.msk [vmem:[#allocation2 + $0x1ad] sm:$0x1] %vm140, %v356
  %379 = vst.msk [vmem:[#allocation2 + $0x1c5] sm:$0x1] %vm140, %v357
  %380 = vst.msk [vmem:[#allocation2 + $0x1dd] sm:$0x1] %vm140, %v358
  %381 = vst.msk [vmem:[#allocation2 + $0x1f5] sm:$0x1] %vm140, %v359
  %382 = vst.msk [vmem:[#allocation2 + $0x20d] sm:$0x1] %vm140, %v360
  %v383 = vld [vmem:[%s1] sm:$0xff]
  %v384 = vld [vmem:[%s1 + $0x8] sm:$0xff]
  %v385 = vld [vmem:[%s1 + $0x10] sm:$0xff]
  %v386 = vld [vmem:[%s1 + $0x18] sm:$0xff]
  %v387 = vld [vmem:[%s1 + $0x20] sm:$0xff]
  %v388 = vld [vmem:[%s1 + $0x28] sm:$0xff]
  %v389 = vld [vmem:[%s1 + $0x30] sm:$0xff]
  %v390 = vld [vmem:[%s1 + $0x38] sm:$0xff]
  %v391 = vld [vmem:[%s1 + $0x40] sm:$0xff]
  %v392 = vld [vmem:[%s1 + $0x48] sm:$0xff]
  %v393 = vld [vmem:[%s1 + $0x50] sm:$0xff]
  %v394 = vld [vmem:[%s1 + $0x58] sm:$0xff]
  %v395 = vld [vmem:[%s1 + $0x60] sm:$0xff]
  %v396 = vld [vmem:[%s1 + $0x68] sm:$0xff]
  %v397 = vld [vmem:[%s1 + $0x70] sm:$0xff]
  %v398 = vld [vmem:[%s1 + $0x78] sm:$0xff]
  %v399 = vld [vmem:[%s1 + $0x80] sm:$0xff]
  %v400 = vld [vmem:[%s1 + $0x88] sm:$0xff]
  %v401 = vld [vmem:[%s1 + $0x90] sm:$0xff]
  %v402 = vld [vmem:[%s1 + $0x98] sm:$0xff]
  %v403 = vld [vmem:[%s1 + $0xa0] sm:$0xff]
  %v404 = vld [vmem:[%s1 + $0xa8] sm:$0xff]
  %v405 = vld [vmem:[%s1 + $0xb0] sm:$0xff]
  %v406 = vld [vmem:[%s1 + $0xb8] sm:$0xff]
  %v407 = vld [vmem:[%s1 + $0xc0] sm:$0xff]
  %v408 = vld [vmem:[%s1 + $0xc8] sm:$0xff]
  %v409 = vld [vmem:[%s1 + $0xd0] sm:$0xff]
  %v410 = vld [vmem:[%s1 + $0xd8] sm:$0xff]
  %v411 = vld [vmem:[%s1 + $0xe0] sm:$0xff]
  %v412 = vld [vmem:[%s1 + $0xe8] sm:$0xff]
  %v413 = vld [vmem:[%s1 + $0xf0] sm:$0xff]
  %v414 = vld [vmem:[%s1 + $0xf8] sm:$0xff]
  %s415 = scalar_lea.vmem [#allocation3], 72
  %416 = vst.msk [vmem:[%s415 + $0x3] sm:$0xff] %vm50, %v383
  %417 = vst.msk [vmem:[%s415 + $0xb] sm:$0xff] %vm50, %v384
  %418 = vst.msk [vmem:[%s415 + $0x1b] sm:$0xff] %vm50, %v385
  %419 = vst.msk [vmem:[%s415 + $0x23] sm:$0xff] %vm50, %v386
  %420 = vst.msk [vmem:[%s415 + $0x33] sm:$0xff] %vm50, %v387
  %421 = vst.msk [vmem:[%s415 + $0x3b] sm:$0xff] %vm50, %v388
  %422 = vst.msk [vmem:[%s415 + $0x4b] sm:$0xff] %vm50, %v389
  %423 = vst.msk [vmem:[%s415 + $0x53] sm:$0xff] %vm50, %v390
  %424 = vst.msk [vmem:[%s415 + $0x63] sm:$0xff] %vm50, %v391
  %425 = vst.msk [vmem:[%s415 + $0x6b] sm:$0xff] %vm50, %v392
  %426 = vst.msk [vmem:[%s415 + $0x7b] sm:$0xff] %vm50, %v393
  %427 = vst.msk [vmem:[%s415 + $0x83] sm:$0xff] %vm50, %v394
  %428 = vst.msk [vmem:[%s415 + $0x93] sm:$0xff] %vm50, %v395
  %429 = vst.msk [vmem:[%s415 + $0x9b] sm:$0xff] %vm50, %v396
  %430 = vst.msk [vmem:[%s415 + $0xab] sm:$0xff] %vm50, %v397
  %431 = vst.msk [vmem:[%s415 + $0xb3] sm:$0xff] %vm50, %v398
  %432 = vst.msk [vmem:[%s415 + $0xc3] sm:$0xff] %vm50, %v399
  %433 = vst.msk [vmem:[%s415 + $0xcb] sm:$0xff] %vm50, %v400
  %434 = vst.msk [vmem:[%s415 + $0xdb] sm:$0xff] %vm50, %v401
  %435 = vst.msk [vmem:[%s415 + $0xe3] sm:$0xff] %vm50, %v402
  %436 = vst.msk [vmem:[%s415 + $0xf3] sm:$0xff] %vm50, %v403
  %437 = vst.msk [vmem:[%s415 + $0xfb] sm:$0xff] %vm50, %v404
  %438 = vst.msk [vmem:[%s415 + $0x10b] sm:$0xff] %vm50, %v405
  %439 = vst.msk [vmem:[%s415 + $0x113] sm:$0xff] %vm50, %v406
  %440 = vst.msk [vmem:[%s415 + $0x123] sm:$0xff] %vm50, %v407
  %441 = vst.msk [vmem:[%s415 + $0x12b] sm:$0xff] %vm50, %v408
  %442 = vst.msk [vmem:[%s415 + $0x13b] sm:$0xff] %vm50, %v409
  %443 = vst.msk [vmem:[%s415 + $0x143] sm:$0xff] %vm50, %v410
  %444 = vst.msk [vmem:[%s415 + $0x153] sm:$0xff] %vm50, %v411
  %445 = vst.msk [vmem:[%s415 + $0x15b] sm:$0xff] %vm50, %v412
  %446 = vst.msk [vmem:[%s415 + $0x16b] sm:$0xff] %vm50, %v413
  %447 = vst.msk [vmem:[%s415 + $0x173] sm:$0xff] %vm50, %v414
  %s448 = scalar_lea.vmem %s1, 16
  %v449 = vld [vmem:[%s448] sm:$0xff]
  %v450 = vld [vmem:[%s448 + $0x8] sm:$0xff]
  %s451 = scalar_lea.vmem [#allocation3], 48
  %452 = vst.msk [vmem:[%s451 + $0x3] sm:$0xff] %vm50, %v449
  %453 = vst.msk [vmem:[%s451 + $0xb] sm:$0xff] %vm50, %v450
  %s454 = scalar_lea.vmem %s1, 224
  %v455 = vld [vmem:[%s454] sm:$0xff]
  %v456 = vld [vmem:[%s454 + $0x8] sm:$0xff]
  %s457 = scalar_lea.vmem [#allocation3], 456
  %458 = vst.msk [vmem:[%s457 + $0x3] sm:$0xff] %vm50, %v455
  %459 = vst.msk [vmem:[%s457 + $0xb] sm:$0xff] %vm50, %v456
  %s460 = scalar_lea.vmem %s1, 32
  %v461 = vld [vmem:[%s460] sm:$0xff]
  %v462 = vld [vmem:[%s460 + $0x8] sm:$0xff]
  %s463 = scalar_lea.vmem [#allocation3], 24
  %464 = vst.msk [vmem:[%s463 + $0x3] sm:$0xff] %vm50, %v461
  %465 = vst.msk [vmem:[%s463 + $0xb] sm:$0xff] %vm50, %v462
  %s466 = scalar_lea.vmem %s1, 208
  %v467 = vld [vmem:[%s466] sm:$0xff]
  %v468 = vld [vmem:[%s466 + $0x8] sm:$0xff]
  %s469 = scalar_lea.vmem [#allocation3], 480
  %470 = vst.msk [vmem:[%s469 + $0x3] sm:$0xff] %vm50, %v467
  %471 = vst.msk [vmem:[%s469 + $0xb] sm:$0xff] %vm50, %v468
  %s472 = scalar_lea.vmem %s1, 48
  %v473 = vld [vmem:[%s472] sm:$0xff]
  %v474 = vld [vmem:[%s472 + $0x8] sm:$0xff]
  %475 = vst.msk [vmem:[#allocation3 + $0x3] sm:$0xff] %vm50, %v473
  %476 = vst.msk [vmem:[#allocation3 + $0xb] sm:$0xff] %vm50, %v474
  %s477 = scalar_lea.vmem %s1, 192
  %v478 = vld [vmem:[%s477] sm:$0xff]
  %v479 = vld [vmem:[%s477 + $0x8] sm:$0xff]
  %s480 = scalar_lea.vmem [#allocation3], 504
  %481 = vst.msk [vmem:[%s480 + $0x3] sm:$0xff] %vm50, %v478
  %482 = vst.msk [vmem:[%s480 + $0xb] sm:$0xff] %vm50, %v479
  %v483 = vld [vmem:[#allocation3 + $0x4] sm:$0x1]
  %v484 = vld [vmem:[#allocation3 + $0x1c] sm:$0x1]
  %v485 = vld [vmem:[#allocation3 + $0x34] sm:$0x1]
  %v486 = vld [vmem:[#allocation3 + $0x4c] sm:$0x1]
  %v487 = vld [vmem:[#allocation3 + $0x64] sm:$0x1]
  %v488 = vld [vmem:[#allocation3 + $0x7c] sm:$0x1]
  %v489 = vld [vmem:[#allocation3 + $0x94] sm:$0x1]
  %v490 = vld [vmem:[#allocation3 + $0xac] sm:$0x1]
  %v491 = vld [vmem:[#allocation3 + $0xc4] sm:$0x1]
  %v492 = vld [vmem:[#allocation3 + $0xdc] sm:$0x1]
  %v493 = vld [vmem:[#allocation3 + $0xf4] sm:$0x1]
  %v494 = vld [vmem:[#allocation3 + $0x10c] sm:$0x1]
  %v495 = vld [vmem:[#allocation3 + $0x124] sm:$0x1]
  %v496 = vld [vmem:[#allocation3 + $0x13c] sm:$0x1]
  %v497 = vld [vmem:[#allocation3 + $0x154] sm:$0x1]
  %v498 = vld [vmem:[#allocation3 + $0x16c] sm:$0x1]
  %v499 = vld [vmem:[#allocation3 + $0x184] sm:$0x1]
  %v500 = vld [vmem:[#allocation3 + $0x19c] sm:$0x1]
  %v501 = vld [vmem:[#allocation3 + $0x1b4] sm:$0x1]
  %v502 = vld [vmem:[#allocation3 + $0x1cc] sm:$0x1]
  %v503 = vld [vmem:[#allocation3 + $0x1e4] sm:$0x1]
  %v504 = vld [vmem:[#allocation3 + $0x1fc] sm:$0x1]
  %505 = vst.msk [vmem:[#allocation3 + $0x2] sm:$0x1] %vm140, %v483
  %506 = vst.msk [vmem:[#allocation3 + $0x1a] sm:$0x1] %vm140, %v484
  %507 = vst.msk [vmem:[#allocation3 + $0x32] sm:$0x1] %vm140, %v485
  %508 = vst.msk [vmem:[#allocation3 + $0x4a] sm:$0x1] %vm140, %v486
  %509 = vst.msk [vmem:[#allocation3 + $0x62] sm:$0x1] %vm140, %v487
  %510 = vst.msk [vmem:[#allocation3 + $0x7a] sm:$0x1] %vm140, %v488
  %511 = vst.msk [vmem:[#allocation3 + $0x92] sm:$0x1] %vm140, %v489
  %512 = vst.msk [vmem:[#allocation3 + $0xaa] sm:$0x1] %vm140, %v490
  %513 = vst.msk [vmem:[#allocation3 + $0xc2] sm:$0x1] %vm140, %v491
  %514 = vst.msk [vmem:[#allocation3 + $0xda] sm:$0x1] %vm140, %v492
  %515 = vst.msk [vmem:[#allocation3 + $0xf2] sm:$0x1] %vm140, %v493
  %516 = vst.msk [vmem:[#allocation3 + $0x10a] sm:$0x1] %vm140, %v494
  %517 = vst.msk [vmem:[#allocation3 + $0x122] sm:$0x1] %vm140, %v495
  %518 = vst.msk [vmem:[#allocation3 + $0x13a] sm:$0x1] %vm140, %v496
  %519 = vst.msk [vmem:[#allocation3 + $0x152] sm:$0x1] %vm140, %v497
  %520 = vst.msk [vmem:[#allocation3 + $0x16a] sm:$0x1] %vm140, %v498
  %521 = vst.msk [vmem:[#allocation3 + $0x182] sm:$0x1] %vm140, %v499
  %522 = vst.msk [vmem:[#allocation3 + $0x19a] sm:$0x1] %vm140, %v500
  %523 = vst.msk [vmem:[#allocation3 + $0x1b2] sm:$0x1] %vm140, %v501
  %524 = vst.msk [vmem:[#allocation3 + $0x1ca] sm:$0x1] %vm140, %v502
  %525 = vst.msk [vmem:[#allocation3 + $0x1e2] sm:$0x1] %vm140, %v503
  %526 = vst.msk [vmem:[#allocation3 + $0x1fa] sm:$0x1] %vm140, %v504
  %v527 = vld [vmem:[#allocation3 + $0x11] sm:$0x1]
  %v528 = vld [vmem:[#allocation3 + $0x29] sm:$0x1]
  %v529 = vld [vmem:[#allocation3 + $0x41] sm:$0x1]
  %v530 = vld [vmem:[#allocation3 + $0x59] sm:$0x1]
  %v531 = vld [vmem:[#allocation3 + $0x71] sm:$0x1]
  %v532 = vld [vmem:[#allocation3 + $0x89] sm:$0x1]
  %v533 = vld [vmem:[#allocation3 + $0xa1] sm:$0x1]
  %v534 = vld [vmem:[#allocation3 + $0xb9] sm:$0x1]
  %v535 = vld [vmem:[#allocation3 + $0xd1] sm:$0x1]
  %v536 = vld [vmem:[#allocation3 + $0xe9] sm:$0x1]
  %v537 = vld [vmem:[#allocation3 + $0x101] sm:$0x1]
  %v538 = vld [vmem:[#allocation3 + $0x119] sm:$0x1]
  %v539 = vld [vmem:[#allocation3 + $0x131] sm:$0x1]
  %v540 = vld [vmem:[#allocation3 + $0x149] sm:$0x1]
  %v541 = vld [vmem:[#allocation3 + $0x161] sm:$0x1]
  %v542 = vld [vmem:[#allocation3 + $0x179] sm:$0x1]
  %v543 = vld [vmem:[#allocation3 + $0x191] sm:$0x1]
  %v544 = vld [vmem:[#allocation3 + $0x1a9] sm:$0x1]
  %v545 = vld [vmem:[#allocation3 + $0x1c1] sm:$0x1]
  %v546 = vld [vmem:[#allocation3 + $0x1d9] sm:$0x1]
  %v547 = vld [vmem:[#allocation3 + $0x1f1] sm:$0x1]
  %v548 = vld [vmem:[#allocation3 + $0x209] sm:$0x1]
  %549 = vst.msk [vmem:[#allocation3 + $0x13] sm:$0x1] %vm140, %v527
  %550 = vst.msk [vmem:[#allocation3 + $0x2b] sm:$0x1] %vm140, %v528
  %551 = vst.msk [vmem:[#allocation3 + $0x43] sm:$0x1] %vm140, %v529
  %552 = vst.msk [vmem:[#allocation3 + $0x5b] sm:$0x1] %vm140, %v530
  %553 = vst.msk [vmem:[#allocation3 + $0x73] sm:$0x1] %vm140, %v531
  %554 = vst.msk [vmem:[#allocation3 + $0x8b] sm:$0x1] %vm140, %v532
  %555 = vst.msk [vmem:[#allocation3 + $0xa3] sm:$0x1] %vm140, %v533
  %556 = vst.msk [vmem:[#allocation3 + $0xbb] sm:$0x1] %vm140, %v534
  %557 = vst.msk [vmem:[#allocation3 + $0xd3] sm:$0x1] %vm140, %v535
  %558 = vst.msk [vmem:[#allocation3 + $0xeb] sm:$0x1] %vm140, %v536
  %559 = vst.msk [vmem:[#allocation3 + $0x103] sm:$0x1] %vm140, %v537
  %560 = vst.msk [vmem:[#allocation3 + $0x11b] sm:$0x1] %vm140, %v538
  %561 = vst.msk [vmem:[#allocation3 + $0x133] sm:$0x1] %vm140, %v539
  %562 = vst.msk [vmem:[#allocation3 + $0x14b] sm:$0x1] %vm140, %v540
  %563 = vst.msk [vmem:[#allocation3 + $0x163] sm:$0x1] %vm140, %v541
  %564 = vst.msk [vmem:[#allocation3 + $0x17b] sm:$0x1] %vm140, %v542
  %565 = vst.msk [vmem:[#allocation3 + $0x193] sm:$0x1] %vm140, %v543
  %566 = vst.msk [vmem:[#allocation3 + $0x1ab] sm:$0x1] %vm140, %v544
  %567 = vst.msk [vmem:[#allocation3 + $0x1c3] sm:$0x1] %vm140, %v545
  %568 = vst.msk [vmem:[#allocation3 + $0x1db] sm:$0x1] %vm140, %v546
  %569 = vst.msk [vmem:[#allocation3 + $0x1f3] sm:$0x1] %vm140, %v547
  %570 = vst.msk [vmem:[#allocation3 + $0x20b] sm:$0x1] %vm140, %v548
  %v571 = vld [vmem:[#allocation3 + $0x5] sm:$0x1]
  %v572 = vld [vmem:[#allocation3 + $0x1d] sm:$0x1]
  %v573 = vld [vmem:[#allocation3 + $0x35] sm:$0x1]
  %v574 = vld [vmem:[#allocation3 + $0x4d] sm:$0x1]
  %v575 = vld [vmem:[#allocation3 + $0x65] sm:$0x1]
  %v576 = vld [vmem:[#allocation3 + $0x7d] sm:$0x1]
  %v577 = vld [vmem:[#allocation3 + $0x95] sm:$0x1]
  %v578 = vld [vmem:[#allocation3 + $0xad] sm:$0x1]
  %v579 = vld [vmem:[#allocation3 + $0xc5] sm:$0x1]
  %v580 = vld [vmem:[#allocation3 + $0xdd] sm:$0x1]
  %v581 = vld [vmem:[#allocation3 + $0xf5] sm:$0x1]
  %v582 = vld [vmem:[#allocation3 + $0x10d] sm:$0x1]
  %v583 = vld [vmem:[#allocation3 + $0x125] sm:$0x1]
  %v584 = vld [vmem:[#allocation3 + $0x13d] sm:$0x1]
  %v585 = vld [vmem:[#allocation3 + $0x155] sm:$0x1]
  %v586 = vld [vmem:[#allocation3 + $0x16d] sm:$0x1]
  %v587 = vld [vmem:[#allocation3 + $0x185] sm:$0x1]
  %v588 = vld [vmem:[#allocation3 + $0x19d] sm:$0x1]
  %v589 = vld [vmem:[#allocation3 + $0x1b5] sm:$0x1]
  %v590 = vld [vmem:[#allocation3 + $0x1cd] sm:$0x1]
  %v591 = vld [vmem:[#allocation3 + $0x1e5] sm:$0x1]
  %v592 = vld [vmem:[#allocation3 + $0x1fd] sm:$0x1]
  %593 = vst.msk [vmem:[#allocation3 + $0x1] sm:$0x1] %vm140, %v571
  %594 = vst.msk [vmem:[#allocation3 + $0x19] sm:$0x1] %vm140, %v572
  %595 = vst.msk [vmem:[#allocation3 + $0x31] sm:$0x1] %vm140, %v573
  %596 = vst.msk [vmem:[#allocation3 + $0x49] sm:$0x1] %vm140, %v574
  %597 = vst.msk [vmem:[#allocation3 + $0x61] sm:$0x1] %vm140, %v575
  %598 = vst.msk [vmem:[#allocation3 + $0x79] sm:$0x1] %vm140, %v576
  %599 = vst.msk [vmem:[#allocation3 + $0x91] sm:$0x1] %vm140, %v577
  %600 = vst.msk [vmem:[#allocation3 + $0xa9] sm:$0x1] %vm140, %v578
  %601 = vst.msk [vmem:[#allocation3 + $0xc1] sm:$0x1] %vm140, %v579
  %602 = vst.msk [vmem:[#allocation3 + $0xd9] sm:$0x1] %vm140, %v580
  %603 = vst.msk [vmem:[#allocation3 + $0xf1] sm:$0x1] %vm140, %v581
  %604 = vst.msk [vmem:[#allocation3 + $0x109] sm:$0x1] %vm140, %v582
  %605 = vst.msk [vmem:[#allocation3 + $0x121] sm:$0x1] %vm140, %v583
  %606 = vst.msk [vmem:[#allocation3 + $0x139] sm:$0x1] %vm140, %v584
  %607 = vst.msk [vmem:[#allocation3 + $0x151] sm:$0x1] %vm140, %v585
  %608 = vst.msk [vmem:[#allocation3 + $0x169] sm:$0x1] %vm140, %v586
  %609 = vst.msk [vmem:[#allocation3 + $0x181] sm:$0x1] %vm140, %v587
  %610 = vst.msk [vmem:[#allocation3 + $0x199] sm:$0x1] %vm140, %v588
  %611 = vst.msk [vmem:[#allocation3 + $0x1b1] sm:$0x1] %vm140, %v589
  %612 = vst.msk [vmem:[#allocation3 + $0x1c9] sm:$0x1] %vm140, %v590
  %613 = vst.msk [vmem:[#allocation3 + $0x1e1] sm:$0x1] %vm140, %v591
  %614 = vst.msk [vmem:[#allocation3 + $0x1f9] sm:$0x1] %vm140, %v592
  %v615 = vld [vmem:[#allocation3 + $0x10] sm:$0x1]
  %v616 = vld [vmem:[#allocation3 + $0x28] sm:$0x1]
  %v617 = vld [vmem:[#allocation3 + $0x40] sm:$0x1]
  %v618 = vld [vmem:[#allocation3 + $0x58] sm:$0x1]
  %v619 = vld [vmem:[#allocation3 + $0x70] sm:$0x1]
  %v620 = vld [vmem:[#allocation3 + $0x88] sm:$0x1]
  %v621 = vld [vmem:[#allocation3 + $0xa0] sm:$0x1]
  %v622 = vld [vmem:[#allocation3 + $0xb8] sm:$0x1]
  %v623 = vld [vmem:[#allocation3 + $0xd0] sm:$0x1]
  %v624 = vld [vmem:[#allocation3 + $0xe8] sm:$0x1]
  %v625 = vld [vmem:[#allocation3 + $0x100] sm:$0x1]
  %v626 = vld [vmem:[#allocation3 + $0x118] sm:$0x1]
  %v627 = vld [vmem:[#allocation3 + $0x130] sm:$0x1]
  %v628 = vld [vmem:[#allocation3 + $0x148] sm:$0x1]
  %v629 = vld [vmem:[#allocation3 + $0x160] sm:$0x1]
  %v630 = vld [vmem:[#allocation3 + $0x178] sm:$0x1]
  %v631 = vld [vmem:[#allocation3 + $0x190] sm:$0x1]
  %v632 = vld [vmem:[#allocation3 + $0x1a8] sm:$0x1]
  %v633 = vld [vmem:[#allocation3 + $0x1c0] sm:$0x1]
  %v634 = vld [vmem:[#allocation3 + $0x1d8] sm:$0x1]
  %v635 = vld [vmem:[#allocation3 + $0x1f0] sm:$0x1]
  %v636 = vld [vmem:[#allocation3 + $0x208] sm:$0x1]
  %637 = vst.msk [vmem:[#allocation3 + $0x14] sm:$0x1] %vm140, %v615
  %638 = vst.msk [vmem:[#allocation3 + $0x2c] sm:$0x1] %vm140, %v616
  %639 = vst.msk [vmem:[#allocation3 + $0x44] sm:$0x1] %vm140, %v617
  %640 = vst.msk [vmem:[#allocation3 + $0x5c] sm:$0x1] %vm140, %v618
  %641 = vst.msk [vmem:[#allocation3 + $0x74] sm:$0x1] %vm140, %v619
  %642 = vst.msk [vmem:[#allocation3 + $0x8c] sm:$0x1] %vm140, %v620
  %643 = vst.msk [vmem:[#allocation3 + $0xa4] sm:$0x1] %vm140, %v621
  %644 = vst.msk [vmem:[#allocation3 + $0xbc] sm:$0x1] %vm140, %v622
  %645 = vst.msk [vmem:[#allocation3 + $0xd4] sm:$0x1] %vm140, %v623
  %646 = vst.msk [vmem:[#allocation3 + $0xec] sm:$0x1] %vm140, %v624
  %647 = vst.msk [vmem:[#allocation3 + $0x104] sm:$0x1] %vm140, %v625
  %648 = vst.msk [vmem:[#allocation3 + $0x11c] sm:$0x1] %vm140, %v626
  %649 = vst.msk [vmem:[#allocation3 + $0x134] sm:$0x1] %vm140, %v627
  %650 = vst.msk [vmem:[#allocation3 + $0x14c] sm:$0x1] %vm140, %v628
  %651 = vst.msk [vmem:[#allocation3 + $0x164] sm:$0x1] %vm140, %v629
  %652 = vst.msk [vmem:[#allocation3 + $0x17c] sm:$0x1] %vm140, %v630
  %653 = vst.msk [vmem:[#allocation3 + $0x194] sm:$0x1] %vm140, %v631
  %654 = vst.msk [vmem:[#allocation3 + $0x1ac] sm:$0x1] %vm140, %v632
  %655 = vst.msk [vmem:[#allocation3 + $0x1c4] sm:$0x1] %vm140, %v633
  %656 = vst.msk [vmem:[#allocation3 + $0x1dc] sm:$0x1] %vm140, %v634
  %657 = vst.msk [vmem:[#allocation3 + $0x1f4] sm:$0x1] %vm140, %v635
  %658 = vst.msk [vmem:[#allocation3 + $0x20c] sm:$0x1] %vm140, %v636
  %v659 = vld [vmem:[#allocation3 + $0x6] sm:$0x1]
  %v660 = vld [vmem:[#allocation3 + $0x1e] sm:$0x1]
  %v661 = vld [vmem:[#allocation3 + $0x36] sm:$0x1]
  %v662 = vld [vmem:[#allocation3 + $0x4e] sm:$0x1]
  %v663 = vld [vmem:[#allocation3 + $0x66] sm:$0x1]
  %v664 = vld [vmem:[#allocation3 + $0x7e] sm:$0x1]
  %v665 = vld [vmem:[#allocation3 + $0x96] sm:$0x1]
  %v666 = vld [vmem:[#allocation3 + $0xae] sm:$0x1]
  %v667 = vld [vmem:[#allocation3 + $0xc6] sm:$0x1]
  %v668 = vld [vmem:[#allocation3 + $0xde] sm:$0x1]
  %v669 = vld [vmem:[#allocation3 + $0xf6] sm:$0x1]
  %v670 = vld [vmem:[#allocation3 + $0x10e] sm:$0x1]
  %v671 = vld [vmem:[#allocation3 + $0x126] sm:$0x1]
  %v672 = vld [vmem:[#allocation3 + $0x13e] sm:$0x1]
  %v673 = vld [vmem:[#allocation3 + $0x156] sm:$0x1]
  %v674 = vld [vmem:[#allocation3 + $0x16e] sm:$0x1]
  %v675 = vld [vmem:[#allocation3 + $0x186] sm:$0x1]
  %v676 = vld [vmem:[#allocation3 + $0x19e] sm:$0x1]
  %v677 = vld [vmem:[#allocation3 + $0x1b6] sm:$0x1]
  %v678 = vld [vmem:[#allocation3 + $0x1ce] sm:$0x1]
  %v679 = vld [vmem:[#allocation3 + $0x1e6] sm:$0x1]
  %v680 = vld [vmem:[#allocation3 + $0x1fe] sm:$0x1]
  %681 = vst.msk [vmem:[#allocation3] sm:$0x1] %vm140, %v659
  %682 = vst.msk [vmem:[#allocation3 + $0x18] sm:$0x1] %vm140, %v660
  %683 = vst.msk [vmem:[#allocation3 + $0x30] sm:$0x1] %vm140, %v661
  %684 = vst.msk [vmem:[#allocation3 + $0x48] sm:$0x1] %vm140, %v662
  %685 = vst.msk [vmem:[#allocation3 + $0x60] sm:$0x1] %vm140, %v663
  %686 = vst.msk [vmem:[#allocation3 + $0x78] sm:$0x1] %vm140, %v664
  %687 = vst.msk [vmem:[#allocation3 + $0x90] sm:$0x1] %vm140, %v665
  %688 = vst.msk [vmem:[#allocation3 + $0xa8] sm:$0x1] %vm140, %v666
  %689 = vst.msk [vmem:[#allocation3 + $0xc0] sm:$0x1] %vm140, %v667
  %690 = vst.msk [vmem:[#allocation3 + $0xd8] sm:$0x1] %vm140, %v668
  %691 = vst.msk [vmem:[#allocation3 + $0xf0] sm:$0x1] %vm140, %v669
  %692 = vst.msk [vmem:[#allocation3 + $0x108] sm:$0x1] %vm140, %v670
  %693 = vst.msk [vmem:[#allocation3 + $0x120] sm:$0x1] %vm140, %v671
  %694 = vst.msk [vmem:[#allocation3 + $0x138] sm:$0x1] %vm140, %v672
  %695 = vst.msk [vmem:[#allocation3 + $0x150] sm:$0x1] %vm140, %v673
  %696 = vst.msk [vmem:[#allocation3 + $0x168] sm:$0x1] %vm140, %v674
  %697 = vst.msk [vmem:[#allocation3 + $0x180] sm:$0x1] %vm140, %v675
  %698 = vst.msk [vmem:[#allocation3 + $0x198] sm:$0x1] %vm140, %v676
  %699 = vst.msk [vmem:[#allocation3 + $0x1b0] sm:$0x1] %vm140, %v677
  %700 = vst.msk [vmem:[#allocation3 + $0x1c8] sm:$0x1] %vm140, %v678
  %701 = vst.msk [vmem:[#allocation3 + $0x1e0] sm:$0x1] %vm140, %v679
  %702 = vst.msk [vmem:[#allocation3 + $0x1f8] sm:$0x1] %vm140, %v680
  %v703 = vld [vmem:[#allocation3 + $0xf] sm:$0x1]
  %v704 = vld [vmem:[#allocation3 + $0x27] sm:$0x1]
  %v705 = vld [vmem:[#allocation3 + $0x3f] sm:$0x1]
  %v706 = vld [vmem:[#allocation3 + $0x57] sm:$0x1]
  %v707 = vld [vmem:[#allocation3 + $0x6f] sm:$0x1]
  %v708 = vld [vmem:[#allocation3 + $0x87] sm:$0x1]
  %v709 = vld [vmem:[#allocation3 + $0x9f] sm:$0x1]
  %v710 = vld [vmem:[#allocation3 + $0xb7] sm:$0x1]
  %v711 = vld [vmem:[#allocation3 + $0xcf] sm:$0x1]
  %v712 = vld [vmem:[#allocation3 + $0xe7] sm:$0x1]
  %v713 = vld [vmem:[#allocation3 + $0xff] sm:$0x1]
  %v714 = vld [vmem:[#allocation3 + $0x117] sm:$0x1]
  %v715 = vld [vmem:[#allocation3 + $0x12f] sm:$0x1]
  %v716 = vld [vmem:[#allocation3 + $0x147] sm:$0x1]
  %v717 = vld [vmem:[#allocation3 + $0x15f] sm:$0x1]
  %v718 = vld [vmem:[#allocation3 + $0x177] sm:$0x1]
  %v719 = vld [vmem:[#allocation3 + $0x18f] sm:$0x1]
  %v720 = vld [vmem:[#allocation3 + $0x1a7] sm:$0x1]
  %v721 = vld [vmem:[#allocation3 + $0x1bf] sm:$0x1]
  %v722 = vld [vmem:[#allocation3 + $0x1d7] sm:$0x1]
  %v723 = vld [vmem:[#allocation3 + $0x1ef] sm:$0x1]
  %v724 = vld [vmem:[#allocation3 + $0x207] sm:$0x1]
  %725 = vst.msk [vmem:[#allocation3 + $0x15] sm:$0x1] %vm140, %v703
  %726 = vst.msk [vmem:[#allocation3 + $0x2d] sm:$0x1] %vm140, %v704
  %727 = vst.msk [vmem:[#allocation3 + $0x45] sm:$0x1] %vm140, %v705
  %728 = vst.msk [vmem:[#allocation3 + $0x5d] sm:$0x1] %vm140, %v706
  %729 = vst.msk [vmem:[#allocation3 + $0x75] sm:$0x1] %vm140, %v707
  %730 = vst.msk [vmem:[#allocation3 + $0x8d] sm:$0x1] %vm140, %v708
  %731 = vst.msk [vmem:[#allocation3 + $0xa5] sm:$0x1] %vm140, %v709
  %732 = vst.msk [vmem:[#allocation3 + $0xbd] sm:$0x1] %vm140, %v710
  %733 = vst.msk [vmem:[#allocation3 + $0xd5] sm:$0x1] %vm140, %v711
  %734 = vst.msk [vmem:[#allocation3 + $0xed] sm:$0x1] %vm140, %v712
  %735 = vst.msk [vmem:[#allocation3 + $0x105] sm:$0x1] %vm140, %v713
  %736 = vst.msk [vmem:[#allocation3 + $0x11d] sm:$0x1] %vm140, %v714
  %737 = vst.msk [vmem:[#allocation3 + $0x135] sm:$0x1] %vm140, %v715
  %738 = vst.msk [vmem:[#allocation3 + $0x14d] sm:$0x1] %vm140, %v716
  %739 = vst.msk [vmem:[#allocation3 + $0x165] sm:$0x1] %vm140, %v717
  %740 = vst.msk [vmem:[#allocation3 + $0x17d] sm:$0x1] %vm140, %v718
  %741 = vst.msk [vmem:[#allocation3 + $0x195] sm:$0x1] %vm140, %v719
  %742 = vst.msk [vmem:[#allocation3 + $0x1ad] sm:$0x1] %vm140, %v720
  %743 = vst.msk [vmem:[#allocation3 + $0x1c5] sm:$0x1] %vm140, %v721
  %744 = vst.msk [vmem:[#allocation3 + $0x1dd] sm:$0x1] %vm140, %v722
  %745 = vst.msk [vmem:[#allocation3 + $0x1f5] sm:$0x1] %vm140, %v723
  %746 = vst.msk [vmem:[#allocation3 + $0x20d] sm:$0x1] %vm140, %v724
  %v747 = vld [vmem:[%s3] sm:$0x1]
  loop: start=0, step=1, limit=4
  $region18: #{tpu_custom_call.1} parent=0 // loop_pre_header
    _
  $region19: #{tpu_custom_call.1} parent=0 // loop_header
    %s749 = sphi 0, %s753
    %p750 = scmp.ge.s32.totalorder %s749, 4
  $region20: #{tpu_custom_call.1} parent=0 // loop_header_branch
    %752 = sbr.rel (%p750) target = $region24
  $region21: #{tpu_custom_call.1} parent=0 // loop_body
    %s754 = smul.u32 %s749, 4
    %s755 = smul.u32 %s754, 24
    %s756 = scalar_lea.vmem [#allocation2], %s755
    %v757 = vld [vmem:[%s756] sm:$0xff]
    %v758 = vld [vmem:[%s756 + $0x8] sm:$0xff]
    %v759 = vld [vmem:[%s756 + $0x10] sm:$0x3f]
    %v760 = vld [vmem:[%s756 + $0x18] sm:$0xff]
    %v761 = vld [vmem:[%s756 + $0x20] sm:$0xff]
    %v762 = vld [vmem:[%s756 + $0x28] sm:$0x3f]
    %v763 = vld [vmem:[%s756 + $0x30] sm:$0xff]
    %v764 = vld [vmem:[%s756 + $0x38] sm:$0xff]
    %v765 = vld [vmem:[%s756 + $0x40] sm:$0x3f]
    %v766 = vld [vmem:[%s756 + $0x48] sm:$0xff]
    %v767 = vld [vmem:[%s756 + $0x50] sm:$0xff]
    %v768 = vld [vmem:[%s756 + $0x58] sm:$0x3f]
    %s769 = scalar_lea.vmem [#allocation3], %s755
    %v770 = vld [vmem:[%s769] sm:$0xff]
    %v771 = vld [vmem:[%s769 + $0x8] sm:$0xff]
    %v772 = vld [vmem:[%s769 + $0x10] sm:$0x3f]
    %v773 = vld [vmem:[%s769 + $0x18] sm:$0xff]
    %v774 = vld [vmem:[%s769 + $0x20] sm:$0xff]
    %v775 = vld [vmem:[%s769 + $0x28] sm:$0x3f]
    %v776 = vld [vmem:[%s769 + $0x30] sm:$0xff]
    %v777 = vld [vmem:[%s769 + $0x38] sm:$0xff]
    %v778 = vld [vmem:[%s769 + $0x40] sm:$0x3f]
    %v779 = vld [vmem:[%s769 + $0x48] sm:$0xff]
    %v780 = vld [vmem:[%s769 + $0x50] sm:$0xff]
    %v781 = vld [vmem:[%s769 + $0x58] sm:$0x3f]
    %v782 = vld [vmem:[%s2] sm:$0x1]
    %v783 = vld [vmem:[%s2 + $0x31] sm:$0x1]
    %v784 = vlaneseq
    %v785 = vshrl.u32 %v784, 7
    %v786 = vsub.s32 0, %v785
    %v787 = vrot.slane %v782, %v786
    %v788 = vmul.f32 %v787, %v757
    %v789 = vmul.f32 %v787, %v758
    %v790 = vmul.f32 %v787, %v760
    %v791 = vmul.f32 %v787, %v761
    %v792 = vmul.f32 %v787, %v763
    %v793 = vmul.f32 %v787, %v764
    %v794 = vmul.f32 %v787, %v766
    %v795 = vmul.f32 %v787, %v767
    %v796 = vadd.f32 %v788, 0.0
    %v797 = vadd.f32 %v789, 0.0
    %v798 = vadd.f32 %v790, 0.0
    %v799 = vadd.f32 %v791, 0.0
    %v800 = vadd.f32 %v792, 0.0
    %v801 = vadd.f32 %v793, 0.0
    %v802 = vadd.f32 %v794, 0.0
    %v803 = vadd.f32 %v795, 0.0
    %v804 = vlaneseq
    %v805 = vshrl.u32 %v804, 7
    %v806 = vsub.s32 0, %v805
    %v807 = vrot.slane %v783, %v806
    %v808 = vmul.f32 %v807, %v770
    %v809 = vmul.f32 %v807, %v771
    %v810 = vmul.f32 %v807, %v773
    %v811 = vmul.f32 %v807, %v774
    %v812 = vmul.f32 %v807, %v776
    %v813 = vmul.f32 %v807, %v777
    %v814 = vmul.f32 %v807, %v779
    %v815 = vmul.f32 %v807, %v780
    %v816 = vadd.f32 %v808, 0.0
    %v817 = vadd.f32 %v809, 0.0
    %v818 = vadd.f32 %v810, 0.0
    %v819 = vadd.f32 %v811, 0.0
    %v820 = vadd.f32 %v812, 0.0
    %v821 = vadd.f32 %v813, 0.0
    %v822 = vadd.f32 %v814, 0.0
    %v823 = vadd.f32 %v815, 0.0
    %v824 = vld [vmem:[%s2 + $0x1] sm:$0x1]
    %v825 = vld [vmem:[%s2 + $0x32] sm:$0x1]
    %v826 = vlaneseq
    %v827 = vshrl.u32 %v826, 7
    %v828 = vsub.s32 0, %v827
    %v829 = vrot.slane %v824, %v828
    %v830 = vmul.f32 %v829, %v757
    %v831 = vmul.f32 %v829, %v758
    %v832 = vmul.f32 %v829, %v759
    %v833 = vmul.f32 %v829, %v760
    %v834 = vmul.f32 %v829, %v761
    %v835 = vmul.f32 %v829, %v762
    %v836 = vmul.f32 %v829, %v763
    %v837 = vmul.f32 %v829, %v764
    %v838 = vmul.f32 %v829, %v765
    %v839 = vmul.f32 %v829, %v766
    %v840 = vmul.f32 %v829, %v767
    %v841 = vmul.f32 %v829, %v768
    %vm854 = vcmask 1046528
    %v855 = vrot.slane %v830, 1
    %v856 = vrot.slane %v831, 1
    %v857 = vsel %vm854, %v855, %v856
    %v858 = vrot.slane %v832, 1
    %v859 = vsel %vm854, %v856, %v858
    %v860 = vrot.slane %v833, 1
    %v861 = vrot.slane %v834, 1
    %v862 = vsel %vm854, %v860, %v861
    %v863 = vrot.slane %v835, 1
    %v864 = vsel %vm854, %v861, %v863
    %v865 = vrot.slane %v836, 1
    %v866 = vrot.slane %v837, 1
    %v867 = vsel %vm854, %v865, %v866
    %v868 = vrot.slane %v838, 1
    %v869 = vsel %vm854, %v866, %v868
    %v870 = vrot.slane %v839, 1
    %v871 = vrot.slane %v840, 1
    %v872 = vsel %vm854, %v870, %v871
    %v873 = vrot.slane %v841, 1
    %v874 = vsel %vm854, %v871, %v873
    %v883 = vadd.f32 %v796, %v857
    %v884 = vadd.f32 %v797, %v859
    %v885 = vadd.f32 %v798, %v862
    %v886 = vadd.f32 %v799, %v864
    %v887 = vadd.f32 %v800, %v867
    %v888 = vadd.f32 %v801, %v869
    %v889 = vadd.f32 %v802, %v872
    %v890 = vadd.f32 %v803, %v874
    %v891 = vlaneseq
    %v892 = vshrl.u32 %v891, 7
    %v893 = vsub.s32 0, %v892
    %v894 = vrot.slane %v825, %v893
    %v895 = vmul.f32 %v894, %v770
    %v896 = vmul.f32 %v894, %v771
    %v897 = vmul.f32 %v894, %v772
    %v898 = vmul.f32 %v894, %v773
    %v899 = vmul.f32 %v894, %v774
    %v900 = vmul.f32 %v894, %v775
    %v901 = vmul.f32 %v894, %v776
    %v902 = vmul.f32 %v894, %v777
    %v903 = vmul.f32 %v894, %v778
    %v904 = vmul.f32 %v894, %v779
    %v905 = vmul.f32 %v894, %v780
    %v906 = vmul.f32 %v894, %v781
    %v919 = vrot.slane %v895, 1
    %v920 = vrot.slane %v896, 1
    %v921 = vsel %vm854, %v919, %v920
    %v922 = vrot.slane %v897, 1
    %v923 = vsel %vm854, %v920, %v922
    %v924 = vrot.slane %v898, 1
    %v925 = vrot.slane %v899, 1
    %v926 = vsel %vm854, %v924, %v925
    %v927 = vrot.slane %v900, 1
    %v928 = vsel %vm854, %v925, %v927
    %v929 = vrot.slane %v901, 1
    %v930 = vrot.slane %v902, 1
    %v931 = vsel %vm854, %v929, %v930
    %v932 = vrot.slane %v903, 1
    %v933 = vsel %vm854, %v930, %v932
    %v934 = vrot.slane %v904, 1
    %v935 = vrot.slane %v905, 1
    %v936 = vsel %vm854, %v934, %v935
    %v937 = vrot.slane %v906, 1
    %v938 = vsel %vm854, %v935, %v937
    %v947 = vadd.f32 %v816, %v921
    %v948 = vadd.f32 %v817, %v923
    %v949 = vadd.f32 %v818, %v926
    %v950 = vadd.f32 %v819, %v928
    %v951 = vadd.f32 %v820, %v931
    %v952 = vadd.f32 %v821, %v933
    %v953 = vadd.f32 %v822, %v936
    %v954 = vadd.f32 %v823, %v938
    %v955 = vld [vmem:[%s2 + $0x2] sm:$0x1]
    %v956 = vld [vmem:[%s2 + $0x33] sm:$0x1]
    %v957 = vlaneseq
    %v958 = vshrl.u32 %v957, 7
    %v959 = vsub.s32 0, %v958
    %v960 = vrot.slane %v955, %v959
    %v961 = vmul.f32 %v960, %v757
    %v962 = vmul.f32 %v960, %v758
    %v963 = vmul.f32 %v960, %v759
    %v964 = vmul.f32 %v960, %v760
    %v965 = vmul.f32 %v960, %v761
    %v966 = vmul.f32 %v960, %v762
    %v967 = vmul.f32 %v960, %v763
    %v968 = vmul.f32 %v960, %v764
    %v969 = vmul.f32 %v960, %v765
    %v970 = vmul.f32 %v960, %v766
    %v971 = vmul.f32 %v960, %v767
    %v972 = vmul.f32 %v960, %v768
    %vm985 = vcmask 1045504
    %v986 = vrot.slane %v961, 2
    %v987 = vrot.slane %v962, 2
    %v988 = vsel %vm985, %v986, %v987
    %v989 = vrot.slane %v963, 2
    %v990 = vsel %vm985, %v987, %v989
    %v991 = vrot.slane %v964, 2
    %v992 = vrot.slane %v965, 2
    %v993 = vsel %vm985, %v991, %v992
    %v994 = vrot.slane %v966, 2
    %v995 = vsel %vm985, %v992, %v994
    %v996 = vrot.slane %v967, 2
    %v997 = vrot.slane %v968, 2
    %v998 = vsel %vm985, %v996, %v997
    %v999 = vrot.slane %v969, 2
    %v1000 = vsel %vm985, %v997, %v999
    %v1001 = vrot.slane %v970, 2
    %v1002 = vrot.slane %v971, 2
    %v1003 = vsel %vm985, %v1001, %v1002
    %v1004 = vrot.slane %v972, 2
    %v1005 = vsel %vm985, %v1002, %v1004
    %v1014 = vadd.f32 %v883, %v988
    %v1015 = vadd.f32 %v884, %v990
    %v1016 = vadd.f32 %v885, %v993
    %v1017 = vadd.f32 %v886, %v995
    %v1018 = vadd.f32 %v887, %v998
    %v1019 = vadd.f32 %v888, %v1000
    %v1020 = vadd.f32 %v889, %v1003
    %v1021 = vadd.f32 %v890, %v1005
    %v1022 = vlaneseq
    %v1023 = vshrl.u32 %v1022, 7
    %v1024 = vsub.s32 0, %v1023
    %v1025 = vrot.slane %v956, %v1024
    %v1026 = vmul.f32 %v1025, %v770
    %v1027 = vmul.f32 %v1025, %v771
    %v1028 = vmul.f32 %v1025, %v772
    %v1029 = vmul.f32 %v1025, %v773
    %v1030 = vmul.f32 %v1025, %v774
    %v1031 = vmul.f32 %v1025, %v775
    %v1032 = vmul.f32 %v1025, %v776
    %v1033 = vmul.f32 %v1025, %v777
    %v1034 = vmul.f32 %v1025, %v778
    %v1035 = vmul.f32 %v1025, %v779
    %v1036 = vmul.f32 %v1025, %v780
    %v1037 = vmul.f32 %v1025, %v781
    %v1050 = vrot.slane %v1026, 2
    %v1051 = vrot.slane %v1027, 2
    %v1052 = vsel %vm985, %v1050, %v1051
    %v1053 = vrot.slane %v1028, 2
    %v1054 = vsel %vm985, %v1051, %v1053
    %v1055 = vrot.slane %v1029, 2
    %v1056 = vrot.slane %v1030, 2
    %v1057 = vsel %vm985, %v1055, %v1056
    %v1058 = vrot.slane %v1031, 2
    %v1059 = vsel %vm985, %v1056, %v1058
    %v1060 = vrot.slane %v1032, 2
    %v1061 = vrot.slane %v1033, 2
    %v1062 = vsel %vm985, %v1060, %v1061
    %v1063 = vrot.slane %v1034, 2
    %v1064 = vsel %vm985, %v1061, %v1063
    %v1065 = vrot.slane %v1035, 2
    %v1066 = vrot.slane %v1036, 2
    %v1067 = vsel %vm985, %v1065, %v1066
    %v1068 = vrot.slane %v1037, 2
    %v1069 = vsel %vm985, %v1066, %v1068
    %v1078 = vadd.f32 %v947, %v1052
    %v1079 = vadd.f32 %v948, %v1054
    %v1080 = vadd.f32 %v949, %v1057
    %v1081 = vadd.f32 %v950, %v1059
    %v1082 = vadd.f32 %v951, %v1062
    %v1083 = vadd.f32 %v952, %v1064
    %v1084 = vadd.f32 %v953, %v1067
    %v1085 = vadd.f32 %v954, %v1069
    %v1086 = vld [vmem:[%s2 + $0x3] sm:$0x1]
    %v1087 = vld [vmem:[%s2 + $0x34] sm:$0x1]
    %v1088 = vlaneseq
    %v1089 = vshrl.u32 %v1088, 7
    %v1090 = vsub.s32 0, %v1089
    %v1091 = vrot.slane %v1086, %v1090
    %v1092 = vmul.f32 %v1091, %v757
    %v1093 = vmul.f32 %v1091, %v758
    %v1094 = vmul.f32 %v1091, %v759
    %v1095 = vmul.f32 %v1091, %v760
    %v1096 = vmul.f32 %v1091, %v761
    %v1097 = vmul.f32 %v1091, %v762
    %v1098 = vmul.f32 %v1091, %v763
    %v1099 = vmul.f32 %v1091, %v764
    %v1100 = vmul.f32 %v1091, %v765
    %v1101 = vmul.f32 %v1091, %v766
    %v1102 = vmul.f32 %v1091, %v767
    %v1103 = vmul.f32 %v1091, %v768
    %vm1116 = vcmask 1044480
    %v1117 = vrot.slane %v1092, 3
    %v1118 = vrot.slane %v1093, 3
    %v1119 = vsel %vm1116, %v1117, %v1118
    %v1120 = vrot.slane %v1094, 3
    %v1121 = vsel %vm1116, %v1118, %v1120
    %v1122 = vrot.slane %v1095, 3
    %v1123 = vrot.slane %v1096, 3
    %v1124 = vsel %vm1116, %v1122, %v1123
    %v1125 = vrot.slane %v1097, 3
    %v1126 = vsel %vm1116, %v1123, %v1125
    %v1127 = vrot.slane %v1098, 3
    %v1128 = vrot.slane %v1099, 3
    %v1129 = vsel %vm1116, %v1127, %v1128
    %v1130 = vrot.slane %v1100, 3
    %v1131 = vsel %vm1116, %v1128, %v1130
    %v1132 = vrot.slane %v1101, 3
    %v1133 = vrot.slane %v1102, 3
    %v1134 = vsel %vm1116, %v1132, %v1133
    %v1135 = vrot.slane %v1103, 3
    %v1136 = vsel %vm1116, %v1133, %v1135
    %v1145 = vadd.f32 %v1014, %v1119
    %v1146 = vadd.f32 %v1015, %v1121
    %v1147 = vadd.f32 %v1016, %v1124
    %v1148 = vadd.f32 %v1017, %v1126
    %v1149 = vadd.f32 %v1018, %v1129
    %v1150 = vadd.f32 %v1019, %v1131
    %v1151 = vadd.f32 %v1020, %v1134
    %v1152 = vadd.f32 %v1021, %v1136
    %v1153 = vlaneseq
    %v1154 = vshrl.u32 %v1153, 7
    %v1155 = vsub.s32 0, %v1154
    %v1156 = vrot.slane %v1087, %v1155
    %v1157 = vmul.f32 %v1156, %v770
    %v1158 = vmul.f32 %v1156, %v771
    %v1159 = vmul.f32 %v1156, %v772
    %v1160 = vmul.f32 %v1156, %v773
    %v1161 = vmul.f32 %v1156, %v774
    %v1162 = vmul.f32 %v1156, %v775
    %v1163 = vmul.f32 %v1156, %v776
    %v1164 = vmul.f32 %v1156, %v777
    %v1165 = vmul.f32 %v1156, %v778
    %v1166 = vmul.f32 %v1156, %v779
    %v1167 = vmul.f32 %v1156, %v780
    %v1168 = vmul.f32 %v1156, %v781
    %v1181 = vrot.slane %v1157, 3
    %v1182 = vrot.slane %v1158, 3
    %v1183 = vsel %vm1116, %v1181, %v1182
    %v1184 = vrot.slane %v1159, 3
    %v1185 = vsel %vm1116, %v1182, %v1184
    %v1186 = vrot.slane %v1160, 3
    %v1187 = vrot.slane %v1161, 3
    %v1188 = vsel %vm1116, %v1186, %v1187
    %v1189 = vrot.slane %v1162, 3
    %v1190 = vsel %vm1116, %v1187, %v1189
    %v1191 = vrot.slane %v1163, 3
    %v1192 = vrot.slane %v1164, 3
    %v1193 = vsel %vm1116, %v1191, %v1192
    %v1194 = vrot.slane %v1165, 3
    %v1195 = vsel %vm1116, %v1192, %v1194
    %v1196 = vrot.slane %v1166, 3
    %v1197 = vrot.slane %v1167, 3
    %v1198 = vsel %vm1116, %v1196, %v1197
    %v1199 = vrot.slane %v1168, 3
    %v1200 = vsel %vm1116, %v1197, %v1199
    %v1209 = vadd.f32 %v1078, %v1183
    %v1210 = vadd.f32 %v1079, %v1185
    %v1211 = vadd.f32 %v1080, %v1188
    %v1212 = vadd.f32 %v1081, %v1190
    %v1213 = vadd.f32 %v1082, %v1193
    %v1214 = vadd.f32 %v1083, %v1195
    %v1215 = vadd.f32 %v1084, %v1198
    %v1216 = vadd.f32 %v1085, %v1200
    %v1217 = vld [vmem:[%s2 + $0x4] sm:$0x1]
    %v1218 = vld [vmem:[%s2 + $0x35] sm:$0x1]
    %v1219 = vlaneseq
    %v1220 = vshrl.u32 %v1219, 7
    %v1221 = vsub.s32 0, %v1220
    %v1222 = vrot.slane %v1217, %v1221
    %v1223 = vmul.f32 %v1222, %v757
    %v1224 = vmul.f32 %v1222, %v758
    %v1225 = vmul.f32 %v1222, %v759
    %v1226 = vmul.f32 %v1222, %v760
    %v1227 = vmul.f32 %v1222, %v761
    %v1228 = vmul.f32 %v1222, %v762
    %v1229 = vmul.f32 %v1222, %v763
    %v1230 = vmul.f32 %v1222, %v764
    %v1231 = vmul.f32 %v1222, %v765
    %v1232 = vmul.f32 %v1222, %v766
    %v1233 = vmul.f32 %v1222, %v767
    %v1234 = vmul.f32 %v1222, %v768
    %vm1247 = vcmask 1043456
    %v1248 = vrot.slane %v1223, 4
    %v1249 = vrot.slane %v1224, 4
    %v1250 = vsel %vm1247, %v1248, %v1249
    %v1251 = vrot.slane %v1225, 4
    %v1252 = vsel %vm1247, %v1249, %v1251
    %v1253 = vrot.slane %v1226, 4
    %v1254 = vrot.slane %v1227, 4
    %v1255 = vsel %vm1247, %v1253, %v1254
    %v1256 = vrot.slane %v1228, 4
    %v1257 = vsel %vm1247, %v1254, %v1256
    %v1258 = vrot.slane %v1229, 4
    %v1259 = vrot.slane %v1230, 4
    %v1260 = vsel %vm1247, %v1258, %v1259
    %v1261 = vrot.slane %v1231, 4
    %v1262 = vsel %vm1247, %v1259, %v1261
    %v1263 = vrot.slane %v1232, 4
    %v1264 = vrot.slane %v1233, 4
    %v1265 = vsel %vm1247, %v1263, %v1264
    %v1266 = vrot.slane %v1234, 4
    %v1267 = vsel %vm1247, %v1264, %v1266
    %v1276 = vadd.f32 %v1145, %v1250
    %v1277 = vadd.f32 %v1146, %v1252
    %v1278 = vadd.f32 %v1147, %v1255
    %v1279 = vadd.f32 %v1148, %v1257
    %v1280 = vadd.f32 %v1149, %v1260
    %v1281 = vadd.f32 %v1150, %v1262
    %v1282 = vadd.f32 %v1151, %v1265
    %v1283 = vadd.f32 %v1152, %v1267
    %v1284 = vlaneseq
    %v1285 = vshrl.u32 %v1284, 7
    %v1286 = vsub.s32 0, %v1285
    %v1287 = vrot.slane %v1218, %v1286
    %v1288 = vmul.f32 %v1287, %v770
    %v1289 = vmul.f32 %v1287, %v771
    %v1290 = vmul.f32 %v1287, %v772
    %v1291 = vmul.f32 %v1287, %v773
    %v1292 = vmul.f32 %v1287, %v774
    %v1293 = vmul.f32 %v1287, %v775
    %v1294 = vmul.f32 %v1287, %v776
    %v1295 = vmul.f32 %v1287, %v777
    %v1296 = vmul.f32 %v1287, %v778
    %v1297 = vmul.f32 %v1287, %v779
    %v1298 = vmul.f32 %v1287, %v780
    %v1299 = vmul.f32 %v1287, %v781
    %v1312 = vrot.slane %v1288, 4
    %v1313 = vrot.slane %v1289, 4
    %v1314 = vsel %vm1247, %v1312, %v1313
    %v1315 = vrot.slane %v1290, 4
    %v1316 = vsel %vm1247, %v1313, %v1315
    %v1317 = vrot.slane %v1291, 4
    %v1318 = vrot.slane %v1292, 4
    %v1319 = vsel %vm1247, %v1317, %v1318
    %v1320 = vrot.slane %v1293, 4
    %v1321 = vsel %vm1247, %v1318, %v1320
    %v1322 = vrot.slane %v1294, 4
    %v1323 = vrot.slane %v1295, 4
    %v1324 = vsel %vm1247, %v1322, %v1323
    %v1325 = vrot.slane %v1296, 4
    %v1326 = vsel %vm1247, %v1323, %v1325
    %v1327 = vrot.slane %v1297, 4
    %v1328 = vrot.slane %v1298, 4
    %v1329 = vsel %vm1247, %v1327, %v1328
    %v1330 = vrot.slane %v1299, 4
    %v1331 = vsel %vm1247, %v1328, %v1330
    %v1340 = vadd.f32 %v1209, %v1314
    %v1341 = vadd.f32 %v1210, %v1316
    %v1342 = vadd.f32 %v1211, %v1319
    %v1343 = vadd.f32 %v1212, %v1321
    %v1344 = vadd.f32 %v1213, %v1324
    %v1345 = vadd.f32 %v1214, %v1326
    %v1346 = vadd.f32 %v1215, %v1329
    %v1347 = vadd.f32 %v1216, %v1331
    %v1348 = vld [vmem:[%s2 + $0x5] sm:$0x1]
    %v1349 = vld [vmem:[%s2 + $0x36] sm:$0x1]
    %v1350 = vlaneseq
    %v1351 = vshrl.u32 %v1350, 7
    %v1352 = vsub.s32 0, %v1351
    %v1353 = vrot.slane %v1348, %v1352
    %v1354 = vmul.f32 %v1353, %v757
    %v1355 = vmul.f32 %v1353, %v758
    %v1356 = vmul.f32 %v1353, %v759
    %v1357 = vmul.f32 %v1353, %v760
    %v1358 = vmul.f32 %v1353, %v761
    %v1359 = vmul.f32 %v1353, %v762
    %v1360 = vmul.f32 %v1353, %v763
    %v1361 = vmul.f32 %v1353, %v764
    %v1362 = vmul.f32 %v1353, %v765
    %v1363 = vmul.f32 %v1353, %v766
    %v1364 = vmul.f32 %v1353, %v767
    %v1365 = vmul.f32 %v1353, %v768
    %vm1378 = vcmask 1042432
    %v1379 = vrot.slane %v1354, 5
    %v1380 = vrot.slane %v1355, 5
    %v1381 = vsel %vm1378, %v1379, %v1380
    %v1382 = vrot.slane %v1356, 5
    %v1383 = vsel %vm1378, %v1380, %v1382
    %v1384 = vrot.slane %v1357, 5
    %v1385 = vrot.slane %v1358, 5
    %v1386 = vsel %vm1378, %v1384, %v1385
    %v1387 = vrot.slane %v1359, 5
    %v1388 = vsel %vm1378, %v1385, %v1387
    %v1389 = vrot.slane %v1360, 5
    %v1390 = vrot.slane %v1361, 5
    %v1391 = vsel %vm1378, %v1389, %v1390
    %v1392 = vrot.slane %v1362, 5
    %v1393 = vsel %vm1378, %v1390, %v1392
    %v1394 = vrot.slane %v1363, 5
    %v1395 = vrot.slane %v1364, 5
    %v1396 = vsel %vm1378, %v1394, %v1395
    %v1397 = vrot.slane %v1365, 5
    %v1398 = vsel %vm1378, %v1395, %v1397
    %v1407 = vadd.f32 %v1276, %v1381
    %v1408 = vadd.f32 %v1277, %v1383
    %v1409 = vadd.f32 %v1278, %v1386
    %v1410 = vadd.f32 %v1279, %v1388
    %v1411 = vadd.f32 %v1280, %v1391
    %v1412 = vadd.f32 %v1281, %v1393
    %v1413 = vadd.f32 %v1282, %v1396
    %v1414 = vadd.f32 %v1283, %v1398
    %v1415 = vlaneseq
    %v1416 = vshrl.u32 %v1415, 7
    %v1417 = vsub.s32 0, %v1416
    %v1418 = vrot.slane %v1349, %v1417
    %v1419 = vmul.f32 %v1418, %v770
    %v1420 = vmul.f32 %v1418, %v771
    %v1421 = vmul.f32 %v1418, %v772
    %v1422 = vmul.f32 %v1418, %v773
    %v1423 = vmul.f32 %v1418, %v774
    %v1424 = vmul.f32 %v1418, %v775
    %v1425 = vmul.f32 %v1418, %v776
    %v1426 = vmul.f32 %v1418, %v777
    %v1427 = vmul.f32 %v1418, %v778
    %v1428 = vmul.f32 %v1418, %v779
    %v1429 = vmul.f32 %v1418, %v780
    %v1430 = vmul.f32 %v1418, %v781
    %v1443 = vrot.slane %v1419, 5
    %v1444 = vrot.slane %v1420, 5
    %v1445 = vsel %vm1378, %v1443, %v1444
    %v1446 = vrot.slane %v1421, 5
    %v1447 = vsel %vm1378, %v1444, %v1446
    %v1448 = vrot.slane %v1422, 5
    %v1449 = vrot.slane %v1423, 5
    %v1450 = vsel %vm1378, %v1448, %v1449
    %v1451 = vrot.slane %v1424, 5
    %v1452 = vsel %vm1378, %v1449, %v1451
    %v1453 = vrot.slane %v1425, 5
    %v1454 = vrot.slane %v1426, 5
    %v1455 = vsel %vm1378, %v1453, %v1454
    %v1456 = vrot.slane %v1427, 5
    %v1457 = vsel %vm1378, %v1454, %v1456
    %v1458 = vrot.slane %v1428, 5
    %v1459 = vrot.slane %v1429, 5
    %v1460 = vsel %vm1378, %v1458, %v1459
    %v1461 = vrot.slane %v1430, 5
    %v1462 = vsel %vm1378, %v1459, %v1461
    %v1471 = vadd.f32 %v1340, %v1445
    %v1472 = vadd.f32 %v1341, %v1447
    %v1473 = vadd.f32 %v1342, %v1450
    %v1474 = vadd.f32 %v1343, %v1452
    %v1475 = vadd.f32 %v1344, %v1455
    %v1476 = vadd.f32 %v1345, %v1457
    %v1477 = vadd.f32 %v1346, %v1460
    %v1478 = vadd.f32 %v1347, %v1462
    %v1479 = vld [vmem:[%s2 + $0x6] sm:$0x1]
    %v1480 = vld [vmem:[%s2 + $0x37] sm:$0x1]
    %v1481 = vlaneseq
    %v1482 = vshrl.u32 %v1481, 7
    %v1483 = vsub.s32 0, %v1482
    %v1484 = vrot.slane %v1479, %v1483
    %v1485 = vmul.f32 %v1484, %v757
    %v1486 = vmul.f32 %v1484, %v758
    %v1487 = vmul.f32 %v1484, %v759
    %v1488 = vmul.f32 %v1484, %v760
    %v1489 = vmul.f32 %v1484, %v761
    %v1490 = vmul.f32 %v1484, %v762
    %v1491 = vmul.f32 %v1484, %v763
    %v1492 = vmul.f32 %v1484, %v764
    %v1493 = vmul.f32 %v1484, %v765
    %v1494 = vmul.f32 %v1484, %v766
    %v1495 = vmul.f32 %v1484, %v767
    %v1496 = vmul.f32 %v1484, %v768
    %vm1509 = vcmask 1041408
    %v1510 = vrot.slane %v1485, 6
    %v1511 = vrot.slane %v1486, 6
    %v1512 = vsel %vm1509, %v1510, %v1511
    %v1513 = vrot.slane %v1487, 6
    %v1514 = vsel %vm1509, %v1511, %v1513
    %v1515 = vrot.slane %v1488, 6
    %v1516 = vrot.slane %v1489, 6
    %v1517 = vsel %vm1509, %v1515, %v1516
    %v1518 = vrot.slane %v1490, 6
    %v1519 = vsel %vm1509, %v1516, %v1518
    %v1520 = vrot.slane %v1491, 6
    %v1521 = vrot.slane %v1492, 6
    %v1522 = vsel %vm1509, %v1520, %v1521
    %v1523 = vrot.slane %v1493, 6
    %v1524 = vsel %vm1509, %v1521, %v1523
    %v1525 = vrot.slane %v1494, 6
    %v1526 = vrot.slane %v1495, 6
    %v1527 = vsel %vm1509, %v1525, %v1526
    %v1528 = vrot.slane %v1496, 6
    %v1529 = vsel %vm1509, %v1526, %v1528
    %v1538 = vadd.f32 %v1407, %v1512
    %v1539 = vadd.f32 %v1408, %v1514
    %v1540 = vadd.f32 %v1409, %v1517
    %v1541 = vadd.f32 %v1410, %v1519
    %v1542 = vadd.f32 %v1411, %v1522
    %v1543 = vadd.f32 %v1412, %v1524
    %v1544 = vadd.f32 %v1413, %v1527
    %v1545 = vadd.f32 %v1414, %v1529
    %v1546 = vlaneseq
    %v1547 = vshrl.u32 %v1546, 7
    %v1548 = vsub.s32 0, %v1547
    %v1549 = vrot.slane %v1480, %v1548
    %v1550 = vmul.f32 %v1549, %v770
    %v1551 = vmul.f32 %v1549, %v771
    %v1552 = vmul.f32 %v1549, %v772
    %v1553 = vmul.f32 %v1549, %v773
    %v1554 = vmul.f32 %v1549, %v774
    %v1555 = vmul.f32 %v1549, %v775
    %v1556 = vmul.f32 %v1549, %v776
    %v1557 = vmul.f32 %v1549, %v777
    %v1558 = vmul.f32 %v1549, %v778
    %v1559 = vmul.f32 %v1549, %v779
    %v1560 = vmul.f32 %v1549, %v780
    %v1561 = vmul.f32 %v1549, %v781
    %v1574 = vrot.slane %v1550, 6
    %v1575 = vrot.slane %v1551, 6
    %v1576 = vsel %vm1509, %v1574, %v1575
    %v1577 = vrot.slane %v1552, 6
    %v1578 = vsel %vm1509, %v1575, %v1577
    %v1579 = vrot.slane %v1553, 6
    %v1580 = vrot.slane %v1554, 6
    %v1581 = vsel %vm1509, %v1579, %v1580
    %v1582 = vrot.slane %v1555, 6
    %v1583 = vsel %vm1509, %v1580, %v1582
    %v1584 = vrot.slane %v1556, 6
    %v1585 = vrot.slane %v1557, 6
    %v1586 = vsel %vm1509, %v1584, %v1585
    %v1587 = vrot.slane %v1558, 6
    %v1588 = vsel %vm1509, %v1585, %v1587
    %v1589 = vrot.slane %v1559, 6
    %v1590 = vrot.slane %v1560, 6
    %v1591 = vsel %vm1509, %v1589, %v1590
    %v1592 = vrot.slane %v1561, 6
    %v1593 = vsel %vm1509, %v1590, %v1592
    %v1602 = vadd.f32 %v1471, %v1576
    %v1603 = vadd.f32 %v1472, %v1578
    %v1604 = vadd.f32 %v1473, %v1581
    %v1605 = vadd.f32 %v1474, %v1583
    %v1606 = vadd.f32 %v1475, %v1586
    %v1607 = vadd.f32 %v1476, %v1588
    %v1608 = vadd.f32 %v1477, %v1591
    %v1609 = vadd.f32 %v1478, %v1593
    %s1610 = sadd.s32 %s754, 1
    %s1611 = smul.u32 %s1610, 24
    %s1612 = scalar_lea.vmem [#allocation2], %s1611
    %v1613 = vld [vmem:[%s1612] sm:$0xff]
    %v1614 = vld [vmem:[%s1612 + $0x8] sm:$0xff]
    %v1615 = vld [vmem:[%s1612 + $0x10] sm:$0x3f]
    %v1616 = vld [vmem:[%s1612 + $0x18] sm:$0xff]
    %v1617 = vld [vmem:[%s1612 + $0x20] sm:$0xff]
    %v1618 = vld [vmem:[%s1612 + $0x28] sm:$0x3f]
    %v1619 = vld [vmem:[%s1612 + $0x30] sm:$0xff]
    %v1620 = vld [vmem:[%s1612 + $0x38] sm:$0xff]
    %v1621 = vld [vmem:[%s1612 + $0x40] sm:$0x3f]
    %v1622 = vld [vmem:[%s1612 + $0x48] sm:$0xff]
    %v1623 = vld [vmem:[%s1612 + $0x50] sm:$0xff]
    %v1624 = vld [vmem:[%s1612 + $0x58] sm:$0x3f]
    %s1625 = scalar_lea.vmem [#allocation3], %s1611
    %v1626 = vld [vmem:[%s1625] sm:$0xff]
    %v1627 = vld [vmem:[%s1625 + $0x8] sm:$0xff]
    %v1628 = vld [vmem:[%s1625 + $0x10] sm:$0x3f]
    %v1629 = vld [vmem:[%s1625 + $0x18] sm:$0xff]
    %v1630 = vld [vmem:[%s1625 + $0x20] sm:$0xff]
    %v1631 = vld [vmem:[%s1625 + $0x28] sm:$0x3f]
    %v1632 = vld [vmem:[%s1625 + $0x30] sm:$0xff]
    %v1633 = vld [vmem:[%s1625 + $0x38] sm:$0xff]
    %v1634 = vld [vmem:[%s1625 + $0x40] sm:$0x3f]
    %v1635 = vld [vmem:[%s1625 + $0x48] sm:$0xff]
    %v1636 = vld [vmem:[%s1625 + $0x50] sm:$0xff]
    %v1637 = vld [vmem:[%s1625 + $0x58] sm:$0x3f]
    %v1638 = vld [vmem:[%s2 + $0x7] sm:$0x1]
    %v1639 = vld [vmem:[%s2 + $0x38] sm:$0x1]
    %v1640 = vlaneseq
    %v1641 = vshrl.u32 %v1640, 7
    %v1642 = vsub.s32 0, %v1641
    %v1643 = vrot.slane %v1638, %v1642
    %v1644 = vmul.f32 %v1643, %v1613
    %v1645 = vmul.f32 %v1643, %v1614
    %v1646 = vmul.f32 %v1643, %v1616
    %v1647 = vmul.f32 %v1643, %v1617
    %v1648 = vmul.f32 %v1643, %v1619
    %v1649 = vmul.f32 %v1643, %v1620
    %v1650 = vmul.f32 %v1643, %v1622
    %v1651 = vmul.f32 %v1643, %v1623
    %v1652 = vadd.f32 %v1538, %v1644
    %v1653 = vadd.f32 %v1539, %v1645
    %v1654 = vadd.f32 %v1540, %v1646
    %v1655 = vadd.f32 %v1541, %v1647
    %v1656 = vadd.f32 %v1542, %v1648
    %v1657 = vadd.f32 %v1543, %v1649
    %v1658 = vadd.f32 %v1544, %v1650
    %v1659 = vadd.f32 %v1545, %v1651
    %v1660 = vlaneseq
    %v1661 = vshrl.u32 %v1660, 7
    %v1662 = vsub.s32 0, %v1661
    %v1663 = vrot.slane %v1639, %v1662
    %v1664 = vmul.f32 %v1663, %v1626
    %v1665 = vmul.f32 %v1663, %v1627
    %v1666 = vmul.f32 %v1663, %v1629
    %v1667 = vmul.f32 %v1663, %v1630
    %v1668 = vmul.f32 %v1663, %v1632
    %v1669 = vmul.f32 %v1663, %v1633
    %v1670 = vmul.f32 %v1663, %v1635
    %v1671 = vmul.f32 %v1663, %v1636
    %v1672 = vadd.f32 %v1602, %v1664
    %v1673 = vadd.f32 %v1603, %v1665
    %v1674 = vadd.f32 %v1604, %v1666
    %v1675 = vadd.f32 %v1605, %v1667
    %v1676 = vadd.f32 %v1606, %v1668
    %v1677 = vadd.f32 %v1607, %v1669
    %v1678 = vadd.f32 %v1608, %v1670
    %v1679 = vadd.f32 %v1609, %v1671
    %v1680 = vld [vmem:[%s2 + $0x8] sm:$0x1]
    %v1681 = vld [vmem:[%s2 + $0x39] sm:$0x1]
    %v1682 = vlaneseq
    %v1683 = vshrl.u32 %v1682, 7
    %v1684 = vsub.s32 0, %v1683
    %v1685 = vrot.slane %v1680, %v1684
    %v1686 = vmul.f32 %v1685, %v1613
    %v1687 = vmul.f32 %v1685, %v1614
    %v1688 = vmul.f32 %v1685, %v1615
    %v1689 = vmul.f32 %v1685, %v1616
    %v1690 = vmul.f32 %v1685, %v1617
    %v1691 = vmul.f32 %v1685, %v1618
    %v1692 = vmul.f32 %v1685, %v1619
    %v1693 = vmul.f32 %v1685, %v1620
    %v1694 = vmul.f32 %v1685, %v1621
    %v1695 = vmul.f32 %v1685, %v1622
    %v1696 = vmul.f32 %v1685, %v1623
    %v1697 = vmul.f32 %v1685, %v1624
    %v1710 = vrot.slane %v1686, 1
    %v1711 = vrot.slane %v1687, 1
    %v1712 = vsel %vm854, %v1710, %v1711
    %v1713 = vrot.slane %v1688, 1
    %v1714 = vsel %vm854, %v1711, %v1713
    %v1715 = vrot.slane %v1689, 1
    %v1716 = vrot.slane %v1690, 1
    %v1717 = vsel %vm854, %v1715, %v1716
    %v1718 = vrot.slane %v1691, 1
    %v1719 = vsel %vm854, %v1716, %v1718
    %v1720 = vrot.slane %v1692, 1
    %v1721 = vrot.slane %v1693, 1
    %v1722 = vsel %vm854, %v1720, %v1721
    %v1723 = vrot.slane %v1694, 1
    %v1724 = vsel %vm854, %v1721, %v1723
    %v1725 = vrot.slane %v1695, 1
    %v1726 = vrot.slane %v1696, 1
    %v1727 = vsel %vm854, %v1725, %v1726
    %v1728 = vrot.slane %v1697, 1
    %v1729 = vsel %vm854, %v1726, %v1728
    %v1738 = vadd.f32 %v1652, %v1712
    %v1739 = vadd.f32 %v1653, %v1714
    %v1740 = vadd.f32 %v1654, %v1717
    %v1741 = vadd.f32 %v1655, %v1719
    %v1742 = vadd.f32 %v1656, %v1722
    %v1743 = vadd.f32 %v1657, %v1724
    %v1744 = vadd.f32 %v1658, %v1727
    %v1745 = vadd.f32 %v1659, %v1729
    %v1746 = vlaneseq
    %v1747 = vshrl.u32 %v1746, 7
    %v1748 = vsub.s32 0, %v1747
    %v1749 = vrot.slane %v1681, %v1748
    %v1750 = vmul.f32 %v1749, %v1626
    %v1751 = vmul.f32 %v1749, %v1627
    %v1752 = vmul.f32 %v1749, %v1628
    %v1753 = vmul.f32 %v1749, %v1629
    %v1754 = vmul.f32 %v1749, %v1630
    %v1755 = vmul.f32 %v1749, %v1631
    %v1756 = vmul.f32 %v1749, %v1632
    %v1757 = vmul.f32 %v1749, %v1633
    %v1758 = vmul.f32 %v1749, %v1634
    %v1759 = vmul.f32 %v1749, %v1635
    %v1760 = vmul.f32 %v1749, %v1636
    %v1761 = vmul.f32 %v1749, %v1637
    %v1774 = vrot.slane %v1750, 1
    %v1775 = vrot.slane %v1751, 1
    %v1776 = vsel %vm854, %v1774, %v1775
    %v1777 = vrot.slane %v1752, 1
    %v1778 = vsel %vm854, %v1775, %v1777
    %v1779 = vrot.slane %v1753, 1
    %v1780 = vrot.slane %v1754, 1
    %v1781 = vsel %vm854, %v1779, %v1780
    %v1782 = vrot.slane %v1755, 1
    %v1783 = vsel %vm854, %v1780, %v1782
    %v1784 = vrot.slane %v1756, 1
    %v1785 = vrot.slane %v1757, 1
    %v1786 = vsel %vm854, %v1784, %v1785
    %v1787 = vrot.slane %v1758, 1
    %v1788 = vsel %vm854, %v1785, %v1787
    %v1789 = vrot.slane %v1759, 1
    %v1790 = vrot.slane %v1760, 1
    %v1791 = vsel %vm854, %v1789, %v1790
    %v1792 = vrot.slane %v1761, 1
    %v1793 = vsel %vm854, %v1790, %v1792
    %v1802 = vadd.f32 %v1672, %v1776
    %v1803 = vadd.f32 %v1673, %v1778
    %v1804 = vadd.f32 %v1674, %v1781
    %v1805 = vadd.f32 %v1675, %v1783
    %v1806 = vadd.f32 %v1676, %v1786
    %v1807 = vadd.f32 %v1677, %v1788
    %v1808 = vadd.f32 %v1678, %v1791
    %v1809 = vadd.f32 %v1679, %v1793
    %v1810 = vld [vmem:[%s2 + $0x9] sm:$0x1]
    %v1811 = vld [vmem:[%s2 + $0x3a] sm:$0x1]
    %v1812 = vlaneseq
    %v1813 = vshrl.u32 %v1812, 7
    %v1814 = vsub.s32 0, %v1813
    %v1815 = vrot.slane %v1810, %v1814
    %v1816 = vmul.f32 %v1815, %v1613
    %v1817 = vmul.f32 %v1815, %v1614
    %v1818 = vmul.f32 %v1815, %v1615
    %v1819 = vmul.f32 %v1815, %v1616
    %v1820 = vmul.f32 %v1815, %v1617
    %v1821 = vmul.f32 %v1815, %v1618
    %v1822 = vmul.f32 %v1815, %v1619
    %v1823 = vmul.f32 %v1815, %v1620
    %v1824 = vmul.f32 %v1815, %v1621
    %v1825 = vmul.f32 %v1815, %v1622
    %v1826 = vmul.f32 %v1815, %v1623
    %v1827 = vmul.f32 %v1815, %v1624
    %v1840 = vrot.slane %v1816, 2
    %v1841 = vrot.slane %v1817, 2
    %v1842 = vsel %vm985, %v1840, %v1841
    %v1843 = vrot.slane %v1818, 2
    %v1844 = vsel %vm985, %v1841, %v1843
    %v1845 = vrot.slane %v1819, 2
    %v1846 = vrot.slane %v1820, 2
    %v1847 = vsel %vm985, %v1845, %v1846
    %v1848 = vrot.slane %v1821, 2
    %v1849 = vsel %vm985, %v1846, %v1848
    %v1850 = vrot.slane %v1822, 2
    %v1851 = vrot.slane %v1823, 2
    %v1852 = vsel %vm985, %v1850, %v1851
    %v1853 = vrot.slane %v1824, 2
    %v1854 = vsel %vm985, %v1851, %v1853
    %v1855 = vrot.slane %v1825, 2
    %v1856 = vrot.slane %v1826, 2
    %v1857 = vsel %vm985, %v1855, %v1856
    %v1858 = vrot.slane %v1827, 2
    %v1859 = vsel %vm985, %v1856, %v1858
    %v1868 = vadd.f32 %v1738, %v1842
    %v1869 = vadd.f32 %v1739, %v1844
    %v1870 = vadd.f32 %v1740, %v1847
    %v1871 = vadd.f32 %v1741, %v1849
    %v1872 = vadd.f32 %v1742, %v1852
    %v1873 = vadd.f32 %v1743, %v1854
    %v1874 = vadd.f32 %v1744, %v1857
    %v1875 = vadd.f32 %v1745, %v1859
    %v1876 = vlaneseq
    %v1877 = vshrl.u32 %v1876, 7
    %v1878 = vsub.s32 0, %v1877
    %v1879 = vrot.slane %v1811, %v1878
    %v1880 = vmul.f32 %v1879, %v1626
    %v1881 = vmul.f32 %v1879, %v1627
    %v1882 = vmul.f32 %v1879, %v1628
    %v1883 = vmul.f32 %v1879, %v1629
    %v1884 = vmul.f32 %v1879, %v1630
    %v1885 = vmul.f32 %v1879, %v1631
    %v1886 = vmul.f32 %v1879, %v1632
    %v1887 = vmul.f32 %v1879, %v1633
    %v1888 = vmul.f32 %v1879, %v1634
    %v1889 = vmul.f32 %v1879, %v1635
    %v1890 = vmul.f32 %v1879, %v1636
    %v1891 = vmul.f32 %v1879, %v1637
    %v1904 = vrot.slane %v1880, 2
    %v1905 = vrot.slane %v1881, 2
    %v1906 = vsel %vm985, %v1904, %v1905
    %v1907 = vrot.slane %v1882, 2
    %v1908 = vsel %vm985, %v1905, %v1907
    %v1909 = vrot.slane %v1883, 2
    %v1910 = vrot.slane %v1884, 2
    %v1911 = vsel %vm985, %v1909, %v1910
    %v1912 = vrot.slane %v1885, 2
    %v1913 = vsel %vm985, %v1910, %v1912
    %v1914 = vrot.slane %v1886, 2
    %v1915 = vrot.slane %v1887, 2
    %v1916 = vsel %vm985, %v1914, %v1915
    %v1917 = vrot.slane %v1888, 2
    %v1918 = vsel %vm985, %v1915, %v1917
    %v1919 = vrot.slane %v1889, 2
    %v1920 = vrot.slane %v1890, 2
    %v1921 = vsel %vm985, %v1919, %v1920
    %v1922 = vrot.slane %v1891, 2
    %v1923 = vsel %vm985, %v1920, %v1922
    %v1932 = vadd.f32 %v1802, %v1906
    %v1933 = vadd.f32 %v1803, %v1908
    %v1934 = vadd.f32 %v1804, %v1911
    %v1935 = vadd.f32 %v1805, %v1913
    %v1936 = vadd.f32 %v1806, %v1916
    %v1937 = vadd.f32 %v1807, %v1918
    %v1938 = vadd.f32 %v1808, %v1921
    %v1939 = vadd.f32 %v1809, %v1923
    %v1940 = vld [vmem:[%s2 + $0xa] sm:$0x1]
    %v1941 = vld [vmem:[%s2 + $0x3b] sm:$0x1]
    %v1942 = vlaneseq
    %v1943 = vshrl.u32 %v1942, 7
    %v1944 = vsub.s32 0, %v1943
    %v1945 = vrot.slane %v1940, %v1944
    %v1946 = vmul.f32 %v1945, %v1613
    %v1947 = vmul.f32 %v1945, %v1614
    %v1948 = vmul.f32 %v1945, %v1615
    %v1949 = vmul.f32 %v1945, %v1616
    %v1950 = vmul.f32 %v1945, %v1617
    %v1951 = vmul.f32 %v1945, %v1618
    %v1952 = vmul.f32 %v1945, %v1619
    %v1953 = vmul.f32 %v1945, %v1620
    %v1954 = vmul.f32 %v1945, %v1621
    %v1955 = vmul.f32 %v1945, %v1622
    %v1956 = vmul.f32 %v1945, %v1623
    %v1957 = vmul.f32 %v1945, %v1624
    %v1970 = vrot.slane %v1946, 3
    %v1971 = vrot.slane %v1947, 3
    %v1972 = vsel %vm1116, %v1970, %v1971
    %v1973 = vrot.slane %v1948, 3
    %v1974 = vsel %vm1116, %v1971, %v1973
    %v1975 = vrot.slane %v1949, 3
    %v1976 = vrot.slane %v1950, 3
    %v1977 = vsel %vm1116, %v1975, %v1976
    %v1978 = vrot.slane %v1951, 3
    %v1979 = vsel %vm1116, %v1976, %v1978
    %v1980 = vrot.slane %v1952, 3
    %v1981 = vrot.slane %v1953, 3
    %v1982 = vsel %vm1116, %v1980, %v1981
    %v1983 = vrot.slane %v1954, 3
    %v1984 = vsel %vm1116, %v1981, %v1983
    %v1985 = vrot.slane %v1955, 3
    %v1986 = vrot.slane %v1956, 3
    %v1987 = vsel %vm1116, %v1985, %v1986
    %v1988 = vrot.slane %v1957, 3
    %v1989 = vsel %vm1116, %v1986, %v1988
    %v1998 = vadd.f32 %v1868, %v1972
    %v1999 = vadd.f32 %v1869, %v1974
    %v2000 = vadd.f32 %v1870, %v1977
    %v2001 = vadd.f32 %v1871, %v1979
    %v2002 = vadd.f32 %v1872, %v1982
    %v2003 = vadd.f32 %v1873, %v1984
    %v2004 = vadd.f32 %v1874, %v1987
    %v2005 = vadd.f32 %v1875, %v1989
    %v2006 = vlaneseq
    %v2007 = vshrl.u32 %v2006, 7
    %v2008 = vsub.s32 0, %v2007
    %v2009 = vrot.slane %v1941, %v2008
    %v2010 = vmul.f32 %v2009, %v1626
    %v2011 = vmul.f32 %v2009, %v1627
    %v2012 = vmul.f32 %v2009, %v1628
    %v2013 = vmul.f32 %v2009, %v1629
    %v2014 = vmul.f32 %v2009, %v1630
    %v2015 = vmul.f32 %v2009, %v1631
    %v2016 = vmul.f32 %v2009, %v1632
    %v2017 = vmul.f32 %v2009, %v1633
    %v2018 = vmul.f32 %v2009, %v1634
    %v2019 = vmul.f32 %v2009, %v1635
    %v2020 = vmul.f32 %v2009, %v1636
    %v2021 = vmul.f32 %v2009, %v1637
    %v2034 = vrot.slane %v2010, 3
    %v2035 = vrot.slane %v2011, 3
    %v2036 = vsel %vm1116, %v2034, %v2035
    %v2037 = vrot.slane %v2012, 3
    %v2038 = vsel %vm1116, %v2035, %v2037
    %v2039 = vrot.slane %v2013, 3
    %v2040 = vrot.slane %v2014, 3
    %v2041 = vsel %vm1116, %v2039, %v2040
    %v2042 = vrot.slane %v2015, 3
    %v2043 = vsel %vm1116, %v2040, %v2042
    %v2044 = vrot.slane %v2016, 3
    %v2045 = vrot.slane %v2017, 3
    %v2046 = vsel %vm1116, %v2044, %v2045
    %v2047 = vrot.slane %v2018, 3
    %v2048 = vsel %vm1116, %v2045, %v2047
    %v2049 = vrot.slane %v2019, 3
    %v2050 = vrot.slane %v2020, 3
    %v2051 = vsel %vm1116, %v2049, %v2050
    %v2052 = vrot.slane %v2021, 3
    %v2053 = vsel %vm1116, %v2050, %v2052
    %v2062 = vadd.f32 %v1932, %v2036
    %v2063 = vadd.f32 %v1933, %v2038
    %v2064 = vadd.f32 %v1934, %v2041
    %v2065 = vadd.f32 %v1935, %v2043
    %v2066 = vadd.f32 %v1936, %v2046
    %v2067 = vadd.f32 %v1937, %v2048
    %v2068 = vadd.f32 %v1938, %v2051
    %v2069 = vadd.f32 %v1939, %v2053
    %v2070 = vld [vmem:[%s2 + $0xb] sm:$0x1]
    %v2071 = vld [vmem:[%s2 + $0x3c] sm:$0x1]
    %v2072 = vlaneseq
    %v2073 = vshrl.u32 %v2072, 7
    %v2074 = vsub.s32 0, %v2073
    %v2075 = vrot.slane %v2070, %v2074
    %v2076 = vmul.f32 %v2075, %v1613
    %v2077 = vmul.f32 %v2075, %v1614
    %v2078 = vmul.f32 %v2075, %v1615
    %v2079 = vmul.f32 %v2075, %v1616
    %v2080 = vmul.f32 %v2075, %v1617
    %v2081 = vmul.f32 %v2075, %v1618
    %v2082 = vmul.f32 %v2075, %v1619
    %v2083 = vmul.f32 %v2075, %v1620
    %v2084 = vmul.f32 %v2075, %v1621
    %v2085 = vmul.f32 %v2075, %v1622
    %v2086 = vmul.f32 %v2075, %v1623
    %v2087 = vmul.f32 %v2075, %v1624
    %v2100 = vrot.slane %v2076, 4
    %v2101 = vrot.slane %v2077, 4
    %v2102 = vsel %vm1247, %v2100, %v2101
    %v2103 = vrot.slane %v2078, 4
    %v2104 = vsel %vm1247, %v2101, %v2103
    %v2105 = vrot.slane %v2079, 4
    %v2106 = vrot.slane %v2080, 4
    %v2107 = vsel %vm1247, %v2105, %v2106
    %v2108 = vrot.slane %v2081, 4
    %v2109 = vsel %vm1247, %v2106, %v2108
    %v2110 = vrot.slane %v2082, 4
    %v2111 = vrot.slane %v2083, 4
    %v2112 = vsel %vm1247, %v2110, %v2111
    %v2113 = vrot.slane %v2084, 4
    %v2114 = vsel %vm1247, %v2111, %v2113
    %v2115 = vrot.slane %v2085, 4
    %v2116 = vrot.slane %v2086, 4
    %v2117 = vsel %vm1247, %v2115, %v2116
    %v2118 = vrot.slane %v2087, 4
    %v2119 = vsel %vm1247, %v2116, %v2118
    %v2128 = vadd.f32 %v1998, %v2102
    %v2129 = vadd.f32 %v1999, %v2104
    %v2130 = vadd.f32 %v2000, %v2107
    %v2131 = vadd.f32 %v2001, %v2109
    %v2132 = vadd.f32 %v2002, %v2112
    %v2133 = vadd.f32 %v2003, %v2114
    %v2134 = vadd.f32 %v2004, %v2117
    %v2135 = vadd.f32 %v2005, %v2119
    %v2136 = vlaneseq
    %v2137 = vshrl.u32 %v2136, 7
    %v2138 = vsub.s32 0, %v2137
    %v2139 = vrot.slane %v2071, %v2138
    %v2140 = vmul.f32 %v2139, %v1626
    %v2141 = vmul.f32 %v2139, %v1627
    %v2142 = vmul.f32 %v2139, %v1628
    %v2143 = vmul.f32 %v2139, %v1629
    %v2144 = vmul.f32 %v2139, %v1630
    %v2145 = vmul.f32 %v2139, %v1631
    %v2146 = vmul.f32 %v2139, %v1632
    %v2147 = vmul.f32 %v2139, %v1633
    %v2148 = vmul.f32 %v2139, %v1634
    %v2149 = vmul.f32 %v2139, %v1635
    %v2150 = vmul.f32 %v2139, %v1636
    %v2151 = vmul.f32 %v2139, %v1637
    %v2164 = vrot.slane %v2140, 4
    %v2165 = vrot.slane %v2141, 4
    %v2166 = vsel %vm1247, %v2164, %v2165
    %v2167 = vrot.slane %v2142, 4
    %v2168 = vsel %vm1247, %v2165, %v2167
    %v2169 = vrot.slane %v2143, 4
    %v2170 = vrot.slane %v2144, 4
    %v2171 = vsel %vm1247, %v2169, %v2170
    %v2172 = vrot.slane %v2145, 4
    %v2173 = vsel %vm1247, %v2170, %v2172
    %v2174 = vrot.slane %v2146, 4
    %v2175 = vrot.slane %v2147, 4
    %v2176 = vsel %vm1247, %v2174, %v2175
    %v2177 = vrot.slane %v2148, 4
    %v2178 = vsel %vm1247, %v2175, %v2177
    %v2179 = vrot.slane %v2149, 4
    %v2180 = vrot.slane %v2150, 4
    %v2181 = vsel %vm1247, %v2179, %v2180
    %v2182 = vrot.slane %v2151, 4
    %v2183 = vsel %vm1247, %v2180, %v2182
    %v2192 = vadd.f32 %v2062, %v2166
    %v2193 = vadd.f32 %v2063, %v2168
    %v2194 = vadd.f32 %v2064, %v2171
    %v2195 = vadd.f32 %v2065, %v2173
    %v2196 = vadd.f32 %v2066, %v2176
    %v2197 = vadd.f32 %v2067, %v2178
    %v2198 = vadd.f32 %v2068, %v2181
    %v2199 = vadd.f32 %v2069, %v2183
    %v2200 = vld [vmem:[%s2 + $0xc] sm:$0x1]
    %v2201 = vld [vmem:[%s2 + $0x3d] sm:$0x1]
    %v2202 = vlaneseq
    %v2203 = vshrl.u32 %v2202, 7
    %v2204 = vsub.s32 0, %v2203
    %v2205 = vrot.slane %v2200, %v2204
    %v2206 = vmul.f32 %v2205, %v1613
    %v2207 = vmul.f32 %v2205, %v1614
    %v2208 = vmul.f32 %v2205, %v1615
    %v2209 = vmul.f32 %v2205, %v1616
    %v2210 = vmul.f32 %v2205, %v1617
    %v2211 = vmul.f32 %v2205, %v1618
    %v2212 = vmul.f32 %v2205, %v1619
    %v2213 = vmul.f32 %v2205, %v1620
    %v2214 = vmul.f32 %v2205, %v1621
    %v2215 = vmul.f32 %v2205, %v1622
    %v2216 = vmul.f32 %v2205, %v1623
    %v2217 = vmul.f32 %v2205, %v1624
    %v2230 = vrot.slane %v2206, 5
    %v2231 = vrot.slane %v2207, 5
    %v2232 = vsel %vm1378, %v2230, %v2231
    %v2233 = vrot.slane %v2208, 5
    %v2234 = vsel %vm1378, %v2231, %v2233
    %v2235 = vrot.slane %v2209, 5
    %v2236 = vrot.slane %v2210, 5
    %v2237 = vsel %vm1378, %v2235, %v2236
    %v2238 = vrot.slane %v2211, 5
    %v2239 = vsel %vm1378, %v2236, %v2238
    %v2240 = vrot.slane %v2212, 5
    %v2241 = vrot.slane %v2213, 5
    %v2242 = vsel %vm1378, %v2240, %v2241
    %v2243 = vrot.slane %v2214, 5
    %v2244 = vsel %vm1378, %v2241, %v2243
    %v2245 = vrot.slane %v2215, 5
    %v2246 = vrot.slane %v2216, 5
    %v2247 = vsel %vm1378, %v2245, %v2246
    %v2248 = vrot.slane %v2217, 5
    %v2249 = vsel %vm1378, %v2246, %v2248
    %v2258 = vadd.f32 %v2128, %v2232
    %v2259 = vadd.f32 %v2129, %v2234
    %v2260 = vadd.f32 %v2130, %v2237
    %v2261 = vadd.f32 %v2131, %v2239
    %v2262 = vadd.f32 %v2132, %v2242
    %v2263 = vadd.f32 %v2133, %v2244
    %v2264 = vadd.f32 %v2134, %v2247
    %v2265 = vadd.f32 %v2135, %v2249
    %v2266 = vlaneseq
    %v2267 = vshrl.u32 %v2266, 7
    %v2268 = vsub.s32 0, %v2267
    %v2269 = vrot.slane %v2201, %v2268
    %v2270 = vmul.f32 %v2269, %v1626
    %v2271 = vmul.f32 %v2269, %v1627
    %v2272 = vmul.f32 %v2269, %v1628
    %v2273 = vmul.f32 %v2269, %v1629
    %v2274 = vmul.f32 %v2269, %v1630
    %v2275 = vmul.f32 %v2269, %v1631
    %v2276 = vmul.f32 %v2269, %v1632
    %v2277 = vmul.f32 %v2269, %v1633
    %v2278 = vmul.f32 %v2269, %v1634
    %v2279 = vmul.f32 %v2269, %v1635
    %v2280 = vmul.f32 %v2269, %v1636
    %v2281 = vmul.f32 %v2269, %v1637
    %v2294 = vrot.slane %v2270, 5
    %v2295 = vrot.slane %v2271, 5
    %v2296 = vsel %vm1378, %v2294, %v2295
    %v2297 = vrot.slane %v2272, 5
    %v2298 = vsel %vm1378, %v2295, %v2297
    %v2299 = vrot.slane %v2273, 5
    %v2300 = vrot.slane %v2274, 5
    %v2301 = vsel %vm1378, %v2299, %v2300
    %v2302 = vrot.slane %v2275, 5
    %v2303 = vsel %vm1378, %v2300, %v2302
    %v2304 = vrot.slane %v2276, 5
    %v2305 = vrot.slane %v2277, 5
    %v2306 = vsel %vm1378, %v2304, %v2305
    %v2307 = vrot.slane %v2278, 5
    %v2308 = vsel %vm1378, %v2305, %v2307
    %v2309 = vrot.slane %v2279, 5
    %v2310 = vrot.slane %v2280, 5
    %v2311 = vsel %vm1378, %v2309, %v2310
    %v2312 = vrot.slane %v2281, 5
    %v2313 = vsel %vm1378, %v2310, %v2312
    %v2322 = vadd.f32 %v2192, %v2296
    %v2323 = vadd.f32 %v2193, %v2298
    %v2324 = vadd.f32 %v2194, %v2301
    %v2325 = vadd.f32 %v2195, %v2303
    %v2326 = vadd.f32 %v2196, %v2306
    %v2327 = vadd.f32 %v2197, %v2308
    %v2328 = vadd.f32 %v2198, %v2311
    %v2329 = vadd.f32 %v2199, %v2313
    %v2330 = vld [vmem:[%s2 + $0xd] sm:$0x1]
    %v2331 = vld [vmem:[%s2 + $0x3e] sm:$0x1]
    %v2332 = vlaneseq
    %v2333 = vshrl.u32 %v2332, 7
    %v2334 = vsub.s32 0, %v2333
    %v2335 = vrot.slane %v2330, %v2334
    %v2336 = vmul.f32 %v2335, %v1613
    %v2337 = vmul.f32 %v2335, %v1614
    %v2338 = vmul.f32 %v2335, %v1615
    %v2339 = vmul.f32 %v2335, %v1616
    %v2340 = vmul.f32 %v2335, %v1617
    %v2341 = vmul.f32 %v2335, %v1618
    %v2342 = vmul.f32 %v2335, %v1619
    %v2343 = vmul.f32 %v2335, %v1620
    %v2344 = vmul.f32 %v2335, %v1621
    %v2345 = vmul.f32 %v2335, %v1622
    %v2346 = vmul.f32 %v2335, %v1623
    %v2347 = vmul.f32 %v2335, %v1624
    %v2360 = vrot.slane %v2336, 6
    %v2361 = vrot.slane %v2337, 6
    %v2362 = vsel %vm1509, %v2360, %v2361
    %v2363 = vrot.slane %v2338, 6
    %v2364 = vsel %vm1509, %v2361, %v2363
    %v2365 = vrot.slane %v2339, 6
    %v2366 = vrot.slane %v2340, 6
    %v2367 = vsel %vm1509, %v2365, %v2366
    %v2368 = vrot.slane %v2341, 6
    %v2369 = vsel %vm1509, %v2366, %v2368
    %v2370 = vrot.slane %v2342, 6
    %v2371 = vrot.slane %v2343, 6
    %v2372 = vsel %vm1509, %v2370, %v2371
    %v2373 = vrot.slane %v2344, 6
    %v2374 = vsel %vm1509, %v2371, %v2373
    %v2375 = vrot.slane %v2345, 6
    %v2376 = vrot.slane %v2346, 6
    %v2377 = vsel %vm1509, %v2375, %v2376
    %v2378 = vrot.slane %v2347, 6
    %v2379 = vsel %vm1509, %v2376, %v2378
    %v2388 = vadd.f32 %v2258, %v2362
    %v2389 = vadd.f32 %v2259, %v2364
    %v2390 = vadd.f32 %v2260, %v2367
    %v2391 = vadd.f32 %v2261, %v2369
    %v2392 = vadd.f32 %v2262, %v2372
    %v2393 = vadd.f32 %v2263, %v2374
    %v2394 = vadd.f32 %v2264, %v2377
    %v2395 = vadd.f32 %v2265, %v2379
    %v2396 = vlaneseq
    %v2397 = vshrl.u32 %v2396, 7
    %v2398 = vsub.s32 0, %v2397
    %v2399 = vrot.slane %v2331, %v2398
    %v2400 = vmul.f32 %v2399, %v1626
    %v2401 = vmul.f32 %v2399, %v1627
    %v2402 = vmul.f32 %v2399, %v1628
    %v2403 = vmul.f32 %v2399, %v1629
    %v2404 = vmul.f32 %v2399, %v1630
    %v2405 = vmul.f32 %v2399, %v1631
    %v2406 = vmul.f32 %v2399, %v1632
    %v2407 = vmul.f32 %v2399, %v1633
    %v2408 = vmul.f32 %v2399, %v1634
    %v2409 = vmul.f32 %v2399, %v1635
    %v2410 = vmul.f32 %v2399, %v1636
    %v2411 = vmul.f32 %v2399, %v1637
    %v2424 = vrot.slane %v2400, 6
    %v2425 = vrot.slane %v2401, 6
    %v2426 = vsel %vm1509, %v2424, %v2425
    %v2427 = vrot.slane %v2402, 6
    %v2428 = vsel %vm1509, %v2425, %v2427
    %v2429 = vrot.slane %v2403, 6
    %v2430 = vrot.slane %v2404, 6
    %v2431 = vsel %vm1509, %v2429, %v2430
    %v2432 = vrot.slane %v2405, 6
    %v2433 = vsel %vm1509, %v2430, %v2432
    %v2434 = vrot.slane %v2406, 6
    %v2435 = vrot.slane %v2407, 6
    %v2436 = vsel %vm1509, %v2434, %v2435
    %v2437 = vrot.slane %v2408, 6
    %v2438 = vsel %vm1509, %v2435, %v2437
    %v2439 = vrot.slane %v2409, 6
    %v2440 = vrot.slane %v2410, 6
    %v2441 = vsel %vm1509, %v2439, %v2440
    %v2442 = vrot.slane %v2411, 6
    %v2443 = vsel %vm1509, %v2440, %v2442
    %v2452 = vadd.f32 %v2322, %v2426
    %v2453 = vadd.f32 %v2323, %v2428
    %v2454 = vadd.f32 %v2324, %v2431
    %v2455 = vadd.f32 %v2325, %v2433
    %v2456 = vadd.f32 %v2326, %v2436
    %v2457 = vadd.f32 %v2327, %v2438
    %v2458 = vadd.f32 %v2328, %v2441
    %v2459 = vadd.f32 %v2329, %v2443
    %s2460 = sadd.s32 %s754, 2
    %s2461 = smul.u32 %s2460, 24
    %s2462 = scalar_lea.vmem [#allocation2], %s2461
    %v2463 = vld [vmem:[%s2462] sm:$0xff]
    %v2464 = vld [vmem:[%s2462 + $0x8] sm:$0xff]
    %v2465 = vld [vmem:[%s2462 + $0x10] sm:$0x3f]
    %v2466 = vld [vmem:[%s2462 + $0x18] sm:$0xff]
    %v2467 = vld [vmem:[%s2462 + $0x20] sm:$0xff]
    %v2468 = vld [vmem:[%s2462 + $0x28] sm:$0x3f]
    %v2469 = vld [vmem:[%s2462 + $0x30] sm:$0xff]
    %v2470 = vld [vmem:[%s2462 + $0x38] sm:$0xff]
    %v2471 = vld [vmem:[%s2462 + $0x40] sm:$0x3f]
    %v2472 = vld [vmem:[%s2462 + $0x48] sm:$0xff]
    %v2473 = vld [vmem:[%s2462 + $0x50] sm:$0xff]
    %v2474 = vld [vmem:[%s2462 + $0x58] sm:$0x3f]
    %s2475 = scalar_lea.vmem [#allocation3], %s2461
    %v2476 = vld [vmem:[%s2475] sm:$0xff]
    %v2477 = vld [vmem:[%s2475 + $0x8] sm:$0xff]
    %v2478 = vld [vmem:[%s2475 + $0x10] sm:$0x3f]
    %v2479 = vld [vmem:[%s2475 + $0x18] sm:$0xff]
    %v2480 = vld [vmem:[%s2475 + $0x20] sm:$0xff]
    %v2481 = vld [vmem:[%s2475 + $0x28] sm:$0x3f]
    %v2482 = vld [vmem:[%s2475 + $0x30] sm:$0xff]
    %v2483 = vld [vmem:[%s2475 + $0x38] sm:$0xff]
    %v2484 = vld [vmem:[%s2475 + $0x40] sm:$0x3f]
    %v2485 = vld [vmem:[%s2475 + $0x48] sm:$0xff]
    %v2486 = vld [vmem:[%s2475 + $0x50] sm:$0xff]
    %v2487 = vld [vmem:[%s2475 + $0x58] sm:$0x3f]
    %v2488 = vld [vmem:[%s2 + $0xe] sm:$0x1]
    %v2489 = vld [vmem:[%s2 + $0x3f] sm:$0x1]
    %v2490 = vlaneseq
    %v2491 = vshrl.u32 %v2490, 7
    %v2492 = vsub.s32 0, %v2491
    %v2493 = vrot.slane %v2488, %v2492
    %v2494 = vmul.f32 %v2493, %v2463
    %v2495 = vmul.f32 %v2493, %v2464
    %v2496 = vmul.f32 %v2493, %v2466
    %v2497 = vmul.f32 %v2493, %v2467
    %v2498 = vmul.f32 %v2493, %v2469
    %v2499 = vmul.f32 %v2493, %v2470
    %v2500 = vmul.f32 %v2493, %v2472
    %v2501 = vmul.f32 %v2493, %v2473
    %v2502 = vadd.f32 %v2388, %v2494
    %v2503 = vadd.f32 %v2389, %v2495
    %v2504 = vadd.f32 %v2390, %v2496
    %v2505 = vadd.f32 %v2391, %v2497
    %v2506 = vadd.f32 %v2392, %v2498
    %v2507 = vadd.f32 %v2393, %v2499
    %v2508 = vadd.f32 %v2394, %v2500
    %v2509 = vadd.f32 %v2395, %v2501
    %v2510 = vlaneseq
    %v2511 = vshrl.u32 %v2510, 7
    %v2512 = vsub.s32 0, %v2511
    %v2513 = vrot.slane %v2489, %v2512
    %v2514 = vmul.f32 %v2513, %v2476
    %v2515 = vmul.f32 %v2513, %v2477
    %v2516 = vmul.f32 %v2513, %v2479
    %v2517 = vmul.f32 %v2513, %v2480
    %v2518 = vmul.f32 %v2513, %v2482
    %v2519 = vmul.f32 %v2513, %v2483
    %v2520 = vmul.f32 %v2513, %v2485
    %v2521 = vmul.f32 %v2513, %v2486
    %v2522 = vadd.f32 %v2452, %v2514
    %v2523 = vadd.f32 %v2453, %v2515
    %v2524 = vadd.f32 %v2454, %v2516
    %v2525 = vadd.f32 %v2455, %v2517
    %v2526 = vadd.f32 %v2456, %v2518
    %v2527 = vadd.f32 %v2457, %v2519
    %v2528 = vadd.f32 %v2458, %v2520
    %v2529 = vadd.f32 %v2459, %v2521
    %v2530 = vld [vmem:[%s2 + $0xf] sm:$0x1]
    %v2531 = vld [vmem:[%s2 + $0x40] sm:$0x1]
    %v2532 = vlaneseq
    %v2533 = vshrl.u32 %v2532, 7
    %v2534 = vsub.s32 0, %v2533
    %v2535 = vrot.slane %v2530, %v2534
    %v2536 = vmul.f32 %v2535, %v2463
    %v2537 = vmul.f32 %v2535, %v2464
    %v2538 = vmul.f32 %v2535, %v2465
    %v2539 = vmul.f32 %v2535, %v2466
    %v2540 = vmul.f32 %v2535, %v2467
    %v2541 = vmul.f32 %v2535, %v2468
    %v2542 = vmul.f32 %v2535, %v2469
    %v2543 = vmul.f32 %v2535, %v2470
    %v2544 = vmul.f32 %v2535, %v2471
    %v2545 = vmul.f32 %v2535, %v2472
    %v2546 = vmul.f32 %v2535, %v2473
    %v2547 = vmul.f32 %v2535, %v2474
    %v2560 = vrot.slane %v2536, 1
    %v2561 = vrot.slane %v2537, 1
    %v2562 = vsel %vm854, %v2560, %v2561
    %v2563 = vrot.slane %v2538, 1
    %v2564 = vsel %vm854, %v2561, %v2563
    %v2565 = vrot.slane %v2539, 1
    %v2566 = vrot.slane %v2540, 1
    %v2567 = vsel %vm854, %v2565, %v2566
    %v2568 = vrot.slane %v2541, 1
    %v2569 = vsel %vm854, %v2566, %v2568
    %v2570 = vrot.slane %v2542, 1
    %v2571 = vrot.slane %v2543, 1
    %v2572 = vsel %vm854, %v2570, %v2571
    %v2573 = vrot.slane %v2544, 1
    %v2574 = vsel %vm854, %v2571, %v2573
    %v2575 = vrot.slane %v2545, 1
    %v2576 = vrot.slane %v2546, 1
    %v2577 = vsel %vm854, %v2575, %v2576
    %v2578 = vrot.slane %v2547, 1
    %v2579 = vsel %vm854, %v2576, %v2578
    %v2588 = vadd.f32 %v2502, %v2562
    %v2589 = vadd.f32 %v2503, %v2564
    %v2590 = vadd.f32 %v2504, %v2567
    %v2591 = vadd.f32 %v2505, %v2569
    %v2592 = vadd.f32 %v2506, %v2572
    %v2593 = vadd.f32 %v2507, %v2574
    %v2594 = vadd.f32 %v2508, %v2577
    %v2595 = vadd.f32 %v2509, %v2579
    %v2596 = vlaneseq
    %v2597 = vshrl.u32 %v2596, 7
    %v2598 = vsub.s32 0, %v2597
    %v2599 = vrot.slane %v2531, %v2598
    %v2600 = vmul.f32 %v2599, %v2476
    %v2601 = vmul.f32 %v2599, %v2477
    %v2602 = vmul.f32 %v2599, %v2478
    %v2603 = vmul.f32 %v2599, %v2479
    %v2604 = vmul.f32 %v2599, %v2480
    %v2605 = vmul.f32 %v2599, %v2481
    %v2606 = vmul.f32 %v2599, %v2482
    %v2607 = vmul.f32 %v2599, %v2483
    %v2608 = vmul.f32 %v2599, %v2484
    %v2609 = vmul.f32 %v2599, %v2485
    %v2610 = vmul.f32 %v2599, %v2486
    %v2611 = vmul.f32 %v2599, %v2487
    %v2624 = vrot.slane %v2600, 1
    %v2625 = vrot.slane %v2601, 1
    %v2626 = vsel %vm854, %v2624, %v2625
    %v2627 = vrot.slane %v2602, 1
    %v2628 = vsel %vm854, %v2625, %v2627
    %v2629 = vrot.slane %v2603, 1
    %v2630 = vrot.slane %v2604, 1
    %v2631 = vsel %vm854, %v2629, %v2630
    %v2632 = vrot.slane %v2605, 1
    %v2633 = vsel %vm854, %v2630, %v2632
    %v2634 = vrot.slane %v2606, 1
    %v2635 = vrot.slane %v2607, 1
    %v2636 = vsel %vm854, %v2634, %v2635
    %v2637 = vrot.slane %v2608, 1
    %v2638 = vsel %vm854, %v2635, %v2637
    %v2639 = vrot.slane %v2609, 1
    %v2640 = vrot.slane %v2610, 1
    %v2641 = vsel %vm854, %v2639, %v2640
    %v2642 = vrot.slane %v2611, 1
    %v2643 = vsel %vm854, %v2640, %v2642
    %v2652 = vadd.f32 %v2522, %v2626
    %v2653 = vadd.f32 %v2523, %v2628
    %v2654 = vadd.f32 %v2524, %v2631
    %v2655 = vadd.f32 %v2525, %v2633
    %v2656 = vadd.f32 %v2526, %v2636
    %v2657 = vadd.f32 %v2527, %v2638
    %v2658 = vadd.f32 %v2528, %v2641
    %v2659 = vadd.f32 %v2529, %v2643
    %v2660 = vld [vmem:[%s2 + $0x10] sm:$0x1]
    %v2661 = vld [vmem:[%s2 + $0x41] sm:$0x1]
    %v2662 = vlaneseq
    %v2663 = vshrl.u32 %v2662, 7
    %v2664 = vsub.s32 0, %v2663
    %v2665 = vrot.slane %v2660, %v2664
    %v2666 = vmul.f32 %v2665, %v2463
    %v2667 = vmul.f32 %v2665, %v2464
    %v2668 = vmul.f32 %v2665, %v2465
    %v2669 = vmul.f32 %v2665, %v2466
    %v2670 = vmul.f32 %v2665, %v2467
    %v2671 = vmul.f32 %v2665, %v2468
    %v2672 = vmul.f32 %v2665, %v2469
    %v2673 = vmul.f32 %v2665, %v2470
    %v2674 = vmul.f32 %v2665, %v2471
    %v2675 = vmul.f32 %v2665, %v2472
    %v2676 = vmul.f32 %v2665, %v2473
    %v2677 = vmul.f32 %v2665, %v2474
    %v2690 = vrot.slane %v2666, 2
    %v2691 = vrot.slane %v2667, 2
    %v2692 = vsel %vm985, %v2690, %v2691
    %v2693 = vrot.slane %v2668, 2
    %v2694 = vsel %vm985, %v2691, %v2693
    %v2695 = vrot.slane %v2669, 2
    %v2696 = vrot.slane %v2670, 2
    %v2697 = vsel %vm985, %v2695, %v2696
    %v2698 = vrot.slane %v2671, 2
    %v2699 = vsel %vm985, %v2696, %v2698
    %v2700 = vrot.slane %v2672, 2
    %v2701 = vrot.slane %v2673, 2
    %v2702 = vsel %vm985, %v2700, %v2701
    %v2703 = vrot.slane %v2674, 2
    %v2704 = vsel %vm985, %v2701, %v2703
    %v2705 = vrot.slane %v2675, 2
    %v2706 = vrot.slane %v2676, 2
    %v2707 = vsel %vm985, %v2705, %v2706
    %v2708 = vrot.slane %v2677, 2
    %v2709 = vsel %vm985, %v2706, %v2708
    %v2718 = vadd.f32 %v2588, %v2692
    %v2719 = vadd.f32 %v2589, %v2694
    %v2720 = vadd.f32 %v2590, %v2697
    %v2721 = vadd.f32 %v2591, %v2699
    %v2722 = vadd.f32 %v2592, %v2702
    %v2723 = vadd.f32 %v2593, %v2704
    %v2724 = vadd.f32 %v2594, %v2707
    %v2725 = vadd.f32 %v2595, %v2709
    %v2726 = vlaneseq
    %v2727 = vshrl.u32 %v2726, 7
    %v2728 = vsub.s32 0, %v2727
    %v2729 = vrot.slane %v2661, %v2728
    %v2730 = vmul.f32 %v2729, %v2476
    %v2731 = vmul.f32 %v2729, %v2477
    %v2732 = vmul.f32 %v2729, %v2478
    %v2733 = vmul.f32 %v2729, %v2479
    %v2734 = vmul.f32 %v2729, %v2480
    %v2735 = vmul.f32 %v2729, %v2481
    %v2736 = vmul.f32 %v2729, %v2482
    %v2737 = vmul.f32 %v2729, %v2483
    %v2738 = vmul.f32 %v2729, %v2484
    %v2739 = vmul.f32 %v2729, %v2485
    %v2740 = vmul.f32 %v2729, %v2486
    %v2741 = vmul.f32 %v2729, %v2487
    %v2754 = vrot.slane %v2730, 2
    %v2755 = vrot.slane %v2731, 2
    %v2756 = vsel %vm985, %v2754, %v2755
    %v2757 = vrot.slane %v2732, 2
    %v2758 = vsel %vm985, %v2755, %v2757
    %v2759 = vrot.slane %v2733, 2
    %v2760 = vrot.slane %v2734, 2
    %v2761 = vsel %vm985, %v2759, %v2760
    %v2762 = vrot.slane %v2735, 2
    %v2763 = vsel %vm985, %v2760, %v2762
    %v2764 = vrot.slane %v2736, 2
    %v2765 = vrot.slane %v2737, 2
    %v2766 = vsel %vm985, %v2764, %v2765
    %v2767 = vrot.slane %v2738, 2
    %v2768 = vsel %vm985, %v2765, %v2767
    %v2769 = vrot.slane %v2739, 2
    %v2770 = vrot.slane %v2740, 2
    %v2771 = vsel %vm985, %v2769, %v2770
    %v2772 = vrot.slane %v2741, 2
    %v2773 = vsel %vm985, %v2770, %v2772
    %v2782 = vadd.f32 %v2652, %v2756
    %v2783 = vadd.f32 %v2653, %v2758
    %v2784 = vadd.f32 %v2654, %v2761
    %v2785 = vadd.f32 %v2655, %v2763
    %v2786 = vadd.f32 %v2656, %v2766
    %v2787 = vadd.f32 %v2657, %v2768
    %v2788 = vadd.f32 %v2658, %v2771
    %v2789 = vadd.f32 %v2659, %v2773
    %v2790 = vld [vmem:[%s2 + $0x11] sm:$0x1]
    %v2791 = vld [vmem:[%s2 + $0x42] sm:$0x1]
    %v2792 = vlaneseq
    %v2793 = vshrl.u32 %v2792, 7
    %v2794 = vsub.s32 0, %v2793
    %v2795 = vrot.slane %v2790, %v2794
    %v2796 = vmul.f32 %v2795, %v2463
    %v2797 = vmul.f32 %v2795, %v2464
    %v2798 = vmul.f32 %v2795, %v2465
    %v2799 = vmul.f32 %v2795, %v2466
    %v2800 = vmul.f32 %v2795, %v2467
    %v2801 = vmul.f32 %v2795, %v2468
    %v2802 = vmul.f32 %v2795, %v2469
    %v2803 = vmul.f32 %v2795, %v2470
    %v2804 = vmul.f32 %v2795, %v2471
    %v2805 = vmul.f32 %v2795, %v2472
    %v2806 = vmul.f32 %v2795, %v2473
    %v2807 = vmul.f32 %v2795, %v2474
    %v2820 = vrot.slane %v2796, 3
    %v2821 = vrot.slane %v2797, 3
    %v2822 = vsel %vm1116, %v2820, %v2821
    %v2823 = vrot.slane %v2798, 3
    %v2824 = vsel %vm1116, %v2821, %v2823
    %v2825 = vrot.slane %v2799, 3
    %v2826 = vrot.slane %v2800, 3
    %v2827 = vsel %vm1116, %v2825, %v2826
    %v2828 = vrot.slane %v2801, 3
    %v2829 = vsel %vm1116, %v2826, %v2828
    %v2830 = vrot.slane %v2802, 3
    %v2831 = vrot.slane %v2803, 3
    %v2832 = vsel %vm1116, %v2830, %v2831
    %v2833 = vrot.slane %v2804, 3
    %v2834 = vsel %vm1116, %v2831, %v2833
    %v2835 = vrot.slane %v2805, 3
    %v2836 = vrot.slane %v2806, 3
    %v2837 = vsel %vm1116, %v2835, %v2836
    %v2838 = vrot.slane %v2807, 3
    %v2839 = vsel %vm1116, %v2836, %v2838
    %v2848 = vadd.f32 %v2718, %v2822
    %v2849 = vadd.f32 %v2719, %v2824
    %v2850 = vadd.f32 %v2720, %v2827
    %v2851 = vadd.f32 %v2721, %v2829
    %v2852 = vadd.f32 %v2722, %v2832
    %v2853 = vadd.f32 %v2723, %v2834
    %v2854 = vadd.f32 %v2724, %v2837
    %v2855 = vadd.f32 %v2725, %v2839
    %v2856 = vlaneseq
    %v2857 = vshrl.u32 %v2856, 7
    %v2858 = vsub.s32 0, %v2857
    %v2859 = vrot.slane %v2791, %v2858
    %v2860 = vmul.f32 %v2859, %v2476
    %v2861 = vmul.f32 %v2859, %v2477
    %v2862 = vmul.f32 %v2859, %v2478
    %v2863 = vmul.f32 %v2859, %v2479
    %v2864 = vmul.f32 %v2859, %v2480
    %v2865 = vmul.f32 %v2859, %v2481
    %v2866 = vmul.f32 %v2859, %v2482
    %v2867 = vmul.f32 %v2859, %v2483
    %v2868 = vmul.f32 %v2859, %v2484
    %v2869 = vmul.f32 %v2859, %v2485
    %v2870 = vmul.f32 %v2859, %v2486
    %v2871 = vmul.f32 %v2859, %v2487
    %v2884 = vrot.slane %v2860, 3
    %v2885 = vrot.slane %v2861, 3
    %v2886 = vsel %vm1116, %v2884, %v2885
    %v2887 = vrot.slane %v2862, 3
    %v2888 = vsel %vm1116, %v2885, %v2887
    %v2889 = vrot.slane %v2863, 3
    %v2890 = vrot.slane %v2864, 3
    %v2891 = vsel %vm1116, %v2889, %v2890
    %v2892 = vrot.slane %v2865, 3
    %v2893 = vsel %vm1116, %v2890, %v2892
    %v2894 = vrot.slane %v2866, 3
    %v2895 = vrot.slane %v2867, 3
    %v2896 = vsel %vm1116, %v2894, %v2895
    %v2897 = vrot.slane %v2868, 3
    %v2898 = vsel %vm1116, %v2895, %v2897
    %v2899 = vrot.slane %v2869, 3
    %v2900 = vrot.slane %v2870, 3
    %v2901 = vsel %vm1116, %v2899, %v2900
    %v2902 = vrot.slane %v2871, 3
    %v2903 = vsel %vm1116, %v2900, %v2902
    %v2912 = vadd.f32 %v2782, %v2886
    %v2913 = vadd.f32 %v2783, %v2888
    %v2914 = vadd.f32 %v2784, %v2891
    %v2915 = vadd.f32 %v2785, %v2893
    %v2916 = vadd.f32 %v2786, %v2896
    %v2917 = vadd.f32 %v2787, %v2898
    %v2918 = vadd.f32 %v2788, %v2901
    %v2919 = vadd.f32 %v2789, %v2903
    %v2920 = vld [vmem:[%s2 + $0x12] sm:$0x1]
    %v2921 = vld [vmem:[%s2 + $0x43] sm:$0x1]
    %v2922 = vlaneseq
    %v2923 = vshrl.u32 %v2922, 7
    %v2924 = vsub.s32 0, %v2923
    %v2925 = vrot.slane %v2920, %v2924
    %v2926 = vmul.f32 %v2925, %v2463
    %v2927 = vmul.f32 %v2925, %v2464
    %v2928 = vmul.f32 %v2925, %v2465
    %v2929 = vmul.f32 %v2925, %v2466
    %v2930 = vmul.f32 %v2925, %v2467
    %v2931 = vmul.f32 %v2925, %v2468
    %v2932 = vmul.f32 %v2925, %v2469
    %v2933 = vmul.f32 %v2925, %v2470
    %v2934 = vmul.f32 %v2925, %v2471
    %v2935 = vmul.f32 %v2925, %v2472
    %v2936 = vmul.f32 %v2925, %v2473
    %v2937 = vmul.f32 %v2925, %v2474
    %v2950 = vrot.slane %v2926, 4
    %v2951 = vrot.slane %v2927, 4
    %v2952 = vsel %vm1247, %v2950, %v2951
    %v2953 = vrot.slane %v2928, 4
    %v2954 = vsel %vm1247, %v2951, %v2953
    %v2955 = vrot.slane %v2929, 4
    %v2956 = vrot.slane %v2930, 4
    %v2957 = vsel %vm1247, %v2955, %v2956
    %v2958 = vrot.slane %v2931, 4
    %v2959 = vsel %vm1247, %v2956, %v2958
    %v2960 = vrot.slane %v2932, 4
    %v2961 = vrot.slane %v2933, 4
    %v2962 = vsel %vm1247, %v2960, %v2961
    %v2963 = vrot.slane %v2934, 4
    %v2964 = vsel %vm1247, %v2961, %v2963
    %v2965 = vrot.slane %v2935, 4
    %v2966 = vrot.slane %v2936, 4
    %v2967 = vsel %vm1247, %v2965, %v2966
    %v2968 = vrot.slane %v2937, 4
    %v2969 = vsel %vm1247, %v2966, %v2968
    %v2978 = vadd.f32 %v2848, %v2952
    %v2979 = vadd.f32 %v2849, %v2954
    %v2980 = vadd.f32 %v2850, %v2957
    %v2981 = vadd.f32 %v2851, %v2959
    %v2982 = vadd.f32 %v2852, %v2962
    %v2983 = vadd.f32 %v2853, %v2964
    %v2984 = vadd.f32 %v2854, %v2967
    %v2985 = vadd.f32 %v2855, %v2969
    %v2986 = vlaneseq
    %v2987 = vshrl.u32 %v2986, 7
    %v2988 = vsub.s32 0, %v2987
    %v2989 = vrot.slane %v2921, %v2988
    %v2990 = vmul.f32 %v2989, %v2476
    %v2991 = vmul.f32 %v2989, %v2477
    %v2992 = vmul.f32 %v2989, %v2478
    %v2993 = vmul.f32 %v2989, %v2479
    %v2994 = vmul.f32 %v2989, %v2480
    %v2995 = vmul.f32 %v2989, %v2481
    %v2996 = vmul.f32 %v2989, %v2482
    %v2997 = vmul.f32 %v2989, %v2483
    %v2998 = vmul.f32 %v2989, %v2484
    %v2999 = vmul.f32 %v2989, %v2485
    %v3000 = vmul.f32 %v2989, %v2486
    %v3001 = vmul.f32 %v2989, %v2487
    %v3014 = vrot.slane %v2990, 4
    %v3015 = vrot.slane %v2991, 4
    %v3016 = vsel %vm1247, %v3014, %v3015
    %v3017 = vrot.slane %v2992, 4
    %v3018 = vsel %vm1247, %v3015, %v3017
    %v3019 = vrot.slane %v2993, 4
    %v3020 = vrot.slane %v2994, 4
    %v3021 = vsel %vm1247, %v3019, %v3020
    %v3022 = vrot.slane %v2995, 4
    %v3023 = vsel %vm1247, %v3020, %v3022
    %v3024 = vrot.slane %v2996, 4
    %v3025 = vrot.slane %v2997, 4
    %v3026 = vsel %vm1247, %v3024, %v3025
    %v3027 = vrot.slane %v2998, 4
    %v3028 = vsel %vm1247, %v3025, %v3027
    %v3029 = vrot.slane %v2999, 4
    %v3030 = vrot.slane %v3000, 4
    %v3031 = vsel %vm1247, %v3029, %v3030
    %v3032 = vrot.slane %v3001, 4
    %v3033 = vsel %vm1247, %v3030, %v3032
    %v3042 = vadd.f32 %v2912, %v3016
    %v3043 = vadd.f32 %v2913, %v3018
    %v3044 = vadd.f32 %v2914, %v3021
    %v3045 = vadd.f32 %v2915, %v3023
    %v3046 = vadd.f32 %v2916, %v3026
    %v3047 = vadd.f32 %v2917, %v3028
    %v3048 = vadd.f32 %v2918, %v3031
    %v3049 = vadd.f32 %v2919, %v3033
    %v3050 = vld [vmem:[%s2 + $0x13] sm:$0x1]
    %v3051 = vld [vmem:[%s2 + $0x44] sm:$0x1]
    %v3052 = vlaneseq
    %v3053 = vshrl.u32 %v3052, 7
    %v3054 = vsub.s32 0, %v3053
    %v3055 = vrot.slane %v3050, %v3054
    %v3056 = vmul.f32 %v3055, %v2463
    %v3057 = vmul.f32 %v3055, %v2464
    %v3058 = vmul.f32 %v3055, %v2465
    %v3059 = vmul.f32 %v3055, %v2466
    %v3060 = vmul.f32 %v3055, %v2467
    %v3061 = vmul.f32 %v3055, %v2468
    %v3062 = vmul.f32 %v3055, %v2469
    %v3063 = vmul.f32 %v3055, %v2470
    %v3064 = vmul.f32 %v3055, %v2471
    %v3065 = vmul.f32 %v3055, %v2472
    %v3066 = vmul.f32 %v3055, %v2473
    %v3067 = vmul.f32 %v3055, %v2474
    %v3080 = vrot.slane %v3056, 5
    %v3081 = vrot.slane %v3057, 5
    %v3082 = vsel %vm1378, %v3080, %v3081
    %v3083 = vrot.slane %v3058, 5
    %v3084 = vsel %vm1378, %v3081, %v3083
    %v3085 = vrot.slane %v3059, 5
    %v3086 = vrot.slane %v3060, 5
    %v3087 = vsel %vm1378, %v3085, %v3086
    %v3088 = vrot.slane %v3061, 5
    %v3089 = vsel %vm1378, %v3086, %v3088
    %v3090 = vrot.slane %v3062, 5
    %v3091 = vrot.slane %v3063, 5
    %v3092 = vsel %vm1378, %v3090, %v3091
    %v3093 = vrot.slane %v3064, 5
    %v3094 = vsel %vm1378, %v3091, %v3093
    %v3095 = vrot.slane %v3065, 5
    %v3096 = vrot.slane %v3066, 5
    %v3097 = vsel %vm1378, %v3095, %v3096
    %v3098 = vrot.slane %v3067, 5
    %v3099 = vsel %vm1378, %v3096, %v3098
    %v3108 = vadd.f32 %v2978, %v3082
    %v3109 = vadd.f32 %v2979, %v3084
    %v3110 = vadd.f32 %v2980, %v3087
    %v3111 = vadd.f32 %v2981, %v3089
    %v3112 = vadd.f32 %v2982, %v3092
    %v3113 = vadd.f32 %v2983, %v3094
    %v3114 = vadd.f32 %v2984, %v3097
    %v3115 = vadd.f32 %v2985, %v3099
    %v3116 = vlaneseq
    %v3117 = vshrl.u32 %v3116, 7
    %v3118 = vsub.s32 0, %v3117
    %v3119 = vrot.slane %v3051, %v3118
    %v3120 = vmul.f32 %v3119, %v2476
    %v3121 = vmul.f32 %v3119, %v2477
    %v3122 = vmul.f32 %v3119, %v2478
    %v3123 = vmul.f32 %v3119, %v2479
    %v3124 = vmul.f32 %v3119, %v2480
    %v3125 = vmul.f32 %v3119, %v2481
    %v3126 = vmul.f32 %v3119, %v2482
    %v3127 = vmul.f32 %v3119, %v2483
    %v3128 = vmul.f32 %v3119, %v2484
    %v3129 = vmul.f32 %v3119, %v2485
    %v3130 = vmul.f32 %v3119, %v2486
    %v3131 = vmul.f32 %v3119, %v2487
    %v3144 = vrot.slane %v3120, 5
    %v3145 = vrot.slane %v3121, 5
    %v3146 = vsel %vm1378, %v3144, %v3145
    %v3147 = vrot.slane %v3122, 5
    %v3148 = vsel %vm1378, %v3145, %v3147
    %v3149 = vrot.slane %v3123, 5
    %v3150 = vrot.slane %v3124, 5
    %v3151 = vsel %vm1378, %v3149, %v3150
    %v3152 = vrot.slane %v3125, 5
    %v3153 = vsel %vm1378, %v3150, %v3152
    %v3154 = vrot.slane %v3126, 5
    %v3155 = vrot.slane %v3127, 5
    %v3156 = vsel %vm1378, %v3154, %v3155
    %v3157 = vrot.slane %v3128, 5
    %v3158 = vsel %vm1378, %v3155, %v3157
    %v3159 = vrot.slane %v3129, 5
    %v3160 = vrot.slane %v3130, 5
    %v3161 = vsel %vm1378, %v3159, %v3160
    %v3162 = vrot.slane %v3131, 5
    %v3163 = vsel %vm1378, %v3160, %v3162
    %v3172 = vadd.f32 %v3042, %v3146
    %v3173 = vadd.f32 %v3043, %v3148
    %v3174 = vadd.f32 %v3044, %v3151
    %v3175 = vadd.f32 %v3045, %v3153
    %v3176 = vadd.f32 %v3046, %v3156
    %v3177 = vadd.f32 %v3047, %v3158
    %v3178 = vadd.f32 %v3048, %v3161
    %v3179 = vadd.f32 %v3049, %v3163
    %v3180 = vld [vmem:[%s2 + $0x14] sm:$0x1]
    %v3181 = vld [vmem:[%s2 + $0x45] sm:$0x1]
    %v3182 = vlaneseq
    %v3183 = vshrl.u32 %v3182, 7
    %v3184 = vsub.s32 0, %v3183
    %v3185 = vrot.slane %v3180, %v3184
    %v3186 = vmul.f32 %v3185, %v2463
    %v3187 = vmul.f32 %v3185, %v2464
    %v3188 = vmul.f32 %v3185, %v2465
    %v3189 = vmul.f32 %v3185, %v2466
    %v3190 = vmul.f32 %v3185, %v2467
    %v3191 = vmul.f32 %v3185, %v2468
    %v3192 = vmul.f32 %v3185, %v2469
    %v3193 = vmul.f32 %v3185, %v2470
    %v3194 = vmul.f32 %v3185, %v2471
    %v3195 = vmul.f32 %v3185, %v2472
    %v3196 = vmul.f32 %v3185, %v2473
    %v3197 = vmul.f32 %v3185, %v2474
    %v3210 = vrot.slane %v3186, 6
    %v3211 = vrot.slane %v3187, 6
    %v3212 = vsel %vm1509, %v3210, %v3211
    %v3213 = vrot.slane %v3188, 6
    %v3214 = vsel %vm1509, %v3211, %v3213
    %v3215 = vrot.slane %v3189, 6
    %v3216 = vrot.slane %v3190, 6
    %v3217 = vsel %vm1509, %v3215, %v3216
    %v3218 = vrot.slane %v3191, 6
    %v3219 = vsel %vm1509, %v3216, %v3218
    %v3220 = vrot.slane %v3192, 6
    %v3221 = vrot.slane %v3193, 6
    %v3222 = vsel %vm1509, %v3220, %v3221
    %v3223 = vrot.slane %v3194, 6
    %v3224 = vsel %vm1509, %v3221, %v3223
    %v3225 = vrot.slane %v3195, 6
    %v3226 = vrot.slane %v3196, 6
    %v3227 = vsel %vm1509, %v3225, %v3226
    %v3228 = vrot.slane %v3197, 6
    %v3229 = vsel %vm1509, %v3226, %v3228
    %v3238 = vadd.f32 %v3108, %v3212
    %v3239 = vadd.f32 %v3109, %v3214
    %v3240 = vadd.f32 %v3110, %v3217
    %v3241 = vadd.f32 %v3111, %v3219
    %v3242 = vadd.f32 %v3112, %v3222
    %v3243 = vadd.f32 %v3113, %v3224
    %v3244 = vadd.f32 %v3114, %v3227
    %v3245 = vadd.f32 %v3115, %v3229
    %v3246 = vlaneseq
    %v3247 = vshrl.u32 %v3246, 7
    %v3248 = vsub.s32 0, %v3247
    %v3249 = vrot.slane %v3181, %v3248
    %v3250 = vmul.f32 %v3249, %v2476
    %v3251 = vmul.f32 %v3249, %v2477
    %v3252 = vmul.f32 %v3249, %v2478
    %v3253 = vmul.f32 %v3249, %v2479
    %v3254 = vmul.f32 %v3249, %v2480
    %v3255 = vmul.f32 %v3249, %v2481
    %v3256 = vmul.f32 %v3249, %v2482
    %v3257 = vmul.f32 %v3249, %v2483
    %v3258 = vmul.f32 %v3249, %v2484
    %v3259 = vmul.f32 %v3249, %v2485
    %v3260 = vmul.f32 %v3249, %v2486
    %v3261 = vmul.f32 %v3249, %v2487
    %v3274 = vrot.slane %v3250, 6
    %v3275 = vrot.slane %v3251, 6
    %v3276 = vsel %vm1509, %v3274, %v3275
    %v3277 = vrot.slane %v3252, 6
    %v3278 = vsel %vm1509, %v3275, %v3277
    %v3279 = vrot.slane %v3253, 6
    %v3280 = vrot.slane %v3254, 6
    %v3281 = vsel %vm1509, %v3279, %v3280
    %v3282 = vrot.slane %v3255, 6
    %v3283 = vsel %vm1509, %v3280, %v3282
    %v3284 = vrot.slane %v3256, 6
    %v3285 = vrot.slane %v3257, 6
    %v3286 = vsel %vm1509, %v3284, %v3285
    %v3287 = vrot.slane %v3258, 6
    %v3288 = vsel %vm1509, %v3285, %v3287
    %v3289 = vrot.slane %v3259, 6
    %v3290 = vrot.slane %v3260, 6
    %v3291 = vsel %vm1509, %v3289, %v3290
    %v3292 = vrot.slane %v3261, 6
    %v3293 = vsel %vm1509, %v3290, %v3292
    %v3302 = vadd.f32 %v3172, %v3276
    %v3303 = vadd.f32 %v3173, %v3278
    %v3304 = vadd.f32 %v3174, %v3281
    %v3305 = vadd.f32 %v3175, %v3283
    %v3306 = vadd.f32 %v3176, %v3286
    %v3307 = vadd.f32 %v3177, %v3288
    %v3308 = vadd.f32 %v3178, %v3291
    %v3309 = vadd.f32 %v3179, %v3293
    %s3310 = sadd.s32 %s754, 3
    %s3311 = smul.u32 %s3310, 24
    %s3312 = scalar_lea.vmem [#allocation2], %s3311
    %v3313 = vld [vmem:[%s3312] sm:$0xff]
    %v3314 = vld [vmem:[%s3312 + $0x8] sm:$0xff]
    %v3315 = vld [vmem:[%s3312 + $0x10] sm:$0x3f]
    %v3316 = vld [vmem:[%s3312 + $0x18] sm:$0xff]
    %v3317 = vld [vmem:[%s3312 + $0x20] sm:$0xff]
    %v3318 = vld [vmem:[%s3312 + $0x28] sm:$0x3f]
    %v3319 = vld [vmem:[%s3312 + $0x30] sm:$0xff]
    %v3320 = vld [vmem:[%s3312 + $0x38] sm:$0xff]
    %v3321 = vld [vmem:[%s3312 + $0x40] sm:$0x3f]
    %v3322 = vld [vmem:[%s3312 + $0x48] sm:$0xff]
    %v3323 = vld [vmem:[%s3312 + $0x50] sm:$0xff]
    %v3324 = vld [vmem:[%s3312 + $0x58] sm:$0x3f]
    %s3325 = scalar_lea.vmem [#allocation3], %s3311
    %v3326 = vld [vmem:[%s3325] sm:$0xff]
    %v3327 = vld [vmem:[%s3325 + $0x8] sm:$0xff]
    %v3328 = vld [vmem:[%s3325 + $0x10] sm:$0x3f]
    %v3329 = vld [vmem:[%s3325 + $0x18] sm:$0xff]
    %v3330 = vld [vmem:[%s3325 + $0x20] sm:$0xff]
    %v3331 = vld [vmem:[%s3325 + $0x28] sm:$0x3f]
    %v3332 = vld [vmem:[%s3325 + $0x30] sm:$0xff]
    %v3333 = vld [vmem:[%s3325 + $0x38] sm:$0xff]
    %v3334 = vld [vmem:[%s3325 + $0x40] sm:$0x3f]
    %v3335 = vld [vmem:[%s3325 + $0x48] sm:$0xff]
    %v3336 = vld [vmem:[%s3325 + $0x50] sm:$0xff]
    %v3337 = vld [vmem:[%s3325 + $0x58] sm:$0x3f]
    %v3338 = vld [vmem:[%s2 + $0x15] sm:$0x1]
    %v3339 = vld [vmem:[%s2 + $0x46] sm:$0x1]
    %v3340 = vlaneseq
    %v3341 = vshrl.u32 %v3340, 7
    %v3342 = vsub.s32 0, %v3341
    %v3343 = vrot.slane %v3338, %v3342
    %v3344 = vmul.f32 %v3343, %v3313
    %v3345 = vmul.f32 %v3343, %v3314
    %v3346 = vmul.f32 %v3343, %v3316
    %v3347 = vmul.f32 %v3343, %v3317
    %v3348 = vmul.f32 %v3343, %v3319
    %v3349 = vmul.f32 %v3343, %v3320
    %v3350 = vmul.f32 %v3343, %v3322
    %v3351 = vmul.f32 %v3343, %v3323
    %v3352 = vadd.f32 %v3238, %v3344
    %v3353 = vadd.f32 %v3239, %v3345
    %v3354 = vadd.f32 %v3240, %v3346
    %v3355 = vadd.f32 %v3241, %v3347
    %v3356 = vadd.f32 %v3242, %v3348
    %v3357 = vadd.f32 %v3243, %v3349
    %v3358 = vadd.f32 %v3244, %v3350
    %v3359 = vadd.f32 %v3245, %v3351
    %v3360 = vlaneseq
    %v3361 = vshrl.u32 %v3360, 7
    %v3362 = vsub.s32 0, %v3361
    %v3363 = vrot.slane %v3339, %v3362
    %v3364 = vmul.f32 %v3363, %v3326
    %v3365 = vmul.f32 %v3363, %v3327
    %v3366 = vmul.f32 %v3363, %v3329
    %v3367 = vmul.f32 %v3363, %v3330
    %v3368 = vmul.f32 %v3363, %v3332
    %v3369 = vmul.f32 %v3363, %v3333
    %v3370 = vmul.f32 %v3363, %v3335
    %v3371 = vmul.f32 %v3363, %v3336
    %v3372 = vadd.f32 %v3302, %v3364
    %v3373 = vadd.f32 %v3303, %v3365
    %v3374 = vadd.f32 %v3304, %v3366
    %v3375 = vadd.f32 %v3305, %v3367
    %v3376 = vadd.f32 %v3306, %v3368
    %v3377 = vadd.f32 %v3307, %v3369
    %v3378 = vadd.f32 %v3308, %v3370
    %v3379 = vadd.f32 %v3309, %v3371
    %v3380 = vld [vmem:[%s2 + $0x16] sm:$0x1]
    %v3381 = vld [vmem:[%s2 + $0x47] sm:$0x1]
    %v3382 = vlaneseq
    %v3383 = vshrl.u32 %v3382, 7
    %v3384 = vsub.s32 0, %v3383
    %v3385 = vrot.slane %v3380, %v3384
    %v3386 = vmul.f32 %v3385, %v3313
    %v3387 = vmul.f32 %v3385, %v3314
    %v3388 = vmul.f32 %v3385, %v3315
    %v3389 = vmul.f32 %v3385, %v3316
    %v3390 = vmul.f32 %v3385, %v3317
    %v3391 = vmul.f32 %v3385, %v3318
    %v3392 = vmul.f32 %v3385, %v3319
    %v3393 = vmul.f32 %v3385, %v3320
    %v3394 = vmul.f32 %v3385, %v3321
    %v3395 = vmul.f32 %v3385, %v3322
    %v3396 = vmul.f32 %v3385, %v3323
    %v3397 = vmul.f32 %v3385, %v3324
    %v3410 = vrot.slane %v3386, 1
    %v3411 = vrot.slane %v3387, 1
    %v3412 = vsel %vm854, %v3410, %v3411
    %v3413 = vrot.slane %v3388, 1
    %v3414 = vsel %vm854, %v3411, %v3413
    %v3415 = vrot.slane %v3389, 1
    %v3416 = vrot.slane %v3390, 1
    %v3417 = vsel %vm854, %v3415, %v3416
    %v3418 = vrot.slane %v3391, 1
    %v3419 = vsel %vm854, %v3416, %v3418
    %v3420 = vrot.slane %v3392, 1
    %v3421 = vrot.slane %v3393, 1
    %v3422 = vsel %vm854, %v3420, %v3421
    %v3423 = vrot.slane %v3394, 1
    %v3424 = vsel %vm854, %v3421, %v3423
    %v3425 = vrot.slane %v3395, 1
    %v3426 = vrot.slane %v3396, 1
    %v3427 = vsel %vm854, %v3425, %v3426
    %v3428 = vrot.slane %v3397, 1
    %v3429 = vsel %vm854, %v3426, %v3428
    %v3438 = vadd.f32 %v3352, %v3412
    %v3439 = vadd.f32 %v3353, %v3414
    %v3440 = vadd.f32 %v3354, %v3417
    %v3441 = vadd.f32 %v3355, %v3419
    %v3442 = vadd.f32 %v3356, %v3422
    %v3443 = vadd.f32 %v3357, %v3424
    %v3444 = vadd.f32 %v3358, %v3427
    %v3445 = vadd.f32 %v3359, %v3429
    %v3446 = vlaneseq
    %v3447 = vshrl.u32 %v3446, 7
    %v3448 = vsub.s32 0, %v3447
    %v3449 = vrot.slane %v3381, %v3448
    %v3450 = vmul.f32 %v3449, %v3326
    %v3451 = vmul.f32 %v3449, %v3327
    %v3452 = vmul.f32 %v3449, %v3328
    %v3453 = vmul.f32 %v3449, %v3329
    %v3454 = vmul.f32 %v3449, %v3330
    %v3455 = vmul.f32 %v3449, %v3331
    %v3456 = vmul.f32 %v3449, %v3332
    %v3457 = vmul.f32 %v3449, %v3333
    %v3458 = vmul.f32 %v3449, %v3334
    %v3459 = vmul.f32 %v3449, %v3335
    %v3460 = vmul.f32 %v3449, %v3336
    %v3461 = vmul.f32 %v3449, %v3337
    %v3474 = vrot.slane %v3450, 1
    %v3475 = vrot.slane %v3451, 1
    %v3476 = vsel %vm854, %v3474, %v3475
    %v3477 = vrot.slane %v3452, 1
    %v3478 = vsel %vm854, %v3475, %v3477
    %v3479 = vrot.slane %v3453, 1
    %v3480 = vrot.slane %v3454, 1
    %v3481 = vsel %vm854, %v3479, %v3480
    %v3482 = vrot.slane %v3455, 1
    %v3483 = vsel %vm854, %v3480, %v3482
    %v3484 = vrot.slane %v3456, 1
    %v3485 = vrot.slane %v3457, 1
    %v3486 = vsel %vm854, %v3484, %v3485
    %v3487 = vrot.slane %v3458, 1
    %v3488 = vsel %vm854, %v3485, %v3487
    %v3489 = vrot.slane %v3459, 1
    %v3490 = vrot.slane %v3460, 1
    %v3491 = vsel %vm854, %v3489, %v3490
    %v3492 = vrot.slane %v3461, 1
    %v3493 = vsel %vm854, %v3490, %v3492
    %v3502 = vadd.f32 %v3372, %v3476
    %v3503 = vadd.f32 %v3373, %v3478
    %v3504 = vadd.f32 %v3374, %v3481
    %v3505 = vadd.f32 %v3375, %v3483
    %v3506 = vadd.f32 %v3376, %v3486
    %v3507 = vadd.f32 %v3377, %v3488
    %v3508 = vadd.f32 %v3378, %v3491
    %v3509 = vadd.f32 %v3379, %v3493
    %v3510 = vld [vmem:[%s2 + $0x17] sm:$0x1]
    %v3511 = vld [vmem:[%s2 + $0x48] sm:$0x1]
    %v3512 = vlaneseq
    %v3513 = vshrl.u32 %v3512, 7
    %v3514 = vsub.s32 0, %v3513
    %v3515 = vrot.slane %v3510, %v3514
    %v3516 = vmul.f32 %v3515, %v3313
    %v3517 = vmul.f32 %v3515, %v3314
    %v3518 = vmul.f32 %v3515, %v3315
    %v3519 = vmul.f32 %v3515, %v3316
    %v3520 = vmul.f32 %v3515, %v3317
    %v3521 = vmul.f32 %v3515, %v3318
    %v3522 = vmul.f32 %v3515, %v3319
    %v3523 = vmul.f32 %v3515, %v3320
    %v3524 = vmul.f32 %v3515, %v3321
    %v3525 = vmul.f32 %v3515, %v3322
    %v3526 = vmul.f32 %v3515, %v3323
    %v3527 = vmul.f32 %v3515, %v3324
    %v3540 = vrot.slane %v3516, 2
    %v3541 = vrot.slane %v3517, 2
    %v3542 = vsel %vm985, %v3540, %v3541
    %v3543 = vrot.slane %v3518, 2
    %v3544 = vsel %vm985, %v3541, %v3543
    %v3545 = vrot.slane %v3519, 2
    %v3546 = vrot.slane %v3520, 2
    %v3547 = vsel %vm985, %v3545, %v3546
    %v3548 = vrot.slane %v3521, 2
    %v3549 = vsel %vm985, %v3546, %v3548
    %v3550 = vrot.slane %v3522, 2
    %v3551 = vrot.slane %v3523, 2
    %v3552 = vsel %vm985, %v3550, %v3551
    %v3553 = vrot.slane %v3524, 2
    %v3554 = vsel %vm985, %v3551, %v3553
    %v3555 = vrot.slane %v3525, 2
    %v3556 = vrot.slane %v3526, 2
    %v3557 = vsel %vm985, %v3555, %v3556
    %v3558 = vrot.slane %v3527, 2
    %v3559 = vsel %vm985, %v3556, %v3558
    %v3568 = vadd.f32 %v3438, %v3542
    %v3569 = vadd.f32 %v3439, %v3544
    %v3570 = vadd.f32 %v3440, %v3547
    %v3571 = vadd.f32 %v3441, %v3549
    %v3572 = vadd.f32 %v3442, %v3552
    %v3573 = vadd.f32 %v3443, %v3554
    %v3574 = vadd.f32 %v3444, %v3557
    %v3575 = vadd.f32 %v3445, %v3559
    %v3576 = vlaneseq
    %v3577 = vshrl.u32 %v3576, 7
    %v3578 = vsub.s32 0, %v3577
    %v3579 = vrot.slane %v3511, %v3578
    %v3580 = vmul.f32 %v3579, %v3326
    %v3581 = vmul.f32 %v3579, %v3327
    %v3582 = vmul.f32 %v3579, %v3328
    %v3583 = vmul.f32 %v3579, %v3329
    %v3584 = vmul.f32 %v3579, %v3330
    %v3585 = vmul.f32 %v3579, %v3331
    %v3586 = vmul.f32 %v3579, %v3332
    %v3587 = vmul.f32 %v3579, %v3333
    %v3588 = vmul.f32 %v3579, %v3334
    %v3589 = vmul.f32 %v3579, %v3335
    %v3590 = vmul.f32 %v3579, %v3336
    %v3591 = vmul.f32 %v3579, %v3337
    %v3604 = vrot.slane %v3580, 2
    %v3605 = vrot.slane %v3581, 2
    %v3606 = vsel %vm985, %v3604, %v3605
    %v3607 = vrot.slane %v3582, 2
    %v3608 = vsel %vm985, %v3605, %v3607
    %v3609 = vrot.slane %v3583, 2
    %v3610 = vrot.slane %v3584, 2
    %v3611 = vsel %vm985, %v3609, %v3610
    %v3612 = vrot.slane %v3585, 2
    %v3613 = vsel %vm985, %v3610, %v3612
    %v3614 = vrot.slane %v3586, 2
    %v3615 = vrot.slane %v3587, 2
    %v3616 = vsel %vm985, %v3614, %v3615
    %v3617 = vrot.slane %v3588, 2
    %v3618 = vsel %vm985, %v3615, %v3617
    %v3619 = vrot.slane %v3589, 2
    %v3620 = vrot.slane %v3590, 2
    %v3621 = vsel %vm985, %v3619, %v3620
    %v3622 = vrot.slane %v3591, 2
    %v3623 = vsel %vm985, %v3620, %v3622
    %v3632 = vadd.f32 %v3502, %v3606
    %v3633 = vadd.f32 %v3503, %v3608
    %v3634 = vadd.f32 %v3504, %v3611
    %v3635 = vadd.f32 %v3505, %v3613
    %v3636 = vadd.f32 %v3506, %v3616
    %v3637 = vadd.f32 %v3507, %v3618
    %v3638 = vadd.f32 %v3508, %v3621
    %v3639 = vadd.f32 %v3509, %v3623
    %v3640 = vld [vmem:[%s2 + $0x18] sm:$0x1]
    %v3641 = vld [vmem:[%s2 + $0x49] sm:$0x1]
    %v3642 = vlaneseq
    %v3643 = vshrl.u32 %v3642, 7
    %v3644 = vsub.s32 0, %v3643
    %v3645 = vrot.slane %v3640, %v3644
    %v3646 = vmul.f32 %v3645, %v3313
    %v3647 = vmul.f32 %v3645, %v3314
    %v3648 = vmul.f32 %v3645, %v3315
    %v3649 = vmul.f32 %v3645, %v3316
    %v3650 = vmul.f32 %v3645, %v3317
    %v3651 = vmul.f32 %v3645, %v3318
    %v3652 = vmul.f32 %v3645, %v3319
    %v3653 = vmul.f32 %v3645, %v3320
    %v3654 = vmul.f32 %v3645, %v3321
    %v3655 = vmul.f32 %v3645, %v3322
    %v3656 = vmul.f32 %v3645, %v3323
    %v3657 = vmul.f32 %v3645, %v3324
    %v3670 = vrot.slane %v3646, 3
    %v3671 = vrot.slane %v3647, 3
    %v3672 = vsel %vm1116, %v3670, %v3671
    %v3673 = vrot.slane %v3648, 3
    %v3674 = vsel %vm1116, %v3671, %v3673
    %v3675 = vrot.slane %v3649, 3
    %v3676 = vrot.slane %v3650, 3
    %v3677 = vsel %vm1116, %v3675, %v3676
    %v3678 = vrot.slane %v3651, 3
    %v3679 = vsel %vm1116, %v3676, %v3678
    %v3680 = vrot.slane %v3652, 3
    %v3681 = vrot.slane %v3653, 3
    %v3682 = vsel %vm1116, %v3680, %v3681
    %v3683 = vrot.slane %v3654, 3
    %v3684 = vsel %vm1116, %v3681, %v3683
    %v3685 = vrot.slane %v3655, 3
    %v3686 = vrot.slane %v3656, 3
    %v3687 = vsel %vm1116, %v3685, %v3686
    %v3688 = vrot.slane %v3657, 3
    %v3689 = vsel %vm1116, %v3686, %v3688
    %v3698 = vadd.f32 %v3568, %v3672
    %v3699 = vadd.f32 %v3569, %v3674
    %v3700 = vadd.f32 %v3570, %v3677
    %v3701 = vadd.f32 %v3571, %v3679
    %v3702 = vadd.f32 %v3572, %v3682
    %v3703 = vadd.f32 %v3573, %v3684
    %v3704 = vadd.f32 %v3574, %v3687
    %v3705 = vadd.f32 %v3575, %v3689
    %v3706 = vlaneseq
    %v3707 = vshrl.u32 %v3706, 7
    %v3708 = vsub.s32 0, %v3707
    %v3709 = vrot.slane %v3641, %v3708
    %v3710 = vmul.f32 %v3709, %v3326
    %v3711 = vmul.f32 %v3709, %v3327
    %v3712 = vmul.f32 %v3709, %v3328
    %v3713 = vmul.f32 %v3709, %v3329
    %v3714 = vmul.f32 %v3709, %v3330
    %v3715 = vmul.f32 %v3709, %v3331
    %v3716 = vmul.f32 %v3709, %v3332
    %v3717 = vmul.f32 %v3709, %v3333
    %v3718 = vmul.f32 %v3709, %v3334
    %v3719 = vmul.f32 %v3709, %v3335
    %v3720 = vmul.f32 %v3709, %v3336
    %v3721 = vmul.f32 %v3709, %v3337
    %v3734 = vrot.slane %v3710, 3
    %v3735 = vrot.slane %v3711, 3
    %v3736 = vsel %vm1116, %v3734, %v3735
    %v3737 = vrot.slane %v3712, 3
    %v3738 = vsel %vm1116, %v3735, %v3737
    %v3739 = vrot.slane %v3713, 3
    %v3740 = vrot.slane %v3714, 3
    %v3741 = vsel %vm1116, %v3739, %v3740
    %v3742 = vrot.slane %v3715, 3
    %v3743 = vsel %vm1116, %v3740, %v3742
    %v3744 = vrot.slane %v3716, 3
    %v3745 = vrot.slane %v3717, 3
    %v3746 = vsel %vm1116, %v3744, %v3745
    %v3747 = vrot.slane %v3718, 3
    %v3748 = vsel %vm1116, %v3745, %v3747
    %v3749 = vrot.slane %v3719, 3
    %v3750 = vrot.slane %v3720, 3
    %v3751 = vsel %vm1116, %v3749, %v3750
    %v3752 = vrot.slane %v3721, 3
    %v3753 = vsel %vm1116, %v3750, %v3752
    %v3762 = vadd.f32 %v3632, %v3736
    %v3763 = vadd.f32 %v3633, %v3738
    %v3764 = vadd.f32 %v3634, %v3741
    %v3765 = vadd.f32 %v3635, %v3743
    %v3766 = vadd.f32 %v3636, %v3746
    %v3767 = vadd.f32 %v3637, %v3748
    %v3768 = vadd.f32 %v3638, %v3751
    %v3769 = vadd.f32 %v3639, %v3753
    %v3770 = vld [vmem:[%s2 + $0x19] sm:$0x1]
    %v3771 = vld [vmem:[%s2 + $0x4a] sm:$0x1]
    %v3772 = vlaneseq
    %v3773 = vshrl.u32 %v3772, 7
    %v3774 = vsub.s32 0, %v3773
    %v3775 = vrot.slane %v3770, %v3774
    %v3776 = vmul.f32 %v3775, %v3313
    %v3777 = vmul.f32 %v3775, %v3314
    %v3778 = vmul.f32 %v3775, %v3315
    %v3779 = vmul.f32 %v3775, %v3316
    %v3780 = vmul.f32 %v3775, %v3317
    %v3781 = vmul.f32 %v3775, %v3318
    %v3782 = vmul.f32 %v3775, %v3319
    %v3783 = vmul.f32 %v3775, %v3320
    %v3784 = vmul.f32 %v3775, %v3321
    %v3785 = vmul.f32 %v3775, %v3322
    %v3786 = vmul.f32 %v3775, %v3323
    %v3787 = vmul.f32 %v3775, %v3324
    %v3800 = vrot.slane %v3776, 4
    %v3801 = vrot.slane %v3777, 4
    %v3802 = vsel %vm1247, %v3800, %v3801
    %v3803 = vrot.slane %v3778, 4
    %v3804 = vsel %vm1247, %v3801, %v3803
    %v3805 = vrot.slane %v3779, 4
    %v3806 = vrot.slane %v3780, 4
    %v3807 = vsel %vm1247, %v3805, %v3806
    %v3808 = vrot.slane %v3781, 4
    %v3809 = vsel %vm1247, %v3806, %v3808
    %v3810 = vrot.slane %v3782, 4
    %v3811 = vrot.slane %v3783, 4
    %v3812 = vsel %vm1247, %v3810, %v3811
    %v3813 = vrot.slane %v3784, 4
    %v3814 = vsel %vm1247, %v3811, %v3813
    %v3815 = vrot.slane %v3785, 4
    %v3816 = vrot.slane %v3786, 4
    %v3817 = vsel %vm1247, %v3815, %v3816
    %v3818 = vrot.slane %v3787, 4
    %v3819 = vsel %vm1247, %v3816, %v3818
    %v3828 = vadd.f32 %v3698, %v3802
    %v3829 = vadd.f32 %v3699, %v3804
    %v3830 = vadd.f32 %v3700, %v3807
    %v3831 = vadd.f32 %v3701, %v3809
    %v3832 = vadd.f32 %v3702, %v3812
    %v3833 = vadd.f32 %v3703, %v3814
    %v3834 = vadd.f32 %v3704, %v3817
    %v3835 = vadd.f32 %v3705, %v3819
    %v3836 = vlaneseq
    %v3837 = vshrl.u32 %v3836, 7
    %v3838 = vsub.s32 0, %v3837
    %v3839 = vrot.slane %v3771, %v3838
    %v3840 = vmul.f32 %v3839, %v3326
    %v3841 = vmul.f32 %v3839, %v3327
    %v3842 = vmul.f32 %v3839, %v3328
    %v3843 = vmul.f32 %v3839, %v3329
    %v3844 = vmul.f32 %v3839, %v3330
    %v3845 = vmul.f32 %v3839, %v3331
    %v3846 = vmul.f32 %v3839, %v3332
    %v3847 = vmul.f32 %v3839, %v3333
    %v3848 = vmul.f32 %v3839, %v3334
    %v3849 = vmul.f32 %v3839, %v3335
    %v3850 = vmul.f32 %v3839, %v3336
    %v3851 = vmul.f32 %v3839, %v3337
    %v3864 = vrot.slane %v3840, 4
    %v3865 = vrot.slane %v3841, 4
    %v3866 = vsel %vm1247, %v3864, %v3865
    %v3867 = vrot.slane %v3842, 4
    %v3868 = vsel %vm1247, %v3865, %v3867
    %v3869 = vrot.slane %v3843, 4
    %v3870 = vrot.slane %v3844, 4
    %v3871 = vsel %vm1247, %v3869, %v3870
    %v3872 = vrot.slane %v3845, 4
    %v3873 = vsel %vm1247, %v3870, %v3872
    %v3874 = vrot.slane %v3846, 4
    %v3875 = vrot.slane %v3847, 4
    %v3876 = vsel %vm1247, %v3874, %v3875
    %v3877 = vrot.slane %v3848, 4
    %v3878 = vsel %vm1247, %v3875, %v3877
    %v3879 = vrot.slane %v3849, 4
    %v3880 = vrot.slane %v3850, 4
    %v3881 = vsel %vm1247, %v3879, %v3880
    %v3882 = vrot.slane %v3851, 4
    %v3883 = vsel %vm1247, %v3880, %v3882
    %v3892 = vadd.f32 %v3762, %v3866
    %v3893 = vadd.f32 %v3763, %v3868
    %v3894 = vadd.f32 %v3764, %v3871
    %v3895 = vadd.f32 %v3765, %v3873
    %v3896 = vadd.f32 %v3766, %v3876
    %v3897 = vadd.f32 %v3767, %v3878
    %v3898 = vadd.f32 %v3768, %v3881
    %v3899 = vadd.f32 %v3769, %v3883
    %v3900 = vld [vmem:[%s2 + $0x1a] sm:$0x1]
    %v3901 = vld [vmem:[%s2 + $0x4b] sm:$0x1]
    %v3902 = vlaneseq
    %v3903 = vshrl.u32 %v3902, 7
    %v3904 = vsub.s32 0, %v3903
    %v3905 = vrot.slane %v3900, %v3904
    %v3906 = vmul.f32 %v3905, %v3313
    %v3907 = vmul.f32 %v3905, %v3314
    %v3908 = vmul.f32 %v3905, %v3315
    %v3909 = vmul.f32 %v3905, %v3316
    %v3910 = vmul.f32 %v3905, %v3317
    %v3911 = vmul.f32 %v3905, %v3318
    %v3912 = vmul.f32 %v3905, %v3319
    %v3913 = vmul.f32 %v3905, %v3320
    %v3914 = vmul.f32 %v3905, %v3321
    %v3915 = vmul.f32 %v3905, %v3322
    %v3916 = vmul.f32 %v3905, %v3323
    %v3917 = vmul.f32 %v3905, %v3324
    %v3930 = vrot.slane %v3906, 5
    %v3931 = vrot.slane %v3907, 5
    %v3932 = vsel %vm1378, %v3930, %v3931
    %v3933 = vrot.slane %v3908, 5
    %v3934 = vsel %vm1378, %v3931, %v3933
    %v3935 = vrot.slane %v3909, 5
    %v3936 = vrot.slane %v3910, 5
    %v3937 = vsel %vm1378, %v3935, %v3936
    %v3938 = vrot.slane %v3911, 5
    %v3939 = vsel %vm1378, %v3936, %v3938
    %v3940 = vrot.slane %v3912, 5
    %v3941 = vrot.slane %v3913, 5
    %v3942 = vsel %vm1378, %v3940, %v3941
    %v3943 = vrot.slane %v3914, 5
    %v3944 = vsel %vm1378, %v3941, %v3943
    %v3945 = vrot.slane %v3915, 5
    %v3946 = vrot.slane %v3916, 5
    %v3947 = vsel %vm1378, %v3945, %v3946
    %v3948 = vrot.slane %v3917, 5
    %v3949 = vsel %vm1378, %v3946, %v3948
    %v3958 = vadd.f32 %v3828, %v3932
    %v3959 = vadd.f32 %v3829, %v3934
    %v3960 = vadd.f32 %v3830, %v3937
    %v3961 = vadd.f32 %v3831, %v3939
    %v3962 = vadd.f32 %v3832, %v3942
    %v3963 = vadd.f32 %v3833, %v3944
    %v3964 = vadd.f32 %v3834, %v3947
    %v3965 = vadd.f32 %v3835, %v3949
    %v3966 = vlaneseq
    %v3967 = vshrl.u32 %v3966, 7
    %v3968 = vsub.s32 0, %v3967
    %v3969 = vrot.slane %v3901, %v3968
    %v3970 = vmul.f32 %v3969, %v3326
    %v3971 = vmul.f32 %v3969, %v3327
    %v3972 = vmul.f32 %v3969, %v3328
    %v3973 = vmul.f32 %v3969, %v3329
    %v3974 = vmul.f32 %v3969, %v3330
    %v3975 = vmul.f32 %v3969, %v3331
    %v3976 = vmul.f32 %v3969, %v3332
    %v3977 = vmul.f32 %v3969, %v3333
    %v3978 = vmul.f32 %v3969, %v3334
    %v3979 = vmul.f32 %v3969, %v3335
    %v3980 = vmul.f32 %v3969, %v3336
    %v3981 = vmul.f32 %v3969, %v3337
    %v3994 = vrot.slane %v3970, 5
    %v3995 = vrot.slane %v3971, 5
    %v3996 = vsel %vm1378, %v3994, %v3995
    %v3997 = vrot.slane %v3972, 5
    %v3998 = vsel %vm1378, %v3995, %v3997
    %v3999 = vrot.slane %v3973, 5
    %v4000 = vrot.slane %v3974, 5
    %v4001 = vsel %vm1378, %v3999, %v4000
    %v4002 = vrot.slane %v3975, 5
    %v4003 = vsel %vm1378, %v4000, %v4002
    %v4004 = vrot.slane %v3976, 5
    %v4005 = vrot.slane %v3977, 5
    %v4006 = vsel %vm1378, %v4004, %v4005
    %v4007 = vrot.slane %v3978, 5
    %v4008 = vsel %vm1378, %v4005, %v4007
    %v4009 = vrot.slane %v3979, 5
    %v4010 = vrot.slane %v3980, 5
    %v4011 = vsel %vm1378, %v4009, %v4010
    %v4012 = vrot.slane %v3981, 5
    %v4013 = vsel %vm1378, %v4010, %v4012
    %v4022 = vadd.f32 %v3892, %v3996
    %v4023 = vadd.f32 %v3893, %v3998
    %v4024 = vadd.f32 %v3894, %v4001
    %v4025 = vadd.f32 %v3895, %v4003
    %v4026 = vadd.f32 %v3896, %v4006
    %v4027 = vadd.f32 %v3897, %v4008
    %v4028 = vadd.f32 %v3898, %v4011
    %v4029 = vadd.f32 %v3899, %v4013
    %v4030 = vld [vmem:[%s2 + $0x1b] sm:$0x1]
    %v4031 = vld [vmem:[%s2 + $0x4c] sm:$0x1]
    %v4032 = vlaneseq
    %v4033 = vshrl.u32 %v4032, 7
    %v4034 = vsub.s32 0, %v4033
    %v4035 = vrot.slane %v4030, %v4034
    %v4036 = vmul.f32 %v4035, %v3313
    %v4037 = vmul.f32 %v4035, %v3314
    %v4038 = vmul.f32 %v4035, %v3315
    %v4039 = vmul.f32 %v4035, %v3316
    %v4040 = vmul.f32 %v4035, %v3317
    %v4041 = vmul.f32 %v4035, %v3318
    %v4042 = vmul.f32 %v4035, %v3319
    %v4043 = vmul.f32 %v4035, %v3320
    %v4044 = vmul.f32 %v4035, %v3321
    %v4045 = vmul.f32 %v4035, %v3322
    %v4046 = vmul.f32 %v4035, %v3323
    %v4047 = vmul.f32 %v4035, %v3324
    %v4060 = vrot.slane %v4036, 6
    %v4061 = vrot.slane %v4037, 6
    %v4062 = vsel %vm1509, %v4060, %v4061
    %v4063 = vrot.slane %v4038, 6
    %v4064 = vsel %vm1509, %v4061, %v4063
    %v4065 = vrot.slane %v4039, 6
    %v4066 = vrot.slane %v4040, 6
    %v4067 = vsel %vm1509, %v4065, %v4066
    %v4068 = vrot.slane %v4041, 6
    %v4069 = vsel %vm1509, %v4066, %v4068
    %v4070 = vrot.slane %v4042, 6
    %v4071 = vrot.slane %v4043, 6
    %v4072 = vsel %vm1509, %v4070, %v4071
    %v4073 = vrot.slane %v4044, 6
    %v4074 = vsel %vm1509, %v4071, %v4073
    %v4075 = vrot.slane %v4045, 6
    %v4076 = vrot.slane %v4046, 6
    %v4077 = vsel %vm1509, %v4075, %v4076
    %v4078 = vrot.slane %v4047, 6
    %v4079 = vsel %vm1509, %v4076, %v4078
    %v4088 = vadd.f32 %v3958, %v4062
    %v4089 = vadd.f32 %v3959, %v4064
    %v4090 = vadd.f32 %v3960, %v4067
    %v4091 = vadd.f32 %v3961, %v4069
    %v4092 = vadd.f32 %v3962, %v4072
    %v4093 = vadd.f32 %v3963, %v4074
    %v4094 = vadd.f32 %v3964, %v4077
    %v4095 = vadd.f32 %v3965, %v4079
    %v4096 = vlaneseq
    %v4097 = vshrl.u32 %v4096, 7
    %v4098 = vsub.s32 0, %v4097
    %v4099 = vrot.slane %v4031, %v4098
    %v4100 = vmul.f32 %v4099, %v3326
    %v4101 = vmul.f32 %v4099, %v3327
    %v4102 = vmul.f32 %v4099, %v3328
    %v4103 = vmul.f32 %v4099, %v3329
    %v4104 = vmul.f32 %v4099, %v3330
    %v4105 = vmul.f32 %v4099, %v3331
    %v4106 = vmul.f32 %v4099, %v3332
    %v4107 = vmul.f32 %v4099, %v3333
    %v4108 = vmul.f32 %v4099, %v3334
    %v4109 = vmul.f32 %v4099, %v3335
    %v4110 = vmul.f32 %v4099, %v3336
    %v4111 = vmul.f32 %v4099, %v3337
    %v4124 = vrot.slane %v4100, 6
    %v4125 = vrot.slane %v4101, 6
    %v4126 = vsel %vm1509, %v4124, %v4125
    %v4127 = vrot.slane %v4102, 6
    %v4128 = vsel %vm1509, %v4125, %v4127
    %v4129 = vrot.slane %v4103, 6
    %v4130 = vrot.slane %v4104, 6
    %v4131 = vsel %vm1509, %v4129, %v4130
    %v4132 = vrot.slane %v4105, 6
    %v4133 = vsel %vm1509, %v4130, %v4132
    %v4134 = vrot.slane %v4106, 6
    %v4135 = vrot.slane %v4107, 6
    %v4136 = vsel %vm1509, %v4134, %v4135
    %v4137 = vrot.slane %v4108, 6
    %v4138 = vsel %vm1509, %v4135, %v4137
    %v4139 = vrot.slane %v4109, 6
    %v4140 = vrot.slane %v4110, 6
    %v4141 = vsel %vm1509, %v4139, %v4140
    %v4142 = vrot.slane %v4111, 6
    %v4143 = vsel %vm1509, %v4140, %v4142
    %v4152 = vadd.f32 %v4022, %v4126
    %v4153 = vadd.f32 %v4023, %v4128
    %v4154 = vadd.f32 %v4024, %v4131
    %v4155 = vadd.f32 %v4025, %v4133
    %v4156 = vadd.f32 %v4026, %v4136
    %v4157 = vadd.f32 %v4027, %v4138
    %v4158 = vadd.f32 %v4028, %v4141
    %v4159 = vadd.f32 %v4029, %v4143
    %s4160 = sadd.s32 %s754, 4
    %s4161 = smul.u32 %s4160, 24
    %s4162 = scalar_lea.vmem [#allocation2], %s4161
    %v4163 = vld [vmem:[%s4162] sm:$0xff]
    %v4164 = vld [vmem:[%s4162 + $0x8] sm:$0xff]
    %v4165 = vld [vmem:[%s4162 + $0x10] sm:$0x3f]
    %v4166 = vld [vmem:[%s4162 + $0x18] sm:$0xff]
    %v4167 = vld [vmem:[%s4162 + $0x20] sm:$0xff]
    %v4168 = vld [vmem:[%s4162 + $0x28] sm:$0x3f]
    %v4169 = vld [vmem:[%s4162 + $0x30] sm:$0xff]
    %v4170 = vld [vmem:[%s4162 + $0x38] sm:$0xff]
    %v4171 = vld [vmem:[%s4162 + $0x40] sm:$0x3f]
    %v4172 = vld [vmem:[%s4162 + $0x48] sm:$0xff]
    %v4173 = vld [vmem:[%s4162 + $0x50] sm:$0xff]
    %v4174 = vld [vmem:[%s4162 + $0x58] sm:$0x3f]
    %s4175 = scalar_lea.vmem [#allocation3], %s4161
    %v4176 = vld [vmem:[%s4175] sm:$0xff]
    %v4177 = vld [vmem:[%s4175 + $0x8] sm:$0xff]
    %v4178 = vld [vmem:[%s4175 + $0x10] sm:$0x3f]
    %v4179 = vld [vmem:[%s4175 + $0x18] sm:$0xff]
    %v4180 = vld [vmem:[%s4175 + $0x20] sm:$0xff]
    %v4181 = vld [vmem:[%s4175 + $0x28] sm:$0x3f]
    %v4182 = vld [vmem:[%s4175 + $0x30] sm:$0xff]
    %v4183 = vld [vmem:[%s4175 + $0x38] sm:$0xff]
    %v4184 = vld [vmem:[%s4175 + $0x40] sm:$0x3f]
    %v4185 = vld [vmem:[%s4175 + $0x48] sm:$0xff]
    %v4186 = vld [vmem:[%s4175 + $0x50] sm:$0xff]
    %v4187 = vld [vmem:[%s4175 + $0x58] sm:$0x3f]
    %v4188 = vld [vmem:[%s2 + $0x1c] sm:$0x1]
    %v4189 = vld [vmem:[%s2 + $0x4d] sm:$0x1]
    %v4190 = vlaneseq
    %v4191 = vshrl.u32 %v4190, 7
    %v4192 = vsub.s32 0, %v4191
    %v4193 = vrot.slane %v4188, %v4192
    %v4194 = vmul.f32 %v4193, %v4163
    %v4195 = vmul.f32 %v4193, %v4164
    %v4196 = vmul.f32 %v4193, %v4166
    %v4197 = vmul.f32 %v4193, %v4167
    %v4198 = vmul.f32 %v4193, %v4169
    %v4199 = vmul.f32 %v4193, %v4170
    %v4200 = vmul.f32 %v4193, %v4172
    %v4201 = vmul.f32 %v4193, %v4173
    %v4202 = vadd.f32 %v4088, %v4194
    %v4203 = vadd.f32 %v4089, %v4195
    %v4204 = vadd.f32 %v4090, %v4196
    %v4205 = vadd.f32 %v4091, %v4197
    %v4206 = vadd.f32 %v4092, %v4198
    %v4207 = vadd.f32 %v4093, %v4199
    %v4208 = vadd.f32 %v4094, %v4200
    %v4209 = vadd.f32 %v4095, %v4201
    %v4210 = vlaneseq
    %v4211 = vshrl.u32 %v4210, 7
    %v4212 = vsub.s32 0, %v4211
    %v4213 = vrot.slane %v4189, %v4212
    %v4214 = vmul.f32 %v4213, %v4176
    %v4215 = vmul.f32 %v4213, %v4177
    %v4216 = vmul.f32 %v4213, %v4179
    %v4217 = vmul.f32 %v4213, %v4180
    %v4218 = vmul.f32 %v4213, %v4182
    %v4219 = vmul.f32 %v4213, %v4183
    %v4220 = vmul.f32 %v4213, %v4185
    %v4221 = vmul.f32 %v4213, %v4186
    %v4222 = vadd.f32 %v4152, %v4214
    %v4223 = vadd.f32 %v4153, %v4215
    %v4224 = vadd.f32 %v4154, %v4216
    %v4225 = vadd.f32 %v4155, %v4217
    %v4226 = vadd.f32 %v4156, %v4218
    %v4227 = vadd.f32 %v4157, %v4219
    %v4228 = vadd.f32 %v4158, %v4220
    %v4229 = vadd.f32 %v4159, %v4221
    %v4230 = vld [vmem:[%s2 + $0x1d] sm:$0x1]
    %v4231 = vld [vmem:[%s2 + $0x4e] sm:$0x1]
    %v4232 = vlaneseq
    %v4233 = vshrl.u32 %v4232, 7
    %v4234 = vsub.s32 0, %v4233
    %v4235 = vrot.slane %v4230, %v4234
    %v4236 = vmul.f32 %v4235, %v4163
    %v4237 = vmul.f32 %v4235, %v4164
    %v4238 = vmul.f32 %v4235, %v4165
    %v4239 = vmul.f32 %v4235, %v4166
    %v4240 = vmul.f32 %v4235, %v4167
    %v4241 = vmul.f32 %v4235, %v4168
    %v4242 = vmul.f32 %v4235, %v4169
    %v4243 = vmul.f32 %v4235, %v4170
    %v4244 = vmul.f32 %v4235, %v4171
    %v4245 = vmul.f32 %v4235, %v4172
    %v4246 = vmul.f32 %v4235, %v4173
    %v4247 = vmul.f32 %v4235, %v4174
    %v4260 = vrot.slane %v4236, 1
    %v4261 = vrot.slane %v4237, 1
    %v4262 = vsel %vm854, %v4260, %v4261
    %v4263 = vrot.slane %v4238, 1
    %v4264 = vsel %vm854, %v4261, %v4263
    %v4265 = vrot.slane %v4239, 1
    %v4266 = vrot.slane %v4240, 1
    %v4267 = vsel %vm854, %v4265, %v4266
    %v4268 = vrot.slane %v4241, 1
    %v4269 = vsel %vm854, %v4266, %v4268
    %v4270 = vrot.slane %v4242, 1
    %v4271 = vrot.slane %v4243, 1
    %v4272 = vsel %vm854, %v4270, %v4271
    %v4273 = vrot.slane %v4244, 1
    %v4274 = vsel %vm854, %v4271, %v4273
    %v4275 = vrot.slane %v4245, 1
    %v4276 = vrot.slane %v4246, 1
    %v4277 = vsel %vm854, %v4275, %v4276
    %v4278 = vrot.slane %v4247, 1
    %v4279 = vsel %vm854, %v4276, %v4278
    %v4288 = vadd.f32 %v4202, %v4262
    %v4289 = vadd.f32 %v4203, %v4264
    %v4290 = vadd.f32 %v4204, %v4267
    %v4291 = vadd.f32 %v4205, %v4269
    %v4292 = vadd.f32 %v4206, %v4272
    %v4293 = vadd.f32 %v4207, %v4274
    %v4294 = vadd.f32 %v4208, %v4277
    %v4295 = vadd.f32 %v4209, %v4279
    %v4296 = vlaneseq
    %v4297 = vshrl.u32 %v4296, 7
    %v4298 = vsub.s32 0, %v4297
    %v4299 = vrot.slane %v4231, %v4298
    %v4300 = vmul.f32 %v4299, %v4176
    %v4301 = vmul.f32 %v4299, %v4177
    %v4302 = vmul.f32 %v4299, %v4178
    %v4303 = vmul.f32 %v4299, %v4179
    %v4304 = vmul.f32 %v4299, %v4180
    %v4305 = vmul.f32 %v4299, %v4181
    %v4306 = vmul.f32 %v4299, %v4182
    %v4307 = vmul.f32 %v4299, %v4183
    %v4308 = vmul.f32 %v4299, %v4184
    %v4309 = vmul.f32 %v4299, %v4185
    %v4310 = vmul.f32 %v4299, %v4186
    %v4311 = vmul.f32 %v4299, %v4187
    %v4324 = vrot.slane %v4300, 1
    %v4325 = vrot.slane %v4301, 1
    %v4326 = vsel %vm854, %v4324, %v4325
    %v4327 = vrot.slane %v4302, 1
    %v4328 = vsel %vm854, %v4325, %v4327
    %v4329 = vrot.slane %v4303, 1
    %v4330 = vrot.slane %v4304, 1
    %v4331 = vsel %vm854, %v4329, %v4330
    %v4332 = vrot.slane %v4305, 1
    %v4333 = vsel %vm854, %v4330, %v4332
    %v4334 = vrot.slane %v4306, 1
    %v4335 = vrot.slane %v4307, 1
    %v4336 = vsel %vm854, %v4334, %v4335
    %v4337 = vrot.slane %v4308, 1
    %v4338 = vsel %vm854, %v4335, %v4337
    %v4339 = vrot.slane %v4309, 1
    %v4340 = vrot.slane %v4310, 1
    %v4341 = vsel %vm854, %v4339, %v4340
    %v4342 = vrot.slane %v4311, 1
    %v4343 = vsel %vm854, %v4340, %v4342
    %v4352 = vadd.f32 %v4222, %v4326
    %v4353 = vadd.f32 %v4223, %v4328
    %v4354 = vadd.f32 %v4224, %v4331
    %v4355 = vadd.f32 %v4225, %v4333
    %v4356 = vadd.f32 %v4226, %v4336
    %v4357 = vadd.f32 %v4227, %v4338
    %v4358 = vadd.f32 %v4228, %v4341
    %v4359 = vadd.f32 %v4229, %v4343
    %v4360 = vld [vmem:[%s2 + $0x1e] sm:$0x1]
    %v4361 = vld [vmem:[%s2 + $0x4f] sm:$0x1]
    %v4362 = vlaneseq
    %v4363 = vshrl.u32 %v4362, 7
    %v4364 = vsub.s32 0, %v4363
    %v4365 = vrot.slane %v4360, %v4364
    %v4366 = vmul.f32 %v4365, %v4163
    %v4367 = vmul.f32 %v4365, %v4164
    %v4368 = vmul.f32 %v4365, %v4165
    %v4369 = vmul.f32 %v4365, %v4166
    %v4370 = vmul.f32 %v4365, %v4167
    %v4371 = vmul.f32 %v4365, %v4168
    %v4372 = vmul.f32 %v4365, %v4169
    %v4373 = vmul.f32 %v4365, %v4170
    %v4374 = vmul.f32 %v4365, %v4171
    %v4375 = vmul.f32 %v4365, %v4172
    %v4376 = vmul.f32 %v4365, %v4173
    %v4377 = vmul.f32 %v4365, %v4174
    %v4390 = vrot.slane %v4366, 2
    %v4391 = vrot.slane %v4367, 2
    %v4392 = vsel %vm985, %v4390, %v4391
    %v4393 = vrot.slane %v4368, 2
    %v4394 = vsel %vm985, %v4391, %v4393
    %v4395 = vrot.slane %v4369, 2
    %v4396 = vrot.slane %v4370, 2
    %v4397 = vsel %vm985, %v4395, %v4396
    %v4398 = vrot.slane %v4371, 2
    %v4399 = vsel %vm985, %v4396, %v4398
    %v4400 = vrot.slane %v4372, 2
    %v4401 = vrot.slane %v4373, 2
    %v4402 = vsel %vm985, %v4400, %v4401
    %v4403 = vrot.slane %v4374, 2
    %v4404 = vsel %vm985, %v4401, %v4403
    %v4405 = vrot.slane %v4375, 2
    %v4406 = vrot.slane %v4376, 2
    %v4407 = vsel %vm985, %v4405, %v4406
    %v4408 = vrot.slane %v4377, 2
    %v4409 = vsel %vm985, %v4406, %v4408
    %v4418 = vadd.f32 %v4288, %v4392
    %v4419 = vadd.f32 %v4289, %v4394
    %v4420 = vadd.f32 %v4290, %v4397
    %v4421 = vadd.f32 %v4291, %v4399
    %v4422 = vadd.f32 %v4292, %v4402
    %v4423 = vadd.f32 %v4293, %v4404
    %v4424 = vadd.f32 %v4294, %v4407
    %v4425 = vadd.f32 %v4295, %v4409
    %v4426 = vlaneseq
    %v4427 = vshrl.u32 %v4426, 7
    %v4428 = vsub.s32 0, %v4427
    %v4429 = vrot.slane %v4361, %v4428
    %v4430 = vmul.f32 %v4429, %v4176
    %v4431 = vmul.f32 %v4429, %v4177
    %v4432 = vmul.f32 %v4429, %v4178
    %v4433 = vmul.f32 %v4429, %v4179
    %v4434 = vmul.f32 %v4429, %v4180
    %v4435 = vmul.f32 %v4429, %v4181
    %v4436 = vmul.f32 %v4429, %v4182
    %v4437 = vmul.f32 %v4429, %v4183
    %v4438 = vmul.f32 %v4429, %v4184
    %v4439 = vmul.f32 %v4429, %v4185
    %v4440 = vmul.f32 %v4429, %v4186
    %v4441 = vmul.f32 %v4429, %v4187
    %v4454 = vrot.slane %v4430, 2
    %v4455 = vrot.slane %v4431, 2
    %v4456 = vsel %vm985, %v4454, %v4455
    %v4457 = vrot.slane %v4432, 2
    %v4458 = vsel %vm985, %v4455, %v4457
    %v4459 = vrot.slane %v4433, 2
    %v4460 = vrot.slane %v4434, 2
    %v4461 = vsel %vm985, %v4459, %v4460
    %v4462 = vrot.slane %v4435, 2
    %v4463 = vsel %vm985, %v4460, %v4462
    %v4464 = vrot.slane %v4436, 2
    %v4465 = vrot.slane %v4437, 2
    %v4466 = vsel %vm985, %v4464, %v4465
    %v4467 = vrot.slane %v4438, 2
    %v4468 = vsel %vm985, %v4465, %v4467
    %v4469 = vrot.slane %v4439, 2
    %v4470 = vrot.slane %v4440, 2
    %v4471 = vsel %vm985, %v4469, %v4470
    %v4472 = vrot.slane %v4441, 2
    %v4473 = vsel %vm985, %v4470, %v4472
    %v4482 = vadd.f32 %v4352, %v4456
    %v4483 = vadd.f32 %v4353, %v4458
    %v4484 = vadd.f32 %v4354, %v4461
    %v4485 = vadd.f32 %v4355, %v4463
    %v4486 = vadd.f32 %v4356, %v4466
    %v4487 = vadd.f32 %v4357, %v4468
    %v4488 = vadd.f32 %v4358, %v4471
    %v4489 = vadd.f32 %v4359, %v4473
    %v4490 = vld [vmem:[%s2 + $0x1f] sm:$0x1]
    %v4491 = vld [vmem:[%s2 + $0x50] sm:$0x1]
    %v4492 = vlaneseq
    %v4493 = vshrl.u32 %v4492, 7
    %v4494 = vsub.s32 0, %v4493
    %v4495 = vrot.slane %v4490, %v4494
    %v4496 = vmul.f32 %v4495, %v4163
    %v4497 = vmul.f32 %v4495, %v4164
    %v4498 = vmul.f32 %v4495, %v4165
    %v4499 = vmul.f32 %v4495, %v4166
    %v4500 = vmul.f32 %v4495, %v4167
    %v4501 = vmul.f32 %v4495, %v4168
    %v4502 = vmul.f32 %v4495, %v4169
    %v4503 = vmul.f32 %v4495, %v4170
    %v4504 = vmul.f32 %v4495, %v4171
    %v4505 = vmul.f32 %v4495, %v4172
    %v4506 = vmul.f32 %v4495, %v4173
    %v4507 = vmul.f32 %v4495, %v4174
    %v4520 = vrot.slane %v4496, 3
    %v4521 = vrot.slane %v4497, 3
    %v4522 = vsel %vm1116, %v4520, %v4521
    %v4523 = vrot.slane %v4498, 3
    %v4524 = vsel %vm1116, %v4521, %v4523
    %v4525 = vrot.slane %v4499, 3
    %v4526 = vrot.slane %v4500, 3
    %v4527 = vsel %vm1116, %v4525, %v4526
    %v4528 = vrot.slane %v4501, 3
    %v4529 = vsel %vm1116, %v4526, %v4528
    %v4530 = vrot.slane %v4502, 3
    %v4531 = vrot.slane %v4503, 3
    %v4532 = vsel %vm1116, %v4530, %v4531
    %v4533 = vrot.slane %v4504, 3
    %v4534 = vsel %vm1116, %v4531, %v4533
    %v4535 = vrot.slane %v4505, 3
    %v4536 = vrot.slane %v4506, 3
    %v4537 = vsel %vm1116, %v4535, %v4536
    %v4538 = vrot.slane %v4507, 3
    %v4539 = vsel %vm1116, %v4536, %v4538
    %v4548 = vadd.f32 %v4418, %v4522
    %v4549 = vadd.f32 %v4419, %v4524
    %v4550 = vadd.f32 %v4420, %v4527
    %v4551 = vadd.f32 %v4421, %v4529
    %v4552 = vadd.f32 %v4422, %v4532
    %v4553 = vadd.f32 %v4423, %v4534
    %v4554 = vadd.f32 %v4424, %v4537
    %v4555 = vadd.f32 %v4425, %v4539
    %v4556 = vlaneseq
    %v4557 = vshrl.u32 %v4556, 7
    %v4558 = vsub.s32 0, %v4557
    %v4559 = vrot.slane %v4491, %v4558
    %v4560 = vmul.f32 %v4559, %v4176
    %v4561 = vmul.f32 %v4559, %v4177
    %v4562 = vmul.f32 %v4559, %v4178
    %v4563 = vmul.f32 %v4559, %v4179
    %v4564 = vmul.f32 %v4559, %v4180
    %v4565 = vmul.f32 %v4559, %v4181
    %v4566 = vmul.f32 %v4559, %v4182
    %v4567 = vmul.f32 %v4559, %v4183
    %v4568 = vmul.f32 %v4559, %v4184
    %v4569 = vmul.f32 %v4559, %v4185
    %v4570 = vmul.f32 %v4559, %v4186
    %v4571 = vmul.f32 %v4559, %v4187
    %v4584 = vrot.slane %v4560, 3
    %v4585 = vrot.slane %v4561, 3
    %v4586 = vsel %vm1116, %v4584, %v4585
    %v4587 = vrot.slane %v4562, 3
    %v4588 = vsel %vm1116, %v4585, %v4587
    %v4589 = vrot.slane %v4563, 3
    %v4590 = vrot.slane %v4564, 3
    %v4591 = vsel %vm1116, %v4589, %v4590
    %v4592 = vrot.slane %v4565, 3
    %v4593 = vsel %vm1116, %v4590, %v4592
    %v4594 = vrot.slane %v4566, 3
    %v4595 = vrot.slane %v4567, 3
    %v4596 = vsel %vm1116, %v4594, %v4595
    %v4597 = vrot.slane %v4568, 3
    %v4598 = vsel %vm1116, %v4595, %v4597
    %v4599 = vrot.slane %v4569, 3
    %v4600 = vrot.slane %v4570, 3
    %v4601 = vsel %vm1116, %v4599, %v4600
    %v4602 = vrot.slane %v4571, 3
    %v4603 = vsel %vm1116, %v4600, %v4602
    %v4612 = vadd.f32 %v4482, %v4586
    %v4613 = vadd.f32 %v4483, %v4588
    %v4614 = vadd.f32 %v4484, %v4591
    %v4615 = vadd.f32 %v4485, %v4593
    %v4616 = vadd.f32 %v4486, %v4596
    %v4617 = vadd.f32 %v4487, %v4598
    %v4618 = vadd.f32 %v4488, %v4601
    %v4619 = vadd.f32 %v4489, %v4603
    %v4620 = vld [vmem:[%s2 + $0x20] sm:$0x1]
    %v4621 = vld [vmem:[%s2 + $0x51] sm:$0x1]
    %v4622 = vlaneseq
    %v4623 = vshrl.u32 %v4622, 7
    %v4624 = vsub.s32 0, %v4623
    %v4625 = vrot.slane %v4620, %v4624
    %v4626 = vmul.f32 %v4625, %v4163
    %v4627 = vmul.f32 %v4625, %v4164
    %v4628 = vmul.f32 %v4625, %v4165
    %v4629 = vmul.f32 %v4625, %v4166
    %v4630 = vmul.f32 %v4625, %v4167
    %v4631 = vmul.f32 %v4625, %v4168
    %v4632 = vmul.f32 %v4625, %v4169
    %v4633 = vmul.f32 %v4625, %v4170
    %v4634 = vmul.f32 %v4625, %v4171
    %v4635 = vmul.f32 %v4625, %v4172
    %v4636 = vmul.f32 %v4625, %v4173
    %v4637 = vmul.f32 %v4625, %v4174
    %v4650 = vrot.slane %v4626, 4
    %v4651 = vrot.slane %v4627, 4
    %v4652 = vsel %vm1247, %v4650, %v4651
    %v4653 = vrot.slane %v4628, 4
    %v4654 = vsel %vm1247, %v4651, %v4653
    %v4655 = vrot.slane %v4629, 4
    %v4656 = vrot.slane %v4630, 4
    %v4657 = vsel %vm1247, %v4655, %v4656
    %v4658 = vrot.slane %v4631, 4
    %v4659 = vsel %vm1247, %v4656, %v4658
    %v4660 = vrot.slane %v4632, 4
    %v4661 = vrot.slane %v4633, 4
    %v4662 = vsel %vm1247, %v4660, %v4661
    %v4663 = vrot.slane %v4634, 4
    %v4664 = vsel %vm1247, %v4661, %v4663
    %v4665 = vrot.slane %v4635, 4
    %v4666 = vrot.slane %v4636, 4
    %v4667 = vsel %vm1247, %v4665, %v4666
    %v4668 = vrot.slane %v4637, 4
    %v4669 = vsel %vm1247, %v4666, %v4668
    %v4678 = vadd.f32 %v4548, %v4652
    %v4679 = vadd.f32 %v4549, %v4654
    %v4680 = vadd.f32 %v4550, %v4657
    %v4681 = vadd.f32 %v4551, %v4659
    %v4682 = vadd.f32 %v4552, %v4662
    %v4683 = vadd.f32 %v4553, %v4664
    %v4684 = vadd.f32 %v4554, %v4667
    %v4685 = vadd.f32 %v4555, %v4669
    %v4686 = vlaneseq
    %v4687 = vshrl.u32 %v4686, 7
    %v4688 = vsub.s32 0, %v4687
    %v4689 = vrot.slane %v4621, %v4688
    %v4690 = vmul.f32 %v4689, %v4176
    %v4691 = vmul.f32 %v4689, %v4177
    %v4692 = vmul.f32 %v4689, %v4178
    %v4693 = vmul.f32 %v4689, %v4179
    %v4694 = vmul.f32 %v4689, %v4180
    %v4695 = vmul.f32 %v4689, %v4181
    %v4696 = vmul.f32 %v4689, %v4182
    %v4697 = vmul.f32 %v4689, %v4183
    %v4698 = vmul.f32 %v4689, %v4184
    %v4699 = vmul.f32 %v4689, %v4185
    %v4700 = vmul.f32 %v4689, %v4186
    %v4701 = vmul.f32 %v4689, %v4187
    %v4714 = vrot.slane %v4690, 4
    %v4715 = vrot.slane %v4691, 4
    %v4716 = vsel %vm1247, %v4714, %v4715
    %v4717 = vrot.slane %v4692, 4
    %v4718 = vsel %vm1247, %v4715, %v4717
    %v4719 = vrot.slane %v4693, 4
    %v4720 = vrot.slane %v4694, 4
    %v4721 = vsel %vm1247, %v4719, %v4720
    %v4722 = vrot.slane %v4695, 4
    %v4723 = vsel %vm1247, %v4720, %v4722
    %v4724 = vrot.slane %v4696, 4
    %v4725 = vrot.slane %v4697, 4
    %v4726 = vsel %vm1247, %v4724, %v4725
    %v4727 = vrot.slane %v4698, 4
    %v4728 = vsel %vm1247, %v4725, %v4727
    %v4729 = vrot.slane %v4699, 4
    %v4730 = vrot.slane %v4700, 4
    %v4731 = vsel %vm1247, %v4729, %v4730
    %v4732 = vrot.slane %v4701, 4
    %v4733 = vsel %vm1247, %v4730, %v4732
    %v4742 = vadd.f32 %v4612, %v4716
    %v4743 = vadd.f32 %v4613, %v4718
    %v4744 = vadd.f32 %v4614, %v4721
    %v4745 = vadd.f32 %v4615, %v4723
    %v4746 = vadd.f32 %v4616, %v4726
    %v4747 = vadd.f32 %v4617, %v4728
    %v4748 = vadd.f32 %v4618, %v4731
    %v4749 = vadd.f32 %v4619, %v4733
    %v4750 = vld [vmem:[%s2 + $0x21] sm:$0x1]
    %v4751 = vld [vmem:[%s2 + $0x52] sm:$0x1]
    %v4752 = vlaneseq
    %v4753 = vshrl.u32 %v4752, 7
    %v4754 = vsub.s32 0, %v4753
    %v4755 = vrot.slane %v4750, %v4754
    %v4756 = vmul.f32 %v4755, %v4163
    %v4757 = vmul.f32 %v4755, %v4164
    %v4758 = vmul.f32 %v4755, %v4165
    %v4759 = vmul.f32 %v4755, %v4166
    %v4760 = vmul.f32 %v4755, %v4167
    %v4761 = vmul.f32 %v4755, %v4168
    %v4762 = vmul.f32 %v4755, %v4169
    %v4763 = vmul.f32 %v4755, %v4170
    %v4764 = vmul.f32 %v4755, %v4171
    %v4765 = vmul.f32 %v4755, %v4172
    %v4766 = vmul.f32 %v4755, %v4173
    %v4767 = vmul.f32 %v4755, %v4174
    %v4780 = vrot.slane %v4756, 5
    %v4781 = vrot.slane %v4757, 5
    %v4782 = vsel %vm1378, %v4780, %v4781
    %v4783 = vrot.slane %v4758, 5
    %v4784 = vsel %vm1378, %v4781, %v4783
    %v4785 = vrot.slane %v4759, 5
    %v4786 = vrot.slane %v4760, 5
    %v4787 = vsel %vm1378, %v4785, %v4786
    %v4788 = vrot.slane %v4761, 5
    %v4789 = vsel %vm1378, %v4786, %v4788
    %v4790 = vrot.slane %v4762, 5
    %v4791 = vrot.slane %v4763, 5
    %v4792 = vsel %vm1378, %v4790, %v4791
    %v4793 = vrot.slane %v4764, 5
    %v4794 = vsel %vm1378, %v4791, %v4793
    %v4795 = vrot.slane %v4765, 5
    %v4796 = vrot.slane %v4766, 5
    %v4797 = vsel %vm1378, %v4795, %v4796
    %v4798 = vrot.slane %v4767, 5
    %v4799 = vsel %vm1378, %v4796, %v4798
    %v4808 = vadd.f32 %v4678, %v4782
    %v4809 = vadd.f32 %v4679, %v4784
    %v4810 = vadd.f32 %v4680, %v4787
    %v4811 = vadd.f32 %v4681, %v4789
    %v4812 = vadd.f32 %v4682, %v4792
    %v4813 = vadd.f32 %v4683, %v4794
    %v4814 = vadd.f32 %v4684, %v4797
    %v4815 = vadd.f32 %v4685, %v4799
    %v4816 = vlaneseq
    %v4817 = vshrl.u32 %v4816, 7
    %v4818 = vsub.s32 0, %v4817
    %v4819 = vrot.slane %v4751, %v4818
    %v4820 = vmul.f32 %v4819, %v4176
    %v4821 = vmul.f32 %v4819, %v4177
    %v4822 = vmul.f32 %v4819, %v4178
    %v4823 = vmul.f32 %v4819, %v4179
    %v4824 = vmul.f32 %v4819, %v4180
    %v4825 = vmul.f32 %v4819, %v4181
    %v4826 = vmul.f32 %v4819, %v4182
    %v4827 = vmul.f32 %v4819, %v4183
    %v4828 = vmul.f32 %v4819, %v4184
    %v4829 = vmul.f32 %v4819, %v4185
    %v4830 = vmul.f32 %v4819, %v4186
    %v4831 = vmul.f32 %v4819, %v4187
    %v4844 = vrot.slane %v4820, 5
    %v4845 = vrot.slane %v4821, 5
    %v4846 = vsel %vm1378, %v4844, %v4845
    %v4847 = vrot.slane %v4822, 5
    %v4848 = vsel %vm1378, %v4845, %v4847
    %v4849 = vrot.slane %v4823, 5
    %v4850 = vrot.slane %v4824, 5
    %v4851 = vsel %vm1378, %v4849, %v4850
    %v4852 = vrot.slane %v4825, 5
    %v4853 = vsel %vm1378, %v4850, %v4852
    %v4854 = vrot.slane %v4826, 5
    %v4855 = vrot.slane %v4827, 5
    %v4856 = vsel %vm1378, %v4854, %v4855
    %v4857 = vrot.slane %v4828, 5
    %v4858 = vsel %vm1378, %v4855, %v4857
    %v4859 = vrot.slane %v4829, 5
    %v4860 = vrot.slane %v4830, 5
    %v4861 = vsel %vm1378, %v4859, %v4860
    %v4862 = vrot.slane %v4831, 5
    %v4863 = vsel %vm1378, %v4860, %v4862
    %v4872 = vadd.f32 %v4742, %v4846
    %v4873 = vadd.f32 %v4743, %v4848
    %v4874 = vadd.f32 %v4744, %v4851
    %v4875 = vadd.f32 %v4745, %v4853
    %v4876 = vadd.f32 %v4746, %v4856
    %v4877 = vadd.f32 %v4747, %v4858
    %v4878 = vadd.f32 %v4748, %v4861
    %v4879 = vadd.f32 %v4749, %v4863
    %v4880 = vld [vmem:[%s2 + $0x22] sm:$0x1]
    %v4881 = vld [vmem:[%s2 + $0x53] sm:$0x1]
    %v4882 = vlaneseq
    %v4883 = vshrl.u32 %v4882, 7
    %v4884 = vsub.s32 0, %v4883
    %v4885 = vrot.slane %v4880, %v4884
    %v4886 = vmul.f32 %v4885, %v4163
    %v4887 = vmul.f32 %v4885, %v4164
    %v4888 = vmul.f32 %v4885, %v4165
    %v4889 = vmul.f32 %v4885, %v4166
    %v4890 = vmul.f32 %v4885, %v4167
    %v4891 = vmul.f32 %v4885, %v4168
    %v4892 = vmul.f32 %v4885, %v4169
    %v4893 = vmul.f32 %v4885, %v4170
    %v4894 = vmul.f32 %v4885, %v4171
    %v4895 = vmul.f32 %v4885, %v4172
    %v4896 = vmul.f32 %v4885, %v4173
    %v4897 = vmul.f32 %v4885, %v4174
    %v4910 = vrot.slane %v4886, 6
    %v4911 = vrot.slane %v4887, 6
    %v4912 = vsel %vm1509, %v4910, %v4911
    %v4913 = vrot.slane %v4888, 6
    %v4914 = vsel %vm1509, %v4911, %v4913
    %v4915 = vrot.slane %v4889, 6
    %v4916 = vrot.slane %v4890, 6
    %v4917 = vsel %vm1509, %v4915, %v4916
    %v4918 = vrot.slane %v4891, 6
    %v4919 = vsel %vm1509, %v4916, %v4918
    %v4920 = vrot.slane %v4892, 6
    %v4921 = vrot.slane %v4893, 6
    %v4922 = vsel %vm1509, %v4920, %v4921
    %v4923 = vrot.slane %v4894, 6
    %v4924 = vsel %vm1509, %v4921, %v4923
    %v4925 = vrot.slane %v4895, 6
    %v4926 = vrot.slane %v4896, 6
    %v4927 = vsel %vm1509, %v4925, %v4926
    %v4928 = vrot.slane %v4897, 6
    %v4929 = vsel %vm1509, %v4926, %v4928
    %v4938 = vadd.f32 %v4808, %v4912
    %v4939 = vadd.f32 %v4809, %v4914
    %v4940 = vadd.f32 %v4810, %v4917
    %v4941 = vadd.f32 %v4811, %v4919
    %v4942 = vadd.f32 %v4812, %v4922
    %v4943 = vadd.f32 %v4813, %v4924
    %v4944 = vadd.f32 %v4814, %v4927
    %v4945 = vadd.f32 %v4815, %v4929
    %v4946 = vlaneseq
    %v4947 = vshrl.u32 %v4946, 7
    %v4948 = vsub.s32 0, %v4947
    %v4949 = vrot.slane %v4881, %v4948
    %v4950 = vmul.f32 %v4949, %v4176
    %v4951 = vmul.f32 %v4949, %v4177
    %v4952 = vmul.f32 %v4949, %v4178
    %v4953 = vmul.f32 %v4949, %v4179
    %v4954 = vmul.f32 %v4949, %v4180
    %v4955 = vmul.f32 %v4949, %v4181
    %v4956 = vmul.f32 %v4949, %v4182
    %v4957 = vmul.f32 %v4949, %v4183
    %v4958 = vmul.f32 %v4949, %v4184
    %v4959 = vmul.f32 %v4949, %v4185
    %v4960 = vmul.f32 %v4949, %v4186
    %v4961 = vmul.f32 %v4949, %v4187
    %v4974 = vrot.slane %v4950, 6
    %v4975 = vrot.slane %v4951, 6
    %v4976 = vsel %vm1509, %v4974, %v4975
    %v4977 = vrot.slane %v4952, 6
    %v4978 = vsel %vm1509, %v4975, %v4977
    %v4979 = vrot.slane %v4953, 6
    %v4980 = vrot.slane %v4954, 6
    %v4981 = vsel %vm1509, %v4979, %v4980
    %v4982 = vrot.slane %v4955, 6
    %v4983 = vsel %vm1509, %v4980, %v4982
    %v4984 = vrot.slane %v4956, 6
    %v4985 = vrot.slane %v4957, 6
    %v4986 = vsel %vm1509, %v4984, %v4985
    %v4987 = vrot.slane %v4958, 6
    %v4988 = vsel %vm1509, %v4985, %v4987
    %v4989 = vrot.slane %v4959, 6
    %v4990 = vrot.slane %v4960, 6
    %v4991 = vsel %vm1509, %v4989, %v4990
    %v4992 = vrot.slane %v4961, 6
    %v4993 = vsel %vm1509, %v4990, %v4992
    %v5002 = vadd.f32 %v4872, %v4976
    %v5003 = vadd.f32 %v4873, %v4978
    %v5004 = vadd.f32 %v4874, %v4981
    %v5005 = vadd.f32 %v4875, %v4983
    %v5006 = vadd.f32 %v4876, %v4986
    %v5007 = vadd.f32 %v4877, %v4988
    %v5008 = vadd.f32 %v4878, %v4991
    %v5009 = vadd.f32 %v4879, %v4993
    %s5010 = sadd.s32 %s754, 5
    %s5011 = smul.u32 %s5010, 24
    %s5012 = scalar_lea.vmem [#allocation2], %s5011
    %v5013 = vld [vmem:[%s5012] sm:$0xff]
    %v5014 = vld [vmem:[%s5012 + $0x8] sm:$0xff]
    %v5015 = vld [vmem:[%s5012 + $0x10] sm:$0x3f]
    %v5016 = vld [vmem:[%s5012 + $0x18] sm:$0xff]
    %v5017 = vld [vmem:[%s5012 + $0x20] sm:$0xff]
    %v5018 = vld [vmem:[%s5012 + $0x28] sm:$0x3f]
    %v5019 = vld [vmem:[%s5012 + $0x30] sm:$0xff]
    %v5020 = vld [vmem:[%s5012 + $0x38] sm:$0xff]
    %v5021 = vld [vmem:[%s5012 + $0x40] sm:$0x3f]
    %v5022 = vld [vmem:[%s5012 + $0x48] sm:$0xff]
    %v5023 = vld [vmem:[%s5012 + $0x50] sm:$0xff]
    %v5024 = vld [vmem:[%s5012 + $0x58] sm:$0x3f]
    %s5025 = scalar_lea.vmem [#allocation3], %s5011
    %v5026 = vld [vmem:[%s5025] sm:$0xff]
    %v5027 = vld [vmem:[%s5025 + $0x8] sm:$0xff]
    %v5028 = vld [vmem:[%s5025 + $0x10] sm:$0x3f]
    %v5029 = vld [vmem:[%s5025 + $0x18] sm:$0xff]
    %v5030 = vld [vmem:[%s5025 + $0x20] sm:$0xff]
    %v5031 = vld [vmem:[%s5025 + $0x28] sm:$0x3f]
    %v5032 = vld [vmem:[%s5025 + $0x30] sm:$0xff]
    %v5033 = vld [vmem:[%s5025 + $0x38] sm:$0xff]
    %v5034 = vld [vmem:[%s5025 + $0x40] sm:$0x3f]
    %v5035 = vld [vmem:[%s5025 + $0x48] sm:$0xff]
    %v5036 = vld [vmem:[%s5025 + $0x50] sm:$0xff]
    %v5037 = vld [vmem:[%s5025 + $0x58] sm:$0x3f]
    %v5038 = vld [vmem:[%s2 + $0x23] sm:$0x1]
    %v5039 = vld [vmem:[%s2 + $0x54] sm:$0x1]
    %v5040 = vlaneseq
    %v5041 = vshrl.u32 %v5040, 7
    %v5042 = vsub.s32 0, %v5041
    %v5043 = vrot.slane %v5038, %v5042
    %v5044 = vmul.f32 %v5043, %v5013
    %v5045 = vmul.f32 %v5043, %v5014
    %v5046 = vmul.f32 %v5043, %v5016
    %v5047 = vmul.f32 %v5043, %v5017
    %v5048 = vmul.f32 %v5043, %v5019
    %v5049 = vmul.f32 %v5043, %v5020
    %v5050 = vmul.f32 %v5043, %v5022
    %v5051 = vmul.f32 %v5043, %v5023
    %v5052 = vadd.f32 %v4938, %v5044
    %v5053 = vadd.f32 %v4939, %v5045
    %v5054 = vadd.f32 %v4940, %v5046
    %v5055 = vadd.f32 %v4941, %v5047
    %v5056 = vadd.f32 %v4942, %v5048
    %v5057 = vadd.f32 %v4943, %v5049
    %v5058 = vadd.f32 %v4944, %v5050
    %v5059 = vadd.f32 %v4945, %v5051
    %v5060 = vlaneseq
    %v5061 = vshrl.u32 %v5060, 7
    %v5062 = vsub.s32 0, %v5061
    %v5063 = vrot.slane %v5039, %v5062
    %v5064 = vmul.f32 %v5063, %v5026
    %v5065 = vmul.f32 %v5063, %v5027
    %v5066 = vmul.f32 %v5063, %v5029
    %v5067 = vmul.f32 %v5063, %v5030
    %v5068 = vmul.f32 %v5063, %v5032
    %v5069 = vmul.f32 %v5063, %v5033
    %v5070 = vmul.f32 %v5063, %v5035
    %v5071 = vmul.f32 %v5063, %v5036
    %v5072 = vadd.f32 %v5002, %v5064
    %v5073 = vadd.f32 %v5003, %v5065
    %v5074 = vadd.f32 %v5004, %v5066
    %v5075 = vadd.f32 %v5005, %v5067
    %v5076 = vadd.f32 %v5006, %v5068
    %v5077 = vadd.f32 %v5007, %v5069
    %v5078 = vadd.f32 %v5008, %v5070
    %v5079 = vadd.f32 %v5009, %v5071
    %v5080 = vld [vmem:[%s2 + $0x24] sm:$0x1]
    %v5081 = vld [vmem:[%s2 + $0x55] sm:$0x1]
    %v5082 = vlaneseq
    %v5083 = vshrl.u32 %v5082, 7
    %v5084 = vsub.s32 0, %v5083
    %v5085 = vrot.slane %v5080, %v5084
    %v5086 = vmul.f32 %v5085, %v5013
    %v5087 = vmul.f32 %v5085, %v5014
    %v5088 = vmul.f32 %v5085, %v5015
    %v5089 = vmul.f32 %v5085, %v5016
    %v5090 = vmul.f32 %v5085, %v5017
    %v5091 = vmul.f32 %v5085, %v5018
    %v5092 = vmul.f32 %v5085, %v5019
    %v5093 = vmul.f32 %v5085, %v5020
    %v5094 = vmul.f32 %v5085, %v5021
    %v5095 = vmul.f32 %v5085, %v5022
    %v5096 = vmul.f32 %v5085, %v5023
    %v5097 = vmul.f32 %v5085, %v5024
    %v5110 = vrot.slane %v5086, 1
    %v5111 = vrot.slane %v5087, 1
    %v5112 = vsel %vm854, %v5110, %v5111
    %v5113 = vrot.slane %v5088, 1
    %v5114 = vsel %vm854, %v5111, %v5113
    %v5115 = vrot.slane %v5089, 1
    %v5116 = vrot.slane %v5090, 1
    %v5117 = vsel %vm854, %v5115, %v5116
    %v5118 = vrot.slane %v5091, 1
    %v5119 = vsel %vm854, %v5116, %v5118
    %v5120 = vrot.slane %v5092, 1
    %v5121 = vrot.slane %v5093, 1
    %v5122 = vsel %vm854, %v5120, %v5121
    %v5123 = vrot.slane %v5094, 1
    %v5124 = vsel %vm854, %v5121, %v5123
    %v5125 = vrot.slane %v5095, 1
    %v5126 = vrot.slane %v5096, 1
    %v5127 = vsel %vm854, %v5125, %v5126
    %v5128 = vrot.slane %v5097, 1
    %v5129 = vsel %vm854, %v5126, %v5128
    %v5138 = vadd.f32 %v5052, %v5112
    %v5139 = vadd.f32 %v5053, %v5114
    %v5140 = vadd.f32 %v5054, %v5117
    %v5141 = vadd.f32 %v5055, %v5119
    %v5142 = vadd.f32 %v5056, %v5122
    %v5143 = vadd.f32 %v5057, %v5124
    %v5144 = vadd.f32 %v5058, %v5127
    %v5145 = vadd.f32 %v5059, %v5129
    %v5146 = vlaneseq
    %v5147 = vshrl.u32 %v5146, 7
    %v5148 = vsub.s32 0, %v5147
    %v5149 = vrot.slane %v5081, %v5148
    %v5150 = vmul.f32 %v5149, %v5026
    %v5151 = vmul.f32 %v5149, %v5027
    %v5152 = vmul.f32 %v5149, %v5028
    %v5153 = vmul.f32 %v5149, %v5029
    %v5154 = vmul.f32 %v5149, %v5030
    %v5155 = vmul.f32 %v5149, %v5031
    %v5156 = vmul.f32 %v5149, %v5032
    %v5157 = vmul.f32 %v5149, %v5033
    %v5158 = vmul.f32 %v5149, %v5034
    %v5159 = vmul.f32 %v5149, %v5035
    %v5160 = vmul.f32 %v5149, %v5036
    %v5161 = vmul.f32 %v5149, %v5037
    %v5174 = vrot.slane %v5150, 1
    %v5175 = vrot.slane %v5151, 1
    %v5176 = vsel %vm854, %v5174, %v5175
    %v5177 = vrot.slane %v5152, 1
    %v5178 = vsel %vm854, %v5175, %v5177
    %v5179 = vrot.slane %v5153, 1
    %v5180 = vrot.slane %v5154, 1
    %v5181 = vsel %vm854, %v5179, %v5180
    %v5182 = vrot.slane %v5155, 1
    %v5183 = vsel %vm854, %v5180, %v5182
    %v5184 = vrot.slane %v5156, 1
    %v5185 = vrot.slane %v5157, 1
    %v5186 = vsel %vm854, %v5184, %v5185
    %v5187 = vrot.slane %v5158, 1
    %v5188 = vsel %vm854, %v5185, %v5187
    %v5189 = vrot.slane %v5159, 1
    %v5190 = vrot.slane %v5160, 1
    %v5191 = vsel %vm854, %v5189, %v5190
    %v5192 = vrot.slane %v5161, 1
    %v5193 = vsel %vm854, %v5190, %v5192
    %v5202 = vadd.f32 %v5072, %v5176
    %v5203 = vadd.f32 %v5073, %v5178
    %v5204 = vadd.f32 %v5074, %v5181
    %v5205 = vadd.f32 %v5075, %v5183
    %v5206 = vadd.f32 %v5076, %v5186
    %v5207 = vadd.f32 %v5077, %v5188
    %v5208 = vadd.f32 %v5078, %v5191
    %v5209 = vadd.f32 %v5079, %v5193
    %v5210 = vld [vmem:[%s2 + $0x25] sm:$0x1]
    %v5211 = vld [vmem:[%s2 + $0x56] sm:$0x1]
    %v5212 = vlaneseq
    %v5213 = vshrl.u32 %v5212, 7
    %v5214 = vsub.s32 0, %v5213
    %v5215 = vrot.slane %v5210, %v5214
    %v5216 = vmul.f32 %v5215, %v5013
    %v5217 = vmul.f32 %v5215, %v5014
    %v5218 = vmul.f32 %v5215, %v5015
    %v5219 = vmul.f32 %v5215, %v5016
    %v5220 = vmul.f32 %v5215, %v5017
    %v5221 = vmul.f32 %v5215, %v5018
    %v5222 = vmul.f32 %v5215, %v5019
    %v5223 = vmul.f32 %v5215, %v5020
    %v5224 = vmul.f32 %v5215, %v5021
    %v5225 = vmul.f32 %v5215, %v5022
    %v5226 = vmul.f32 %v5215, %v5023
    %v5227 = vmul.f32 %v5215, %v5024
    %v5240 = vrot.slane %v5216, 2
    %v5241 = vrot.slane %v5217, 2
    %v5242 = vsel %vm985, %v5240, %v5241
    %v5243 = vrot.slane %v5218, 2
    %v5244 = vsel %vm985, %v5241, %v5243
    %v5245 = vrot.slane %v5219, 2
    %v5246 = vrot.slane %v5220, 2
    %v5247 = vsel %vm985, %v5245, %v5246
    %v5248 = vrot.slane %v5221, 2
    %v5249 = vsel %vm985, %v5246, %v5248
    %v5250 = vrot.slane %v5222, 2
    %v5251 = vrot.slane %v5223, 2
    %v5252 = vsel %vm985, %v5250, %v5251
    %v5253 = vrot.slane %v5224, 2
    %v5254 = vsel %vm985, %v5251, %v5253
    %v5255 = vrot.slane %v5225, 2
    %v5256 = vrot.slane %v5226, 2
    %v5257 = vsel %vm985, %v5255, %v5256
    %v5258 = vrot.slane %v5227, 2
    %v5259 = vsel %vm985, %v5256, %v5258
    %v5268 = vadd.f32 %v5138, %v5242
    %v5269 = vadd.f32 %v5139, %v5244
    %v5270 = vadd.f32 %v5140, %v5247
    %v5271 = vadd.f32 %v5141, %v5249
    %v5272 = vadd.f32 %v5142, %v5252
    %v5273 = vadd.f32 %v5143, %v5254
    %v5274 = vadd.f32 %v5144, %v5257
    %v5275 = vadd.f32 %v5145, %v5259
    %v5276 = vlaneseq
    %v5277 = vshrl.u32 %v5276, 7
    %v5278 = vsub.s32 0, %v5277
    %v5279 = vrot.slane %v5211, %v5278
    %v5280 = vmul.f32 %v5279, %v5026
    %v5281 = vmul.f32 %v5279, %v5027
    %v5282 = vmul.f32 %v5279, %v5028
    %v5283 = vmul.f32 %v5279, %v5029
    %v5284 = vmul.f32 %v5279, %v5030
    %v5285 = vmul.f32 %v5279, %v5031
    %v5286 = vmul.f32 %v5279, %v5032
    %v5287 = vmul.f32 %v5279, %v5033
    %v5288 = vmul.f32 %v5279, %v5034
    %v5289 = vmul.f32 %v5279, %v5035
    %v5290 = vmul.f32 %v5279, %v5036
    %v5291 = vmul.f32 %v5279, %v5037
    %v5304 = vrot.slane %v5280, 2
    %v5305 = vrot.slane %v5281, 2
    %v5306 = vsel %vm985, %v5304, %v5305
    %v5307 = vrot.slane %v5282, 2
    %v5308 = vsel %vm985, %v5305, %v5307
    %v5309 = vrot.slane %v5283, 2
    %v5310 = vrot.slane %v5284, 2
    %v5311 = vsel %vm985, %v5309, %v5310
    %v5312 = vrot.slane %v5285, 2
    %v5313 = vsel %vm985, %v5310, %v5312
    %v5314 = vrot.slane %v5286, 2
    %v5315 = vrot.slane %v5287, 2
    %v5316 = vsel %vm985, %v5314, %v5315
    %v5317 = vrot.slane %v5288, 2
    %v5318 = vsel %vm985, %v5315, %v5317
    %v5319 = vrot.slane %v5289, 2
    %v5320 = vrot.slane %v5290, 2
    %v5321 = vsel %vm985, %v5319, %v5320
    %v5322 = vrot.slane %v5291, 2
    %v5323 = vsel %vm985, %v5320, %v5322
    %v5332 = vadd.f32 %v5202, %v5306
    %v5333 = vadd.f32 %v5203, %v5308
    %v5334 = vadd.f32 %v5204, %v5311
    %v5335 = vadd.f32 %v5205, %v5313
    %v5336 = vadd.f32 %v5206, %v5316
    %v5337 = vadd.f32 %v5207, %v5318
    %v5338 = vadd.f32 %v5208, %v5321
    %v5339 = vadd.f32 %v5209, %v5323
    %v5340 = vld [vmem:[%s2 + $0x26] sm:$0x1]
    %v5341 = vld [vmem:[%s2 + $0x57] sm:$0x1]
    %v5342 = vlaneseq
    %v5343 = vshrl.u32 %v5342, 7
    %v5344 = vsub.s32 0, %v5343
    %v5345 = vrot.slane %v5340, %v5344
    %v5346 = vmul.f32 %v5345, %v5013
    %v5347 = vmul.f32 %v5345, %v5014
    %v5348 = vmul.f32 %v5345, %v5015
    %v5349 = vmul.f32 %v5345, %v5016
    %v5350 = vmul.f32 %v5345, %v5017
    %v5351 = vmul.f32 %v5345, %v5018
    %v5352 = vmul.f32 %v5345, %v5019
    %v5353 = vmul.f32 %v5345, %v5020
    %v5354 = vmul.f32 %v5345, %v5021
    %v5355 = vmul.f32 %v5345, %v5022
    %v5356 = vmul.f32 %v5345, %v5023
    %v5357 = vmul.f32 %v5345, %v5024
    %v5370 = vrot.slane %v5346, 3
    %v5371 = vrot.slane %v5347, 3
    %v5372 = vsel %vm1116, %v5370, %v5371
    %v5373 = vrot.slane %v5348, 3
    %v5374 = vsel %vm1116, %v5371, %v5373
    %v5375 = vrot.slane %v5349, 3
    %v5376 = vrot.slane %v5350, 3
    %v5377 = vsel %vm1116, %v5375, %v5376
    %v5378 = vrot.slane %v5351, 3
    %v5379 = vsel %vm1116, %v5376, %v5378
    %v5380 = vrot.slane %v5352, 3
    %v5381 = vrot.slane %v5353, 3
    %v5382 = vsel %vm1116, %v5380, %v5381
    %v5383 = vrot.slane %v5354, 3
    %v5384 = vsel %vm1116, %v5381, %v5383
    %v5385 = vrot.slane %v5355, 3
    %v5386 = vrot.slane %v5356, 3
    %v5387 = vsel %vm1116, %v5385, %v5386
    %v5388 = vrot.slane %v5357, 3
    %v5389 = vsel %vm1116, %v5386, %v5388
    %v5398 = vadd.f32 %v5268, %v5372
    %v5399 = vadd.f32 %v5269, %v5374
    %v5400 = vadd.f32 %v5270, %v5377
    %v5401 = vadd.f32 %v5271, %v5379
    %v5402 = vadd.f32 %v5272, %v5382
    %v5403 = vadd.f32 %v5273, %v5384
    %v5404 = vadd.f32 %v5274, %v5387
    %v5405 = vadd.f32 %v5275, %v5389
    %v5406 = vlaneseq
    %v5407 = vshrl.u32 %v5406, 7
    %v5408 = vsub.s32 0, %v5407
    %v5409 = vrot.slane %v5341, %v5408
    %v5410 = vmul.f32 %v5409, %v5026
    %v5411 = vmul.f32 %v5409, %v5027
    %v5412 = vmul.f32 %v5409, %v5028
    %v5413 = vmul.f32 %v5409, %v5029
    %v5414 = vmul.f32 %v5409, %v5030
    %v5415 = vmul.f32 %v5409, %v5031
    %v5416 = vmul.f32 %v5409, %v5032
    %v5417 = vmul.f32 %v5409, %v5033
    %v5418 = vmul.f32 %v5409, %v5034
    %v5419 = vmul.f32 %v5409, %v5035
    %v5420 = vmul.f32 %v5409, %v5036
    %v5421 = vmul.f32 %v5409, %v5037
    %v5434 = vrot.slane %v5410, 3
    %v5435 = vrot.slane %v5411, 3
    %v5436 = vsel %vm1116, %v5434, %v5435
    %v5437 = vrot.slane %v5412, 3
    %v5438 = vsel %vm1116, %v5435, %v5437
    %v5439 = vrot.slane %v5413, 3
    %v5440 = vrot.slane %v5414, 3
    %v5441 = vsel %vm1116, %v5439, %v5440
    %v5442 = vrot.slane %v5415, 3
    %v5443 = vsel %vm1116, %v5440, %v5442
    %v5444 = vrot.slane %v5416, 3
    %v5445 = vrot.slane %v5417, 3
    %v5446 = vsel %vm1116, %v5444, %v5445
    %v5447 = vrot.slane %v5418, 3
    %v5448 = vsel %vm1116, %v5445, %v5447
    %v5449 = vrot.slane %v5419, 3
    %v5450 = vrot.slane %v5420, 3
    %v5451 = vsel %vm1116, %v5449, %v5450
    %v5452 = vrot.slane %v5421, 3
    %v5453 = vsel %vm1116, %v5450, %v5452
    %v5462 = vadd.f32 %v5332, %v5436
    %v5463 = vadd.f32 %v5333, %v5438
    %v5464 = vadd.f32 %v5334, %v5441
    %v5465 = vadd.f32 %v5335, %v5443
    %v5466 = vadd.f32 %v5336, %v5446
    %v5467 = vadd.f32 %v5337, %v5448
    %v5468 = vadd.f32 %v5338, %v5451
    %v5469 = vadd.f32 %v5339, %v5453
    %v5470 = vld [vmem:[%s2 + $0x27] sm:$0x1]
    %v5471 = vld [vmem:[%s2 + $0x58] sm:$0x1]
    %v5472 = vlaneseq
    %v5473 = vshrl.u32 %v5472, 7
    %v5474 = vsub.s32 0, %v5473
    %v5475 = vrot.slane %v5470, %v5474
    %v5476 = vmul.f32 %v5475, %v5013
    %v5477 = vmul.f32 %v5475, %v5014
    %v5478 = vmul.f32 %v5475, %v5015
    %v5479 = vmul.f32 %v5475, %v5016
    %v5480 = vmul.f32 %v5475, %v5017
    %v5481 = vmul.f32 %v5475, %v5018
    %v5482 = vmul.f32 %v5475, %v5019
    %v5483 = vmul.f32 %v5475, %v5020
    %v5484 = vmul.f32 %v5475, %v5021
    %v5485 = vmul.f32 %v5475, %v5022
    %v5486 = vmul.f32 %v5475, %v5023
    %v5487 = vmul.f32 %v5475, %v5024
    %v5500 = vrot.slane %v5476, 4
    %v5501 = vrot.slane %v5477, 4
    %v5502 = vsel %vm1247, %v5500, %v5501
    %v5503 = vrot.slane %v5478, 4
    %v5504 = vsel %vm1247, %v5501, %v5503
    %v5505 = vrot.slane %v5479, 4
    %v5506 = vrot.slane %v5480, 4
    %v5507 = vsel %vm1247, %v5505, %v5506
    %v5508 = vrot.slane %v5481, 4
    %v5509 = vsel %vm1247, %v5506, %v5508
    %v5510 = vrot.slane %v5482, 4
    %v5511 = vrot.slane %v5483, 4
    %v5512 = vsel %vm1247, %v5510, %v5511
    %v5513 = vrot.slane %v5484, 4
    %v5514 = vsel %vm1247, %v5511, %v5513
    %v5515 = vrot.slane %v5485, 4
    %v5516 = vrot.slane %v5486, 4
    %v5517 = vsel %vm1247, %v5515, %v5516
    %v5518 = vrot.slane %v5487, 4
    %v5519 = vsel %vm1247, %v5516, %v5518
    %v5528 = vadd.f32 %v5398, %v5502
    %v5529 = vadd.f32 %v5399, %v5504
    %v5530 = vadd.f32 %v5400, %v5507
    %v5531 = vadd.f32 %v5401, %v5509
    %v5532 = vadd.f32 %v5402, %v5512
    %v5533 = vadd.f32 %v5403, %v5514
    %v5534 = vadd.f32 %v5404, %v5517
    %v5535 = vadd.f32 %v5405, %v5519
    %v5536 = vlaneseq
    %v5537 = vshrl.u32 %v5536, 7
    %v5538 = vsub.s32 0, %v5537
    %v5539 = vrot.slane %v5471, %v5538
    %v5540 = vmul.f32 %v5539, %v5026
    %v5541 = vmul.f32 %v5539, %v5027
    %v5542 = vmul.f32 %v5539, %v5028
    %v5543 = vmul.f32 %v5539, %v5029
    %v5544 = vmul.f32 %v5539, %v5030
    %v5545 = vmul.f32 %v5539, %v5031
    %v5546 = vmul.f32 %v5539, %v5032
    %v5547 = vmul.f32 %v5539, %v5033
    %v5548 = vmul.f32 %v5539, %v5034
    %v5549 = vmul.f32 %v5539, %v5035
    %v5550 = vmul.f32 %v5539, %v5036
    %v5551 = vmul.f32 %v5539, %v5037
    %v5564 = vrot.slane %v5540, 4
    %v5565 = vrot.slane %v5541, 4
    %v5566 = vsel %vm1247, %v5564, %v5565
    %v5567 = vrot.slane %v5542, 4
    %v5568 = vsel %vm1247, %v5565, %v5567
    %v5569 = vrot.slane %v5543, 4
    %v5570 = vrot.slane %v5544, 4
    %v5571 = vsel %vm1247, %v5569, %v5570
    %v5572 = vrot.slane %v5545, 4
    %v5573 = vsel %vm1247, %v5570, %v5572
    %v5574 = vrot.slane %v5546, 4
    %v5575 = vrot.slane %v5547, 4
    %v5576 = vsel %vm1247, %v5574, %v5575
    %v5577 = vrot.slane %v5548, 4
    %v5578 = vsel %vm1247, %v5575, %v5577
    %v5579 = vrot.slane %v5549, 4
    %v5580 = vrot.slane %v5550, 4
    %v5581 = vsel %vm1247, %v5579, %v5580
    %v5582 = vrot.slane %v5551, 4
    %v5583 = vsel %vm1247, %v5580, %v5582
    %v5592 = vadd.f32 %v5462, %v5566
    %v5593 = vadd.f32 %v5463, %v5568
    %v5594 = vadd.f32 %v5464, %v5571
    %v5595 = vadd.f32 %v5465, %v5573
    %v5596 = vadd.f32 %v5466, %v5576
    %v5597 = vadd.f32 %v5467, %v5578
    %v5598 = vadd.f32 %v5468, %v5581
    %v5599 = vadd.f32 %v5469, %v5583
    %v5600 = vld [vmem:[%s2 + $0x28] sm:$0x1]
    %v5601 = vld [vmem:[%s2 + $0x59] sm:$0x1]
    %v5602 = vlaneseq
    %v5603 = vshrl.u32 %v5602, 7
    %v5604 = vsub.s32 0, %v5603
    %v5605 = vrot.slane %v5600, %v5604
    %v5606 = vmul.f32 %v5605, %v5013
    %v5607 = vmul.f32 %v5605, %v5014
    %v5608 = vmul.f32 %v5605, %v5015
    %v5609 = vmul.f32 %v5605, %v5016
    %v5610 = vmul.f32 %v5605, %v5017
    %v5611 = vmul.f32 %v5605, %v5018
    %v5612 = vmul.f32 %v5605, %v5019
    %v5613 = vmul.f32 %v5605, %v5020
    %v5614 = vmul.f32 %v5605, %v5021
    %v5615 = vmul.f32 %v5605, %v5022
    %v5616 = vmul.f32 %v5605, %v5023
    %v5617 = vmul.f32 %v5605, %v5024
    %v5630 = vrot.slane %v5606, 5
    %v5631 = vrot.slane %v5607, 5
    %v5632 = vsel %vm1378, %v5630, %v5631
    %v5633 = vrot.slane %v5608, 5
    %v5634 = vsel %vm1378, %v5631, %v5633
    %v5635 = vrot.slane %v5609, 5
    %v5636 = vrot.slane %v5610, 5
    %v5637 = vsel %vm1378, %v5635, %v5636
    %v5638 = vrot.slane %v5611, 5
    %v5639 = vsel %vm1378, %v5636, %v5638
    %v5640 = vrot.slane %v5612, 5
    %v5641 = vrot.slane %v5613, 5
    %v5642 = vsel %vm1378, %v5640, %v5641
    %v5643 = vrot.slane %v5614, 5
    %v5644 = vsel %vm1378, %v5641, %v5643
    %v5645 = vrot.slane %v5615, 5
    %v5646 = vrot.slane %v5616, 5
    %v5647 = vsel %vm1378, %v5645, %v5646
    %v5648 = vrot.slane %v5617, 5
    %v5649 = vsel %vm1378, %v5646, %v5648
    %v5658 = vadd.f32 %v5528, %v5632
    %v5659 = vadd.f32 %v5529, %v5634
    %v5660 = vadd.f32 %v5530, %v5637
    %v5661 = vadd.f32 %v5531, %v5639
    %v5662 = vadd.f32 %v5532, %v5642
    %v5663 = vadd.f32 %v5533, %v5644
    %v5664 = vadd.f32 %v5534, %v5647
    %v5665 = vadd.f32 %v5535, %v5649
    %v5666 = vlaneseq
    %v5667 = vshrl.u32 %v5666, 7
    %v5668 = vsub.s32 0, %v5667
    %v5669 = vrot.slane %v5601, %v5668
    %v5670 = vmul.f32 %v5669, %v5026
    %v5671 = vmul.f32 %v5669, %v5027
    %v5672 = vmul.f32 %v5669, %v5028
    %v5673 = vmul.f32 %v5669, %v5029
    %v5674 = vmul.f32 %v5669, %v5030
    %v5675 = vmul.f32 %v5669, %v5031
    %v5676 = vmul.f32 %v5669, %v5032
    %v5677 = vmul.f32 %v5669, %v5033
    %v5678 = vmul.f32 %v5669, %v5034
    %v5679 = vmul.f32 %v5669, %v5035
    %v5680 = vmul.f32 %v5669, %v5036
    %v5681 = vmul.f32 %v5669, %v5037
    %v5694 = vrot.slane %v5670, 5
    %v5695 = vrot.slane %v5671, 5
    %v5696 = vsel %vm1378, %v5694, %v5695
    %v5697 = vrot.slane %v5672, 5
    %v5698 = vsel %vm1378, %v5695, %v5697
    %v5699 = vrot.slane %v5673, 5
    %v5700 = vrot.slane %v5674, 5
    %v5701 = vsel %vm1378, %v5699, %v5700
    %v5702 = vrot.slane %v5675, 5
    %v5703 = vsel %vm1378, %v5700, %v5702
    %v5704 = vrot.slane %v5676, 5
    %v5705 = vrot.slane %v5677, 5
    %v5706 = vsel %vm1378, %v5704, %v5705
    %v5707 = vrot.slane %v5678, 5
    %v5708 = vsel %vm1378, %v5705, %v5707
    %v5709 = vrot.slane %v5679, 5
    %v5710 = vrot.slane %v5680, 5
    %v5711 = vsel %vm1378, %v5709, %v5710
    %v5712 = vrot.slane %v5681, 5
    %v5713 = vsel %vm1378, %v5710, %v5712
    %v5722 = vadd.f32 %v5592, %v5696
    %v5723 = vadd.f32 %v5593, %v5698
    %v5724 = vadd.f32 %v5594, %v5701
    %v5725 = vadd.f32 %v5595, %v5703
    %v5726 = vadd.f32 %v5596, %v5706
    %v5727 = vadd.f32 %v5597, %v5708
    %v5728 = vadd.f32 %v5598, %v5711
    %v5729 = vadd.f32 %v5599, %v5713
    %v5730 = vld [vmem:[%s2 + $0x29] sm:$0x1]
    %v5731 = vld [vmem:[%s2 + $0x5a] sm:$0x1]
    %v5732 = vlaneseq
    %v5733 = vshrl.u32 %v5732, 7
    %v5734 = vsub.s32 0, %v5733
    %v5735 = vrot.slane %v5730, %v5734
    %v5736 = vmul.f32 %v5735, %v5013
    %v5737 = vmul.f32 %v5735, %v5014
    %v5738 = vmul.f32 %v5735, %v5015
    %v5739 = vmul.f32 %v5735, %v5016
    %v5740 = vmul.f32 %v5735, %v5017
    %v5741 = vmul.f32 %v5735, %v5018
    %v5742 = vmul.f32 %v5735, %v5019
    %v5743 = vmul.f32 %v5735, %v5020
    %v5744 = vmul.f32 %v5735, %v5021
    %v5745 = vmul.f32 %v5735, %v5022
    %v5746 = vmul.f32 %v5735, %v5023
    %v5747 = vmul.f32 %v5735, %v5024
    %v5760 = vrot.slane %v5736, 6
    %v5761 = vrot.slane %v5737, 6
    %v5762 = vsel %vm1509, %v5760, %v5761
    %v5763 = vrot.slane %v5738, 6
    %v5764 = vsel %vm1509, %v5761, %v5763
    %v5765 = vrot.slane %v5739, 6
    %v5766 = vrot.slane %v5740, 6
    %v5767 = vsel %vm1509, %v5765, %v5766
    %v5768 = vrot.slane %v5741, 6
    %v5769 = vsel %vm1509, %v5766, %v5768
    %v5770 = vrot.slane %v5742, 6
    %v5771 = vrot.slane %v5743, 6
    %v5772 = vsel %vm1509, %v5770, %v5771
    %v5773 = vrot.slane %v5744, 6
    %v5774 = vsel %vm1509, %v5771, %v5773
    %v5775 = vrot.slane %v5745, 6
    %v5776 = vrot.slane %v5746, 6
    %v5777 = vsel %vm1509, %v5775, %v5776
    %v5778 = vrot.slane %v5747, 6
    %v5779 = vsel %vm1509, %v5776, %v5778
    %v5788 = vadd.f32 %v5658, %v5762
    %v5789 = vadd.f32 %v5659, %v5764
    %v5790 = vadd.f32 %v5660, %v5767
    %v5791 = vadd.f32 %v5661, %v5769
    %v5792 = vadd.f32 %v5662, %v5772
    %v5793 = vadd.f32 %v5663, %v5774
    %v5794 = vadd.f32 %v5664, %v5777
    %v5795 = vadd.f32 %v5665, %v5779
    %v5796 = vlaneseq
    %v5797 = vshrl.u32 %v5796, 7
    %v5798 = vsub.s32 0, %v5797
    %v5799 = vrot.slane %v5731, %v5798
    %v5800 = vmul.f32 %v5799, %v5026
    %v5801 = vmul.f32 %v5799, %v5027
    %v5802 = vmul.f32 %v5799, %v5028
    %v5803 = vmul.f32 %v5799, %v5029
    %v5804 = vmul.f32 %v5799, %v5030
    %v5805 = vmul.f32 %v5799, %v5031
    %v5806 = vmul.f32 %v5799, %v5032
    %v5807 = vmul.f32 %v5799, %v5033
    %v5808 = vmul.f32 %v5799, %v5034
    %v5809 = vmul.f32 %v5799, %v5035
    %v5810 = vmul.f32 %v5799, %v5036
    %v5811 = vmul.f32 %v5799, %v5037
    %v5824 = vrot.slane %v5800, 6
    %v5825 = vrot.slane %v5801, 6
    %v5826 = vsel %vm1509, %v5824, %v5825
    %v5827 = vrot.slane %v5802, 6
    %v5828 = vsel %vm1509, %v5825, %v5827
    %v5829 = vrot.slane %v5803, 6
    %v5830 = vrot.slane %v5804, 6
    %v5831 = vsel %vm1509, %v5829, %v5830
    %v5832 = vrot.slane %v5805, 6
    %v5833 = vsel %vm1509, %v5830, %v5832
    %v5834 = vrot.slane %v5806, 6
    %v5835 = vrot.slane %v5807, 6
    %v5836 = vsel %vm1509, %v5834, %v5835
    %v5837 = vrot.slane %v5808, 6
    %v5838 = vsel %vm1509, %v5835, %v5837
    %v5839 = vrot.slane %v5809, 6
    %v5840 = vrot.slane %v5810, 6
    %v5841 = vsel %vm1509, %v5839, %v5840
    %v5842 = vrot.slane %v5811, 6
    %v5843 = vsel %vm1509, %v5840, %v5842
    %v5852 = vadd.f32 %v5722, %v5826
    %v5853 = vadd.f32 %v5723, %v5828
    %v5854 = vadd.f32 %v5724, %v5831
    %v5855 = vadd.f32 %v5725, %v5833
    %v5856 = vadd.f32 %v5726, %v5836
    %v5857 = vadd.f32 %v5727, %v5838
    %v5858 = vadd.f32 %v5728, %v5841
    %v5859 = vadd.f32 %v5729, %v5843
    %s5860 = sadd.s32 %s754, 6
    %s5861 = smul.u32 %s5860, 24
    %s5862 = scalar_lea.vmem [#allocation2], %s5861
    %v5863 = vld [vmem:[%s5862] sm:$0xff]
    %v5864 = vld [vmem:[%s5862 + $0x8] sm:$0xff]
    %v5865 = vld [vmem:[%s5862 + $0x10] sm:$0x3f]
    %v5866 = vld [vmem:[%s5862 + $0x18] sm:$0xff]
    %v5867 = vld [vmem:[%s5862 + $0x20] sm:$0xff]
    %v5868 = vld [vmem:[%s5862 + $0x28] sm:$0x3f]
    %v5869 = vld [vmem:[%s5862 + $0x30] sm:$0xff]
    %v5870 = vld [vmem:[%s5862 + $0x38] sm:$0xff]
    %v5871 = vld [vmem:[%s5862 + $0x40] sm:$0x3f]
    %v5872 = vld [vmem:[%s5862 + $0x48] sm:$0xff]
    %v5873 = vld [vmem:[%s5862 + $0x50] sm:$0xff]
    %v5874 = vld [vmem:[%s5862 + $0x58] sm:$0x3f]
    %s5875 = scalar_lea.vmem [#allocation3], %s5861
    %v5876 = vld [vmem:[%s5875] sm:$0xff]
    %v5877 = vld [vmem:[%s5875 + $0x8] sm:$0xff]
    %v5878 = vld [vmem:[%s5875 + $0x10] sm:$0x3f]
    %v5879 = vld [vmem:[%s5875 + $0x18] sm:$0xff]
    %v5880 = vld [vmem:[%s5875 + $0x20] sm:$0xff]
    %v5881 = vld [vmem:[%s5875 + $0x28] sm:$0x3f]
    %v5882 = vld [vmem:[%s5875 + $0x30] sm:$0xff]
    %v5883 = vld [vmem:[%s5875 + $0x38] sm:$0xff]
    %v5884 = vld [vmem:[%s5875 + $0x40] sm:$0x3f]
    %v5885 = vld [vmem:[%s5875 + $0x48] sm:$0xff]
    %v5886 = vld [vmem:[%s5875 + $0x50] sm:$0xff]
    %v5887 = vld [vmem:[%s5875 + $0x58] sm:$0x3f]
    %v5888 = vld [vmem:[%s2 + $0x2a] sm:$0x1]
    %v5889 = vld [vmem:[%s2 + $0x5b] sm:$0x1]
    %v5890 = vlaneseq
    %v5891 = vshrl.u32 %v5890, 7
    %v5892 = vsub.s32 0, %v5891
    %v5893 = vrot.slane %v5888, %v5892
    %v5894 = vmul.f32 %v5893, %v5863
    %v5895 = vmul.f32 %v5893, %v5864
    %v5896 = vmul.f32 %v5893, %v5866
    %v5897 = vmul.f32 %v5893, %v5867
    %v5898 = vmul.f32 %v5893, %v5869
    %v5899 = vmul.f32 %v5893, %v5870
    %v5900 = vmul.f32 %v5893, %v5872
    %v5901 = vmul.f32 %v5893, %v5873
    %v5902 = vadd.f32 %v5788, %v5894
    %v5903 = vadd.f32 %v5789, %v5895
    %v5904 = vadd.f32 %v5790, %v5896
    %v5905 = vadd.f32 %v5791, %v5897
    %v5906 = vadd.f32 %v5792, %v5898
    %v5907 = vadd.f32 %v5793, %v5899
    %v5908 = vadd.f32 %v5794, %v5900
    %v5909 = vadd.f32 %v5795, %v5901
    %v5910 = vlaneseq
    %v5911 = vshrl.u32 %v5910, 7
    %v5912 = vsub.s32 0, %v5911
    %v5913 = vrot.slane %v5889, %v5912
    %v5914 = vmul.f32 %v5913, %v5876
    %v5915 = vmul.f32 %v5913, %v5877
    %v5916 = vmul.f32 %v5913, %v5879
    %v5917 = vmul.f32 %v5913, %v5880
    %v5918 = vmul.f32 %v5913, %v5882
    %v5919 = vmul.f32 %v5913, %v5883
    %v5920 = vmul.f32 %v5913, %v5885
    %v5921 = vmul.f32 %v5913, %v5886
    %v5922 = vadd.f32 %v5852, %v5914
    %v5923 = vadd.f32 %v5853, %v5915
    %v5924 = vadd.f32 %v5854, %v5916
    %v5925 = vadd.f32 %v5855, %v5917
    %v5926 = vadd.f32 %v5856, %v5918
    %v5927 = vadd.f32 %v5857, %v5919
    %v5928 = vadd.f32 %v5858, %v5920
    %v5929 = vadd.f32 %v5859, %v5921
    %v5930 = vld [vmem:[%s2 + $0x2b] sm:$0x1]
    %v5931 = vld [vmem:[%s2 + $0x5c] sm:$0x1]
    %v5932 = vlaneseq
    %v5933 = vshrl.u32 %v5932, 7
    %v5934 = vsub.s32 0, %v5933
    %v5935 = vrot.slane %v5930, %v5934
    %v5936 = vmul.f32 %v5935, %v5863
    %v5937 = vmul.f32 %v5935, %v5864
    %v5938 = vmul.f32 %v5935, %v5865
    %v5939 = vmul.f32 %v5935, %v5866
    %v5940 = vmul.f32 %v5935, %v5867
    %v5941 = vmul.f32 %v5935, %v5868
    %v5942 = vmul.f32 %v5935, %v5869
    %v5943 = vmul.f32 %v5935, %v5870
    %v5944 = vmul.f32 %v5935, %v5871
    %v5945 = vmul.f32 %v5935, %v5872
    %v5946 = vmul.f32 %v5935, %v5873
    %v5947 = vmul.f32 %v5935, %v5874
    %v5960 = vrot.slane %v5936, 1
    %v5961 = vrot.slane %v5937, 1
    %v5962 = vsel %vm854, %v5960, %v5961
    %v5963 = vrot.slane %v5938, 1
    %v5964 = vsel %vm854, %v5961, %v5963
    %v5965 = vrot.slane %v5939, 1
    %v5966 = vrot.slane %v5940, 1
    %v5967 = vsel %vm854, %v5965, %v5966
    %v5968 = vrot.slane %v5941, 1
    %v5969 = vsel %vm854, %v5966, %v5968
    %v5970 = vrot.slane %v5942, 1
    %v5971 = vrot.slane %v5943, 1
    %v5972 = vsel %vm854, %v5970, %v5971
    %v5973 = vrot.slane %v5944, 1
    %v5974 = vsel %vm854, %v5971, %v5973
    %v5975 = vrot.slane %v5945, 1
    %v5976 = vrot.slane %v5946, 1
    %v5977 = vsel %vm854, %v5975, %v5976
    %v5978 = vrot.slane %v5947, 1
    %v5979 = vsel %vm854, %v5976, %v5978
    %v5988 = vadd.f32 %v5902, %v5962
    %v5989 = vadd.f32 %v5903, %v5964
    %v5990 = vadd.f32 %v5904, %v5967
    %v5991 = vadd.f32 %v5905, %v5969
    %v5992 = vadd.f32 %v5906, %v5972
    %v5993 = vadd.f32 %v5907, %v5974
    %v5994 = vadd.f32 %v5908, %v5977
    %v5995 = vadd.f32 %v5909, %v5979
    %v5996 = vlaneseq
    %v5997 = vshrl.u32 %v5996, 7
    %v5998 = vsub.s32 0, %v5997
    %v5999 = vrot.slane %v5931, %v5998
    %v6000 = vmul.f32 %v5999, %v5876
    %v6001 = vmul.f32 %v5999, %v5877
    %v6002 = vmul.f32 %v5999, %v5878
    %v6003 = vmul.f32 %v5999, %v5879
    %v6004 = vmul.f32 %v5999, %v5880
    %v6005 = vmul.f32 %v5999, %v5881
    %v6006 = vmul.f32 %v5999, %v5882
    %v6007 = vmul.f32 %v5999, %v5883
    %v6008 = vmul.f32 %v5999, %v5884
    %v6009 = vmul.f32 %v5999, %v5885
    %v6010 = vmul.f32 %v5999, %v5886
    %v6011 = vmul.f32 %v5999, %v5887
    %v6024 = vrot.slane %v6000, 1
    %v6025 = vrot.slane %v6001, 1
    %v6026 = vsel %vm854, %v6024, %v6025
    %v6027 = vrot.slane %v6002, 1
    %v6028 = vsel %vm854, %v6025, %v6027
    %v6029 = vrot.slane %v6003, 1
    %v6030 = vrot.slane %v6004, 1
    %v6031 = vsel %vm854, %v6029, %v6030
    %v6032 = vrot.slane %v6005, 1
    %v6033 = vsel %vm854, %v6030, %v6032
    %v6034 = vrot.slane %v6006, 1
    %v6035 = vrot.slane %v6007, 1
    %v6036 = vsel %vm854, %v6034, %v6035
    %v6037 = vrot.slane %v6008, 1
    %v6038 = vsel %vm854, %v6035, %v6037
    %v6039 = vrot.slane %v6009, 1
    %v6040 = vrot.slane %v6010, 1
    %v6041 = vsel %vm854, %v6039, %v6040
    %v6042 = vrot.slane %v6011, 1
    %v6043 = vsel %vm854, %v6040, %v6042
    %v6052 = vadd.f32 %v5922, %v6026
    %v6053 = vadd.f32 %v5923, %v6028
    %v6054 = vadd.f32 %v5924, %v6031
    %v6055 = vadd.f32 %v5925, %v6033
    %v6056 = vadd.f32 %v5926, %v6036
    %v6057 = vadd.f32 %v5927, %v6038
    %v6058 = vadd.f32 %v5928, %v6041
    %v6059 = vadd.f32 %v5929, %v6043
    %v6060 = vld [vmem:[%s2 + $0x2c] sm:$0x1]
    %v6061 = vld [vmem:[%s2 + $0x5d] sm:$0x1]
    %v6062 = vlaneseq
    %v6063 = vshrl.u32 %v6062, 7
    %v6064 = vsub.s32 0, %v6063
    %v6065 = vrot.slane %v6060, %v6064
    %v6066 = vmul.f32 %v6065, %v5863
    %v6067 = vmul.f32 %v6065, %v5864
    %v6068 = vmul.f32 %v6065, %v5865
    %v6069 = vmul.f32 %v6065, %v5866
    %v6070 = vmul.f32 %v6065, %v5867
    %v6071 = vmul.f32 %v6065, %v5868
    %v6072 = vmul.f32 %v6065, %v5869
    %v6073 = vmul.f32 %v6065, %v5870
    %v6074 = vmul.f32 %v6065, %v5871
    %v6075 = vmul.f32 %v6065, %v5872
    %v6076 = vmul.f32 %v6065, %v5873
    %v6077 = vmul.f32 %v6065, %v5874
    %v6090 = vrot.slane %v6066, 2
    %v6091 = vrot.slane %v6067, 2
    %v6092 = vsel %vm985, %v6090, %v6091
    %v6093 = vrot.slane %v6068, 2
    %v6094 = vsel %vm985, %v6091, %v6093
    %v6095 = vrot.slane %v6069, 2
    %v6096 = vrot.slane %v6070, 2
    %v6097 = vsel %vm985, %v6095, %v6096
    %v6098 = vrot.slane %v6071, 2
    %v6099 = vsel %vm985, %v6096, %v6098
    %v6100 = vrot.slane %v6072, 2
    %v6101 = vrot.slane %v6073, 2
    %v6102 = vsel %vm985, %v6100, %v6101
    %v6103 = vrot.slane %v6074, 2
    %v6104 = vsel %vm985, %v6101, %v6103
    %v6105 = vrot.slane %v6075, 2
    %v6106 = vrot.slane %v6076, 2
    %v6107 = vsel %vm985, %v6105, %v6106
    %v6108 = vrot.slane %v6077, 2
    %v6109 = vsel %vm985, %v6106, %v6108
    %v6118 = vadd.f32 %v5988, %v6092
    %v6119 = vadd.f32 %v5989, %v6094
    %v6120 = vadd.f32 %v5990, %v6097
    %v6121 = vadd.f32 %v5991, %v6099
    %v6122 = vadd.f32 %v5992, %v6102
    %v6123 = vadd.f32 %v5993, %v6104
    %v6124 = vadd.f32 %v5994, %v6107
    %v6125 = vadd.f32 %v5995, %v6109
    %v6126 = vlaneseq
    %v6127 = vshrl.u32 %v6126, 7
    %v6128 = vsub.s32 0, %v6127
    %v6129 = vrot.slane %v6061, %v6128
    %v6130 = vmul.f32 %v6129, %v5876
    %v6131 = vmul.f32 %v6129, %v5877
    %v6132 = vmul.f32 %v6129, %v5878
    %v6133 = vmul.f32 %v6129, %v5879
    %v6134 = vmul.f32 %v6129, %v5880
    %v6135 = vmul.f32 %v6129, %v5881
    %v6136 = vmul.f32 %v6129, %v5882
    %v6137 = vmul.f32 %v6129, %v5883
    %v6138 = vmul.f32 %v6129, %v5884
    %v6139 = vmul.f32 %v6129, %v5885
    %v6140 = vmul.f32 %v6129, %v5886
    %v6141 = vmul.f32 %v6129, %v5887
    %v6154 = vrot.slane %v6130, 2
    %v6155 = vrot.slane %v6131, 2
    %v6156 = vsel %vm985, %v6154, %v6155
    %v6157 = vrot.slane %v6132, 2
    %v6158 = vsel %vm985, %v6155, %v6157
    %v6159 = vrot.slane %v6133, 2
    %v6160 = vrot.slane %v6134, 2
    %v6161 = vsel %vm985, %v6159, %v6160
    %v6162 = vrot.slane %v6135, 2
    %v6163 = vsel %vm985, %v6160, %v6162
    %v6164 = vrot.slane %v6136, 2
    %v6165 = vrot.slane %v6137, 2
    %v6166 = vsel %vm985, %v6164, %v6165
    %v6167 = vrot.slane %v6138, 2
    %v6168 = vsel %vm985, %v6165, %v6167
    %v6169 = vrot.slane %v6139, 2
    %v6170 = vrot.slane %v6140, 2
    %v6171 = vsel %vm985, %v6169, %v6170
    %v6172 = vrot.slane %v6141, 2
    %v6173 = vsel %vm985, %v6170, %v6172
    %v6182 = vadd.f32 %v6052, %v6156
    %v6183 = vadd.f32 %v6053, %v6158
    %v6184 = vadd.f32 %v6054, %v6161
    %v6185 = vadd.f32 %v6055, %v6163
    %v6186 = vadd.f32 %v6056, %v6166
    %v6187 = vadd.f32 %v6057, %v6168
    %v6188 = vadd.f32 %v6058, %v6171
    %v6189 = vadd.f32 %v6059, %v6173
    %v6190 = vld [vmem:[%s2 + $0x2d] sm:$0x1]
    %v6191 = vld [vmem:[%s2 + $0x5e] sm:$0x1]
    %v6192 = vlaneseq
    %v6193 = vshrl.u32 %v6192, 7
    %v6194 = vsub.s32 0, %v6193
    %v6195 = vrot.slane %v6190, %v6194
    %v6196 = vmul.f32 %v6195, %v5863
    %v6197 = vmul.f32 %v6195, %v5864
    %v6198 = vmul.f32 %v6195, %v5865
    %v6199 = vmul.f32 %v6195, %v5866
    %v6200 = vmul.f32 %v6195, %v5867
    %v6201 = vmul.f32 %v6195, %v5868
    %v6202 = vmul.f32 %v6195, %v5869
    %v6203 = vmul.f32 %v6195, %v5870
    %v6204 = vmul.f32 %v6195, %v5871
    %v6205 = vmul.f32 %v6195, %v5872
    %v6206 = vmul.f32 %v6195, %v5873
    %v6207 = vmul.f32 %v6195, %v5874
    %v6220 = vrot.slane %v6196, 3
    %v6221 = vrot.slane %v6197, 3
    %v6222 = vsel %vm1116, %v6220, %v6221
    %v6223 = vrot.slane %v6198, 3
    %v6224 = vsel %vm1116, %v6221, %v6223
    %v6225 = vrot.slane %v6199, 3
    %v6226 = vrot.slane %v6200, 3
    %v6227 = vsel %vm1116, %v6225, %v6226
    %v6228 = vrot.slane %v6201, 3
    %v6229 = vsel %vm1116, %v6226, %v6228
    %v6230 = vrot.slane %v6202, 3
    %v6231 = vrot.slane %v6203, 3
    %v6232 = vsel %vm1116, %v6230, %v6231
    %v6233 = vrot.slane %v6204, 3
    %v6234 = vsel %vm1116, %v6231, %v6233
    %v6235 = vrot.slane %v6205, 3
    %v6236 = vrot.slane %v6206, 3
    %v6237 = vsel %vm1116, %v6235, %v6236
    %v6238 = vrot.slane %v6207, 3
    %v6239 = vsel %vm1116, %v6236, %v6238
    %v6248 = vadd.f32 %v6118, %v6222
    %v6249 = vadd.f32 %v6119, %v6224
    %v6250 = vadd.f32 %v6120, %v6227
    %v6251 = vadd.f32 %v6121, %v6229
    %v6252 = vadd.f32 %v6122, %v6232
    %v6253 = vadd.f32 %v6123, %v6234
    %v6254 = vadd.f32 %v6124, %v6237
    %v6255 = vadd.f32 %v6125, %v6239
    %v6256 = vlaneseq
    %v6257 = vshrl.u32 %v6256, 7
    %v6258 = vsub.s32 0, %v6257
    %v6259 = vrot.slane %v6191, %v6258
    %v6260 = vmul.f32 %v6259, %v5876
    %v6261 = vmul.f32 %v6259, %v5877
    %v6262 = vmul.f32 %v6259, %v5878
    %v6263 = vmul.f32 %v6259, %v5879
    %v6264 = vmul.f32 %v6259, %v5880
    %v6265 = vmul.f32 %v6259, %v5881
    %v6266 = vmul.f32 %v6259, %v5882
    %v6267 = vmul.f32 %v6259, %v5883
    %v6268 = vmul.f32 %v6259, %v5884
    %v6269 = vmul.f32 %v6259, %v5885
    %v6270 = vmul.f32 %v6259, %v5886
    %v6271 = vmul.f32 %v6259, %v5887
    %v6284 = vrot.slane %v6260, 3
    %v6285 = vrot.slane %v6261, 3
    %v6286 = vsel %vm1116, %v6284, %v6285
    %v6287 = vrot.slane %v6262, 3
    %v6288 = vsel %vm1116, %v6285, %v6287
    %v6289 = vrot.slane %v6263, 3
    %v6290 = vrot.slane %v6264, 3
    %v6291 = vsel %vm1116, %v6289, %v6290
    %v6292 = vrot.slane %v6265, 3
    %v6293 = vsel %vm1116, %v6290, %v6292
    %v6294 = vrot.slane %v6266, 3
    %v6295 = vrot.slane %v6267, 3
    %v6296 = vsel %vm1116, %v6294, %v6295
    %v6297 = vrot.slane %v6268, 3
    %v6298 = vsel %vm1116, %v6295, %v6297
    %v6299 = vrot.slane %v6269, 3
    %v6300 = vrot.slane %v6270, 3
    %v6301 = vsel %vm1116, %v6299, %v6300
    %v6302 = vrot.slane %v6271, 3
    %v6303 = vsel %vm1116, %v6300, %v6302
    %v6312 = vadd.f32 %v6182, %v6286
    %v6313 = vadd.f32 %v6183, %v6288
    %v6314 = vadd.f32 %v6184, %v6291
    %v6315 = vadd.f32 %v6185, %v6293
    %v6316 = vadd.f32 %v6186, %v6296
    %v6317 = vadd.f32 %v6187, %v6298
    %v6318 = vadd.f32 %v6188, %v6301
    %v6319 = vadd.f32 %v6189, %v6303
    %v6320 = vld [vmem:[%s2 + $0x2e] sm:$0x1]
    %v6321 = vld [vmem:[%s2 + $0x5f] sm:$0x1]
    %v6322 = vlaneseq
    %v6323 = vshrl.u32 %v6322, 7
    %v6324 = vsub.s32 0, %v6323
    %v6325 = vrot.slane %v6320, %v6324
    %v6326 = vmul.f32 %v6325, %v5863
    %v6327 = vmul.f32 %v6325, %v5864
    %v6328 = vmul.f32 %v6325, %v5865
    %v6329 = vmul.f32 %v6325, %v5866
    %v6330 = vmul.f32 %v6325, %v5867
    %v6331 = vmul.f32 %v6325, %v5868
    %v6332 = vmul.f32 %v6325, %v5869
    %v6333 = vmul.f32 %v6325, %v5870
    %v6334 = vmul.f32 %v6325, %v5871
    %v6335 = vmul.f32 %v6325, %v5872
    %v6336 = vmul.f32 %v6325, %v5873
    %v6337 = vmul.f32 %v6325, %v5874
    %v6350 = vrot.slane %v6326, 4
    %v6351 = vrot.slane %v6327, 4
    %v6352 = vsel %vm1247, %v6350, %v6351
    %v6353 = vrot.slane %v6328, 4
    %v6354 = vsel %vm1247, %v6351, %v6353
    %v6355 = vrot.slane %v6329, 4
    %v6356 = vrot.slane %v6330, 4
    %v6357 = vsel %vm1247, %v6355, %v6356
    %v6358 = vrot.slane %v6331, 4
    %v6359 = vsel %vm1247, %v6356, %v6358
    %v6360 = vrot.slane %v6332, 4
    %v6361 = vrot.slane %v6333, 4
    %v6362 = vsel %vm1247, %v6360, %v6361
    %v6363 = vrot.slane %v6334, 4
    %v6364 = vsel %vm1247, %v6361, %v6363
    %v6365 = vrot.slane %v6335, 4
    %v6366 = vrot.slane %v6336, 4
    %v6367 = vsel %vm1247, %v6365, %v6366
    %v6368 = vrot.slane %v6337, 4
    %v6369 = vsel %vm1247, %v6366, %v6368
    %v6378 = vadd.f32 %v6248, %v6352
    %v6379 = vadd.f32 %v6249, %v6354
    %v6380 = vadd.f32 %v6250, %v6357
    %v6381 = vadd.f32 %v6251, %v6359
    %v6382 = vadd.f32 %v6252, %v6362
    %v6383 = vadd.f32 %v6253, %v6364
    %v6384 = vadd.f32 %v6254, %v6367
    %v6385 = vadd.f32 %v6255, %v6369
    %v6386 = vlaneseq
    %v6387 = vshrl.u32 %v6386, 7
    %v6388 = vsub.s32 0, %v6387
    %v6389 = vrot.slane %v6321, %v6388
    %v6390 = vmul.f32 %v6389, %v5876
    %v6391 = vmul.f32 %v6389, %v5877
    %v6392 = vmul.f32 %v6389, %v5878
    %v6393 = vmul.f32 %v6389, %v5879
    %v6394 = vmul.f32 %v6389, %v5880
    %v6395 = vmul.f32 %v6389, %v5881
    %v6396 = vmul.f32 %v6389, %v5882
    %v6397 = vmul.f32 %v6389, %v5883
    %v6398 = vmul.f32 %v6389, %v5884
    %v6399 = vmul.f32 %v6389, %v5885
    %v6400 = vmul.f32 %v6389, %v5886
    %v6401 = vmul.f32 %v6389, %v5887
    %v6414 = vrot.slane %v6390, 4
    %v6415 = vrot.slane %v6391, 4
    %v6416 = vsel %vm1247, %v6414, %v6415
    %v6417 = vrot.slane %v6392, 4
    %v6418 = vsel %vm1247, %v6415, %v6417
    %v6419 = vrot.slane %v6393, 4
    %v6420 = vrot.slane %v6394, 4
    %v6421 = vsel %vm1247, %v6419, %v6420
    %v6422 = vrot.slane %v6395, 4
    %v6423 = vsel %vm1247, %v6420, %v6422
    %v6424 = vrot.slane %v6396, 4
    %v6425 = vrot.slane %v6397, 4
    %v6426 = vsel %vm1247, %v6424, %v6425
    %v6427 = vrot.slane %v6398, 4
    %v6428 = vsel %vm1247, %v6425, %v6427
    %v6429 = vrot.slane %v6399, 4
    %v6430 = vrot.slane %v6400, 4
    %v6431 = vsel %vm1247, %v6429, %v6430
    %v6432 = vrot.slane %v6401, 4
    %v6433 = vsel %vm1247, %v6430, %v6432
    %v6442 = vadd.f32 %v6312, %v6416
    %v6443 = vadd.f32 %v6313, %v6418
    %v6444 = vadd.f32 %v6314, %v6421
    %v6445 = vadd.f32 %v6315, %v6423
    %v6446 = vadd.f32 %v6316, %v6426
    %v6447 = vadd.f32 %v6317, %v6428
    %v6448 = vadd.f32 %v6318, %v6431
    %v6449 = vadd.f32 %v6319, %v6433
    %v6450 = vld [vmem:[%s2 + $0x2f] sm:$0x1]
    %v6451 = vld [vmem:[%s2 + $0x60] sm:$0x1]
    %v6452 = vlaneseq
    %v6453 = vshrl.u32 %v6452, 7
    %v6454 = vsub.s32 0, %v6453
    %v6455 = vrot.slane %v6450, %v6454
    %v6456 = vmul.f32 %v6455, %v5863
    %v6457 = vmul.f32 %v6455, %v5864
    %v6458 = vmul.f32 %v6455, %v5865
    %v6459 = vmul.f32 %v6455, %v5866
    %v6460 = vmul.f32 %v6455, %v5867
    %v6461 = vmul.f32 %v6455, %v5868
    %v6462 = vmul.f32 %v6455, %v5869
    %v6463 = vmul.f32 %v6455, %v5870
    %v6464 = vmul.f32 %v6455, %v5871
    %v6465 = vmul.f32 %v6455, %v5872
    %v6466 = vmul.f32 %v6455, %v5873
    %v6467 = vmul.f32 %v6455, %v5874
    %v6480 = vrot.slane %v6456, 5
    %v6481 = vrot.slane %v6457, 5
    %v6482 = vsel %vm1378, %v6480, %v6481
    %v6483 = vrot.slane %v6458, 5
    %v6484 = vsel %vm1378, %v6481, %v6483
    %v6485 = vrot.slane %v6459, 5
    %v6486 = vrot.slane %v6460, 5
    %v6487 = vsel %vm1378, %v6485, %v6486
    %v6488 = vrot.slane %v6461, 5
    %v6489 = vsel %vm1378, %v6486, %v6488
    %v6490 = vrot.slane %v6462, 5
    %v6491 = vrot.slane %v6463, 5
    %v6492 = vsel %vm1378, %v6490, %v6491
    %v6493 = vrot.slane %v6464, 5
    %v6494 = vsel %vm1378, %v6491, %v6493
    %v6495 = vrot.slane %v6465, 5
    %v6496 = vrot.slane %v6466, 5
    %v6497 = vsel %vm1378, %v6495, %v6496
    %v6498 = vrot.slane %v6467, 5
    %v6499 = vsel %vm1378, %v6496, %v6498
    %v6508 = vadd.f32 %v6378, %v6482
    %v6509 = vadd.f32 %v6379, %v6484
    %v6510 = vadd.f32 %v6380, %v6487
    %v6511 = vadd.f32 %v6381, %v6489
    %v6512 = vadd.f32 %v6382, %v6492
    %v6513 = vadd.f32 %v6383, %v6494
    %v6514 = vadd.f32 %v6384, %v6497
    %v6515 = vadd.f32 %v6385, %v6499
    %v6516 = vlaneseq
    %v6517 = vshrl.u32 %v6516, 7
    %v6518 = vsub.s32 0, %v6517
    %v6519 = vrot.slane %v6451, %v6518
    %v6520 = vmul.f32 %v6519, %v5876
    %v6521 = vmul.f32 %v6519, %v5877
    %v6522 = vmul.f32 %v6519, %v5878
    %v6523 = vmul.f32 %v6519, %v5879
    %v6524 = vmul.f32 %v6519, %v5880
    %v6525 = vmul.f32 %v6519, %v5881
    %v6526 = vmul.f32 %v6519, %v5882
    %v6527 = vmul.f32 %v6519, %v5883
    %v6528 = vmul.f32 %v6519, %v5884
    %v6529 = vmul.f32 %v6519, %v5885
    %v6530 = vmul.f32 %v6519, %v5886
    %v6531 = vmul.f32 %v6519, %v5887
    %v6544 = vrot.slane %v6520, 5
    %v6545 = vrot.slane %v6521, 5
    %v6546 = vsel %vm1378, %v6544, %v6545
    %v6547 = vrot.slane %v6522, 5
    %v6548 = vsel %vm1378, %v6545, %v6547
    %v6549 = vrot.slane %v6523, 5
    %v6550 = vrot.slane %v6524, 5
    %v6551 = vsel %vm1378, %v6549, %v6550
    %v6552 = vrot.slane %v6525, 5
    %v6553 = vsel %vm1378, %v6550, %v6552
    %v6554 = vrot.slane %v6526, 5
    %v6555 = vrot.slane %v6527, 5
    %v6556 = vsel %vm1378, %v6554, %v6555
    %v6557 = vrot.slane %v6528, 5
    %v6558 = vsel %vm1378, %v6555, %v6557
    %v6559 = vrot.slane %v6529, 5
    %v6560 = vrot.slane %v6530, 5
    %v6561 = vsel %vm1378, %v6559, %v6560
    %v6562 = vrot.slane %v6531, 5
    %v6563 = vsel %vm1378, %v6560, %v6562
    %v6572 = vadd.f32 %v6442, %v6546
    %v6573 = vadd.f32 %v6443, %v6548
    %v6574 = vadd.f32 %v6444, %v6551
    %v6575 = vadd.f32 %v6445, %v6553
    %v6576 = vadd.f32 %v6446, %v6556
    %v6577 = vadd.f32 %v6447, %v6558
    %v6578 = vadd.f32 %v6448, %v6561
    %v6579 = vadd.f32 %v6449, %v6563
    %v6580 = vld [vmem:[%s2 + $0x30] sm:$0x1]
    %v6581 = vld [vmem:[%s2 + $0x61] sm:$0x1]
    %v6582 = vlaneseq
    %v6583 = vshrl.u32 %v6582, 7
    %v6584 = vsub.s32 0, %v6583
    %v6585 = vrot.slane %v6580, %v6584
    %v6586 = vmul.f32 %v6585, %v5863
    %v6587 = vmul.f32 %v6585, %v5864
    %v6588 = vmul.f32 %v6585, %v5865
    %v6589 = vmul.f32 %v6585, %v5866
    %v6590 = vmul.f32 %v6585, %v5867
    %v6591 = vmul.f32 %v6585, %v5868
    %v6592 = vmul.f32 %v6585, %v5869
    %v6593 = vmul.f32 %v6585, %v5870
    %v6594 = vmul.f32 %v6585, %v5871
    %v6595 = vmul.f32 %v6585, %v5872
    %v6596 = vmul.f32 %v6585, %v5873
    %v6597 = vmul.f32 %v6585, %v5874
    %v6610 = vrot.slane %v6586, 6
    %v6611 = vrot.slane %v6587, 6
    %v6612 = vsel %vm1509, %v6610, %v6611
    %v6613 = vrot.slane %v6588, 6
    %v6614 = vsel %vm1509, %v6611, %v6613
    %v6615 = vrot.slane %v6589, 6
    %v6616 = vrot.slane %v6590, 6
    %v6617 = vsel %vm1509, %v6615, %v6616
    %v6618 = vrot.slane %v6591, 6
    %v6619 = vsel %vm1509, %v6616, %v6618
    %v6620 = vrot.slane %v6592, 6
    %v6621 = vrot.slane %v6593, 6
    %v6622 = vsel %vm1509, %v6620, %v6621
    %v6623 = vrot.slane %v6594, 6
    %v6624 = vsel %vm1509, %v6621, %v6623
    %v6625 = vrot.slane %v6595, 6
    %v6626 = vrot.slane %v6596, 6
    %v6627 = vsel %vm1509, %v6625, %v6626
    %v6628 = vrot.slane %v6597, 6
    %v6629 = vsel %vm1509, %v6626, %v6628
    %v6638 = vadd.f32 %v6508, %v6612
    %v6639 = vadd.f32 %v6509, %v6614
    %v6640 = vadd.f32 %v6510, %v6617
    %v6641 = vadd.f32 %v6511, %v6619
    %v6642 = vadd.f32 %v6512, %v6622
    %v6643 = vadd.f32 %v6513, %v6624
    %v6644 = vadd.f32 %v6514, %v6627
    %v6645 = vadd.f32 %v6515, %v6629
    %v6646 = vlaneseq
    %v6647 = vshrl.u32 %v6646, 7
    %v6648 = vsub.s32 0, %v6647
    %v6649 = vrot.slane %v6581, %v6648
    %v6650 = vmul.f32 %v6649, %v5876
    %v6651 = vmul.f32 %v6649, %v5877
    %v6652 = vmul.f32 %v6649, %v5878
    %v6653 = vmul.f32 %v6649, %v5879
    %v6654 = vmul.f32 %v6649, %v5880
    %v6655 = vmul.f32 %v6649, %v5881
    %v6656 = vmul.f32 %v6649, %v5882
    %v6657 = vmul.f32 %v6649, %v5883
    %v6658 = vmul.f32 %v6649, %v5884
    %v6659 = vmul.f32 %v6649, %v5885
    %v6660 = vmul.f32 %v6649, %v5886
    %v6661 = vmul.f32 %v6649, %v5887
    %v6674 = vrot.slane %v6650, 6
    %v6675 = vrot.slane %v6651, 6
    %v6676 = vsel %vm1509, %v6674, %v6675
    %v6677 = vrot.slane %v6652, 6
    %v6678 = vsel %vm1509, %v6675, %v6677
    %v6679 = vrot.slane %v6653, 6
    %v6680 = vrot.slane %v6654, 6
    %v6681 = vsel %vm1509, %v6679, %v6680
    %v6682 = vrot.slane %v6655, 6
    %v6683 = vsel %vm1509, %v6680, %v6682
    %v6684 = vrot.slane %v6656, 6
    %v6685 = vrot.slane %v6657, 6
    %v6686 = vsel %vm1509, %v6684, %v6685
    %v6687 = vrot.slane %v6658, 6
    %v6688 = vsel %vm1509, %v6685, %v6687
    %v6689 = vrot.slane %v6659, 6
    %v6690 = vrot.slane %v6660, 6
    %v6691 = vsel %vm1509, %v6689, %v6690
    %v6692 = vrot.slane %v6661, 6
    %v6693 = vsel %vm1509, %v6690, %v6692
    %v6702 = vadd.f32 %v6572, %v6676
    %v6703 = vadd.f32 %v6573, %v6678
    %v6704 = vadd.f32 %v6574, %v6681
    %v6705 = vadd.f32 %v6575, %v6683
    %v6706 = vadd.f32 %v6576, %v6686
    %v6707 = vadd.f32 %v6577, %v6688
    %v6708 = vadd.f32 %v6578, %v6691
    %v6709 = vadd.f32 %v6579, %v6693
    %v6710 = vadd.f32 %v6638, %v6702
    %v6711 = vadd.f32 %v6639, %v6703
    %v6712 = vadd.f32 %v6640, %v6704
    %v6713 = vadd.f32 %v6641, %v6705
    %v6714 = vadd.f32 %v6642, %v6706
    %v6715 = vadd.f32 %v6643, %v6707
    %v6716 = vadd.f32 %v6644, %v6708
    %v6717 = vadd.f32 %v6645, %v6709
    %v6719 = vlaneseq
    %v6720 = vshrl.u32 %v6719, 7
    %v6721 = vsub.s32 0, %v6720
    %v6722 = vrot.slane %v747, %v6721
    %v6724 = vadd.f32 %v6710, %v6722
    %v6725 = vadd.f32 %v6711, %v6722
    %v6726 = vadd.f32 %v6712, %v6722
    %v6727 = vadd.f32 %v6713, %v6722
    %v6728 = vadd.f32 %v6714, %v6722
    %v6729 = vadd.f32 %v6715, %v6722
    %v6730 = vadd.f32 %v6716, %v6722
    %v6731 = vadd.f32 %v6717, %v6722
    %v6732 = vxor.u32 %v6724, 2147483648
    %v6733 = vxor.u32 %v6725, 2147483648
    %v6734 = vxor.u32 %v6726, 2147483648
    %v6735 = vxor.u32 %v6727, 2147483648
    %v6736 = vxor.u32 %v6728, 2147483648
    %v6737 = vxor.u32 %v6729, 2147483648
    %v6738 = vxor.u32 %v6730, 2147483648
    %v6739 = vxor.u32 %v6731, 2147483648
    %v6740 = vmul.f32 %v6732, 1.442695
    %v6741 = vpow.pop %v6740
    %v6742 = vmul.f32 %v6733, 1.442695
    %v6743 = vpow.pop %v6742
    %v6744 = vmul.f32 %v6734, 1.442695
    %v6745 = vpow.pop %v6744
    %v6746 = vmul.f32 %v6735, 1.442695
    %v6747 = vpow.pop %v6746
    %v6748 = vmul.f32 %v6736, 1.442695
    %v6749 = vpow.pop %v6748
    %v6750 = vmul.f32 %v6737, 1.442695
    %v6751 = vpow.pop %v6750
    %v6752 = vmul.f32 %v6738, 1.442695
    %v6753 = vpow.pop %v6752
    %v6754 = vmul.f32 %v6739, 1.442695
    %v6755 = vpow.pop %v6754
    %v6756 = vadd.f32 %v6741, 1.0
    %v6757 = vadd.f32 %v6743, 1.0
    %v6758 = vadd.f32 %v6745, 1.0
    %v6759 = vadd.f32 %v6747, 1.0
    %v6760 = vadd.f32 %v6749, 1.0
    %v6761 = vadd.f32 %v6751, 1.0
    %v6762 = vadd.f32 %v6753, 1.0
    %v6763 = vadd.f32 %v6755, 1.0
    %v6764 = vrcp.pop %v6756
    %v6765 = vmul.f32 1.0, %v6764
    %v6766 = vrcp.pop %v6757
    %v6767 = vmul.f32 1.0, %v6766
    %v6768 = vrcp.pop %v6758
    %v6769 = vmul.f32 1.0, %v6768
    %v6770 = vrcp.pop %v6759
    %v6771 = vmul.f32 1.0, %v6770
    %v6772 = vrcp.pop %v6760
    %v6773 = vmul.f32 1.0, %v6772
    %v6774 = vrcp.pop %v6761
    %v6775 = vmul.f32 1.0, %v6774
    %v6776 = vrcp.pop %v6762
    %v6777 = vmul.f32 1.0, %v6776
    %v6778 = vrcp.pop %v6763
    %v6779 = vmul.f32 1.0, %v6778
    %s6780 = smul.u32 %s754, 16
    %s6781 = scalar_lea.vmem %s4, %s6780
    %6782 = vst.msk [vmem:[%s6781] sm:$0xff] %vm50, %v6765
    %6783 = vst.msk [vmem:[%s6781 + $0x8] sm:$0xff] %vm50, %v6767
    %6784 = vst.msk [vmem:[%s6781 + $0x10] sm:$0xff] %vm50, %v6769
    %6785 = vst.msk [vmem:[%s6781 + $0x18] sm:$0xff] %vm50, %v6771
    %6786 = vst.msk [vmem:[%s6781 + $0x20] sm:$0xff] %vm50, %v6773
    %6787 = vst.msk [vmem:[%s6781 + $0x28] sm:$0xff] %vm50, %v6775
    %6788 = vst.msk [vmem:[%s6781 + $0x30] sm:$0xff] %vm50, %v6777
    %6789 = vst.msk [vmem:[%s6781 + $0x38] sm:$0xff] %vm50, %v6779
  $region22: #{tpu_custom_call.1} parent=0 // loop_footer
    %s753 = sadd.s32 1, %s749
  $region23: #{tpu_custom_call.1} parent=0 // loop_footer_branch
    %748 = sbr.rel target = $region19
  $region24: #{tpu_custom_call.1} parent=0 // loop_exit
    _
  // Predicated region
  $region25: #{tpu_custom_call.1} parent=0 // pred_check
    _
  $region26: #{tpu_custom_call.1} parent=0 // pred_check_branch
    %6791 = sbr.rel (0) target = $region28
  $region27: #{tpu_custom_call.1} parent=0 // pred_region
    _
  $region28: #{tpu_custom_call.1} parent=0 // pred_fallthru
    _
  // Predicated region
  $region29: #{tpu_custom_call.1} parent=0 // pred_check
    _
  $region30: #{tpu_custom_call.1} parent=0 // pred_check_branch
    %6793 = sbr.rel (0) target = $region32
  $region31: #{tpu_custom_call.1} parent=0 // pred_region
    _
  $region32: #{tpu_custom_call.1} parent=0 // pred_fallthru
    _

</llo_original>
